<compile_context>
chip_gen: v7x
topology: tpu7x:2x2x1
jax: 0.10.0
libtpu: 0.0.40
codegen_flags: <defaults>
</compile_context>

<pallas_src>
from functools import partial

import jax
import jax.numpy as jnp
from jax.experimental import pallas as pl
from jax.experimental.pallas import tpu as pltpu


# ------------------------------ fused kernel -------------------------------

def _cifar10_fused_kernel(lhs1_ref, w1_ref, b1_ref, w2_ref, b2_ref,
                          wf1_hbm, bf1_ref, wf2_ref, bf2_ref, o_ref,
                          wf1_vmem, wf1_sem, *, B):
    """conv1+pool -> conv2+pool -> fc1+ReLU -> fc2, all VMEM-resident."""
    f32 = jnp.float32
    C2, C3 = 32, 64            # conv1 / conv2 output channels
    H1, Wq1 = 32, 8            # conv1 out rows / columns per mod-4 class
    Hp1 = 16                   # conv1 pooled rows
    H2, Wp2, Hp2 = 16, 8, 8    # conv2 out rows / pooled cols / pooled rows

    # -- start fc1 weight prefetch; it is waited on only right before fc1 ---
    wf1_cp = pltpu.make_async_copy(wf1_hbm, wf1_vmem, wf1_sem)
    wf1_cp.start()

    def pool_rows_bias_relu(z, b_ref, n_rows, half, c):
        # z rows are (b, h, w'); h = 2*hp + dh -> max over dh.
        z = z.reshape(n_rows, 2 * half, c)
        z = jnp.maximum(z[:, :half, :], z[:, half:, :])
        return jnp.maximum(z + b_ref[...], 0.0)   # bias+ReLU commute with max

    # ---------------- conv1: one (B*32*32, 27) x (27, 32) MXU matmul --------
    z1 = jnp.dot(lhs1_ref[...], w1_ref[...], preferred_element_type=f32)
    z1 = z1.reshape(4, B * H1 * Wq1, C2)           # blocks: out col w == q (mod 4)
    # column pool: q=0/1 -> even pooled columns, q=2/3 -> odd pooled columns
    y1e = pool_rows_bias_relu(jnp.maximum(z1[0], z1[1]), b1_ref, B * Hp1, Wq1, C2)
    y1o = pool_rows_bias_relu(jnp.maximum(z1[2], z1[3]), b1_ref, B * Hp1, Wq1, C2)
    y1e = y1e.reshape(B, Hp1, Wq1, C2)             # pooled cols 0,2,...,14
    y1o = y1o.reshape(B, Hp1, Wq1, C2)             # pooled cols 1,3,...,15

    # ---------------- conv2: in-VMEM zero-pad + column-parity split ---------
    zrow = jnp.zeros((B, 1, Wq1, C2), f32)
    zcol = jnp.zeros((B, Hp1 + 2, 1, C2), f32)
    y1e_p = jnp.concatenate([zrow, y1e, zrow], axis=1)   # (B, 18, 8, 32)
    y1o_p = jnp.concatenate([zrow, y1o, zrow], axis=1)
    xe2 = jnp.concatenate([zcol, y1o_p], axis=2)         # even padded cols 0..16
    xo2 = jnp.concatenate([y1e_p, zcol], axis=2)         # odd  padded cols 1..17

    def conv2_pre(dw):
        # pre-activation at output columns w = 2*wp + dw, all rows.
        rows = B * H2 * Wp2
        slabs = []
        for i in range(3):
            for j in range(3):
                p = dw + j                       # padded column = 2*wp + p
                src = xe2 if p % 2 == 0 else xo2
                m = p // 2
                slabs.append(src[:, i:i + H2, m:m + Wp2, :].reshape(rows, C2))
        lhs = jnp.concatenate(slabs, axis=-1).astype(jnp.bfloat16)  # (rows, 288)
        return jnp.dot(lhs, w2_ref[...], preferred_element_type=f32)

    z2 = jnp.maximum(conv2_pre(0), conv2_pre(1))               # (B*16*8, 64)
    y2 = pool_rows_bias_relu(z2, b2_ref, B * Hp2, Wp2, C3)     # (B*8, 8, 64)
    y2 = y2.reshape(B, Hp2, Wp2, C3)

    # ---------------- flatten in (h, w, c) order (fc1 rows pre-permuted) ----
    pieces = [y2[:, hp, wp, :] for hp in range(Hp2) for wp in range(Wp2)]
    x_fc = jnp.concatenate(pieces, axis=-1).astype(jnp.bfloat16)   # (B, 4096)

    # ---------------- fc1 + ReLU + fc2 --------------------------------------
    wf1_cp.wait()                               # fc1 weights now VMEM-resident
    h = jnp.dot(x_fc, wf1_vmem[...], preferred_element_type=f32)
    h = jnp.maximum(h + bf1_ref[...], 0.0)
    y = jnp.dot(h, wf2_ref[...], preferred_element_type=f32)
    o_ref[...] = (y + bf2_ref[...]).astype(o_ref.dtype)


# ------------------------------ wrapper -------------------------------------

_VMEM = pl.BlockSpec(memory_space=pltpu.MemorySpace.VMEM)
_HBM_ANY = pl.BlockSpec(memory_space=pl.ANY)


def _conv1_im2col(x_nhwc):
    """conv1 im2col LHS, grouped by output-column (mod 4) class.

    Returns (B*H*W, 27): four stacked row blocks q = 0..3; block q holds rows
    (b, h, wq) for output columns w = 4*wq + q, K ordered (tap_i, tap_j, cin).
    Runs as a few tiny XLA ops on the <100 KB network input.
    """
    B, H, W, C = x_nhwc.shape
    xp = jnp.pad(x_nhwc, ((0, 0), (1, 1), (1, 1), (0, 0)))
    blocks = []
    for q in range(4):
        taps = [xp[:, i:i + H, q + j:q + j + W:4, :]
                for i in range(3) for j in range(3)]
        blk = jnp.concatenate(taps, axis=-1)           # (B, H, W//4, 27)
        blocks.append(blk.reshape(B * H * (W // 4), 9 * C))
    return jnp.concatenate(blocks, axis=0)


def cifar10_cnn_forward(x_nchw, kp):
    B = x_nchw.shape[0]
    x = jnp.transpose(x_nchw, (0, 2, 3, 1))            # NCHW -> NHWC
    lhs1 = _conv1_im2col(x).astype(jnp.bfloat16)       # (B*1024, 27)
    kernel = partial(_cifar10_fused_kernel, B=B)
    return pl.pallas_call(
        kernel,
        out_shape=jax.ShapeDtypeStruct((B, 10), jnp.float32),
        in_specs=[_VMEM, _VMEM, _VMEM, _VMEM, _VMEM,    # lhs1, w1, b1, w2, b2
                  _HBM_ANY,                             # wf1: async-prefetched
                  _VMEM, _VMEM, _VMEM],                 # bf1, wf2, bf2
        out_specs=_VMEM,
        scratch_shapes=[
            pltpu.VMEM((64 * 8 * 8, 512), jnp.bfloat16),   # fc1 weight buffer
            pltpu.SemaphoreType.DMA,
        ],
        compiler_params=pltpu.CompilerParams(
            vmem_limit_bytes=32 * 1024 * 1024),
    )(lhs1, kp["w1"], kp["b1"], kp["w2"], kp["b2"],
      kp["wf1"], kp["bf1"], kp["wf2"], kp["bf2"])


# ------------------------- params & one-time layout --------------------------

def init_params(key):
    """Torch-layout parameters (also used by the pure-JAX reference)."""
    ks = jax.random.split(key, 8)

    def u(k, shape, fan_in):
        bound = 1.0 / float(fan_in) ** 0.5
        return jax.random.uniform(k, shape, jnp.float32, -bound, bound)

    return dict(
        w1=u(ks[0], (32, 3, 3, 3), 3 * 9),   b1=u(ks[1], (32,), 3 * 9),
        w2=u(ks[2], (64, 32, 3, 3), 32 * 9), b2=u(ks[3], (64,), 32 * 9),
        wf1=u(ks[4], (512, 64 * 8 * 8), 64 * 8 * 8),
        bf1=u(ks[5], (512,), 64 * 8 * 8),
        wf2=u(ks[6], (10, 512), 512),        bf2=u(ks[7], (10,), 512),
    )


def prepare_kernel_params(p):
    """One-time weight re-layout; runs once, outside the jitted forward."""
    def conv_mat(w_oihw):
        cout, cin = w_oihw.shape[0], w_oihw.shape[1]
        # (O,I,KH,KW) -> (KH,KW,I,O) -> (9*I, O); row = (i*3+j)*I + c
        return (jnp.transpose(w_oihw, (2, 3, 1, 0))
                .reshape(9 * cin, cout).astype(jnp.bfloat16))

    # fc1 rows permuted to consume the (h, w, c) NHWC flatten directly, which
    # reproduces torch's NCHW x.view(-1, 64*8*8) semantics.
    wf1 = p["wf1"].reshape(512, 64, 8, 8)                 # [n, c, h, w]
    wf1 = jnp.transpose(wf1, (2, 3, 1, 0)).reshape(64 * 8 * 8, 512)

    return dict(
        w1=conv_mat(p["w1"]), b1=p["b1"].reshape(1, -1),
        w2=conv_mat(p["w2"]), b2=p["b2"].reshape(1, -1),
        wf1=wf1.astype(jnp.bfloat16), bf1=p["bf1"].reshape(1, -1),
        wf2=p["wf2"].T,               bf2=p["bf2"].reshape(1, -1),
    )


# ----------------------------- pure-JAX reference ----------------------------

def reference_forward(x_nchw, p):
    dn1 = jax.lax.conv_dimension_numbers(
        x_nchw.shape, p["w1"].shape, ("NCHW", "OIHW", "NCHW"))
    y = jax.lax.conv_general_dilated(
        x_nchw, p["w1"], (1, 1), ((1, 1), (1, 1)), dimension_numbers=dn1)
    y = jnp.maximum(y + p["b1"][None, :, None, None], 0.0)
    y = jax.lax.reduce_window(y, -jnp.inf, jax.lax.max,
                              (1, 1, 2, 2), (1, 1, 2, 2), "VALID")
    dn2 = jax.lax.conv_dimension_numbers(
        y.shape, p["w2"].shape, ("NCHW", "OIHW", "NCHW"))
    y = jax.lax.conv_general_dilated(
        y, p["w2"], (1, 1), ((1, 1), (1, 1)), dimension_numbers=dn2)
    y = jnp.maximum(y + p["b2"][None, :, None, None], 0.0)
    y = jax.lax.reduce_window(y, -jnp.inf, jax.lax.max,
                              (1, 1, 2, 2), (1, 1, 2, 2), "VALID")
    y = y.reshape(y.shape[0], -1)
    y = jnp.maximum(y @ p["wf1"].T + p["bf1"], 0.0)
    return y @ p["wf2"].T + p["bf2"]


# ----------------------------------- main ------------------------------------

if __name__ == "__main__":
    key = jax.random.PRNGKey(0)
    k_x, k_p = jax.random.split(key)
    # CIFAR-10 geometry is required by fc1 (64*8*8): B=2, C=3, H=W=32.
    x = jax.random.normal(k_x, (2, 3, 32, 32), jnp.float32)
    params = init_params(k_p)
    kparams = prepare_kernel_params(params)   # one-time layout prep

    out = jax.block_until_ready(jax.jit(cifar10_cnn_forward)(x, kparams))
    assert out.shape == (2, 10), out.shape

    ref = jax.block_until_ready(jax.jit(reference_forward)(x, params))
    assert bool(jnp.all(jnp.isfinite(out)))
    assert bool(jnp.allclose(out, ref, rtol=5e-2, atol=5e-2)), (out, ref)

    print("KERNEL_OK")
</pallas_src>

<mosaic_0001>
module attributes {stable_mosaic.version = 11 : i64} {
  func.func @_cifar10_fused_kernel(%arg0: memref<2048x27xbf16, #tpu.memory_space<vmem>>, %arg1: memref<27x32xbf16, #tpu.memory_space<vmem>>, %arg2: memref<1x32xf32, #tpu.memory_space<vmem>>, %arg3: memref<288x64xbf16, #tpu.memory_space<vmem>>, %arg4: memref<1x64xf32, #tpu.memory_space<vmem>>, %arg5: memref<4096x512xbf16, #tpu.memory_space<any>>, %arg6: memref<1x512xf32, #tpu.memory_space<vmem>>, %arg7: memref<512x10xf32, #tpu.memory_space<vmem>>, %arg8: memref<1x10xf32, #tpu.memory_space<vmem>>, %arg9: memref<2x10xf32, #tpu.memory_space<vmem>>, %arg10: memref<4096x512xbf16, #tpu.memory_space<vmem>>, %arg11: memref<!tpu.dma_semaphore, #tpu.memory_space<semaphore_mem>>) attributes {dimension_semantics = [], scalar_prefetch = 0 : i64, scratch_operands = 2 : i64, tpu.core_type = #tpu.core_type<tc>} {
    tpu.enqueue_dma source(%arg5 : memref<4096x512xbf16, #tpu.memory_space<any>>) target(%arg10 : memref<4096x512xbf16, #tpu.memory_space<vmem>>) target_semaphore(%arg11 : memref<!tpu.dma_semaphore, #tpu.memory_space<semaphore_mem>>)
    %c0 = arith.constant 0 : index
    %c0_0 = arith.constant 0 : index
    %0 = vector.load %arg0[%c0, %c0_0] : memref<2048x27xbf16, #tpu.memory_space<vmem>>, vector<2048x27xbf16>
    %c0_1 = arith.constant 0 : index
    %c0_2 = arith.constant 0 : index
    %1 = vector.load %arg1[%c0_1, %c0_2] : memref<27x32xbf16, #tpu.memory_space<vmem>>, vector<27x32xbf16>
    %cst = arith.constant dense<0.000000e+00> : vector<2048x32xf32>
    %2 = tpu.matmul %0, %1, %cst {dimension_numbers = #tpu.dot_dimension_numbers<[1], [0], [0], [1], [0, 0, 1, 1], [], []>} : vector<2048x27xbf16>, vector<27x32xbf16>, vector<2048x32xf32> -> vector<2048x32xf32>
    %3 = vector.shape_cast %2 : vector<2048x32xf32> to vector<4x512x32xf32>
    %4 = vector.extract_strided_slice %3 {offsets = [0, 0, 0], sizes = [1, 512, 32], strides = [1, 1, 1]} : vector<4x512x32xf32> to vector<1x512x32xf32>
    %5 = vector.shape_cast %4 : vector<1x512x32xf32> to vector<512x32xf32>
    %6 = vector.extract_strided_slice %3 {offsets = [1, 0, 0], sizes = [1, 512, 32], strides = [1, 1, 1]} : vector<4x512x32xf32> to vector<1x512x32xf32>
    %7 = vector.shape_cast %6 : vector<1x512x32xf32> to vector<512x32xf32>
    %8 = arith.maximumf %5, %7 : vector<512x32xf32>
    %9 = vector.shape_cast %8 : vector<512x32xf32> to vector<32x16x32xf32>
    %10 = vector.extract_strided_slice %9 {offsets = [0, 0, 0], sizes = [32, 8, 32], strides = [1, 1, 1]} : vector<32x16x32xf32> to vector<32x8x32xf32>
    %11 = vector.extract_strided_slice %9 {offsets = [0, 8, 0], sizes = [32, 8, 32], strides = [1, 1, 1]} : vector<32x16x32xf32> to vector<32x8x32xf32>
    %12 = arith.maximumf %10, %11 : vector<32x8x32xf32>
    %c0_3 = arith.constant 0 : index
    %c0_4 = arith.constant 0 : index
    %13 = vector.load %arg2[%c0_3, %c0_4] : memref<1x32xf32, #tpu.memory_space<vmem>>, vector<1x32xf32>
    %14 = vector.shape_cast %13 : vector<1x32xf32> to vector<1x1x32xf32>
    %15 = vector.broadcast %14 : vector<1x1x32xf32> to vector<32x8x32xf32>
    %16 = arith.addf %12, %15 : vector<32x8x32xf32>
    %cst_5 = arith.constant 0.000000e+00 : f32
    %17 = vector.broadcast %cst_5 : f32 to vector<32x8x32xf32>
    %18 = arith.maximumf %16, %17 : vector<32x8x32xf32>
    %19 = vector.extract_strided_slice %3 {offsets = [2, 0, 0], sizes = [1, 512, 32], strides = [1, 1, 1]} : vector<4x512x32xf32> to vector<1x512x32xf32>
    %20 = vector.shape_cast %19 : vector<1x512x32xf32> to vector<512x32xf32>
    %21 = vector.extract_strided_slice %3 {offsets = [3, 0, 0], sizes = [1, 512, 32], strides = [1, 1, 1]} : vector<4x512x32xf32> to vector<1x512x32xf32>
    %22 = vector.shape_cast %21 : vector<1x512x32xf32> to vector<512x32xf32>
    %23 = arith.maximumf %20, %22 : vector<512x32xf32>
    %24 = vector.shape_cast %23 : vector<512x32xf32> to vector<32x16x32xf32>
    %25 = vector.extract_strided_slice %24 {offsets = [0, 0, 0], sizes = [32, 8, 32], strides = [1, 1, 1]} : vector<32x16x32xf32> to vector<32x8x32xf32>
    %26 = vector.extract_strided_slice %24 {offsets = [0, 8, 0], sizes = [32, 8, 32], strides = [1, 1, 1]} : vector<32x16x32xf32> to vector<32x8x32xf32>
    %27 = arith.maximumf %25, %26 : vector<32x8x32xf32>
    %c0_6 = arith.constant 0 : index
    %c0_7 = arith.constant 0 : index
    %28 = vector.load %arg2[%c0_6, %c0_7] : memref<1x32xf32, #tpu.memory_space<vmem>>, vector<1x32xf32>
    %29 = vector.shape_cast %28 : vector<1x32xf32> to vector<1x1x32xf32>
    %30 = vector.broadcast %29 : vector<1x1x32xf32> to vector<32x8x32xf32>
    %31 = arith.addf %27, %30 : vector<32x8x32xf32>
    %cst_8 = arith.constant 0.000000e+00 : f32
    %32 = vector.broadcast %cst_8 : f32 to vector<32x8x32xf32>
    %33 = arith.maximumf %31, %32 : vector<32x8x32xf32>
    %34 = vector.shape_cast %18 : vector<32x8x32xf32> to vector<2x16x8x32xf32>
    %35 = vector.shape_cast %33 : vector<32x8x32xf32> to vector<2x16x8x32xf32>
    %cst_9 = arith.constant 0.000000e+00 : f32
    %36 = vector.broadcast %cst_9 : f32 to vector<2x1x8x32xf32>
    %cst_10 = arith.constant 0.000000e+00 : f32
    %37 = vector.broadcast %cst_10 : f32 to vector<2x18x1x32xf32>
    %38 = tpu.concatenate %36, %34, %36 in 1 : vector<2x1x8x32xf32>, vector<2x16x8x32xf32>, vector<2x1x8x32xf32> -> vector<2x18x8x32xf32>
    %39 = tpu.concatenate %36, %35, %36 in 1 : vector<2x1x8x32xf32>, vector<2x16x8x32xf32>, vector<2x1x8x32xf32> -> vector<2x18x8x32xf32>
    %40 = tpu.concatenate %37, %39 in 2 : vector<2x18x1x32xf32>, vector<2x18x8x32xf32> -> vector<2x18x9x32xf32>
    %41 = tpu.concatenate %38, %37 in 2 : vector<2x18x8x32xf32>, vector<2x18x1x32xf32> -> vector<2x18x9x32xf32>
    %42 = vector.extract_strided_slice %40 {offsets = [0, 0, 0, 0], sizes = [2, 16, 8, 32], strides = [1, 1, 1, 1]} : vector<2x18x9x32xf32> to vector<2x16x8x32xf32>
    %43 = vector.shape_cast %42 : vector<2x16x8x32xf32> to vector<256x32xf32>
    %44 = vector.extract_strided_slice %41 {offsets = [0, 0, 0, 0], sizes = [2, 16, 8, 32], strides = [1, 1, 1, 1]} : vector<2x18x9x32xf32> to vector<2x16x8x32xf32>
    %45 = vector.shape_cast %44 : vector<2x16x8x32xf32> to vector<256x32xf32>
    %46 = vector.extract_strided_slice %40 {offsets = [0, 0, 1, 0], sizes = [2, 16, 8, 32], strides = [1, 1, 1, 1]} : vector<2x18x9x32xf32> to vector<2x16x8x32xf32>
    %47 = vector.shape_cast %46 : vector<2x16x8x32xf32> to vector<256x32xf32>
    %48 = vector.extract_strided_slice %40 {offsets = [0, 1, 0, 0], sizes = [2, 16, 8, 32], strides = [1, 1, 1, 1]} : vector<2x18x9x32xf32> to vector<2x16x8x32xf32>
    %49 = vector.shape_cast %48 : vector<2x16x8x32xf32> to vector<256x32xf32>
    %50 = vector.extract_strided_slice %41 {offsets = [0, 1, 0, 0], sizes = [2, 16, 8, 32], strides = [1, 1, 1, 1]} : vector<2x18x9x32xf32> to vector<2x16x8x32xf32>
    %51 = vector.shape_cast %50 : vector<2x16x8x32xf32> to vector<256x32xf32>
    %52 = vector.extract_strided_slice %40 {offsets = [0, 1, 1, 0], sizes = [2, 16, 8, 32], strides = [1, 1, 1, 1]} : vector<2x18x9x32xf32> to vector<2x16x8x32xf32>
    %53 = vector.shape_cast %52 : vector<2x16x8x32xf32> to vector<256x32xf32>
    %54 = vector.extract_strided_slice %40 {offsets = [0, 2, 0, 0], sizes = [2, 16, 8, 32], strides = [1, 1, 1, 1]} : vector<2x18x9x32xf32> to vector<2x16x8x32xf32>
    %55 = vector.shape_cast %54 : vector<2x16x8x32xf32> to vector<256x32xf32>
    %56 = vector.extract_strided_slice %41 {offsets = [0, 2, 0, 0], sizes = [2, 16, 8, 32], strides = [1, 1, 1, 1]} : vector<2x18x9x32xf32> to vector<2x16x8x32xf32>
    %57 = vector.shape_cast %56 : vector<2x16x8x32xf32> to vector<256x32xf32>
    %58 = vector.extract_strided_slice %40 {offsets = [0, 2, 1, 0], sizes = [2, 16, 8, 32], strides = [1, 1, 1, 1]} : vector<2x18x9x32xf32> to vector<2x16x8x32xf32>
    %59 = vector.shape_cast %58 : vector<2x16x8x32xf32> to vector<256x32xf32>
    %60 = tpu.concatenate %43, %45, %47, %49, %51, %53, %55, %57, %59 in 1 : vector<256x32xf32>, vector<256x32xf32>, vector<256x32xf32>, vector<256x32xf32>, vector<256x32xf32>, vector<256x32xf32>, vector<256x32xf32>, vector<256x32xf32>, vector<256x32xf32> -> vector<256x288xf32>
    %61 = arith.truncf %60 : vector<256x288xf32> to vector<256x288xbf16>
    %c0_11 = arith.constant 0 : index
    %c0_12 = arith.constant 0 : index
    %62 = vector.load %arg3[%c0_11, %c0_12] : memref<288x64xbf16, #tpu.memory_space<vmem>>, vector<288x64xbf16>
    %cst_13 = arith.constant dense<0.000000e+00> : vector<256x64xf32>
    %63 = tpu.matmul %61, %62, %cst_13 {dimension_numbers = #tpu.dot_dimension_numbers<[1], [0], [0], [1], [0, 0, 1, 1], [], []>} : vector<256x288xbf16>, vector<288x64xbf16>, vector<256x64xf32> -> vector<256x64xf32>
    %64 = vector.extract_strided_slice %41 {offsets = [0, 0, 0, 0], sizes = [2, 16, 8, 32], strides = [1, 1, 1, 1]} : vector<2x18x9x32xf32> to vector<2x16x8x32xf32>
    %65 = vector.shape_cast %64 : vector<2x16x8x32xf32> to vector<256x32xf32>
    %66 = vector.extract_strided_slice %40 {offsets = [0, 0, 1, 0], sizes = [2, 16, 8, 32], strides = [1, 1, 1, 1]} : vector<2x18x9x32xf32> to vector<2x16x8x32xf32>
    %67 = vector.shape_cast %66 : vector<2x16x8x32xf32> to vector<256x32xf32>
    %68 = vector.extract_strided_slice %41 {offsets = [0, 0, 1, 0], sizes = [2, 16, 8, 32], strides = [1, 1, 1, 1]} : vector<2x18x9x32xf32> to vector<2x16x8x32xf32>
    %69 = vector.shape_cast %68 : vector<2x16x8x32xf32> to vector<256x32xf32>
    %70 = vector.extract_strided_slice %41 {offsets = [0, 1, 0, 0], sizes = [2, 16, 8, 32], strides = [1, 1, 1, 1]} : vector<2x18x9x32xf32> to vector<2x16x8x32xf32>
    %71 = vector.shape_cast %70 : vector<2x16x8x32xf32> to vector<256x32xf32>
    %72 = vector.extract_strided_slice %40 {offsets = [0, 1, 1, 0], sizes = [2, 16, 8, 32], strides = [1, 1, 1, 1]} : vector<2x18x9x32xf32> to vector<2x16x8x32xf32>
    %73 = vector.shape_cast %72 : vector<2x16x8x32xf32> to vector<256x32xf32>
    %74 = vector.extract_strided_slice %41 {offsets = [0, 1, 1, 0], sizes = [2, 16, 8, 32], strides = [1, 1, 1, 1]} : vector<2x18x9x32xf32> to vector<2x16x8x32xf32>
    %75 = vector.shape_cast %74 : vector<2x16x8x32xf32> to vector<256x32xf32>
    %76 = vector.extract_strided_slice %41 {offsets = [0, 2, 0, 0], sizes = [2, 16, 8, 32], strides = [1, 1, 1, 1]} : vector<2x18x9x32xf32> to vector<2x16x8x32xf32>
    %77 = vector.shape_cast %76 : vector<2x16x8x32xf32> to vector<256x32xf32>
    %78 = vector.extract_strided_slice %40 {offsets = [0, 2, 1, 0], sizes = [2, 16, 8, 32], strides = [1, 1, 1, 1]} : vector<2x18x9x32xf32> to vector<2x16x8x32xf32>
    %79 = vector.shape_cast %78 : vector<2x16x8x32xf32> to vector<256x32xf32>
    %80 = vector.extract_strided_slice %41 {offsets = [0, 2, 1, 0], sizes = [2, 16, 8, 32], strides = [1, 1, 1, 1]} : vector<2x18x9x32xf32> to vector<2x16x8x32xf32>
    %81 = vector.shape_cast %80 : vector<2x16x8x32xf32> to vector<256x32xf32>
    %82 = tpu.concatenate %65, %67, %69, %71, %73, %75, %77, %79, %81 in 1 : vector<256x32xf32>, vector<256x32xf32>, vector<256x32xf32>, vector<256x32xf32>, vector<256x32xf32>, vector<256x32xf32>, vector<256x32xf32>, vector<256x32xf32>, vector<256x32xf32> -> vector<256x288xf32>
    %83 = arith.truncf %82 : vector<256x288xf32> to vector<256x288xbf16>
    %c0_14 = arith.constant 0 : index
    %c0_15 = arith.constant 0 : index
    %84 = vector.load %arg3[%c0_14, %c0_15] : memref<288x64xbf16, #tpu.memory_space<vmem>>, vector<288x64xbf16>
    %cst_16 = arith.constant dense<0.000000e+00> : vector<256x64xf32>
    %85 = tpu.matmul %83, %84, %cst_16 {dimension_numbers = #tpu.dot_dimension_numbers<[1], [0], [0], [1], [0, 0, 1, 1], [], []>} : vector<256x288xbf16>, vector<288x64xbf16>, vector<256x64xf32> -> vector<256x64xf32>
    %86 = arith.maximumf %63, %85 : vector<256x64xf32>
    %87 = vector.shape_cast %86 : vector<256x64xf32> to vector<16x16x64xf32>
    %88 = vector.extract_strided_slice %87 {offsets = [0, 0, 0], sizes = [16, 8, 64], strides = [1, 1, 1]} : vector<16x16x64xf32> to vector<16x8x64xf32>
    %89 = vector.extract_strided_slice %87 {offsets = [0, 8, 0], sizes = [16, 8, 64], strides = [1, 1, 1]} : vector<16x16x64xf32> to vector<16x8x64xf32>
    %90 = arith.maximumf %88, %89 : vector<16x8x64xf32>
    %c0_17 = arith.constant 0 : index
    %c0_18 = arith.constant 0 : index
    %91 = vector.load %arg4[%c0_17, %c0_18] : memref<1x64xf32, #tpu.memory_space<vmem>>, vector<1x64xf32>
    %92 = vector.shape_cast %91 : vector<1x64xf32> to vector<1x1x64xf32>
    %93 = vector.broadcast %92 : vector<1x1x64xf32> to vector<16x8x64xf32>
    %94 = arith.addf %90, %93 : vector<16x8x64xf32>
    %cst_19 = arith.constant 0.000000e+00 : f32
    %95 = vector.broadcast %cst_19 : f32 to vector<16x8x64xf32>
    %96 = arith.maximumf %94, %95 : vector<16x8x64xf32>
    %97 = vector.shape_cast %96 : vector<16x8x64xf32> to vector<2x8x8x64xf32>
    %98 = vector.extract_strided_slice %97 {offsets = [0, 0, 0, 0], sizes = [2, 1, 1, 64], strides = [1, 1, 1, 1]} : vector<2x8x8x64xf32> to vector<2x1x1x64xf32>
    %99 = vector.shape_cast %98 : vector<2x1x1x64xf32> to vector<2x64xf32>
    %100 = vector.extract_strided_slice %97 {offsets = [0, 0, 1, 0], sizes = [2, 1, 1, 64], strides = [1, 1, 1, 1]} : vector<2x8x8x64xf32> to vector<2x1x1x64xf32>
    %101 = vector.shape_cast %100 : vector<2x1x1x64xf32> to vector<2x64xf32>
    %102 = vector.extract_strided_slice %97 {offsets = [0, 0, 2, 0], sizes = [2, 1, 1, 64], strides = [1, 1, 1, 1]} : vector<2x8x8x64xf32> to vector<2x1x1x64xf32>
    %103 = vector.shape_cast %102 : vector<2x1x1x64xf32> to vector<2x64xf32>
    %104 = vector.extract_strided_slice %97 {offsets = [0, 0, 3, 0], sizes = [2, 1, 1, 64], strides = [1, 1, 1, 1]} : vector<2x8x8x64xf32> to vector<2x1x1x64xf32>
    %105 = vector.shape_cast %104 : vector<2x1x1x64xf32> to vector<2x64xf32>
    %106 = vector.extract_strided_slice %97 {offsets = [0, 0, 4, 0], sizes = [2, 1, 1, 64], strides = [1, 1, 1, 1]} : vector<2x8x8x64xf32> to vector<2x1x1x64xf32>
    %107 = vector.shape_cast %106 : vector<2x1x1x64xf32> to vector<2x64xf32>
    %108 = vector.extract_strided_slice %97 {offsets = [0, 0, 5, 0], sizes = [2, 1, 1, 64], strides = [1, 1, 1, 1]} : vector<2x8x8x64xf32> to vector<2x1x1x64xf32>
    %109 = vector.shape_cast %108 : vector<2x1x1x64xf32> to vector<2x64xf32>
    %110 = vector.extract_strided_slice %97 {offsets = [0, 0, 6, 0], sizes = [2, 1, 1, 64], strides = [1, 1, 1, 1]} : vector<2x8x8x64xf32> to vector<2x1x1x64xf32>
    %111 = vector.shape_cast %110 : vector<2x1x1x64xf32> to vector<2x64xf32>
    %112 = vector.extract_strided_slice %97 {offsets = [0, 0, 7, 0], sizes = [2, 1, 1, 64], strides = [1, 1, 1, 1]} : vector<2x8x8x64xf32> to vector<2x1x1x64xf32>
    %113 = vector.shape_cast %112 : vector<2x1x1x64xf32> to vector<2x64xf32>
    %114 = vector.extract_strided_slice %97 {offsets = [0, 1, 0, 0], sizes = [2, 1, 1, 64], strides = [1, 1, 1, 1]} : vector<2x8x8x64xf32> to vector<2x1x1x64xf32>
    %115 = vector.shape_cast %114 : vector<2x1x1x64xf32> to vector<2x64xf32>
    %116 = vector.extract_strided_slice %97 {offsets = [0, 1, 1, 0], sizes = [2, 1, 1, 64], strides = [1, 1, 1, 1]} : vector<2x8x8x64xf32> to vector<2x1x1x64xf32>
    %117 = vector.shape_cast %116 : vector<2x1x1x64xf32> to vector<2x64xf32>
    %118 = vector.extract_strided_slice %97 {offsets = [0, 1, 2, 0], sizes = [2, 1, 1, 64], strides = [1, 1, 1, 1]} : vector<2x8x8x64xf32> to vector<2x1x1x64xf32>
    %119 = vector.shape_cast %118 : vector<2x1x1x64xf32> to vector<2x64xf32>
    %120 = vector.extract_strided_slice %97 {offsets = [0, 1, 3, 0], sizes = [2, 1, 1, 64], strides = [1, 1, 1, 1]} : vector<2x8x8x64xf32> to vector<2x1x1x64xf32>
    %121 = vector.shape_cast %120 : vector<2x1x1x64xf32> to vector<2x64xf32>
    %122 = vector.extract_strided_slice %97 {offsets = [0, 1, 4, 0], sizes = [2, 1, 1, 64], strides = [1, 1, 1, 1]} : vector<2x8x8x64xf32> to vector<2x1x1x64xf32>
    %123 = vector.shape_cast %122 : vector<2x1x1x64xf32> to vector<2x64xf32>
    %124 = vector.extract_strided_slice %97 {offsets = [0, 1, 5, 0], sizes = [2, 1, 1, 64], strides = [1, 1, 1, 1]} : vector<2x8x8x64xf32> to vector<2x1x1x64xf32>
    %125 = vector.shape_cast %124 : vector<2x1x1x64xf32> to vector<2x64xf32>
    %126 = vector.extract_strided_slice %97 {offsets = [0, 1, 6, 0], sizes = [2, 1, 1, 64], strides = [1, 1, 1, 1]} : vector<2x8x8x64xf32> to vector<2x1x1x64xf32>
    %127 = vector.shape_cast %126 : vector<2x1x1x64xf32> to vector<2x64xf32>
    %128 = vector.extract_strided_slice %97 {offsets = [0, 1, 7, 0], sizes = [2, 1, 1, 64], strides = [1, 1, 1, 1]} : vector<2x8x8x64xf32> to vector<2x1x1x64xf32>
    %129 = vector.shape_cast %128 : vector<2x1x1x64xf32> to vector<2x64xf32>
    %130 = vector.extract_strided_slice %97 {offsets = [0, 2, 0, 0], sizes = [2, 1, 1, 64], strides = [1, 1, 1, 1]} : vector<2x8x8x64xf32> to vector<2x1x1x64xf32>
    %131 = vector.shape_cast %130 : vector<2x1x1x64xf32> to vector<2x64xf32>
    %132 = vector.extract_strided_slice %97 {offsets = [0, 2, 1, 0], sizes = [2, 1, 1, 64], strides = [1, 1, 1, 1]} : vector<2x8x8x64xf32> to vector<2x1x1x64xf32>
    %133 = vector.shape_cast %132 : vector<2x1x1x64xf32> to vector<2x64xf32>
    %134 = vector.extract_strided_slice %97 {offsets = [0, 2, 2, 0], sizes = [2, 1, 1, 64], strides = [1, 1, 1, 1]} : vector<2x8x8x64xf32> to vector<2x1x1x64xf32>
    %135 = vector.shape_cast %134 : vector<2x1x1x64xf32> to vector<2x64xf32>
    %136 = vector.extract_strided_slice %97 {offsets = [0, 2, 3, 0], sizes = [2, 1, 1, 64], strides = [1, 1, 1, 1]} : vector<2x8x8x64xf32> to vector<2x1x1x64xf32>
    %137 = vector.shape_cast %136 : vector<2x1x1x64xf32> to vector<2x64xf32>
    %138 = vector.extract_strided_slice %97 {offsets = [0, 2, 4, 0], sizes = [2, 1, 1, 64], strides = [1, 1, 1, 1]} : vector<2x8x8x64xf32> to vector<2x1x1x64xf32>
    %139 = vector.shape_cast %138 : vector<2x1x1x64xf32> to vector<2x64xf32>
    %140 = vector.extract_strided_slice %97 {offsets = [0, 2, 5, 0], sizes = [2, 1, 1, 64], strides = [1, 1, 1, 1]} : vector<2x8x8x64xf32> to vector<2x1x1x64xf32>
    %141 = vector.shape_cast %140 : vector<2x1x1x64xf32> to vector<2x64xf32>
    %142 = vector.extract_strided_slice %97 {offsets = [0, 2, 6, 0], sizes = [2, 1, 1, 64], strides = [1, 1, 1, 1]} : vector<2x8x8x64xf32> to vector<2x1x1x64xf32>
    %143 = vector.shape_cast %142 : vector<2x1x1x64xf32> to vector<2x64xf32>
    %144 = vector.extract_strided_slice %97 {offsets = [0, 2, 7, 0], sizes = [2, 1, 1, 64], strides = [1, 1, 1, 1]} : vector<2x8x8x64xf32> to vector<2x1x1x64xf32>
    %145 = vector.shape_cast %144 : vector<2x1x1x64xf32> to vector<2x64xf32>
    %146 = vector.extract_strided_slice %97 {offsets = [0, 3, 0, 0], sizes = [2, 1, 1, 64], strides = [1, 1, 1, 1]} : vector<2x8x8x64xf32> to vector<2x1x1x64xf32>
    %147 = vector.shape_cast %146 : vector<2x1x1x64xf32> to vector<2x64xf32>
    %148 = vector.extract_strided_slice %97 {offsets = [0, 3, 1, 0], sizes = [2, 1, 1, 64], strides = [1, 1, 1, 1]} : vector<2x8x8x64xf32> to vector<2x1x1x64xf32>
    %149 = vector.shape_cast %148 : vector<2x1x1x64xf32> to vector<2x64xf32>
    %150 = vector.extract_strided_slice %97 {offsets = [0, 3, 2, 0], sizes = [2, 1, 1, 64], strides = [1, 1, 1, 1]} : vector<2x8x8x64xf32> to vector<2x1x1x64xf32>
    %151 = vector.shape_cast %150 : vector<2x1x1x64xf32> to vector<2x64xf32>
    %152 = vector.extract_strided_slice %97 {offsets = [0, 3, 3, 0], sizes = [2, 1, 1, 64], strides = [1, 1, 1, 1]} : vector<2x8x8x64xf32> to vector<2x1x1x64xf32>
    %153 = vector.shape_cast %152 : vector<2x1x1x64xf32> to vector<2x64xf32>
    %154 = vector.extract_strided_slice %97 {offsets = [0, 3, 4, 0], sizes = [2, 1, 1, 64], strides = [1, 1, 1, 1]} : vector<2x8x8x64xf32> to vector<2x1x1x64xf32>
    %155 = vector.shape_cast %154 : vector<2x1x1x64xf32> to vector<2x64xf32>
    %156 = vector.extract_strided_slice %97 {offsets = [0, 3, 5, 0], sizes = [2, 1, 1, 64], strides = [1, 1, 1, 1]} : vector<2x8x8x64xf32> to vector<2x1x1x64xf32>
    %157 = vector.shape_cast %156 : vector<2x1x1x64xf32> to vector<2x64xf32>
    %158 = vector.extract_strided_slice %97 {offsets = [0, 3, 6, 0], sizes = [2, 1, 1, 64], strides = [1, 1, 1, 1]} : vector<2x8x8x64xf32> to vector<2x1x1x64xf32>
    %159 = vector.shape_cast %158 : vector<2x1x1x64xf32> to vector<2x64xf32>
    %160 = vector.extract_strided_slice %97 {offsets = [0, 3, 7, 0], sizes = [2, 1, 1, 64], strides = [1, 1, 1, 1]} : vector<2x8x8x64xf32> to vector<2x1x1x64xf32>
    %161 = vector.shape_cast %160 : vector<2x1x1x64xf32> to vector<2x64xf32>
    %162 = vector.extract_strided_slice %97 {offsets = [0, 4, 0, 0], sizes = [2, 1, 1, 64], strides = [1, 1, 1, 1]} : vector<2x8x8x64xf32> to vector<2x1x1x64xf32>
    %163 = vector.shape_cast %162 : vector<2x1x1x64xf32> to vector<2x64xf32>
    %164 = vector.extract_strided_slice %97 {offsets = [0, 4, 1, 0], sizes = [2, 1, 1, 64], strides = [1, 1, 1, 1]} : vector<2x8x8x64xf32> to vector<2x1x1x64xf32>
    %165 = vector.shape_cast %164 : vector<2x1x1x64xf32> to vector<2x64xf32>
    %166 = vector.extract_strided_slice %97 {offsets = [0, 4, 2, 0], sizes = [2, 1, 1, 64], strides = [1, 1, 1, 1]} : vector<2x8x8x64xf32> to vector<2x1x1x64xf32>
    %167 = vector.shape_cast %166 : vector<2x1x1x64xf32> to vector<2x64xf32>
    %168 = vector.extract_strided_slice %97 {offsets = [0, 4, 3, 0], sizes = [2, 1, 1, 64], strides = [1, 1, 1, 1]} : vector<2x8x8x64xf32> to vector<2x1x1x64xf32>
    %169 = vector.shape_cast %168 : vector<2x1x1x64xf32> to vector<2x64xf32>
    %170 = vector.extract_strided_slice %97 {offsets = [0, 4, 4, 0], sizes = [2, 1, 1, 64], strides = [1, 1, 1, 1]} : vector<2x8x8x64xf32> to vector<2x1x1x64xf32>
    %171 = vector.shape_cast %170 : vector<2x1x1x64xf32> to vector<2x64xf32>
    %172 = vector.extract_strided_slice %97 {offsets = [0, 4, 5, 0], sizes = [2, 1, 1, 64], strides = [1, 1, 1, 1]} : vector<2x8x8x64xf32> to vector<2x1x1x64xf32>
    %173 = vector.shape_cast %172 : vector<2x1x1x64xf32> to vector<2x64xf32>
    %174 = vector.extract_strided_slice %97 {offsets = [0, 4, 6, 0], sizes = [2, 1, 1, 64], strides = [1, 1, 1, 1]} : vector<2x8x8x64xf32> to vector<2x1x1x64xf32>
    %175 = vector.shape_cast %174 : vector<2x1x1x64xf32> to vector<2x64xf32>
    %176 = vector.extract_strided_slice %97 {offsets = [0, 4, 7, 0], sizes = [2, 1, 1, 64], strides = [1, 1, 1, 1]} : vector<2x8x8x64xf32> to vector<2x1x1x64xf32>
    %177 = vector.shape_cast %176 : vector<2x1x1x64xf32> to vector<2x64xf32>
    %178 = vector.extract_strided_slice %97 {offsets = [0, 5, 0, 0], sizes = [2, 1, 1, 64], strides = [1, 1, 1, 1]} : vector<2x8x8x64xf32> to vector<2x1x1x64xf32>
    %179 = vector.shape_cast %178 : vector<2x1x1x64xf32> to vector<2x64xf32>
    %180 = vector.extract_strided_slice %97 {offsets = [0, 5, 1, 0], sizes = [2, 1, 1, 64], strides = [1, 1, 1, 1]} : vector<2x8x8x64xf32> to vector<2x1x1x64xf32>
    %181 = vector.shape_cast %180 : vector<2x1x1x64xf32> to vector<2x64xf32>
    %182 = vector.extract_strided_slice %97 {offsets = [0, 5, 2, 0], sizes = [2, 1, 1, 64], strides = [1, 1, 1, 1]} : vector<2x8x8x64xf32> to vector<2x1x1x64xf32>
    %183 = vector.shape_cast %182 : vector<2x1x1x64xf32> to vector<2x64xf32>
    %184 = vector.extract_strided_slice %97 {offsets = [0, 5, 3, 0], sizes = [2, 1, 1, 64], strides = [1, 1, 1, 1]} : vector<2x8x8x64xf32> to vector<2x1x1x64xf32>
    %185 = vector.shape_cast %184 : vector<2x1x1x64xf32> to vector<2x64xf32>
    %186 = vector.extract_strided_slice %97 {offsets = [0, 5, 4, 0], sizes = [2, 1, 1, 64], strides = [1, 1, 1, 1]} : vector<2x8x8x64xf32> to vector<2x1x1x64xf32>
    %187 = vector.shape_cast %186 : vector<2x1x1x64xf32> to vector<2x64xf32>
    %188 = vector.extract_strided_slice %97 {offsets = [0, 5, 5, 0], sizes = [2, 1, 1, 64], strides = [1, 1, 1, 1]} : vector<2x8x8x64xf32> to vector<2x1x1x64xf32>
    %189 = vector.shape_cast %188 : vector<2x1x1x64xf32> to vector<2x64xf32>
    %190 = vector.extract_strided_slice %97 {offsets = [0, 5, 6, 0], sizes = [2, 1, 1, 64], strides = [1, 1, 1, 1]} : vector<2x8x8x64xf32> to vector<2x1x1x64xf32>
    %191 = vector.shape_cast %190 : vector<2x1x1x64xf32> to vector<2x64xf32>
    %192 = vector.extract_strided_slice %97 {offsets = [0, 5, 7, 0], sizes = [2, 1, 1, 64], strides = [1, 1, 1, 1]} : vector<2x8x8x64xf32> to vector<2x1x1x64xf32>
    %193 = vector.shape_cast %192 : vector<2x1x1x64xf32> to vector<2x64xf32>
    %194 = vector.extract_strided_slice %97 {offsets = [0, 6, 0, 0], sizes = [2, 1, 1, 64], strides = [1, 1, 1, 1]} : vector<2x8x8x64xf32> to vector<2x1x1x64xf32>
    %195 = vector.shape_cast %194 : vector<2x1x1x64xf32> to vector<2x64xf32>
    %196 = vector.extract_strided_slice %97 {offsets = [0, 6, 1, 0], sizes = [2, 1, 1, 64], strides = [1, 1, 1, 1]} : vector<2x8x8x64xf32> to vector<2x1x1x64xf32>
    %197 = vector.shape_cast %196 : vector<2x1x1x64xf32> to vector<2x64xf32>
    %198 = vector.extract_strided_slice %97 {offsets = [0, 6, 2, 0], sizes = [2, 1, 1, 64], strides = [1, 1, 1, 1]} : vector<2x8x8x64xf32> to vector<2x1x1x64xf32>
    %199 = vector.shape_cast %198 : vector<2x1x1x64xf32> to vector<2x64xf32>
    %200 = vector.extract_strided_slice %97 {offsets = [0, 6, 3, 0], sizes = [2, 1, 1, 64], strides = [1, 1, 1, 1]} : vector<2x8x8x64xf32> to vector<2x1x1x64xf32>
    %201 = vector.shape_cast %200 : vector<2x1x1x64xf32> to vector<2x64xf32>
    %202 = vector.extract_strided_slice %97 {offsets = [0, 6, 4, 0], sizes = [2, 1, 1, 64], strides = [1, 1, 1, 1]} : vector<2x8x8x64xf32> to vector<2x1x1x64xf32>
    %203 = vector.shape_cast %202 : vector<2x1x1x64xf32> to vector<2x64xf32>
    %204 = vector.extract_strided_slice %97 {offsets = [0, 6, 5, 0], sizes = [2, 1, 1, 64], strides = [1, 1, 1, 1]} : vector<2x8x8x64xf32> to vector<2x1x1x64xf32>
    %205 = vector.shape_cast %204 : vector<2x1x1x64xf32> to vector<2x64xf32>
    %206 = vector.extract_strided_slice %97 {offsets = [0, 6, 6, 0], sizes = [2, 1, 1, 64], strides = [1, 1, 1, 1]} : vector<2x8x8x64xf32> to vector<2x1x1x64xf32>
    %207 = vector.shape_cast %206 : vector<2x1x1x64xf32> to vector<2x64xf32>
    %208 = vector.extract_strided_slice %97 {offsets = [0, 6, 7, 0], sizes = [2, 1, 1, 64], strides = [1, 1, 1, 1]} : vector<2x8x8x64xf32> to vector<2x1x1x64xf32>
    %209 = vector.shape_cast %208 : vector<2x1x1x64xf32> to vector<2x64xf32>
    %210 = vector.extract_strided_slice %97 {offsets = [0, 7, 0, 0], sizes = [2, 1, 1, 64], strides = [1, 1, 1, 1]} : vector<2x8x8x64xf32> to vector<2x1x1x64xf32>
    %211 = vector.shape_cast %210 : vector<2x1x1x64xf32> to vector<2x64xf32>
    %212 = vector.extract_strided_slice %97 {offsets = [0, 7, 1, 0], sizes = [2, 1, 1, 64], strides = [1, 1, 1, 1]} : vector<2x8x8x64xf32> to vector<2x1x1x64xf32>
    %213 = vector.shape_cast %212 : vector<2x1x1x64xf32> to vector<2x64xf32>
    %214 = vector.extract_strided_slice %97 {offsets = [0, 7, 2, 0], sizes = [2, 1, 1, 64], strides = [1, 1, 1, 1]} : vector<2x8x8x64xf32> to vector<2x1x1x64xf32>
    %215 = vector.shape_cast %214 : vector<2x1x1x64xf32> to vector<2x64xf32>
    %216 = vector.extract_strided_slice %97 {offsets = [0, 7, 3, 0], sizes = [2, 1, 1, 64], strides = [1, 1, 1, 1]} : vector<2x8x8x64xf32> to vector<2x1x1x64xf32>
    %217 = vector.shape_cast %216 : vector<2x1x1x64xf32> to vector<2x64xf32>
    %218 = vector.extract_strided_slice %97 {offsets = [0, 7, 4, 0], sizes = [2, 1, 1, 64], strides = [1, 1, 1, 1]} : vector<2x8x8x64xf32> to vector<2x1x1x64xf32>
    %219 = vector.shape_cast %218 : vector<2x1x1x64xf32> to vector<2x64xf32>
    %220 = vector.extract_strided_slice %97 {offsets = [0, 7, 5, 0], sizes = [2, 1, 1, 64], strides = [1, 1, 1, 1]} : vector<2x8x8x64xf32> to vector<2x1x1x64xf32>
    %221 = vector.shape_cast %220 : vector<2x1x1x64xf32> to vector<2x64xf32>
    %222 = vector.extract_strided_slice %97 {offsets = [0, 7, 6, 0], sizes = [2, 1, 1, 64], strides = [1, 1, 1, 1]} : vector<2x8x8x64xf32> to vector<2x1x1x64xf32>
    %223 = vector.shape_cast %222 : vector<2x1x1x64xf32> to vector<2x64xf32>
    %224 = vector.extract_strided_slice %97 {offsets = [0, 7, 7, 0], sizes = [2, 1, 1, 64], strides = [1, 1, 1, 1]} : vector<2x8x8x64xf32> to vector<2x1x1x64xf32>
    %225 = vector.shape_cast %224 : vector<2x1x1x64xf32> to vector<2x64xf32>
    %226 = tpu.concatenate %99, %101, %103, %105, %107, %109, %111, %113, %115, %117, %119, %121, %123, %125, %127, %129 in 1 : vector<2x64xf32>, vector<2x64xf32>, vector<2x64xf32>, vector<2x64xf32>, vector<2x64xf32>, vector<2x64xf32>, vector<2x64xf32>, vector<2x64xf32>, vector<2x64xf32>, vector<2x64xf32>, vector<2x64xf32>, vector<2x64xf32>, vector<2x64xf32>, vector<2x64xf32>, vector<2x64xf32>, vector<2x64xf32> -> vector<2x1024xf32>
    %227 = tpu.concatenate %131, %133, %135, %137, %139, %141, %143, %145, %147, %149, %151, %153, %155, %157, %159, %161 in 1 : vector<2x64xf32>, vector<2x64xf32>, vector<2x64xf32>, vector<2x64xf32>, vector<2x64xf32>, vector<2x64xf32>, vector<2x64xf32>, vector<2x64xf32>, vector<2x64xf32>, vector<2x64xf32>, vector<2x64xf32>, vector<2x64xf32>, vector<2x64xf32>, vector<2x64xf32>, vector<2x64xf32>, vector<2x64xf32> -> vector<2x1024xf32>
    %228 = tpu.concatenate %163, %165, %167, %169, %171, %173, %175, %177, %179, %181, %183, %185, %187, %189, %191, %193 in 1 : vector<2x64xf32>, vector<2x64xf32>, vector<2x64xf32>, vector<2x64xf32>, vector<2x64xf32>, vector<2x64xf32>, vector<2x64xf32>, vector<2x64xf32>, vector<2x64xf32>, vector<2x64xf32>, vector<2x64xf32>, vector<2x64xf32>, vector<2x64xf32>, vector<2x64xf32>, vector<2x64xf32>, vector<2x64xf32> -> vector<2x1024xf32>
    %229 = tpu.concatenate %195, %197, %199, %201, %203, %205, %207, %209, %211, %213, %215, %217, %219, %221, %223, %225 in 1 : vector<2x64xf32>, vector<2x64xf32>, vector<2x64xf32>, vector<2x64xf32>, vector<2x64xf32>, vector<2x64xf32>, vector<2x64xf32>, vector<2x64xf32>, vector<2x64xf32>, vector<2x64xf32>, vector<2x64xf32>, vector<2x64xf32>, vector<2x64xf32>, vector<2x64xf32>, vector<2x64xf32>, vector<2x64xf32> -> vector<2x1024xf32>
    %230 = tpu.concatenate %226, %227, %228, %229 in 1 : vector<2x1024xf32>, vector<2x1024xf32>, vector<2x1024xf32>, vector<2x1024xf32> -> vector<2x4096xf32>
    %231 = arith.truncf %230 : vector<2x4096xf32> to vector<2x4096xbf16>
    tpu.wait_dma2 semaphore(%arg11 : memref<!tpu.dma_semaphore, #tpu.memory_space<semaphore_mem>>) src(%arg5 : memref<4096x512xbf16, #tpu.memory_space<any>>) dst(%arg10 : memref<4096x512xbf16, #tpu.memory_space<vmem>>)
    %c0_20 = arith.constant 0 : index
    %c0_21 = arith.constant 0 : index
    %232 = vector.load %arg10[%c0_20, %c0_21] : memref<4096x512xbf16, #tpu.memory_space<vmem>>, vector<4096x512xbf16>
    %cst_22 = arith.constant dense<0.000000e+00> : vector<2x512xf32>
    %233 = tpu.matmul %231, %232, %cst_22 {dimension_numbers = #tpu.dot_dimension_numbers<[1], [0], [0], [1], [0, 0, 1, 1], [], []>} : vector<2x4096xbf16>, vector<4096x512xbf16>, vector<2x512xf32> -> vector<2x512xf32>
    %c0_23 = arith.constant 0 : index
    %c0_24 = arith.constant 0 : index
    %234 = vector.load %arg6[%c0_23, %c0_24] : memref<1x512xf32, #tpu.memory_space<vmem>>, vector<1x512xf32>
    %235 = vector.broadcast %234 : vector<1x512xf32> to vector<2x512xf32>
    %236 = arith.addf %233, %235 : vector<2x512xf32>
    %cst_25 = arith.constant 0.000000e+00 : f32
    %237 = vector.broadcast %cst_25 : f32 to vector<2x512xf32>
    %238 = arith.maximumf %236, %237 : vector<2x512xf32>
    %c0_26 = arith.constant 0 : index
    %c0_27 = arith.constant 0 : index
    %239 = vector.load %arg7[%c0_26, %c0_27] : memref<512x10xf32, #tpu.memory_space<vmem>>, vector<512x10xf32>
    %cst_28 = arith.constant dense<0.000000e+00> : vector<2x10xf32>
    %240 = tpu.matmul %238, %239, %cst_28 {dimension_numbers = #tpu.dot_dimension_numbers<[1], [0], [0], [1], [0, 0, 1, 1], [], []>} : vector<2x512xf32>, vector<512x10xf32>, vector<2x10xf32> -> vector<2x10xf32>
    %c0_29 = arith.constant 0 : index
    %c0_30 = arith.constant 0 : index
    %241 = vector.load %arg8[%c0_29, %c0_30] : memref<1x10xf32, #tpu.memory_space<vmem>>, vector<1x10xf32>
    %242 = vector.broadcast %241 : vector<1x10xf32> to vector<2x10xf32>
    %243 = arith.addf %240, %242 : vector<2x10xf32>
    %c0_31 = arith.constant 0 : index
    %c0_32 = arith.constant 0 : index
    %244 = vector.load %arg9[%c0_31, %c0_32] : memref<2x10xf32, #tpu.memory_space<vmem>>, vector<2x10xf32>
    tpu.vector_store %arg9[%c0_31, %c0_32], %243 {strides = array<i32>} : memref<2x10xf32, #tpu.memory_space<vmem>>, vector<2x10xf32>,
    return
  }
}

</mosaic_0001>

<llo_original>
// kernel: cifar10_cnn_forward.1
$region0: #{cifar10_cnn_forward.1}
  #allocation0 [shape = 'u32[]', space=smem, size = 0x4, offset = 0x4, fixed_abs, tag = 'smem constant byte address 0x4 - core index']
  #allocation1 [shape = 'u32[144,128]{1,0:T(1,128)}', space=vmem, size = 0x12000, scoped, tag = 'internal scratch']
  #allocation2 [shape = 'bf16[4096,512]{1,0:T(16,128)(2,1)}', space=vmem, size = 0x400000, scoped, tag = 'scratch operand']
  #allocation3 [shape = 's32[1]{0}', space=sflag, size = 0x4, scoped, tag = 'scratch operand']
  #allocation14 [shape = 's32[]', space=sflag, size = 0x4, offset = 0, fixed_abs, tag = 'sflag constant byte address 0x0 - dummy sync flag']
  %s0 = inlined_call_operand.vmem [shape: bf16[2048,27], index: 0, kind: input, shape index: {}]
  %s1 = inlined_call_operand.hbm [shape: bf16[27,32], index: 1, kind: input, shape index: {}]
  %s2 = inlined_call_operand.hbm [shape: f32[1,32], index: 2, kind: input, shape index: {}]
  %s3 = inlined_call_operand.vmem [shape: bf16[288,64], index: 3, kind: input, shape index: {}]
  %s4 = inlined_call_operand.hbm [shape: f32[1,64], index: 4, kind: input, shape index: {}]
  %s5 = inlined_call_operand.hbm [shape: bf16[4096,512], index: 5, kind: input, shape index: {}]
  %s6 = inlined_call_operand.hbm [shape: f32[1,512], index: 6, kind: input, shape index: {}]
  %s7 = inlined_call_operand.vmem [shape: f32[512,10], index: 7, kind: input, shape index: {}]
  %s8 = inlined_call_operand.hbm [shape: f32[1,10], index: 8, kind: input, shape index: {}]
  %s9 = inlined_call_operand.hbm [shape: f32[2,10], index: 9, kind: output, shape index: {}]
  %s10 = sld [smem:[#allocation0]]
  $region62: #{cifar10_cnn_forward.1} parent=0
    _
  %s12 = ssub.s32 1, %s10
  %s13 = scalar_select 0, %s12, %s10
  $region1: #{cifar10_cnn_forward.1} parent=0
    #allocation4 [shape = 'u8[8192]{0}', space=vmem, size = 0x2000, scoped, tag = 'input window, operand 1, single buffered']
    #allocation5 [shape = 's32[1]{0}', space=sflag, size = 0x4, scoped, tag = 'scoped memory for cifar10_cnn_forward.1']
    #allocation6 [shape = 's32[1]{0}', space=sflag, size = 0x4, scoped, tag = 'scoped memory for cifar10_cnn_forward.1']
    #allocation7 [shape = 'u8[512]{0}', space=vmem, size = 0x400, scoped, tag = 'input window, operand 2, single buffered']
    #allocation8 [shape = 's32[1]{0}', space=sflag, size = 0x4, scoped, tag = 'scoped memory for cifar10_cnn_forward.1']
    #allocation9 [shape = 'u8[512]{0}', space=vmem, size = 0x400, scoped, tag = 'input window, operand 4, single buffered']
    #allocation10 [shape = 'u8[2048]{0}', space=vmem, size = 0x800, scoped, tag = 'input window, operand 6, single buffered']
    #allocation11 [shape = 's32[1]{0}', space=sflag, size = 0x4, scoped, tag = 'scoped memory for cifar10_cnn_forward.1']
    #allocation12 [shape = 'u8[512]{0}', space=vmem, size = 0x400, scoped, tag = 'input window, operand 8, single buffered']
    #allocation13 [shape = 'u8[1024]{0}', space=vmem, size = 0x400, scoped, tag = 'output window, operand 0, single buffered']
    #allocation15 [shape = 'u32[9]{0}', space=smem, size = 0x24, scoped, tag = 'DMA stride descriptor']
    %14 = vsyncpa [#allocation5], 0
    %15 = vsyncpa [#allocation8], 0
    %16 = vsyncpa [#allocation11], 0
    %17 = vsyncpa [#allocation6], 0
    // Predicated region
    $region2: #{cifar10_cnn_forward.1} parent=1 // pred_check
      _
    $region3: #{cifar10_cnn_forward.1} parent=1 // pred_check_branch
      %19 = sbr.rel (0) target = $region5
    $region4: #{cifar10_cnn_forward.1} parent=1 // pred_region
      _
    $region5: #{cifar10_cnn_forward.1} parent=1 // pred_fallthru
      _
    // Predicated region
    $region6: #{cifar10_cnn_forward.1} parent=1 // pred_check
      _
    $region7: #{cifar10_cnn_forward.1} parent=1 // pred_check_branch
      %21 = sbr.rel (0) target = $region9
    $region8: #{cifar10_cnn_forward.1} parent=1 // pred_region
      %s23 = ssub.s32 256, 256
      %24 = vsyncadd [#allocation5], %s23
      %s25 = sshll.u32 [#allocation4], 4
      %s26 = int_to_ptr.vmem [resolvable:$true] %s25
      %31 = dma.hbm_to_vmem [thread:$0]  %s1, 256, %s26, [#allocation5], 64, 64, 4
    $region9: #{cifar10_cnn_forward.1} parent=1 // pred_fallthru
      _
    // Predicated region
    $region10: #{cifar10_cnn_forward.1} parent=1 // pred_check
      _
    $region11: #{cifar10_cnn_forward.1} parent=1 // pred_check_branch
      %33 = sbr.rel (0) target = $region13
    $region12: #{cifar10_cnn_forward.1} parent=1 // pred_region
      %s35 = ssub.s32 16, 16
      %36 = vsyncadd [#allocation8], %s35
      %s38 = sshll.u32 [#allocation7], 4
      %s39 = int_to_ptr.vmem [resolvable:$true] %s38
      %41 = dma.hbm_to_vmem [thread:$0]  %s2, 16, %s39, [#allocation8]
    $region13: #{cifar10_cnn_forward.1} parent=1 // pred_fallthru
      _
    // Predicated region
    $region14: #{cifar10_cnn_forward.1} parent=1 // pred_check
      _
    $region15: #{cifar10_cnn_forward.1} parent=1 // pred_check_branch
      %43 = sbr.rel (0) target = $region17
    $region16: #{cifar10_cnn_forward.1} parent=1 // pred_region
      _
    $region17: #{cifar10_cnn_forward.1} parent=1 // pred_fallthru
      _
    // Predicated region
    $region18: #{cifar10_cnn_forward.1} parent=1 // pred_check
      _
    $region19: #{cifar10_cnn_forward.1} parent=1 // pred_check_branch
      %45 = sbr.rel (0) target = $region21
    $region20: #{cifar10_cnn_forward.1} parent=1 // pred_region
      %s47 = ssub.s32 16, 16
      %48 = vsyncadd [#allocation8], %s47
      %s50 = sshll.u32 [#allocation9], 4
      %s51 = int_to_ptr.vmem [resolvable:$true] %s50
      %53 = dma.hbm_to_vmem [thread:$0]  %s4, 16, %s51, [#allocation8]
    $region21: #{cifar10_cnn_forward.1} parent=1 // pred_fallthru
      _
    // Predicated region
    $region22: #{cifar10_cnn_forward.1} parent=1 // pred_check
      _
    $region23: #{cifar10_cnn_forward.1} parent=1 // pred_check_branch
      %55 = sbr.rel (0) target = $region25
    $region24: #{cifar10_cnn_forward.1} parent=1 // pred_region
      %s57 = ssub.s32 64, 64
      %58 = vsyncadd [#allocation11], %s57
      %s60 = sshll.u32 [#allocation10], 4
      %s61 = int_to_ptr.vmem [resolvable:$true] %s60
      %63 = dma.hbm_to_vmem [thread:$0]  %s6, 64, %s61, [#allocation11]
    $region25: #{cifar10_cnn_forward.1} parent=1 // pred_fallthru
      _
    // Predicated region
    $region26: #{cifar10_cnn_forward.1} parent=1 // pred_check
      _
    $region27: #{cifar10_cnn_forward.1} parent=1 // pred_check_branch
      %65 = sbr.rel (0) target = $region29
    $region28: #{cifar10_cnn_forward.1} parent=1 // pred_region
      _
    $region29: #{cifar10_cnn_forward.1} parent=1 // pred_fallthru
      _
    // Predicated region
    $region30: #{cifar10_cnn_forward.1} parent=1 // pred_check
      _
    $region31: #{cifar10_cnn_forward.1} parent=1 // pred_check_branch
      %67 = sbr.rel (0) target = $region33
    $region32: #{cifar10_cnn_forward.1} parent=1 // pred_region
      %s69 = ssub.s32 16, 16
      %70 = vsyncadd [#allocation11], %s69
      %s72 = sshll.u32 [#allocation12], 4
      %s73 = int_to_ptr.vmem [resolvable:$true] %s72
      %75 = dma.hbm_to_vmem [thread:$0]  %s8, 16, %s73, [#allocation11]
    $region33: #{cifar10_cnn_forward.1} parent=1 // pred_fallthru
      _
    // Predicated region
    $region34: #{cifar10_cnn_forward.1} parent=1 // pred_check
      _
    $region35: #{cifar10_cnn_forward.1} parent=1 // pred_check_branch
      %77 = sbr.rel (0) target = $region37
    $region36: #{cifar10_cnn_forward.1} parent=1 // pred_region
      %78 = dma.done [#allocation5], 256
    $region37: #{cifar10_cnn_forward.1} parent=1 // pred_fallthru
      _
    // Predicated region
    $region38: #{cifar10_cnn_forward.1} parent=1 // pred_check
      _
    $region39: #{cifar10_cnn_forward.1} parent=1 // pred_check_branch
      %80 = sbr.rel (0) target = $region41
    $region40: #{cifar10_cnn_forward.1} parent=1 // pred_region
      %81 = dma.done [#allocation8], 16
    $region41: #{cifar10_cnn_forward.1} parent=1 // pred_fallthru
      _
    // Predicated region
    $region42: #{cifar10_cnn_forward.1} parent=1 // pred_check
      _
    $region43: #{cifar10_cnn_forward.1} parent=1 // pred_check_branch
      %83 = sbr.rel (0) target = $region45
    $region44: #{cifar10_cnn_forward.1} parent=1 // pred_region
      %84 = dma.done [#allocation8], 16
    $region45: #{cifar10_cnn_forward.1} parent=1 // pred_fallthru
      _
    // Predicated region
    $region46: #{cifar10_cnn_forward.1} parent=1 // pred_check
      _
    $region47: #{cifar10_cnn_forward.1} parent=1 // pred_check_branch
      %86 = sbr.rel (0) target = $region49
    $region48: #{cifar10_cnn_forward.1} parent=1 // pred_region
      %87 = dma.done [#allocation11], 64
    $region49: #{cifar10_cnn_forward.1} parent=1 // pred_fallthru
      _
    // Predicated region
    $region50: #{cifar10_cnn_forward.1} parent=1 // pred_check
      _
    $region51: #{cifar10_cnn_forward.1} parent=1 // pred_check_branch
      %89 = sbr.rel (0) target = $region53
    $region52: #{cifar10_cnn_forward.1} parent=1 // pred_region
      %90 = dma.done [#allocation11], 16
    $region53: #{cifar10_cnn_forward.1} parent=1 // pred_fallthru
      _
    %s93 = sshll.u32 1, 14
    %s94 = sxor.u32 4294967295, %s93
    %s96 = sld [smem:[#allocation0]]
    %s97 = sadd.s32 2, %s96
    %s99 = sshll.u32 7, 26
    %s100 = sxor.u32 4294967295, %s99
    %s101 = sand.u32 0, %s100
    %s102 = sshll.u32 %s97, 26
    %s103 = sor.u32 %s101, %s102
    %s104 = sshll.u32 [#allocation2], 4
    %s105 = int_to_ptr.vmem [resolvable:$true] %s104
    %108 = sst [smem:[#allocation15]] 512
    %s109 = scalar_lea.smem [#allocation15], 1
    %110 = sst [smem:[%s109]] 512
    %s111 = scalar_lea.smem [#allocation15], 2
    %112 = sst [smem:[%s111]] 4
    %s113 = scalar_lea.smem [#allocation15], 3
    %114 = sst [smem:[%s113]] 64
    %s115 = scalar_lea.smem [#allocation15], 4
    %116 = sst [smem:[%s115]] 128
    %s117 = scalar_lea.smem [#allocation15], 5
    %118 = sst [smem:[%s117]] 2
    %s119 = scalar_lea.smem [#allocation15], 6
    %120 = sst [smem:[%s119]] 256
    %s121 = scalar_lea.smem [#allocation15], 7
    %122 = sst [smem:[%s121]] 64
    %s123 = scalar_lea.smem [#allocation15], 8
    %124 = sst [smem:[%s123]] 4
    %126 = dma.general %s5, 131072, %s105, [#allocation3], [#allocation14], [#allocation15], %s103, 0
    %v127 = vld [vmem:[%s0] sm:$0xf]
    %v128 = vld [vmem:[%s0 + $0x4] sm:$0xf]
    %v129 = vld [vmem:[%s0 + $0x8] sm:$0xf]
    %v130 = vld [vmem:[%s0 + $0xc] sm:$0xf]
    %v131 = vld [vmem:[%s0 + $0x10] sm:$0xf]
    %v132 = vld [vmem:[%s0 + $0x14] sm:$0xf]
    %v133 = vld [vmem:[%s0 + $0x18] sm:$0xf]
    %v134 = vld [vmem:[%s0 + $0x1c] sm:$0xf]
    %v135 = vld [vmem:[%s0 + $0x20] sm:$0xf]
    %v136 = vld [vmem:[%s0 + $0x24] sm:$0xf]
    %v137 = vld [vmem:[%s0 + $0x28] sm:$0xf]
    %v138 = vld [vmem:[%s0 + $0x2c] sm:$0xf]
    %v139 = vld [vmem:[%s0 + $0x30] sm:$0xf]
    %v140 = vld [vmem:[%s0 + $0x34] sm:$0xf]
    %v141 = vld [vmem:[%s0 + $0x38] sm:$0xf]
    %v142 = vld [vmem:[%s0 + $0x3c] sm:$0xf]
    %v143 = vld [vmem:[%s0 + $0x40] sm:$0xf]
    %v144 = vld [vmem:[%s0 + $0x44] sm:$0xf]
    %v145 = vld [vmem:[%s0 + $0x48] sm:$0xf]
    %v146 = vld [vmem:[%s0 + $0x4c] sm:$0xf]
    %v147 = vld [vmem:[%s0 + $0x50] sm:$0xf]
    %v148 = vld [vmem:[%s0 + $0x54] sm:$0xf]
    %v149 = vld [vmem:[%s0 + $0x58] sm:$0xf]
    %v150 = vld [vmem:[%s0 + $0x5c] sm:$0xf]
    %v151 = vld [vmem:[%s0 + $0x60] sm:$0xf]
    %v152 = vld [vmem:[%s0 + $0x64] sm:$0xf]
    %v153 = vld [vmem:[%s0 + $0x68] sm:$0xf]
    %v154 = vld [vmem:[%s0 + $0x6c] sm:$0xf]
    %v155 = vld [vmem:[%s0 + $0x70] sm:$0xf]
    %v156 = vld [vmem:[%s0 + $0x74] sm:$0xf]
    %v157 = vld [vmem:[%s0 + $0x78] sm:$0xf]
    %v158 = vld [vmem:[%s0 + $0x7c] sm:$0xf]
    %v159 = vld [vmem:[%s0 + $0x80] sm:$0xf]
    %v160 = vld [vmem:[%s0 + $0x84] sm:$0xf]
    %v161 = vld [vmem:[%s0 + $0x88] sm:$0xf]
    %v162 = vld [vmem:[%s0 + $0x8c] sm:$0xf]
    %v163 = vld [vmem:[%s0 + $0x90] sm:$0xf]
    %v164 = vld [vmem:[%s0 + $0x94] sm:$0xf]
    %v165 = vld [vmem:[%s0 + $0x98] sm:$0xf]
    %v166 = vld [vmem:[%s0 + $0x9c] sm:$0xf]
    %v167 = vld [vmem:[%s0 + $0xa0] sm:$0xf]
    %v168 = vld [vmem:[%s0 + $0xa4] sm:$0xf]
    %v169 = vld [vmem:[%s0 + $0xa8] sm:$0xf]
    %v170 = vld [vmem:[%s0 + $0xac] sm:$0xf]
    %v171 = vld [vmem:[%s0 + $0xb0] sm:$0xf]
    %v172 = vld [vmem:[%s0 + $0xb4] sm:$0xf]
    %v173 = vld [vmem:[%s0 + $0xb8] sm:$0xf]
    %v174 = vld [vmem:[%s0 + $0xbc] sm:$0xf]
    %v175 = vld [vmem:[%s0 + $0xc0] sm:$0xf]
    %v176 = vld [vmem:[%s0 + $0xc4] sm:$0xf]
    %v177 = vld [vmem:[%s0 + $0xc8] sm:$0xf]
    %v178 = vld [vmem:[%s0 + $0xcc] sm:$0xf]
    %v179 = vld [vmem:[%s0 + $0xd0] sm:$0xf]
    %v180 = vld [vmem:[%s0 + $0xd4] sm:$0xf]
    %v181 = vld [vmem:[%s0 + $0xd8] sm:$0xf]
    %v182 = vld [vmem:[%s0 + $0xdc] sm:$0xf]
    %v183 = vld [vmem:[%s0 + $0xe0] sm:$0xf]
    %v184 = vld [vmem:[%s0 + $0xe4] sm:$0xf]
    %v185 = vld [vmem:[%s0 + $0xe8] sm:$0xf]
    %v186 = vld [vmem:[%s0 + $0xec] sm:$0xf]
    %v187 = vld [vmem:[%s0 + $0xf0] sm:$0xf]
    %v188 = vld [vmem:[%s0 + $0xf4] sm:$0xf]
    %v189 = vld [vmem:[%s0 + $0xf8] sm:$0xf]
    %v190 = vld [vmem:[%s0 + $0xfc] sm:$0xf]
    %v191 = vld [vmem:[%s0 + $0x100] sm:$0xf]
    %v192 = vld [vmem:[%s0 + $0x104] sm:$0xf]
    %v193 = vld [vmem:[%s0 + $0x108] sm:$0xf]
    %v194 = vld [vmem:[%s0 + $0x10c] sm:$0xf]
    %v195 = vld [vmem:[%s0 + $0x110] sm:$0xf]
    %v196 = vld [vmem:[%s0 + $0x114] sm:$0xf]
    %v197 = vld [vmem:[%s0 + $0x118] sm:$0xf]
    %v198 = vld [vmem:[%s0 + $0x11c] sm:$0xf]
    %v199 = vld [vmem:[%s0 + $0x120] sm:$0xf]
    %v200 = vld [vmem:[%s0 + $0x124] sm:$0xf]
    %v201 = vld [vmem:[%s0 + $0x128] sm:$0xf]
    %v202 = vld [vmem:[%s0 + $0x12c] sm:$0xf]
    %v203 = vld [vmem:[%s0 + $0x130] sm:$0xf]
    %v204 = vld [vmem:[%s0 + $0x134] sm:$0xf]
    %v205 = vld [vmem:[%s0 + $0x138] sm:$0xf]
    %v206 = vld [vmem:[%s0 + $0x13c] sm:$0xf]
    %v207 = vld [vmem:[%s0 + $0x140] sm:$0xf]
    %v208 = vld [vmem:[%s0 + $0x144] sm:$0xf]
    %v209 = vld [vmem:[%s0 + $0x148] sm:$0xf]
    %v210 = vld [vmem:[%s0 + $0x14c] sm:$0xf]
    %v211 = vld [vmem:[%s0 + $0x150] sm:$0xf]
    %v212 = vld [vmem:[%s0 + $0x154] sm:$0xf]
    %v213 = vld [vmem:[%s0 + $0x158] sm:$0xf]
    %v214 = vld [vmem:[%s0 + $0x15c] sm:$0xf]
    %v215 = vld [vmem:[%s0 + $0x160] sm:$0xf]
    %v216 = vld [vmem:[%s0 + $0x164] sm:$0xf]
    %v217 = vld [vmem:[%s0 + $0x168] sm:$0xf]
    %v218 = vld [vmem:[%s0 + $0x16c] sm:$0xf]
    %v219 = vld [vmem:[%s0 + $0x170] sm:$0xf]
    %v220 = vld [vmem:[%s0 + $0x174] sm:$0xf]
    %v221 = vld [vmem:[%s0 + $0x178] sm:$0xf]
    %v222 = vld [vmem:[%s0 + $0x17c] sm:$0xf]
    %v223 = vld [vmem:[%s0 + $0x180] sm:$0xf]
    %v224 = vld [vmem:[%s0 + $0x184] sm:$0xf]
    %v225 = vld [vmem:[%s0 + $0x188] sm:$0xf]
    %v226 = vld [vmem:[%s0 + $0x18c] sm:$0xf]
    %v227 = vld [vmem:[%s0 + $0x190] sm:$0xf]
    %v228 = vld [vmem:[%s0 + $0x194] sm:$0xf]
    %v229 = vld [vmem:[%s0 + $0x198] sm:$0xf]
    %v230 = vld [vmem:[%s0 + $0x19c] sm:$0xf]
    %v231 = vld [vmem:[%s0 + $0x1a0] sm:$0xf]
    %v232 = vld [vmem:[%s0 + $0x1a4] sm:$0xf]
    %v233 = vld [vmem:[%s0 + $0x1a8] sm:$0xf]
    %v234 = vld [vmem:[%s0 + $0x1ac] sm:$0xf]
    %v235 = vld [vmem:[%s0 + $0x1b0] sm:$0xf]
    %v236 = vld [vmem:[%s0 + $0x1b4] sm:$0xf]
    %v237 = vld [vmem:[%s0 + $0x1b8] sm:$0xf]
    %v238 = vld [vmem:[%s0 + $0x1bc] sm:$0xf]
    %v239 = vld [vmem:[%s0 + $0x1c0] sm:$0xf]
    %v240 = vld [vmem:[%s0 + $0x1c4] sm:$0xf]
    %v241 = vld [vmem:[%s0 + $0x1c8] sm:$0xf]
    %v242 = vld [vmem:[%s0 + $0x1cc] sm:$0xf]
    %v243 = vld [vmem:[%s0 + $0x1d0] sm:$0xf]
    %v244 = vld [vmem:[%s0 + $0x1d4] sm:$0xf]
    %v245 = vld [vmem:[%s0 + $0x1d8] sm:$0xf]
    %v246 = vld [vmem:[%s0 + $0x1dc] sm:$0xf]
    %v247 = vld [vmem:[%s0 + $0x1e0] sm:$0xf]
    %v248 = vld [vmem:[%s0 + $0x1e4] sm:$0xf]
    %v249 = vld [vmem:[%s0 + $0x1e8] sm:$0xf]
    %v250 = vld [vmem:[%s0 + $0x1ec] sm:$0xf]
    %v251 = vld [vmem:[%s0 + $0x1f0] sm:$0xf]
    %v252 = vld [vmem:[%s0 + $0x1f4] sm:$0xf]
    %v253 = vld [vmem:[%s0 + $0x1f8] sm:$0xf]
    %v254 = vld [vmem:[%s0 + $0x1fc] sm:$0xf]
    %v255 = vld [vmem:[%s0 + $0x200] sm:$0xf]
    %v256 = vld [vmem:[%s0 + $0x204] sm:$0xf]
    %v257 = vld [vmem:[%s0 + $0x208] sm:$0xf]
    %v258 = vld [vmem:[%s0 + $0x20c] sm:$0xf]
    %v259 = vld [vmem:[%s0 + $0x210] sm:$0xf]
    %v260 = vld [vmem:[%s0 + $0x214] sm:$0xf]
    %v261 = vld [vmem:[%s0 + $0x218] sm:$0xf]
    %v262 = vld [vmem:[%s0 + $0x21c] sm:$0xf]
    %v263 = vld [vmem:[%s0 + $0x220] sm:$0xf]
    %v264 = vld [vmem:[%s0 + $0x224] sm:$0xf]
    %v265 = vld [vmem:[%s0 + $0x228] sm:$0xf]
    %v266 = vld [vmem:[%s0 + $0x22c] sm:$0xf]
    %v267 = vld [vmem:[%s0 + $0x230] sm:$0xf]
    %v268 = vld [vmem:[%s0 + $0x234] sm:$0xf]
    %v269 = vld [vmem:[%s0 + $0x238] sm:$0xf]
    %v270 = vld [vmem:[%s0 + $0x23c] sm:$0xf]
    %v271 = vld [vmem:[%s0 + $0x240] sm:$0xf]
    %v272 = vld [vmem:[%s0 + $0x244] sm:$0xf]
    %v273 = vld [vmem:[%s0 + $0x248] sm:$0xf]
    %v274 = vld [vmem:[%s0 + $0x24c] sm:$0xf]
    %v275 = vld [vmem:[%s0 + $0x250] sm:$0xf]
    %v276 = vld [vmem:[%s0 + $0x254] sm:$0xf]
    %v277 = vld [vmem:[%s0 + $0x258] sm:$0xf]
    %v278 = vld [vmem:[%s0 + $0x25c] sm:$0xf]
    %v279 = vld [vmem:[%s0 + $0x260] sm:$0xf]
    %v280 = vld [vmem:[%s0 + $0x264] sm:$0xf]
    %v281 = vld [vmem:[%s0 + $0x268] sm:$0xf]
    %v282 = vld [vmem:[%s0 + $0x26c] sm:$0xf]
    %v283 = vld [vmem:[%s0 + $0x270] sm:$0xf]
    %v284 = vld [vmem:[%s0 + $0x274] sm:$0xf]
    %v285 = vld [vmem:[%s0 + $0x278] sm:$0xf]
    %v286 = vld [vmem:[%s0 + $0x27c] sm:$0xf]
    %v287 = vld [vmem:[%s0 + $0x280] sm:$0xf]
    %v288 = vld [vmem:[%s0 + $0x284] sm:$0xf]
    %v289 = vld [vmem:[%s0 + $0x288] sm:$0xf]
    %v290 = vld [vmem:[%s0 + $0x28c] sm:$0xf]
    %v291 = vld [vmem:[%s0 + $0x290] sm:$0xf]
    %v292 = vld [vmem:[%s0 + $0x294] sm:$0xf]
    %v293 = vld [vmem:[%s0 + $0x298] sm:$0xf]
    %v294 = vld [vmem:[%s0 + $0x29c] sm:$0xf]
    %v295 = vld [vmem:[%s0 + $0x2a0] sm:$0xf]
    %v296 = vld [vmem:[%s0 + $0x2a4] sm:$0xf]
    %v297 = vld [vmem:[%s0 + $0x2a8] sm:$0xf]
    %v298 = vld [vmem:[%s0 + $0x2ac] sm:$0xf]
    %v299 = vld [vmem:[%s0 + $0x2b0] sm:$0xf]
    %v300 = vld [vmem:[%s0 + $0x2b4] sm:$0xf]
    %v301 = vld [vmem:[%s0 + $0x2b8] sm:$0xf]
    %v302 = vld [vmem:[%s0 + $0x2bc] sm:$0xf]
    %v303 = vld [vmem:[%s0 + $0x2c0] sm:$0xf]
    %v304 = vld [vmem:[%s0 + $0x2c4] sm:$0xf]
    %v305 = vld [vmem:[%s0 + $0x2c8] sm:$0xf]
    %v306 = vld [vmem:[%s0 + $0x2cc] sm:$0xf]
    %v307 = vld [vmem:[%s0 + $0x2d0] sm:$0xf]
    %v308 = vld [vmem:[%s0 + $0x2d4] sm:$0xf]
    %v309 = vld [vmem:[%s0 + $0x2d8] sm:$0xf]
    %v310 = vld [vmem:[%s0 + $0x2dc] sm:$0xf]
    %v311 = vld [vmem:[%s0 + $0x2e0] sm:$0xf]
    %v312 = vld [vmem:[%s0 + $0x2e4] sm:$0xf]
    %v313 = vld [vmem:[%s0 + $0x2e8] sm:$0xf]
    %v314 = vld [vmem:[%s0 + $0x2ec] sm:$0xf]
    %v315 = vld [vmem:[%s0 + $0x2f0] sm:$0xf]
    %v316 = vld [vmem:[%s0 + $0x2f4] sm:$0xf]
    %v317 = vld [vmem:[%s0 + $0x2f8] sm:$0xf]
    %v318 = vld [vmem:[%s0 + $0x2fc] sm:$0xf]
    %v319 = vld [vmem:[%s0 + $0x300] sm:$0xf]
    %v320 = vld [vmem:[%s0 + $0x304] sm:$0xf]
    %v321 = vld [vmem:[%s0 + $0x308] sm:$0xf]
    %v322 = vld [vmem:[%s0 + $0x30c] sm:$0xf]
    %v323 = vld [vmem:[%s0 + $0x310] sm:$0xf]
    %v324 = vld [vmem:[%s0 + $0x314] sm:$0xf]
    %v325 = vld [vmem:[%s0 + $0x318] sm:$0xf]
    %v326 = vld [vmem:[%s0 + $0x31c] sm:$0xf]
    %v327 = vld [vmem:[%s0 + $0x320] sm:$0xf]
    %v328 = vld [vmem:[%s0 + $0x324] sm:$0xf]
    %v329 = vld [vmem:[%s0 + $0x328] sm:$0xf]
    %v330 = vld [vmem:[%s0 + $0x32c] sm:$0xf]
    %v331 = vld [vmem:[%s0 + $0x330] sm:$0xf]
    %v332 = vld [vmem:[%s0 + $0x334] sm:$0xf]
    %v333 = vld [vmem:[%s0 + $0x338] sm:$0xf]
    %v334 = vld [vmem:[%s0 + $0x33c] sm:$0xf]
    %v335 = vld [vmem:[%s0 + $0x340] sm:$0xf]
    %v336 = vld [vmem:[%s0 + $0x344] sm:$0xf]
    %v337 = vld [vmem:[%s0 + $0x348] sm:$0xf]
    %v338 = vld [vmem:[%s0 + $0x34c] sm:$0xf]
    %v339 = vld [vmem:[%s0 + $0x350] sm:$0xf]
    %v340 = vld [vmem:[%s0 + $0x354] sm:$0xf]
    %v341 = vld [vmem:[%s0 + $0x358] sm:$0xf]
    %v342 = vld [vmem:[%s0 + $0x35c] sm:$0xf]
    %v343 = vld [vmem:[%s0 + $0x360] sm:$0xf]
    %v344 = vld [vmem:[%s0 + $0x364] sm:$0xf]
    %v345 = vld [vmem:[%s0 + $0x368] sm:$0xf]
    %v346 = vld [vmem:[%s0 + $0x36c] sm:$0xf]
    %v347 = vld [vmem:[%s0 + $0x370] sm:$0xf]
    %v348 = vld [vmem:[%s0 + $0x374] sm:$0xf]
    %v349 = vld [vmem:[%s0 + $0x378] sm:$0xf]
    %v350 = vld [vmem:[%s0 + $0x37c] sm:$0xf]
    %v351 = vld [vmem:[%s0 + $0x380] sm:$0xf]
    %v352 = vld [vmem:[%s0 + $0x384] sm:$0xf]
    %v353 = vld [vmem:[%s0 + $0x388] sm:$0xf]
    %v354 = vld [vmem:[%s0 + $0x38c] sm:$0xf]
    %v355 = vld [vmem:[%s0 + $0x390] sm:$0xf]
    %v356 = vld [vmem:[%s0 + $0x394] sm:$0xf]
    %v357 = vld [vmem:[%s0 + $0x398] sm:$0xf]
    %v358 = vld [vmem:[%s0 + $0x39c] sm:$0xf]
    %v359 = vld [vmem:[%s0 + $0x3a0] sm:$0xf]
    %v360 = vld [vmem:[%s0 + $0x3a4] sm:$0xf]
    %v361 = vld [vmem:[%s0 + $0x3a8] sm:$0xf]
    %v362 = vld [vmem:[%s0 + $0x3ac] sm:$0xf]
    %v363 = vld [vmem:[%s0 + $0x3b0] sm:$0xf]
    %v364 = vld [vmem:[%s0 + $0x3b4] sm:$0xf]
    %v365 = vld [vmem:[%s0 + $0x3b8] sm:$0xf]
    %v366 = vld [vmem:[%s0 + $0x3bc] sm:$0xf]
    %v367 = vld [vmem:[%s0 + $0x3c0] sm:$0xf]
    %v368 = vld [vmem:[%s0 + $0x3c4] sm:$0xf]
    %v369 = vld [vmem:[%s0 + $0x3c8] sm:$0xf]
    %v370 = vld [vmem:[%s0 + $0x3cc] sm:$0xf]
    %v371 = vld [vmem:[%s0 + $0x3d0] sm:$0xf]
    %v372 = vld [vmem:[%s0 + $0x3d4] sm:$0xf]
    %v373 = vld [vmem:[%s0 + $0x3d8] sm:$0xf]
    %v374 = vld [vmem:[%s0 + $0x3dc] sm:$0xf]
    %v375 = vld [vmem:[%s0 + $0x3e0] sm:$0xf]
    %v376 = vld [vmem:[%s0 + $0x3e4] sm:$0xf]
    %v377 = vld [vmem:[%s0 + $0x3e8] sm:$0xf]
    %v378 = vld [vmem:[%s0 + $0x3ec] sm:$0xf]
    %v379 = vld [vmem:[%s0 + $0x3f0] sm:$0xf]
    %v380 = vld [vmem:[%s0 + $0x3f4] sm:$0xf]
    %v381 = vld [vmem:[%s0 + $0x3f8] sm:$0xf]
    %v382 = vld [vmem:[%s0 + $0x3fc] sm:$0xf]
    %v383 = vld [vmem:[#allocation4] sm:$0xf]
    %v384 = vld [vmem:[#allocation4 + $0x4] sm:$0xf]
    %v385 = vld [vmem:[#allocation4 + $0x8] sm:$0xf]
    %v386 = vld [vmem:[#allocation4 + $0xc] sm:$0x3]
    %v643 = vunpack.c.l.b16 %v127
    %v644 = vunpack.c.l.b16 %v128
    %v645 = vunpack.c.l.b16 %v129
    %v646 = vunpack.c.l.b16 %v130
    %v647 = vunpack.c.l.b16 %v131
    %v648 = vunpack.c.l.b16 %v132
    %v649 = vunpack.c.l.b16 %v133
    %v650 = vunpack.c.l.b16 %v134
    %v651 = vunpack.c.l.b16 %v135
    %v652 = vunpack.c.l.b16 %v136
    %v653 = vunpack.c.l.b16 %v137
    %v654 = vunpack.c.l.b16 %v138
    %v655 = vunpack.c.l.b16 %v139
    %v656 = vunpack.c.l.b16 %v140
    %v657 = vunpack.c.l.b16 %v141
    %v658 = vunpack.c.l.b16 %v142
    %v659 = vunpack.c.l.b16 %v143
    %v660 = vunpack.c.l.b16 %v144
    %v661 = vunpack.c.l.b16 %v145
    %v662 = vunpack.c.l.b16 %v146
    %v663 = vunpack.c.l.b16 %v147
    %v664 = vunpack.c.l.b16 %v148
    %v665 = vunpack.c.l.b16 %v149
    %v666 = vunpack.c.l.b16 %v150
    %v667 = vunpack.c.l.b16 %v151
    %v668 = vunpack.c.l.b16 %v152
    %v669 = vunpack.c.l.b16 %v153
    %v670 = vunpack.c.l.b16 %v154
    %v671 = vunpack.c.l.b16 %v155
    %v672 = vunpack.c.l.b16 %v156
    %v673 = vunpack.c.l.b16 %v157
    %v674 = vunpack.c.l.b16 %v158
    %v675 = vunpack.c.l.b16 %v159
    %v676 = vunpack.c.l.b16 %v160
    %v677 = vunpack.c.l.b16 %v161
    %v678 = vunpack.c.l.b16 %v162
    %v679 = vunpack.c.l.b16 %v163
    %v680 = vunpack.c.l.b16 %v164
    %v681 = vunpack.c.l.b16 %v165
    %v682 = vunpack.c.l.b16 %v166
    %v683 = vunpack.c.l.b16 %v167
    %v684 = vunpack.c.l.b16 %v168
    %v685 = vunpack.c.l.b16 %v169
    %v686 = vunpack.c.l.b16 %v170
    %v687 = vunpack.c.l.b16 %v171
    %v688 = vunpack.c.l.b16 %v172
    %v689 = vunpack.c.l.b16 %v173
    %v690 = vunpack.c.l.b16 %v174
    %v691 = vunpack.c.l.b16 %v175
    %v692 = vunpack.c.l.b16 %v176
    %v693 = vunpack.c.l.b16 %v177
    %v694 = vunpack.c.l.b16 %v178
    %v695 = vunpack.c.l.b16 %v179
    %v696 = vunpack.c.l.b16 %v180
    %v697 = vunpack.c.l.b16 %v181
    %v698 = vunpack.c.l.b16 %v182
    %v699 = vunpack.c.l.b16 %v183
    %v700 = vunpack.c.l.b16 %v184
    %v701 = vunpack.c.l.b16 %v185
    %v702 = vunpack.c.l.b16 %v186
    %v703 = vunpack.c.l.b16 %v187
    %v704 = vunpack.c.l.b16 %v188
    %v705 = vunpack.c.l.b16 %v189
    %v706 = vunpack.c.l.b16 %v190
    %v707 = vunpack.c.l.b16 %v191
    %v708 = vunpack.c.l.b16 %v192
    %v709 = vunpack.c.l.b16 %v193
    %v710 = vunpack.c.l.b16 %v194
    %v711 = vunpack.c.l.b16 %v195
    %v712 = vunpack.c.l.b16 %v196
    %v713 = vunpack.c.l.b16 %v197
    %v714 = vunpack.c.l.b16 %v198
    %v715 = vunpack.c.l.b16 %v199
    %v716 = vunpack.c.l.b16 %v200
    %v717 = vunpack.c.l.b16 %v201
    %v718 = vunpack.c.l.b16 %v202
    %v719 = vunpack.c.l.b16 %v203
    %v720 = vunpack.c.l.b16 %v204
    %v721 = vunpack.c.l.b16 %v205
    %v722 = vunpack.c.l.b16 %v206
    %v723 = vunpack.c.l.b16 %v207
    %v724 = vunpack.c.l.b16 %v208
    %v725 = vunpack.c.l.b16 %v209
    %v726 = vunpack.c.l.b16 %v210
    %v727 = vunpack.c.l.b16 %v211
    %v728 = vunpack.c.l.b16 %v212
    %v729 = vunpack.c.l.b16 %v213
    %v730 = vunpack.c.l.b16 %v214
    %v731 = vunpack.c.l.b16 %v215
    %v732 = vunpack.c.l.b16 %v216
    %v733 = vunpack.c.l.b16 %v217
    %v734 = vunpack.c.l.b16 %v218
    %v735 = vunpack.c.l.b16 %v219
    %v736 = vunpack.c.l.b16 %v220
    %v737 = vunpack.c.l.b16 %v221
    %v738 = vunpack.c.l.b16 %v222
    %v739 = vunpack.c.l.b16 %v223
    %v740 = vunpack.c.l.b16 %v224
    %v741 = vunpack.c.l.b16 %v225
    %v742 = vunpack.c.l.b16 %v226
    %v743 = vunpack.c.l.b16 %v227
    %v744 = vunpack.c.l.b16 %v228
    %v745 = vunpack.c.l.b16 %v229
    %v746 = vunpack.c.l.b16 %v230
    %v747 = vunpack.c.l.b16 %v231
    %v748 = vunpack.c.l.b16 %v232
    %v749 = vunpack.c.l.b16 %v233
    %v750 = vunpack.c.l.b16 %v234
    %v751 = vunpack.c.l.b16 %v235
    %v752 = vunpack.c.l.b16 %v236
    %v753 = vunpack.c.l.b16 %v237
    %v754 = vunpack.c.l.b16 %v238
    %v755 = vunpack.c.l.b16 %v239
    %v756 = vunpack.c.l.b16 %v240
    %v757 = vunpack.c.l.b16 %v241
    %v758 = vunpack.c.l.b16 %v242
    %v759 = vunpack.c.l.b16 %v243
    %v760 = vunpack.c.l.b16 %v244
    %v761 = vunpack.c.l.b16 %v245
    %v762 = vunpack.c.l.b16 %v246
    %v763 = vunpack.c.l.b16 %v247
    %v764 = vunpack.c.l.b16 %v248
    %v765 = vunpack.c.l.b16 %v249
    %v766 = vunpack.c.l.b16 %v250
    %v767 = vunpack.c.l.b16 %v251
    %v768 = vunpack.c.l.b16 %v252
    %v769 = vunpack.c.l.b16 %v253
    %v770 = vunpack.c.l.b16 %v254
    %v771 = vunpack.c.l.b16 %v255
    %v772 = vunpack.c.l.b16 %v256
    %v773 = vunpack.c.l.b16 %v257
    %v774 = vunpack.c.l.b16 %v258
    %v775 = vunpack.c.l.b16 %v259
    %v776 = vunpack.c.l.b16 %v260
    %v777 = vunpack.c.l.b16 %v261
    %v778 = vunpack.c.l.b16 %v262
    %v779 = vunpack.c.l.b16 %v263
    %v780 = vunpack.c.l.b16 %v264
    %v781 = vunpack.c.l.b16 %v265
    %v782 = vunpack.c.l.b16 %v266
    %v783 = vunpack.c.l.b16 %v267
    %v784 = vunpack.c.l.b16 %v268
    %v785 = vunpack.c.l.b16 %v269
    %v786 = vunpack.c.l.b16 %v270
    %v787 = vunpack.c.l.b16 %v271
    %v788 = vunpack.c.l.b16 %v272
    %v789 = vunpack.c.l.b16 %v273
    %v790 = vunpack.c.l.b16 %v274
    %v791 = vunpack.c.l.b16 %v275
    %v792 = vunpack.c.l.b16 %v276
    %v793 = vunpack.c.l.b16 %v277
    %v794 = vunpack.c.l.b16 %v278
    %v795 = vunpack.c.l.b16 %v279
    %v796 = vunpack.c.l.b16 %v280
    %v797 = vunpack.c.l.b16 %v281
    %v798 = vunpack.c.l.b16 %v282
    %v799 = vunpack.c.l.b16 %v283
    %v800 = vunpack.c.l.b16 %v284
    %v801 = vunpack.c.l.b16 %v285
    %v802 = vunpack.c.l.b16 %v286
    %v803 = vunpack.c.l.b16 %v287
    %v804 = vunpack.c.l.b16 %v288
    %v805 = vunpack.c.l.b16 %v289
    %v806 = vunpack.c.l.b16 %v290
    %v807 = vunpack.c.l.b16 %v291
    %v808 = vunpack.c.l.b16 %v292
    %v809 = vunpack.c.l.b16 %v293
    %v810 = vunpack.c.l.b16 %v294
    %v811 = vunpack.c.l.b16 %v295
    %v812 = vunpack.c.l.b16 %v296
    %v813 = vunpack.c.l.b16 %v297
    %v814 = vunpack.c.l.b16 %v298
    %v815 = vunpack.c.l.b16 %v299
    %v816 = vunpack.c.l.b16 %v300
    %v817 = vunpack.c.l.b16 %v301
    %v818 = vunpack.c.l.b16 %v302
    %v819 = vunpack.c.l.b16 %v303
    %v820 = vunpack.c.l.b16 %v304
    %v821 = vunpack.c.l.b16 %v305
    %v822 = vunpack.c.l.b16 %v306
    %v823 = vunpack.c.l.b16 %v307
    %v824 = vunpack.c.l.b16 %v308
    %v825 = vunpack.c.l.b16 %v309
    %v826 = vunpack.c.l.b16 %v310
    %v827 = vunpack.c.l.b16 %v311
    %v828 = vunpack.c.l.b16 %v312
    %v829 = vunpack.c.l.b16 %v313
    %v830 = vunpack.c.l.b16 %v314
    %v831 = vunpack.c.l.b16 %v315
    %v832 = vunpack.c.l.b16 %v316
    %v833 = vunpack.c.l.b16 %v317
    %v834 = vunpack.c.l.b16 %v318
    %v835 = vunpack.c.l.b16 %v319
    %v836 = vunpack.c.l.b16 %v320
    %v837 = vunpack.c.l.b16 %v321
    %v838 = vunpack.c.l.b16 %v322
    %v839 = vunpack.c.l.b16 %v323
    %v840 = vunpack.c.l.b16 %v324
    %v841 = vunpack.c.l.b16 %v325
    %v842 = vunpack.c.l.b16 %v326
    %v843 = vunpack.c.l.b16 %v327
    %v844 = vunpack.c.l.b16 %v328
    %v845 = vunpack.c.l.b16 %v329
    %v846 = vunpack.c.l.b16 %v330
    %v847 = vunpack.c.l.b16 %v331
    %v848 = vunpack.c.l.b16 %v332
    %v849 = vunpack.c.l.b16 %v333
    %v850 = vunpack.c.l.b16 %v334
    %v851 = vunpack.c.l.b16 %v335
    %v852 = vunpack.c.l.b16 %v336
    %v853 = vunpack.c.l.b16 %v337
    %v854 = vunpack.c.l.b16 %v338
    %v855 = vunpack.c.l.b16 %v339
    %v856 = vunpack.c.l.b16 %v340
    %v857 = vunpack.c.l.b16 %v341
    %v858 = vunpack.c.l.b16 %v342
    %v859 = vunpack.c.l.b16 %v343
    %v860 = vunpack.c.l.b16 %v344
    %v861 = vunpack.c.l.b16 %v345
    %v862 = vunpack.c.l.b16 %v346
    %v863 = vunpack.c.l.b16 %v347
    %v864 = vunpack.c.l.b16 %v348
    %v865 = vunpack.c.l.b16 %v349
    %v866 = vunpack.c.l.b16 %v350
    %v867 = vunpack.c.l.b16 %v351
    %v868 = vunpack.c.l.b16 %v352
    %v869 = vunpack.c.l.b16 %v353
    %v870 = vunpack.c.l.b16 %v354
    %v871 = vunpack.c.l.b16 %v355
    %v872 = vunpack.c.l.b16 %v356
    %v873 = vunpack.c.l.b16 %v357
    %v874 = vunpack.c.l.b16 %v358
    %v875 = vunpack.c.l.b16 %v359
    %v876 = vunpack.c.l.b16 %v360
    %v877 = vunpack.c.l.b16 %v361
    %v878 = vunpack.c.l.b16 %v362
    %v879 = vunpack.c.l.b16 %v363
    %v880 = vunpack.c.l.b16 %v364
    %v881 = vunpack.c.l.b16 %v365
    %v882 = vunpack.c.l.b16 %v366
    %v883 = vunpack.c.l.b16 %v367
    %v884 = vunpack.c.l.b16 %v368
    %v885 = vunpack.c.l.b16 %v369
    %v886 = vunpack.c.l.b16 %v370
    %v887 = vunpack.c.l.b16 %v371
    %v888 = vunpack.c.l.b16 %v372
    %v889 = vunpack.c.l.b16 %v373
    %v890 = vunpack.c.l.b16 %v374
    %v891 = vunpack.c.l.b16 %v375
    %v892 = vunpack.c.l.b16 %v376
    %v893 = vunpack.c.l.b16 %v377
    %v894 = vunpack.c.l.b16 %v378
    %v895 = vunpack.c.l.b16 %v379
    %v896 = vunpack.c.l.b16 %v380
    %v897 = vunpack.c.l.b16 %v381
    %v898 = vunpack.c.l.b16 %v382
    %v899 = vpack.c.b16 %v644, %v643
    %v900 = vpack.c.b16 %v646, %v645
    %v901 = vpack.c.b16 %v648, %v647
    %v902 = vpack.c.b16 %v650, %v649
    %v903 = vpack.c.b16 %v652, %v651
    %v904 = vpack.c.b16 %v654, %v653
    %v905 = vpack.c.b16 %v656, %v655
    %v906 = vpack.c.b16 %v658, %v657
    %v907 = vpack.c.b16 %v660, %v659
    %v908 = vpack.c.b16 %v662, %v661
    %v909 = vpack.c.b16 %v664, %v663
    %v910 = vpack.c.b16 %v666, %v665
    %v911 = vpack.c.b16 %v668, %v667
    %v912 = vpack.c.b16 %v670, %v669
    %v913 = vpack.c.b16 %v672, %v671
    %v914 = vpack.c.b16 %v674, %v673
    %v915 = vpack.c.b16 %v676, %v675
    %v916 = vpack.c.b16 %v678, %v677
    %v917 = vpack.c.b16 %v680, %v679
    %v918 = vpack.c.b16 %v682, %v681
    %v919 = vpack.c.b16 %v684, %v683
    %v920 = vpack.c.b16 %v686, %v685
    %v921 = vpack.c.b16 %v688, %v687
    %v922 = vpack.c.b16 %v690, %v689
    %v923 = vpack.c.b16 %v692, %v691
    %v924 = vpack.c.b16 %v694, %v693
    %v925 = vpack.c.b16 %v696, %v695
    %v926 = vpack.c.b16 %v698, %v697
    %v927 = vpack.c.b16 %v700, %v699
    %v928 = vpack.c.b16 %v702, %v701
    %v929 = vpack.c.b16 %v704, %v703
    %v930 = vpack.c.b16 %v706, %v705
    %v931 = vpack.c.b16 %v708, %v707
    %v932 = vpack.c.b16 %v710, %v709
    %v933 = vpack.c.b16 %v712, %v711
    %v934 = vpack.c.b16 %v714, %v713
    %v935 = vpack.c.b16 %v716, %v715
    %v936 = vpack.c.b16 %v718, %v717
    %v937 = vpack.c.b16 %v720, %v719
    %v938 = vpack.c.b16 %v722, %v721
    %v939 = vpack.c.b16 %v724, %v723
    %v940 = vpack.c.b16 %v726, %v725
    %v941 = vpack.c.b16 %v728, %v727
    %v942 = vpack.c.b16 %v730, %v729
    %v943 = vpack.c.b16 %v732, %v731
    %v944 = vpack.c.b16 %v734, %v733
    %v945 = vpack.c.b16 %v736, %v735
    %v946 = vpack.c.b16 %v738, %v737
    %v947 = vpack.c.b16 %v740, %v739
    %v948 = vpack.c.b16 %v742, %v741
    %v949 = vpack.c.b16 %v744, %v743
    %v950 = vpack.c.b16 %v746, %v745
    %v951 = vpack.c.b16 %v748, %v747
    %v952 = vpack.c.b16 %v750, %v749
    %v953 = vpack.c.b16 %v752, %v751
    %v954 = vpack.c.b16 %v754, %v753
    %v955 = vpack.c.b16 %v756, %v755
    %v956 = vpack.c.b16 %v758, %v757
    %v957 = vpack.c.b16 %v760, %v759
    %v958 = vpack.c.b16 %v762, %v761
    %v959 = vpack.c.b16 %v764, %v763
    %v960 = vpack.c.b16 %v766, %v765
    %v961 = vpack.c.b16 %v768, %v767
    %v962 = vpack.c.b16 %v770, %v769
    %v963 = vpack.c.b16 %v772, %v771
    %v964 = vpack.c.b16 %v774, %v773
    %v965 = vpack.c.b16 %v776, %v775
    %v966 = vpack.c.b16 %v778, %v777
    %v967 = vpack.c.b16 %v780, %v779
    %v968 = vpack.c.b16 %v782, %v781
    %v969 = vpack.c.b16 %v784, %v783
    %v970 = vpack.c.b16 %v786, %v785
    %v971 = vpack.c.b16 %v788, %v787
    %v972 = vpack.c.b16 %v790, %v789
    %v973 = vpack.c.b16 %v792, %v791
    %v974 = vpack.c.b16 %v794, %v793
    %v975 = vpack.c.b16 %v796, %v795
    %v976 = vpack.c.b16 %v798, %v797
    %v977 = vpack.c.b16 %v800, %v799
    %v978 = vpack.c.b16 %v802, %v801
    %v979 = vpack.c.b16 %v804, %v803
    %v980 = vpack.c.b16 %v806, %v805
    %v981 = vpack.c.b16 %v808, %v807
    %v982 = vpack.c.b16 %v810, %v809
    %v983 = vpack.c.b16 %v812, %v811
    %v984 = vpack.c.b16 %v814, %v813
    %v985 = vpack.c.b16 %v816, %v815
    %v986 = vpack.c.b16 %v818, %v817
    %v987 = vpack.c.b16 %v820, %v819
    %v988 = vpack.c.b16 %v822, %v821
    %v989 = vpack.c.b16 %v824, %v823
    %v990 = vpack.c.b16 %v826, %v825
    %v991 = vpack.c.b16 %v828, %v827
    %v992 = vpack.c.b16 %v830, %v829
    %v993 = vpack.c.b16 %v832, %v831
    %v994 = vpack.c.b16 %v834, %v833
    %v995 = vpack.c.b16 %v836, %v835
    %v996 = vpack.c.b16 %v838, %v837
    %v997 = vpack.c.b16 %v840, %v839
    %v998 = vpack.c.b16 %v842, %v841
    %v999 = vpack.c.b16 %v844, %v843
    %v1000 = vpack.c.b16 %v846, %v845
    %v1001 = vpack.c.b16 %v848, %v847
    %v1002 = vpack.c.b16 %v850, %v849
    %v1003 = vpack.c.b16 %v852, %v851
    %v1004 = vpack.c.b16 %v854, %v853
    %v1005 = vpack.c.b16 %v856, %v855
    %v1006 = vpack.c.b16 %v858, %v857
    %v1007 = vpack.c.b16 %v860, %v859
    %v1008 = vpack.c.b16 %v862, %v861
    %v1009 = vpack.c.b16 %v864, %v863
    %v1010 = vpack.c.b16 %v866, %v865
    %v1011 = vpack.c.b16 %v868, %v867
    %v1012 = vpack.c.b16 %v870, %v869
    %v1013 = vpack.c.b16 %v872, %v871
    %v1014 = vpack.c.b16 %v874, %v873
    %v1015 = vpack.c.b16 %v876, %v875
    %v1016 = vpack.c.b16 %v878, %v877
    %v1017 = vpack.c.b16 %v880, %v879
    %v1018 = vpack.c.b16 %v882, %v881
    %v1019 = vpack.c.b16 %v884, %v883
    %v1020 = vpack.c.b16 %v886, %v885
    %v1021 = vpack.c.b16 %v888, %v887
    %v1022 = vpack.c.b16 %v890, %v889
    %v1023 = vpack.c.b16 %v892, %v891
    %v1024 = vpack.c.b16 %v894, %v893
    %v1025 = vpack.c.b16 %v896, %v895
    %v1026 = vpack.c.b16 %v898, %v897
    %v1031 = vunpack.c.l.b16 %v383
    %v1032 = vunpack.c.l.b16 %v384
    %v1033 = vunpack.c.l.b16 %v385
    %v1034 = vunpack.c.l.b16 %v386
    %v1035 = vpack.c.b16 %v1032, %v1031
    %v1036 = vpack.c.b16 %v1034, %v1033
    %vm1038 = vcmask 220160
    %v1040 = vsel %vm1038, %v899, 0
    %v1043 = vsel %vm1038, %v900, 0
    %v1046 = vsel %vm1038, %v901, 0
    %v1049 = vsel %vm1038, %v902, 0
    %v1052 = vsel %vm1038, %v903, 0
    %v1055 = vsel %vm1038, %v904, 0
    %v1058 = vsel %vm1038, %v905, 0
    %v1061 = vsel %vm1038, %v906, 0
    %v1064 = vsel %vm1038, %v907, 0
    %v1067 = vsel %vm1038, %v908, 0
    %v1070 = vsel %vm1038, %v909, 0
    %v1073 = vsel %vm1038, %v910, 0
    %v1076 = vsel %vm1038, %v911, 0
    %v1079 = vsel %vm1038, %v912, 0
    %v1082 = vsel %vm1038, %v913, 0
    %v1085 = vsel %vm1038, %v914, 0
    %v1088 = vsel %vm1038, %v915, 0
    %v1091 = vsel %vm1038, %v916, 0
    %v1094 = vsel %vm1038, %v917, 0
    %v1097 = vsel %vm1038, %v918, 0
    %v1100 = vsel %vm1038, %v919, 0
    %v1103 = vsel %vm1038, %v920, 0
    %v1106 = vsel %vm1038, %v921, 0
    %v1109 = vsel %vm1038, %v922, 0
    %v1112 = vsel %vm1038, %v923, 0
    %v1115 = vsel %vm1038, %v924, 0
    %v1118 = vsel %vm1038, %v925, 0
    %v1121 = vsel %vm1038, %v926, 0
    %v1124 = vsel %vm1038, %v927, 0
    %v1127 = vsel %vm1038, %v928, 0
    %v1130 = vsel %vm1038, %v929, 0
    %v1133 = vsel %vm1038, %v930, 0
    %v1136 = vsel %vm1038, %v931, 0
    %v1139 = vsel %vm1038, %v932, 0
    %v1142 = vsel %vm1038, %v933, 0
    %v1145 = vsel %vm1038, %v934, 0
    %v1148 = vsel %vm1038, %v935, 0
    %v1151 = vsel %vm1038, %v936, 0
    %v1154 = vsel %vm1038, %v937, 0
    %v1157 = vsel %vm1038, %v938, 0
    %v1160 = vsel %vm1038, %v939, 0
    %v1163 = vsel %vm1038, %v940, 0
    %v1166 = vsel %vm1038, %v941, 0
    %v1169 = vsel %vm1038, %v942, 0
    %v1172 = vsel %vm1038, %v943, 0
    %v1175 = vsel %vm1038, %v944, 0
    %v1178 = vsel %vm1038, %v945, 0
    %v1181 = vsel %vm1038, %v946, 0
    %v1184 = vsel %vm1038, %v947, 0
    %v1187 = vsel %vm1038, %v948, 0
    %v1190 = vsel %vm1038, %v949, 0
    %v1193 = vsel %vm1038, %v950, 0
    %v1196 = vsel %vm1038, %v951, 0
    %v1199 = vsel %vm1038, %v952, 0
    %v1202 = vsel %vm1038, %v953, 0
    %v1205 = vsel %vm1038, %v954, 0
    %v1208 = vsel %vm1038, %v955, 0
    %v1211 = vsel %vm1038, %v956, 0
    %v1214 = vsel %vm1038, %v957, 0
    %v1217 = vsel %vm1038, %v958, 0
    %v1220 = vsel %vm1038, %v959, 0
    %v1223 = vsel %vm1038, %v960, 0
    %v1226 = vsel %vm1038, %v961, 0
    %v1229 = vsel %vm1038, %v962, 0
    %v1232 = vsel %vm1038, %v963, 0
    %v1235 = vsel %vm1038, %v964, 0
    %v1238 = vsel %vm1038, %v965, 0
    %v1241 = vsel %vm1038, %v966, 0
    %v1244 = vsel %vm1038, %v967, 0
    %v1247 = vsel %vm1038, %v968, 0
    %v1250 = vsel %vm1038, %v969, 0
    %v1253 = vsel %vm1038, %v970, 0
    %v1256 = vsel %vm1038, %v971, 0
    %v1259 = vsel %vm1038, %v972, 0
    %v1262 = vsel %vm1038, %v973, 0
    %v1265 = vsel %vm1038, %v974, 0
    %v1268 = vsel %vm1038, %v975, 0
    %v1271 = vsel %vm1038, %v976, 0
    %v1274 = vsel %vm1038, %v977, 0
    %v1277 = vsel %vm1038, %v978, 0
    %v1280 = vsel %vm1038, %v979, 0
    %v1283 = vsel %vm1038, %v980, 0
    %v1286 = vsel %vm1038, %v981, 0
    %v1289 = vsel %vm1038, %v982, 0
    %v1292 = vsel %vm1038, %v983, 0
    %v1295 = vsel %vm1038, %v984, 0
    %v1298 = vsel %vm1038, %v985, 0
    %v1301 = vsel %vm1038, %v986, 0
    %v1304 = vsel %vm1038, %v987, 0
    %v1307 = vsel %vm1038, %v988, 0
    %v1310 = vsel %vm1038, %v989, 0
    %v1313 = vsel %vm1038, %v990, 0
    %v1316 = vsel %vm1038, %v991, 0
    %v1319 = vsel %vm1038, %v992, 0
    %v1322 = vsel %vm1038, %v993, 0
    %v1325 = vsel %vm1038, %v994, 0
    %v1328 = vsel %vm1038, %v995, 0
    %v1331 = vsel %vm1038, %v996, 0
    %v1334 = vsel %vm1038, %v997, 0
    %v1337 = vsel %vm1038, %v998, 0
    %v1340 = vsel %vm1038, %v999, 0
    %v1343 = vsel %vm1038, %v1000, 0
    %v1346 = vsel %vm1038, %v1001, 0
    %v1349 = vsel %vm1038, %v1002, 0
    %v1352 = vsel %vm1038, %v1003, 0
    %v1355 = vsel %vm1038, %v1004, 0
    %v1358 = vsel %vm1038, %v1005, 0
    %v1361 = vsel %vm1038, %v1006, 0
    %v1364 = vsel %vm1038, %v1007, 0
    %v1367 = vsel %vm1038, %v1008, 0
    %v1370 = vsel %vm1038, %v1009, 0
    %v1373 = vsel %vm1038, %v1010, 0
    %v1376 = vsel %vm1038, %v1011, 0
    %v1379 = vsel %vm1038, %v1012, 0
    %v1382 = vsel %vm1038, %v1013, 0
    %v1385 = vsel %vm1038, %v1014, 0
    %v1388 = vsel %vm1038, %v1015, 0
    %v1391 = vsel %vm1038, %v1016, 0
    %v1394 = vsel %vm1038, %v1017, 0
    %v1397 = vsel %vm1038, %v1018, 0
    %v1400 = vsel %vm1038, %v1019, 0
    %v1403 = vsel %vm1038, %v1020, 0
    %v1406 = vsel %vm1038, %v1021, 0
    %v1409 = vsel %vm1038, %v1022, 0
    %v1412 = vsel %vm1038, %v1023, 0
    %v1415 = vsel %vm1038, %v1024, 0
    %v1418 = vsel %vm1038, %v1025, 0
    %v1421 = vsel %vm1038, %v1026, 0
    %vm1423 = vcmask 1044480
    %vm1424 = vcmask 1045504
    %v1425 = vsel %vm1423, 4294967295, 65535
    %v1426 = vsel %vm1424, %v1425, 0
    %v1428 = vand.u32 %v1036, %v1426
    %1430 = vmatprep.subr.bf16.mxu0 0
    %1431 = vmatpush1.bf16.msra.mxu0 %v1035
    %1432 = vmatprep.subr.bf16.mxu0 0
    %1433 = vmatpush1.bf16.msra.mxu0 %v1428
    %1434 = vmatprep.subr.bf16.mxu0 0
    %1435 = vmatpush1.bf16.msra.mxu0 0
    %1436 = vmatprep.subr.bf16.mxu0 0
    %1437 = vmatpush1.bf16.msra.mxu0 0
    %1438 = vmatprep.subr.bf16.mxu0 0
    %1439 = vmatpush1.bf16.msra.mxu0 0
    %1440 = vmatprep.subr.bf16.mxu0 0
    %1441 = vmatpush1.bf16.msra.mxu0 0
    %1442 = vmatprep.subr.bf16.mxu0 0
    %1443 = vmatpush1.bf16.msra.mxu0 0
    %1444 = vmatprep.subr.bf16.mxu0 0
    %1445 = vmatpush1.bf16.msra.mxu0 0
    %1446 = vmatprep.subr.bf16.mxu0 0
    %1447 = vmatpush1.bf16.msra.mxu0 0
    %1448 = vmatprep.subr.bf16.mxu0 0
    %1449 = vmatpush1.bf16.msra.mxu0 0
    %1450 = vmatprep.subr.bf16.mxu0 0
    %1451 = vmatpush1.bf16.msra.mxu0 0
    %1452 = vmatprep.subr.bf16.mxu0 0
    %1453 = vmatpush1.bf16.msra.mxu0 0
    %1454 = vmatprep.subr.bf16.mxu0 0
    %1455 = vmatpush1.bf16.msra.mxu0 0
    %1456 = vmatprep.subr.bf16.mxu0 0
    %1457 = vmatpush1.bf16.msra.mxu0 0
    %1458 = vmatprep.subr.bf16.mxu0 0
    %1459 = vmatpush1.bf16.msra.mxu0 0
    %1460 = vmatprep.subr.bf16.mxu0 0
    %1461 = vmatpush1.bf16.msra.mxu0 0
    %1462 = vmatprep.mubr.bf16.mxu0 0
    %1463 = vmatmul.mubr.bf16.gmra.mrb[0].mxu0 %v1040
    %v1464 = vpop.f32.mrb[0].mxu0
    %v1465 = vadd.f32 0.0, %v1464
    %v1466 = vpop.f32.mrb[0].mxu0
    %v1467 = vpop.f32.mrb[0].mxu0
    %v1468 = vadd.f32 0.0, %v1467
    %v1469 = vpop.f32.mrb[0].mxu0
    %1470 = vmatprep.mubr.bf16.mxu0 0
    %1471 = vmatmul.mubr.bf16.gmra.mrb[0].mxu0 %v1043
    %v1472 = vpop.f32.mrb[0].mxu0
    %v1473 = vadd.f32 0.0, %v1472
    %v1474 = vpop.f32.mrb[0].mxu0
    %v1475 = vpop.f32.mrb[0].mxu0
    %v1476 = vadd.f32 0.0, %v1475
    %v1477 = vpop.f32.mrb[0].mxu0
    %1478 = vmatprep.mubr.bf16.mxu0 0
    %1479 = vmatmul.mubr.bf16.gmra.mrb[0].mxu0 %v1046
    %v1480 = vpop.f32.mrb[0].mxu0
    %v1481 = vadd.f32 0.0, %v1480
    %v1482 = vpop.f32.mrb[0].mxu0
    %v1483 = vpop.f32.mrb[0].mxu0
    %v1484 = vadd.f32 0.0, %v1483
    %v1485 = vpop.f32.mrb[0].mxu0
    %1486 = vmatprep.mubr.bf16.mxu0 0
    %1487 = vmatmul.mubr.bf16.gmra.mrb[0].mxu0 %v1049
    %v1488 = vpop.f32.mrb[0].mxu0
    %v1489 = vadd.f32 0.0, %v1488
    %v1490 = vpop.f32.mrb[0].mxu0
    %v1491 = vpop.f32.mrb[0].mxu0
    %v1492 = vadd.f32 0.0, %v1491
    %v1493 = vpop.f32.mrb[0].mxu0
    %1494 = vmatprep.mubr.bf16.mxu0 0
    %1495 = vmatmul.mubr.bf16.gmra.mrb[0].mxu0 %v1052
    %v1496 = vpop.f32.mrb[0].mxu0
    %v1497 = vadd.f32 0.0, %v1496
    %v1498 = vpop.f32.mrb[0].mxu0
    %v1499 = vpop.f32.mrb[0].mxu0
    %v1500 = vadd.f32 0.0, %v1499
    %v1501 = vpop.f32.mrb[0].mxu0
    %1502 = vmatprep.mubr.bf16.mxu0 0
    %1503 = vmatmul.mubr.bf16.gmra.mrb[0].mxu0 %v1055
    %v1504 = vpop.f32.mrb[0].mxu0
    %v1505 = vadd.f32 0.0, %v1504
    %v1506 = vpop.f32.mrb[0].mxu0
    %v1507 = vpop.f32.mrb[0].mxu0
    %v1508 = vadd.f32 0.0, %v1507
    %v1509 = vpop.f32.mrb[0].mxu0
    %1510 = vmatprep.mubr.bf16.mxu0 0
    %1511 = vmatmul.mubr.bf16.gmra.mrb[0].mxu0 %v1058
    %v1512 = vpop.f32.mrb[0].mxu0
    %v1513 = vadd.f32 0.0, %v1512
    %v1514 = vpop.f32.mrb[0].mxu0
    %v1515 = vpop.f32.mrb[0].mxu0
    %v1516 = vadd.f32 0.0, %v1515
    %v1517 = vpop.f32.mrb[0].mxu0
    %1518 = vmatprep.mubr.bf16.mxu0 0
    %1519 = vmatmul.mubr.bf16.gmra.mrb[0].mxu0 %v1061
    %v1520 = vpop.f32.mrb[0].mxu0
    %v1521 = vadd.f32 0.0, %v1520
    %v1522 = vpop.f32.mrb[0].mxu0
    %v1523 = vpop.f32.mrb[0].mxu0
    %v1524 = vadd.f32 0.0, %v1523
    %v1525 = vpop.f32.mrb[0].mxu0
    %1526 = vmatprep.mubr.bf16.mxu0 0
    %1527 = vmatmul.mubr.bf16.gmra.mrb[0].mxu0 %v1064
    %v1528 = vpop.f32.mrb[0].mxu0
    %v1529 = vadd.f32 0.0, %v1528
    %v1530 = vpop.f32.mrb[0].mxu0
    %v1531 = vpop.f32.mrb[0].mxu0
    %v1532 = vadd.f32 0.0, %v1531
    %v1533 = vpop.f32.mrb[0].mxu0
    %1534 = vmatprep.mubr.bf16.mxu0 0
    %1535 = vmatmul.mubr.bf16.gmra.mrb[0].mxu0 %v1067
    %v1536 = vpop.f32.mrb[0].mxu0
    %v1537 = vadd.f32 0.0, %v1536
    %v1538 = vpop.f32.mrb[0].mxu0
    %v1539 = vpop.f32.mrb[0].mxu0
    %v1540 = vadd.f32 0.0, %v1539
    %v1541 = vpop.f32.mrb[0].mxu0
    %1542 = vmatprep.mubr.bf16.mxu0 0
    %1543 = vmatmul.mubr.bf16.gmra.mrb[0].mxu0 %v1070
    %v1544 = vpop.f32.mrb[0].mxu0
    %v1545 = vadd.f32 0.0, %v1544
    %v1546 = vpop.f32.mrb[0].mxu0
    %v1547 = vpop.f32.mrb[0].mxu0
    %v1548 = vadd.f32 0.0, %v1547
    %v1549 = vpop.f32.mrb[0].mxu0
    %1550 = vmatprep.mubr.bf16.mxu0 0
    %1551 = vmatmul.mubr.bf16.gmra.mrb[0].mxu0 %v1073
    %v1552 = vpop.f32.mrb[0].mxu0
    %v1553 = vadd.f32 0.0, %v1552
    %v1554 = vpop.f32.mrb[0].mxu0
    %v1555 = vpop.f32.mrb[0].mxu0
    %v1556 = vadd.f32 0.0, %v1555
    %v1557 = vpop.f32.mrb[0].mxu0
    %1558 = vmatprep.mubr.bf16.mxu0 0
    %1559 = vmatmul.mubr.bf16.gmra.mrb[0].mxu0 %v1076
    %v1560 = vpop.f32.mrb[0].mxu0
    %v1561 = vadd.f32 0.0, %v1560
    %v1562 = vpop.f32.mrb[0].mxu0
    %v1563 = vpop.f32.mrb[0].mxu0
    %v1564 = vadd.f32 0.0, %v1563
    %v1565 = vpop.f32.mrb[0].mxu0
    %1566 = vmatprep.mubr.bf16.mxu0 0
    %1567 = vmatmul.mubr.bf16.gmra.mrb[0].mxu0 %v1079
    %v1568 = vpop.f32.mrb[0].mxu0
    %v1569 = vadd.f32 0.0, %v1568
    %v1570 = vpop.f32.mrb[0].mxu0
    %v1571 = vpop.f32.mrb[0].mxu0
    %v1572 = vadd.f32 0.0, %v1571
    %v1573 = vpop.f32.mrb[0].mxu0
    %1574 = vmatprep.mubr.bf16.mxu0 0
    %1575 = vmatmul.mubr.bf16.gmra.mrb[0].mxu0 %v1082
    %v1576 = vpop.f32.mrb[0].mxu0
    %v1577 = vadd.f32 0.0, %v1576
    %v1578 = vpop.f32.mrb[0].mxu0
    %v1579 = vpop.f32.mrb[0].mxu0
    %v1580 = vadd.f32 0.0, %v1579
    %v1581 = vpop.f32.mrb[0].mxu0
    %1582 = vmatprep.mubr.bf16.mxu0 0
    %1583 = vmatmul.mubr.bf16.gmra.mrb[0].mxu0 %v1085
    %v1584 = vpop.f32.mrb[0].mxu0
    %v1585 = vadd.f32 0.0, %v1584
    %v1586 = vpop.f32.mrb[0].mxu0
    %v1587 = vpop.f32.mrb[0].mxu0
    %v1588 = vadd.f32 0.0, %v1587
    %v1589 = vpop.f32.mrb[0].mxu0
    %1590 = vmatprep.mubr.bf16.mxu0 0
    %1591 = vmatmul.mubr.bf16.gmra.mrb[0].mxu0 %v1088
    %v1592 = vpop.f32.mrb[0].mxu0
    %v1593 = vadd.f32 0.0, %v1592
    %v1594 = vpop.f32.mrb[0].mxu0
    %v1595 = vpop.f32.mrb[0].mxu0
    %v1596 = vadd.f32 0.0, %v1595
    %v1597 = vpop.f32.mrb[0].mxu0
    %1598 = vmatprep.mubr.bf16.mxu0 0
    %1599 = vmatmul.mubr.bf16.gmra.mrb[0].mxu0 %v1091
    %v1600 = vpop.f32.mrb[0].mxu0
    %v1601 = vadd.f32 0.0, %v1600
    %v1602 = vpop.f32.mrb[0].mxu0
    %v1603 = vpop.f32.mrb[0].mxu0
    %v1604 = vadd.f32 0.0, %v1603
    %v1605 = vpop.f32.mrb[0].mxu0
    %1606 = vmatprep.mubr.bf16.mxu0 0
    %1607 = vmatmul.mubr.bf16.gmra.mrb[0].mxu0 %v1094
    %v1608 = vpop.f32.mrb[0].mxu0
    %v1609 = vadd.f32 0.0, %v1608
    %v1610 = vpop.f32.mrb[0].mxu0
    %v1611 = vpop.f32.mrb[0].mxu0
    %v1612 = vadd.f32 0.0, %v1611
    %v1613 = vpop.f32.mrb[0].mxu0
    %1614 = vmatprep.mubr.bf16.mxu0 0
    %1615 = vmatmul.mubr.bf16.gmra.mrb[0].mxu0 %v1097
    %v1616 = vpop.f32.mrb[0].mxu0
    %v1617 = vadd.f32 0.0, %v1616
    %v1618 = vpop.f32.mrb[0].mxu0
    %v1619 = vpop.f32.mrb[0].mxu0
    %v1620 = vadd.f32 0.0, %v1619
    %v1621 = vpop.f32.mrb[0].mxu0
    %1622 = vmatprep.mubr.bf16.mxu0 0
    %1623 = vmatmul.mubr.bf16.gmra.mrb[0].mxu0 %v1100
    %v1624 = vpop.f32.mrb[0].mxu0
    %v1625 = vadd.f32 0.0, %v1624
    %v1626 = vpop.f32.mrb[0].mxu0
    %v1627 = vpop.f32.mrb[0].mxu0
    %v1628 = vadd.f32 0.0, %v1627
    %v1629 = vpop.f32.mrb[0].mxu0
    %1630 = vmatprep.mubr.bf16.mxu0 0
    %1631 = vmatmul.mubr.bf16.gmra.mrb[0].mxu0 %v1103
    %v1632 = vpop.f32.mrb[0].mxu0
    %v1633 = vadd.f32 0.0, %v1632
    %v1634 = vpop.f32.mrb[0].mxu0
    %v1635 = vpop.f32.mrb[0].mxu0
    %v1636 = vadd.f32 0.0, %v1635
    %v1637 = vpop.f32.mrb[0].mxu0
    %1638 = vmatprep.mubr.bf16.mxu0 0
    %1639 = vmatmul.mubr.bf16.gmra.mrb[0].mxu0 %v1106
    %v1640 = vpop.f32.mrb[0].mxu0
    %v1641 = vadd.f32 0.0, %v1640
    %v1642 = vpop.f32.mrb[0].mxu0
    %v1643 = vpop.f32.mrb[0].mxu0
    %v1644 = vadd.f32 0.0, %v1643
    %v1645 = vpop.f32.mrb[0].mxu0
    %1646 = vmatprep.mubr.bf16.mxu0 0
    %1647 = vmatmul.mubr.bf16.gmra.mrb[0].mxu0 %v1109
    %v1648 = vpop.f32.mrb[0].mxu0
    %v1649 = vadd.f32 0.0, %v1648
    %v1650 = vpop.f32.mrb[0].mxu0
    %v1651 = vpop.f32.mrb[0].mxu0
    %v1652 = vadd.f32 0.0, %v1651
    %v1653 = vpop.f32.mrb[0].mxu0
    %1654 = vmatprep.mubr.bf16.mxu0 0
    %1655 = vmatmul.mubr.bf16.gmra.mrb[0].mxu0 %v1112
    %v1656 = vpop.f32.mrb[0].mxu0
    %v1657 = vadd.f32 0.0, %v1656
    %v1658 = vpop.f32.mrb[0].mxu0
    %v1659 = vpop.f32.mrb[0].mxu0
    %v1660 = vadd.f32 0.0, %v1659
    %v1661 = vpop.f32.mrb[0].mxu0
    %1662 = vmatprep.mubr.bf16.mxu0 0
    %1663 = vmatmul.mubr.bf16.gmra.mrb[0].mxu0 %v1115
    %v1664 = vpop.f32.mrb[0].mxu0
    %v1665 = vadd.f32 0.0, %v1664
    %v1666 = vpop.f32.mrb[0].mxu0
    %v1667 = vpop.f32.mrb[0].mxu0
    %v1668 = vadd.f32 0.0, %v1667
    %v1669 = vpop.f32.mrb[0].mxu0
    %1670 = vmatprep.mubr.bf16.mxu0 0
    %1671 = vmatmul.mubr.bf16.gmra.mrb[0].mxu0 %v1118
    %v1672 = vpop.f32.mrb[0].mxu0
    %v1673 = vadd.f32 0.0, %v1672
    %v1674 = vpop.f32.mrb[0].mxu0
    %v1675 = vpop.f32.mrb[0].mxu0
    %v1676 = vadd.f32 0.0, %v1675
    %v1677 = vpop.f32.mrb[0].mxu0
    %1678 = vmatprep.mubr.bf16.mxu0 0
    %1679 = vmatmul.mubr.bf16.gmra.mrb[0].mxu0 %v1121
    %v1680 = vpop.f32.mrb[0].mxu0
    %v1681 = vadd.f32 0.0, %v1680
    %v1682 = vpop.f32.mrb[0].mxu0
    %v1683 = vpop.f32.mrb[0].mxu0
    %v1684 = vadd.f32 0.0, %v1683
    %v1685 = vpop.f32.mrb[0].mxu0
    %1686 = vmatprep.mubr.bf16.mxu0 0
    %1687 = vmatmul.mubr.bf16.gmra.mrb[0].mxu0 %v1124
    %v1688 = vpop.f32.mrb[0].mxu0
    %v1689 = vadd.f32 0.0, %v1688
    %v1690 = vpop.f32.mrb[0].mxu0
    %v1691 = vpop.f32.mrb[0].mxu0
    %v1692 = vadd.f32 0.0, %v1691
    %v1693 = vpop.f32.mrb[0].mxu0
    %1694 = vmatprep.mubr.bf16.mxu0 0
    %1695 = vmatmul.mubr.bf16.gmra.mrb[0].mxu0 %v1127
    %v1696 = vpop.f32.mrb[0].mxu0
    %v1697 = vadd.f32 0.0, %v1696
    %v1698 = vpop.f32.mrb[0].mxu0
    %v1699 = vpop.f32.mrb[0].mxu0
    %v1700 = vadd.f32 0.0, %v1699
    %v1701 = vpop.f32.mrb[0].mxu0
    %1702 = vmatprep.mubr.bf16.mxu0 0
    %1703 = vmatmul.mubr.bf16.gmra.mrb[0].mxu0 %v1130
    %v1704 = vpop.f32.mrb[0].mxu0
    %v1705 = vadd.f32 0.0, %v1704
    %v1706 = vpop.f32.mrb[0].mxu0
    %v1707 = vpop.f32.mrb[0].mxu0
    %v1708 = vadd.f32 0.0, %v1707
    %v1709 = vpop.f32.mrb[0].mxu0
    %1710 = vmatprep.mubr.bf16.mxu0 0
    %1711 = vmatmul.mubr.bf16.gmra.mrb[0].mxu0 %v1133
    %v1712 = vpop.f32.mrb[0].mxu0
    %v1713 = vadd.f32 0.0, %v1712
    %v1714 = vpop.f32.mrb[0].mxu0
    %v1715 = vpop.f32.mrb[0].mxu0
    %v1716 = vadd.f32 0.0, %v1715
    %v1717 = vpop.f32.mrb[0].mxu0
    %1718 = vmatprep.mubr.bf16.mxu0 0
    %1719 = vmatmul.mubr.bf16.gmra.mrb[0].mxu0 %v1136
    %v1720 = vpop.f32.mrb[0].mxu0
    %v1721 = vadd.f32 0.0, %v1720
    %v1722 = vpop.f32.mrb[0].mxu0
    %v1723 = vpop.f32.mrb[0].mxu0
    %v1724 = vadd.f32 0.0, %v1723
    %v1725 = vpop.f32.mrb[0].mxu0
    %1726 = vmatprep.mubr.bf16.mxu0 0
    %1727 = vmatmul.mubr.bf16.gmra.mrb[0].mxu0 %v1139
    %v1728 = vpop.f32.mrb[0].mxu0
    %v1729 = vadd.f32 0.0, %v1728
    %v1730 = vpop.f32.mrb[0].mxu0
    %v1731 = vpop.f32.mrb[0].mxu0
    %v1732 = vadd.f32 0.0, %v1731
    %v1733 = vpop.f32.mrb[0].mxu0
    %1734 = vmatprep.mubr.bf16.mxu0 0
    %1735 = vmatmul.mubr.bf16.gmra.mrb[0].mxu0 %v1142
    %v1736 = vpop.f32.mrb[0].mxu0
    %v1737 = vadd.f32 0.0, %v1736
    %v1738 = vpop.f32.mrb[0].mxu0
    %v1739 = vpop.f32.mrb[0].mxu0
    %v1740 = vadd.f32 0.0, %v1739
    %v1741 = vpop.f32.mrb[0].mxu0
    %1742 = vmatprep.mubr.bf16.mxu0 0
    %1743 = vmatmul.mubr.bf16.gmra.mrb[0].mxu0 %v1145
    %v1744 = vpop.f32.mrb[0].mxu0
    %v1745 = vadd.f32 0.0, %v1744
    %v1746 = vpop.f32.mrb[0].mxu0
    %v1747 = vpop.f32.mrb[0].mxu0
    %v1748 = vadd.f32 0.0, %v1747
    %v1749 = vpop.f32.mrb[0].mxu0
    %1750 = vmatprep.mubr.bf16.mxu0 0
    %1751 = vmatmul.mubr.bf16.gmra.mrb[0].mxu0 %v1148
    %v1752 = vpop.f32.mrb[0].mxu0
    %v1753 = vadd.f32 0.0, %v1752
    %v1754 = vpop.f32.mrb[0].mxu0
    %v1755 = vpop.f32.mrb[0].mxu0
    %v1756 = vadd.f32 0.0, %v1755
    %v1757 = vpop.f32.mrb[0].mxu0
    %1758 = vmatprep.mubr.bf16.mxu0 0
    %1759 = vmatmul.mubr.bf16.gmra.mrb[0].mxu0 %v1151
    %v1760 = vpop.f32.mrb[0].mxu0
    %v1761 = vadd.f32 0.0, %v1760
    %v1762 = vpop.f32.mrb[0].mxu0
    %v1763 = vpop.f32.mrb[0].mxu0
    %v1764 = vadd.f32 0.0, %v1763
    %v1765 = vpop.f32.mrb[0].mxu0
    %1766 = vmatprep.mubr.bf16.mxu0 0
    %1767 = vmatmul.mubr.bf16.gmra.mrb[0].mxu0 %v1154
    %v1768 = vpop.f32.mrb[0].mxu0
    %v1769 = vadd.f32 0.0, %v1768
    %v1770 = vpop.f32.mrb[0].mxu0
    %v1771 = vpop.f32.mrb[0].mxu0
    %v1772 = vadd.f32 0.0, %v1771
    %v1773 = vpop.f32.mrb[0].mxu0
    %1774 = vmatprep.mubr.bf16.mxu0 0
    %1775 = vmatmul.mubr.bf16.gmra.mrb[0].mxu0 %v1157
    %v1776 = vpop.f32.mrb[0].mxu0
    %v1777 = vadd.f32 0.0, %v1776
    %v1778 = vpop.f32.mrb[0].mxu0
    %v1779 = vpop.f32.mrb[0].mxu0
    %v1780 = vadd.f32 0.0, %v1779
    %v1781 = vpop.f32.mrb[0].mxu0
    %1782 = vmatprep.mubr.bf16.mxu0 0
    %1783 = vmatmul.mubr.bf16.gmra.mrb[0].mxu0 %v1160
    %v1784 = vpop.f32.mrb[0].mxu0
    %v1785 = vadd.f32 0.0, %v1784
    %v1786 = vpop.f32.mrb[0].mxu0
    %v1787 = vpop.f32.mrb[0].mxu0
    %v1788 = vadd.f32 0.0, %v1787
    %v1789 = vpop.f32.mrb[0].mxu0
    %1790 = vmatprep.mubr.bf16.mxu0 0
    %1791 = vmatmul.mubr.bf16.gmra.mrb[0].mxu0 %v1163
    %v1792 = vpop.f32.mrb[0].mxu0
    %v1793 = vadd.f32 0.0, %v1792
    %v1794 = vpop.f32.mrb[0].mxu0
    %v1795 = vpop.f32.mrb[0].mxu0
    %v1796 = vadd.f32 0.0, %v1795
    %v1797 = vpop.f32.mrb[0].mxu0
    %1798 = vmatprep.mubr.bf16.mxu0 0
    %1799 = vmatmul.mubr.bf16.gmra.mrb[0].mxu0 %v1166
    %v1800 = vpop.f32.mrb[0].mxu0
    %v1801 = vadd.f32 0.0, %v1800
    %v1802 = vpop.f32.mrb[0].mxu0
    %v1803 = vpop.f32.mrb[0].mxu0
    %v1804 = vadd.f32 0.0, %v1803
    %v1805 = vpop.f32.mrb[0].mxu0
    %1806 = vmatprep.mubr.bf16.mxu0 0
    %1807 = vmatmul.mubr.bf16.gmra.mrb[0].mxu0 %v1169
    %v1808 = vpop.f32.mrb[0].mxu0
    %v1809 = vadd.f32 0.0, %v1808
    %v1810 = vpop.f32.mrb[0].mxu0
    %v1811 = vpop.f32.mrb[0].mxu0
    %v1812 = vadd.f32 0.0, %v1811
    %v1813 = vpop.f32.mrb[0].mxu0
    %1814 = vmatprep.mubr.bf16.mxu0 0
    %1815 = vmatmul.mubr.bf16.gmra.mrb[0].mxu0 %v1172
    %v1816 = vpop.f32.mrb[0].mxu0
    %v1817 = vadd.f32 0.0, %v1816
    %v1818 = vpop.f32.mrb[0].mxu0
    %v1819 = vpop.f32.mrb[0].mxu0
    %v1820 = vadd.f32 0.0, %v1819
    %v1821 = vpop.f32.mrb[0].mxu0
    %1822 = vmatprep.mubr.bf16.mxu0 0
    %1823 = vmatmul.mubr.bf16.gmra.mrb[0].mxu0 %v1175
    %v1824 = vpop.f32.mrb[0].mxu0
    %v1825 = vadd.f32 0.0, %v1824
    %v1826 = vpop.f32.mrb[0].mxu0
    %v1827 = vpop.f32.mrb[0].mxu0
    %v1828 = vadd.f32 0.0, %v1827
    %v1829 = vpop.f32.mrb[0].mxu0
    %1830 = vmatprep.mubr.bf16.mxu0 0
    %1831 = vmatmul.mubr.bf16.gmra.mrb[0].mxu0 %v1178
    %v1832 = vpop.f32.mrb[0].mxu0
    %v1833 = vadd.f32 0.0, %v1832
    %v1834 = vpop.f32.mrb[0].mxu0
    %v1835 = vpop.f32.mrb[0].mxu0
    %v1836 = vadd.f32 0.0, %v1835
    %v1837 = vpop.f32.mrb[0].mxu0
    %1838 = vmatprep.mubr.bf16.mxu0 0
    %1839 = vmatmul.mubr.bf16.gmra.mrb[0].mxu0 %v1181
    %v1840 = vpop.f32.mrb[0].mxu0
    %v1841 = vadd.f32 0.0, %v1840
    %v1842 = vpop.f32.mrb[0].mxu0
    %v1843 = vpop.f32.mrb[0].mxu0
    %v1844 = vadd.f32 0.0, %v1843
    %v1845 = vpop.f32.mrb[0].mxu0
    %1846 = vmatprep.mubr.bf16.mxu0 0
    %1847 = vmatmul.mubr.bf16.gmra.mrb[0].mxu0 %v1184
    %v1848 = vpop.f32.mrb[0].mxu0
    %v1849 = vadd.f32 0.0, %v1848
    %v1850 = vpop.f32.mrb[0].mxu0
    %v1851 = vpop.f32.mrb[0].mxu0
    %v1852 = vadd.f32 0.0, %v1851
    %v1853 = vpop.f32.mrb[0].mxu0
    %1854 = vmatprep.mubr.bf16.mxu0 0
    %1855 = vmatmul.mubr.bf16.gmra.mrb[0].mxu0 %v1187
    %v1856 = vpop.f32.mrb[0].mxu0
    %v1857 = vadd.f32 0.0, %v1856
    %v1858 = vpop.f32.mrb[0].mxu0
    %v1859 = vpop.f32.mrb[0].mxu0
    %v1860 = vadd.f32 0.0, %v1859
    %v1861 = vpop.f32.mrb[0].mxu0
    %1862 = vmatprep.mubr.bf16.mxu0 0
    %1863 = vmatmul.mubr.bf16.gmra.mrb[0].mxu0 %v1190
    %v1864 = vpop.f32.mrb[0].mxu0
    %v1865 = vadd.f32 0.0, %v1864
    %v1866 = vpop.f32.mrb[0].mxu0
    %v1867 = vpop.f32.mrb[0].mxu0
    %v1868 = vadd.f32 0.0, %v1867
    %v1869 = vpop.f32.mrb[0].mxu0
    %1870 = vmatprep.mubr.bf16.mxu0 0
    %1871 = vmatmul.mubr.bf16.gmra.mrb[0].mxu0 %v1193
    %v1872 = vpop.f32.mrb[0].mxu0
    %v1873 = vadd.f32 0.0, %v1872
    %v1874 = vpop.f32.mrb[0].mxu0
    %v1875 = vpop.f32.mrb[0].mxu0
    %v1876 = vadd.f32 0.0, %v1875
    %v1877 = vpop.f32.mrb[0].mxu0
    %1878 = vmatprep.mubr.bf16.mxu0 0
    %1879 = vmatmul.mubr.bf16.gmra.mrb[0].mxu0 %v1196
    %v1880 = vpop.f32.mrb[0].mxu0
    %v1881 = vadd.f32 0.0, %v1880
    %v1882 = vpop.f32.mrb[0].mxu0
    %v1883 = vpop.f32.mrb[0].mxu0
    %v1884 = vadd.f32 0.0, %v1883
    %v1885 = vpop.f32.mrb[0].mxu0
    %1886 = vmatprep.mubr.bf16.mxu0 0
    %1887 = vmatmul.mubr.bf16.gmra.mrb[0].mxu0 %v1199
    %v1888 = vpop.f32.mrb[0].mxu0
    %v1889 = vadd.f32 0.0, %v1888
    %v1890 = vpop.f32.mrb[0].mxu0
    %v1891 = vpop.f32.mrb[0].mxu0
    %v1892 = vadd.f32 0.0, %v1891
    %v1893 = vpop.f32.mrb[0].mxu0
    %1894 = vmatprep.mubr.bf16.mxu0 0
    %1895 = vmatmul.mubr.bf16.gmra.mrb[0].mxu0 %v1202
    %v1896 = vpop.f32.mrb[0].mxu0
    %v1897 = vadd.f32 0.0, %v1896
    %v1898 = vpop.f32.mrb[0].mxu0
    %v1899 = vpop.f32.mrb[0].mxu0
    %v1900 = vadd.f32 0.0, %v1899
    %v1901 = vpop.f32.mrb[0].mxu0
    %1902 = vmatprep.mubr.bf16.mxu0 0
    %1903 = vmatmul.mubr.bf16.gmra.mrb[0].mxu0 %v1205
    %v1904 = vpop.f32.mrb[0].mxu0
    %v1905 = vadd.f32 0.0, %v1904
    %v1906 = vpop.f32.mrb[0].mxu0
    %v1907 = vpop.f32.mrb[0].mxu0
    %v1908 = vadd.f32 0.0, %v1907
    %v1909 = vpop.f32.mrb[0].mxu0
    %1910 = vmatprep.mubr.bf16.mxu0 0
    %1911 = vmatmul.mubr.bf16.gmra.mrb[0].mxu0 %v1208
    %v1912 = vpop.f32.mrb[0].mxu0
    %v1913 = vadd.f32 0.0, %v1912
    %v1914 = vpop.f32.mrb[0].mxu0
    %v1915 = vpop.f32.mrb[0].mxu0
    %v1916 = vadd.f32 0.0, %v1915
    %v1917 = vpop.f32.mrb[0].mxu0
    %1918 = vmatprep.mubr.bf16.mxu0 0
    %1919 = vmatmul.mubr.bf16.gmra.mrb[0].mxu0 %v1211
    %v1920 = vpop.f32.mrb[0].mxu0
    %v1921 = vadd.f32 0.0, %v1920
    %v1922 = vpop.f32.mrb[0].mxu0
    %v1923 = vpop.f32.mrb[0].mxu0
    %v1924 = vadd.f32 0.0, %v1923
    %v1925 = vpop.f32.mrb[0].mxu0
    %1926 = vmatprep.mubr.bf16.mxu0 0
    %1927 = vmatmul.mubr.bf16.gmra.mrb[0].mxu0 %v1214
    %v1928 = vpop.f32.mrb[0].mxu0
    %v1929 = vadd.f32 0.0, %v1928
    %v1930 = vpop.f32.mrb[0].mxu0
    %v1931 = vpop.f32.mrb[0].mxu0
    %v1932 = vadd.f32 0.0, %v1931
    %v1933 = vpop.f32.mrb[0].mxu0
    %1934 = vmatprep.mubr.bf16.mxu0 0
    %1935 = vmatmul.mubr.bf16.gmra.mrb[0].mxu0 %v1217
    %v1936 = vpop.f32.mrb[0].mxu0
    %v1937 = vadd.f32 0.0, %v1936
    %v1938 = vpop.f32.mrb[0].mxu0
    %v1939 = vpop.f32.mrb[0].mxu0
    %v1940 = vadd.f32 0.0, %v1939
    %v1941 = vpop.f32.mrb[0].mxu0
    %1942 = vmatprep.mubr.bf16.mxu0 0
    %1943 = vmatmul.mubr.bf16.gmra.mrb[0].mxu0 %v1220
    %v1944 = vpop.f32.mrb[0].mxu0
    %v1945 = vadd.f32 0.0, %v1944
    %v1946 = vpop.f32.mrb[0].mxu0
    %v1947 = vpop.f32.mrb[0].mxu0
    %v1948 = vadd.f32 0.0, %v1947
    %v1949 = vpop.f32.mrb[0].mxu0
    %1950 = vmatprep.mubr.bf16.mxu0 0
    %1951 = vmatmul.mubr.bf16.gmra.mrb[0].mxu0 %v1223
    %v1952 = vpop.f32.mrb[0].mxu0
    %v1953 = vadd.f32 0.0, %v1952
    %v1954 = vpop.f32.mrb[0].mxu0
    %v1955 = vpop.f32.mrb[0].mxu0
    %v1956 = vadd.f32 0.0, %v1955
    %v1957 = vpop.f32.mrb[0].mxu0
    %1958 = vmatprep.mubr.bf16.mxu0 0
    %1959 = vmatmul.mubr.bf16.gmra.mrb[0].mxu0 %v1226
    %v1960 = vpop.f32.mrb[0].mxu0
    %v1961 = vadd.f32 0.0, %v1960
    %v1962 = vpop.f32.mrb[0].mxu0
    %v1963 = vpop.f32.mrb[0].mxu0
    %v1964 = vadd.f32 0.0, %v1963
    %v1965 = vpop.f32.mrb[0].mxu0
    %1966 = vmatprep.mubr.bf16.mxu0 0
    %1967 = vmatmul.mubr.bf16.gmra.mrb[0].mxu0 %v1229
    %v1968 = vpop.f32.mrb[0].mxu0
    %v1969 = vadd.f32 0.0, %v1968
    %v1970 = vpop.f32.mrb[0].mxu0
    %v1971 = vpop.f32.mrb[0].mxu0
    %v1972 = vadd.f32 0.0, %v1971
    %v1973 = vpop.f32.mrb[0].mxu0
    %1974 = vmatprep.mubr.bf16.mxu0 0
    %1975 = vmatmul.mubr.bf16.gmra.mrb[0].mxu0 %v1232
    %v1976 = vpop.f32.mrb[0].mxu0
    %v1977 = vadd.f32 0.0, %v1976
    %v1978 = vpop.f32.mrb[0].mxu0
    %v1979 = vpop.f32.mrb[0].mxu0
    %v1980 = vadd.f32 0.0, %v1979
    %v1981 = vpop.f32.mrb[0].mxu0
    %1982 = vmatprep.mubr.bf16.mxu0 0
    %1983 = vmatmul.mubr.bf16.gmra.mrb[0].mxu0 %v1235
    %v1984 = vpop.f32.mrb[0].mxu0
    %v1985 = vadd.f32 0.0, %v1984
    %v1986 = vpop.f32.mrb[0].mxu0
    %v1987 = vpop.f32.mrb[0].mxu0
    %v1988 = vadd.f32 0.0, %v1987
    %v1989 = vpop.f32.mrb[0].mxu0
    %1990 = vmatprep.mubr.bf16.mxu0 0
    %1991 = vmatmul.mubr.bf16.gmra.mrb[0].mxu0 %v1238
    %v1992 = vpop.f32.mrb[0].mxu0
    %v1993 = vadd.f32 0.0, %v1992
    %v1994 = vpop.f32.mrb[0].mxu0
    %v1995 = vpop.f32.mrb[0].mxu0
    %v1996 = vadd.f32 0.0, %v1995
    %v1997 = vpop.f32.mrb[0].mxu0
    %1998 = vmatprep.mubr.bf16.mxu0 0
    %1999 = vmatmul.mubr.bf16.gmra.mrb[0].mxu0 %v1241
    %v2000 = vpop.f32.mrb[0].mxu0
    %v2001 = vadd.f32 0.0, %v2000
    %v2002 = vpop.f32.mrb[0].mxu0
    %v2003 = vpop.f32.mrb[0].mxu0
    %v2004 = vadd.f32 0.0, %v2003
    %v2005 = vpop.f32.mrb[0].mxu0
    %2006 = vmatprep.mubr.bf16.mxu0 0
    %2007 = vmatmul.mubr.bf16.gmra.mrb[0].mxu0 %v1244
    %v2008 = vpop.f32.mrb[0].mxu0
    %v2009 = vadd.f32 0.0, %v2008
    %v2010 = vpop.f32.mrb[0].mxu0
    %v2011 = vpop.f32.mrb[0].mxu0
    %v2012 = vadd.f32 0.0, %v2011
    %v2013 = vpop.f32.mrb[0].mxu0
    %2014 = vmatprep.mubr.bf16.mxu0 0
    %2015 = vmatmul.mubr.bf16.gmra.mrb[0].mxu0 %v1247
    %v2016 = vpop.f32.mrb[0].mxu0
    %v2017 = vadd.f32 0.0, %v2016
    %v2018 = vpop.f32.mrb[0].mxu0
    %v2019 = vpop.f32.mrb[0].mxu0
    %v2020 = vadd.f32 0.0, %v2019
    %v2021 = vpop.f32.mrb[0].mxu0
    %2022 = vmatprep.mubr.bf16.mxu0 0
    %2023 = vmatmul.mubr.bf16.gmra.mrb[0].mxu0 %v1250
    %v2024 = vpop.f32.mrb[0].mxu0
    %v2025 = vadd.f32 0.0, %v2024
    %v2026 = vpop.f32.mrb[0].mxu0
    %v2027 = vpop.f32.mrb[0].mxu0
    %v2028 = vadd.f32 0.0, %v2027
    %v2029 = vpop.f32.mrb[0].mxu0
    %2030 = vmatprep.mubr.bf16.mxu0 0
    %2031 = vmatmul.mubr.bf16.gmra.mrb[0].mxu0 %v1253
    %v2032 = vpop.f32.mrb[0].mxu0
    %v2033 = vadd.f32 0.0, %v2032
    %v2034 = vpop.f32.mrb[0].mxu0
    %v2035 = vpop.f32.mrb[0].mxu0
    %v2036 = vadd.f32 0.0, %v2035
    %v2037 = vpop.f32.mrb[0].mxu0
    %2038 = vmatprep.mubr.bf16.mxu0 0
    %2039 = vmatmul.mubr.bf16.gmra.mrb[0].mxu0 %v1256
    %v2040 = vpop.f32.mrb[0].mxu0
    %v2041 = vadd.f32 0.0, %v2040
    %v2042 = vpop.f32.mrb[0].mxu0
    %v2043 = vpop.f32.mrb[0].mxu0
    %v2044 = vadd.f32 0.0, %v2043
    %v2045 = vpop.f32.mrb[0].mxu0
    %2046 = vmatprep.mubr.bf16.mxu0 0
    %2047 = vmatmul.mubr.bf16.gmra.mrb[0].mxu0 %v1259
    %v2048 = vpop.f32.mrb[0].mxu0
    %v2049 = vadd.f32 0.0, %v2048
    %v2050 = vpop.f32.mrb[0].mxu0
    %v2051 = vpop.f32.mrb[0].mxu0
    %v2052 = vadd.f32 0.0, %v2051
    %v2053 = vpop.f32.mrb[0].mxu0
    %2054 = vmatprep.mubr.bf16.mxu0 0
    %2055 = vmatmul.mubr.bf16.gmra.mrb[0].mxu0 %v1262
    %v2056 = vpop.f32.mrb[0].mxu0
    %v2057 = vadd.f32 0.0, %v2056
    %v2058 = vpop.f32.mrb[0].mxu0
    %v2059 = vpop.f32.mrb[0].mxu0
    %v2060 = vadd.f32 0.0, %v2059
    %v2061 = vpop.f32.mrb[0].mxu0
    %2062 = vmatprep.mubr.bf16.mxu0 0
    %2063 = vmatmul.mubr.bf16.gmra.mrb[0].mxu0 %v1265
    %v2064 = vpop.f32.mrb[0].mxu0
    %v2065 = vadd.f32 0.0, %v2064
    %v2066 = vpop.f32.mrb[0].mxu0
    %v2067 = vpop.f32.mrb[0].mxu0
    %v2068 = vadd.f32 0.0, %v2067
    %v2069 = vpop.f32.mrb[0].mxu0
    %2070 = vmatprep.mubr.bf16.mxu0 0
    %2071 = vmatmul.mubr.bf16.gmra.mrb[0].mxu0 %v1268
    %v2072 = vpop.f32.mrb[0].mxu0
    %v2073 = vadd.f32 0.0, %v2072
    %v2074 = vpop.f32.mrb[0].mxu0
    %v2075 = vpop.f32.mrb[0].mxu0
    %v2076 = vadd.f32 0.0, %v2075
    %v2077 = vpop.f32.mrb[0].mxu0
    %2078 = vmatprep.mubr.bf16.mxu0 0
    %2079 = vmatmul.mubr.bf16.gmra.mrb[0].mxu0 %v1271
    %v2080 = vpop.f32.mrb[0].mxu0
    %v2081 = vadd.f32 0.0, %v2080
    %v2082 = vpop.f32.mrb[0].mxu0
    %v2083 = vpop.f32.mrb[0].mxu0
    %v2084 = vadd.f32 0.0, %v2083
    %v2085 = vpop.f32.mrb[0].mxu0
    %2086 = vmatprep.mubr.bf16.mxu0 0
    %2087 = vmatmul.mubr.bf16.gmra.mrb[0].mxu0 %v1274
    %v2088 = vpop.f32.mrb[0].mxu0
    %v2089 = vadd.f32 0.0, %v2088
    %v2090 = vpop.f32.mrb[0].mxu0
    %v2091 = vpop.f32.mrb[0].mxu0
    %v2092 = vadd.f32 0.0, %v2091
    %v2093 = vpop.f32.mrb[0].mxu0
    %2094 = vmatprep.mubr.bf16.mxu0 0
    %2095 = vmatmul.mubr.bf16.gmra.mrb[0].mxu0 %v1277
    %v2096 = vpop.f32.mrb[0].mxu0
    %v2097 = vadd.f32 0.0, %v2096
    %v2098 = vpop.f32.mrb[0].mxu0
    %v2099 = vpop.f32.mrb[0].mxu0
    %v2100 = vadd.f32 0.0, %v2099
    %v2101 = vpop.f32.mrb[0].mxu0
    %2102 = vmatprep.mubr.bf16.mxu0 0
    %2103 = vmatmul.mubr.bf16.gmra.mrb[0].mxu0 %v1280
    %v2104 = vpop.f32.mrb[0].mxu0
    %v2105 = vadd.f32 0.0, %v2104
    %v2106 = vpop.f32.mrb[0].mxu0
    %v2107 = vpop.f32.mrb[0].mxu0
    %v2108 = vadd.f32 0.0, %v2107
    %v2109 = vpop.f32.mrb[0].mxu0
    %2110 = vmatprep.mubr.bf16.mxu0 0
    %2111 = vmatmul.mubr.bf16.gmra.mrb[0].mxu0 %v1283
    %v2112 = vpop.f32.mrb[0].mxu0
    %v2113 = vadd.f32 0.0, %v2112
    %v2114 = vpop.f32.mrb[0].mxu0
    %v2115 = vpop.f32.mrb[0].mxu0
    %v2116 = vadd.f32 0.0, %v2115
    %v2117 = vpop.f32.mrb[0].mxu0
    %2118 = vmatprep.mubr.bf16.mxu0 0
    %2119 = vmatmul.mubr.bf16.gmra.mrb[0].mxu0 %v1286
    %v2120 = vpop.f32.mrb[0].mxu0
    %v2121 = vadd.f32 0.0, %v2120
    %v2122 = vpop.f32.mrb[0].mxu0
    %v2123 = vpop.f32.mrb[0].mxu0
    %v2124 = vadd.f32 0.0, %v2123
    %v2125 = vpop.f32.mrb[0].mxu0
    %2126 = vmatprep.mubr.bf16.mxu0 0
    %2127 = vmatmul.mubr.bf16.gmra.mrb[0].mxu0 %v1289
    %v2128 = vpop.f32.mrb[0].mxu0
    %v2129 = vadd.f32 0.0, %v2128
    %v2130 = vpop.f32.mrb[0].mxu0
    %v2131 = vpop.f32.mrb[0].mxu0
    %v2132 = vadd.f32 0.0, %v2131
    %v2133 = vpop.f32.mrb[0].mxu0
    %2134 = vmatprep.mubr.bf16.mxu0 0
    %2135 = vmatmul.mubr.bf16.gmra.mrb[0].mxu0 %v1292
    %v2136 = vpop.f32.mrb[0].mxu0
    %v2137 = vadd.f32 0.0, %v2136
    %v2138 = vpop.f32.mrb[0].mxu0
    %v2139 = vpop.f32.mrb[0].mxu0
    %v2140 = vadd.f32 0.0, %v2139
    %v2141 = vpop.f32.mrb[0].mxu0
    %2142 = vmatprep.mubr.bf16.mxu0 0
    %2143 = vmatmul.mubr.bf16.gmra.mrb[0].mxu0 %v1295
    %v2144 = vpop.f32.mrb[0].mxu0
    %v2145 = vadd.f32 0.0, %v2144
    %v2146 = vpop.f32.mrb[0].mxu0
    %v2147 = vpop.f32.mrb[0].mxu0
    %v2148 = vadd.f32 0.0, %v2147
    %v2149 = vpop.f32.mrb[0].mxu0
    %2150 = vmatprep.mubr.bf16.mxu0 0
    %2151 = vmatmul.mubr.bf16.gmra.mrb[0].mxu0 %v1298
    %v2152 = vpop.f32.mrb[0].mxu0
    %v2153 = vadd.f32 0.0, %v2152
    %v2154 = vpop.f32.mrb[0].mxu0
    %v2155 = vpop.f32.mrb[0].mxu0
    %v2156 = vadd.f32 0.0, %v2155
    %v2157 = vpop.f32.mrb[0].mxu0
    %2158 = vmatprep.mubr.bf16.mxu0 0
    %2159 = vmatmul.mubr.bf16.gmra.mrb[0].mxu0 %v1301
    %v2160 = vpop.f32.mrb[0].mxu0
    %v2161 = vadd.f32 0.0, %v2160
    %v2162 = vpop.f32.mrb[0].mxu0
    %v2163 = vpop.f32.mrb[0].mxu0
    %v2164 = vadd.f32 0.0, %v2163
    %v2165 = vpop.f32.mrb[0].mxu0
    %2166 = vmatprep.mubr.bf16.mxu0 0
    %2167 = vmatmul.mubr.bf16.gmra.mrb[0].mxu0 %v1304
    %v2168 = vpop.f32.mrb[0].mxu0
    %v2169 = vadd.f32 0.0, %v2168
    %v2170 = vpop.f32.mrb[0].mxu0
    %v2171 = vpop.f32.mrb[0].mxu0
    %v2172 = vadd.f32 0.0, %v2171
    %v2173 = vpop.f32.mrb[0].mxu0
    %2174 = vmatprep.mubr.bf16.mxu0 0
    %2175 = vmatmul.mubr.bf16.gmra.mrb[0].mxu0 %v1307
    %v2176 = vpop.f32.mrb[0].mxu0
    %v2177 = vadd.f32 0.0, %v2176
    %v2178 = vpop.f32.mrb[0].mxu0
    %v2179 = vpop.f32.mrb[0].mxu0
    %v2180 = vadd.f32 0.0, %v2179
    %v2181 = vpop.f32.mrb[0].mxu0
    %2182 = vmatprep.mubr.bf16.mxu0 0
    %2183 = vmatmul.mubr.bf16.gmra.mrb[0].mxu0 %v1310
    %v2184 = vpop.f32.mrb[0].mxu0
    %v2185 = vadd.f32 0.0, %v2184
    %v2186 = vpop.f32.mrb[0].mxu0
    %v2187 = vpop.f32.mrb[0].mxu0
    %v2188 = vadd.f32 0.0, %v2187
    %v2189 = vpop.f32.mrb[0].mxu0
    %2190 = vmatprep.mubr.bf16.mxu0 0
    %2191 = vmatmul.mubr.bf16.gmra.mrb[0].mxu0 %v1313
    %v2192 = vpop.f32.mrb[0].mxu0
    %v2193 = vadd.f32 0.0, %v2192
    %v2194 = vpop.f32.mrb[0].mxu0
    %v2195 = vpop.f32.mrb[0].mxu0
    %v2196 = vadd.f32 0.0, %v2195
    %v2197 = vpop.f32.mrb[0].mxu0
    %2198 = vmatprep.mubr.bf16.mxu0 0
    %2199 = vmatmul.mubr.bf16.gmra.mrb[0].mxu0 %v1316
    %v2200 = vpop.f32.mrb[0].mxu0
    %v2201 = vadd.f32 0.0, %v2200
    %v2202 = vpop.f32.mrb[0].mxu0
    %v2203 = vpop.f32.mrb[0].mxu0
    %v2204 = vadd.f32 0.0, %v2203
    %v2205 = vpop.f32.mrb[0].mxu0
    %2206 = vmatprep.mubr.bf16.mxu0 0
    %2207 = vmatmul.mubr.bf16.gmra.mrb[0].mxu0 %v1319
    %v2208 = vpop.f32.mrb[0].mxu0
    %v2209 = vadd.f32 0.0, %v2208
    %v2210 = vpop.f32.mrb[0].mxu0
    %v2211 = vpop.f32.mrb[0].mxu0
    %v2212 = vadd.f32 0.0, %v2211
    %v2213 = vpop.f32.mrb[0].mxu0
    %2214 = vmatprep.mubr.bf16.mxu0 0
    %2215 = vmatmul.mubr.bf16.gmra.mrb[0].mxu0 %v1322
    %v2216 = vpop.f32.mrb[0].mxu0
    %v2217 = vadd.f32 0.0, %v2216
    %v2218 = vpop.f32.mrb[0].mxu0
    %v2219 = vpop.f32.mrb[0].mxu0
    %v2220 = vadd.f32 0.0, %v2219
    %v2221 = vpop.f32.mrb[0].mxu0
    %2222 = vmatprep.mubr.bf16.mxu0 0
    %2223 = vmatmul.mubr.bf16.gmra.mrb[0].mxu0 %v1325
    %v2224 = vpop.f32.mrb[0].mxu0
    %v2225 = vadd.f32 0.0, %v2224
    %v2226 = vpop.f32.mrb[0].mxu0
    %v2227 = vpop.f32.mrb[0].mxu0
    %v2228 = vadd.f32 0.0, %v2227
    %v2229 = vpop.f32.mrb[0].mxu0
    %2230 = vmatprep.mubr.bf16.mxu0 0
    %2231 = vmatmul.mubr.bf16.gmra.mrb[0].mxu0 %v1328
    %v2232 = vpop.f32.mrb[0].mxu0
    %v2233 = vadd.f32 0.0, %v2232
    %v2234 = vpop.f32.mrb[0].mxu0
    %v2235 = vpop.f32.mrb[0].mxu0
    %v2236 = vadd.f32 0.0, %v2235
    %v2237 = vpop.f32.mrb[0].mxu0
    %2238 = vmatprep.mubr.bf16.mxu0 0
    %2239 = vmatmul.mubr.bf16.gmra.mrb[0].mxu0 %v1331
    %v2240 = vpop.f32.mrb[0].mxu0
    %v2241 = vadd.f32 0.0, %v2240
    %v2242 = vpop.f32.mrb[0].mxu0
    %v2243 = vpop.f32.mrb[0].mxu0
    %v2244 = vadd.f32 0.0, %v2243
    %v2245 = vpop.f32.mrb[0].mxu0
    %2246 = vmatprep.mubr.bf16.mxu0 0
    %2247 = vmatmul.mubr.bf16.gmra.mrb[0].mxu0 %v1334
    %v2248 = vpop.f32.mrb[0].mxu0
    %v2249 = vadd.f32 0.0, %v2248
    %v2250 = vpop.f32.mrb[0].mxu0
    %v2251 = vpop.f32.mrb[0].mxu0
    %v2252 = vadd.f32 0.0, %v2251
    %v2253 = vpop.f32.mrb[0].mxu0
    %2254 = vmatprep.mubr.bf16.mxu0 0
    %2255 = vmatmul.mubr.bf16.gmra.mrb[0].mxu0 %v1337
    %v2256 = vpop.f32.mrb[0].mxu0
    %v2257 = vadd.f32 0.0, %v2256
    %v2258 = vpop.f32.mrb[0].mxu0
    %v2259 = vpop.f32.mrb[0].mxu0
    %v2260 = vadd.f32 0.0, %v2259
    %v2261 = vpop.f32.mrb[0].mxu0
    %2262 = vmatprep.mubr.bf16.mxu0 0
    %2263 = vmatmul.mubr.bf16.gmra.mrb[0].mxu0 %v1340
    %v2264 = vpop.f32.mrb[0].mxu0
    %v2265 = vadd.f32 0.0, %v2264
    %v2266 = vpop.f32.mrb[0].mxu0
    %v2267 = vpop.f32.mrb[0].mxu0
    %v2268 = vadd.f32 0.0, %v2267
    %v2269 = vpop.f32.mrb[0].mxu0
    %2270 = vmatprep.mubr.bf16.mxu0 0
    %2271 = vmatmul.mubr.bf16.gmra.mrb[0].mxu0 %v1343
    %v2272 = vpop.f32.mrb[0].mxu0
    %v2273 = vadd.f32 0.0, %v2272
    %v2274 = vpop.f32.mrb[0].mxu0
    %v2275 = vpop.f32.mrb[0].mxu0
    %v2276 = vadd.f32 0.0, %v2275
    %v2277 = vpop.f32.mrb[0].mxu0
    %2278 = vmatprep.mubr.bf16.mxu0 0
    %2279 = vmatmul.mubr.bf16.gmra.mrb[0].mxu0 %v1346
    %v2280 = vpop.f32.mrb[0].mxu0
    %v2281 = vadd.f32 0.0, %v2280
    %v2282 = vpop.f32.mrb[0].mxu0
    %v2283 = vpop.f32.mrb[0].mxu0
    %v2284 = vadd.f32 0.0, %v2283
    %v2285 = vpop.f32.mrb[0].mxu0
    %2286 = vmatprep.mubr.bf16.mxu0 0
    %2287 = vmatmul.mubr.bf16.gmra.mrb[0].mxu0 %v1349
    %v2288 = vpop.f32.mrb[0].mxu0
    %v2289 = vadd.f32 0.0, %v2288
    %v2290 = vpop.f32.mrb[0].mxu0
    %v2291 = vpop.f32.mrb[0].mxu0
    %v2292 = vadd.f32 0.0, %v2291
    %v2293 = vpop.f32.mrb[0].mxu0
    %2294 = vmatprep.mubr.bf16.mxu0 0
    %2295 = vmatmul.mubr.bf16.gmra.mrb[0].mxu0 %v1352
    %v2296 = vpop.f32.mrb[0].mxu0
    %v2297 = vadd.f32 0.0, %v2296
    %v2298 = vpop.f32.mrb[0].mxu0
    %v2299 = vpop.f32.mrb[0].mxu0
    %v2300 = vadd.f32 0.0, %v2299
    %v2301 = vpop.f32.mrb[0].mxu0
    %2302 = vmatprep.mubr.bf16.mxu0 0
    %2303 = vmatmul.mubr.bf16.gmra.mrb[0].mxu0 %v1355
    %v2304 = vpop.f32.mrb[0].mxu0
    %v2305 = vadd.f32 0.0, %v2304
    %v2306 = vpop.f32.mrb[0].mxu0
    %v2307 = vpop.f32.mrb[0].mxu0
    %v2308 = vadd.f32 0.0, %v2307
    %v2309 = vpop.f32.mrb[0].mxu0
    %2310 = vmatprep.mubr.bf16.mxu0 0
    %2311 = vmatmul.mubr.bf16.gmra.mrb[0].mxu0 %v1358
    %v2312 = vpop.f32.mrb[0].mxu0
    %v2313 = vadd.f32 0.0, %v2312
    %v2314 = vpop.f32.mrb[0].mxu0
    %v2315 = vpop.f32.mrb[0].mxu0
    %v2316 = vadd.f32 0.0, %v2315
    %v2317 = vpop.f32.mrb[0].mxu0
    %2318 = vmatprep.mubr.bf16.mxu0 0
    %2319 = vmatmul.mubr.bf16.gmra.mrb[0].mxu0 %v1361
    %v2320 = vpop.f32.mrb[0].mxu0
    %v2321 = vadd.f32 0.0, %v2320
    %v2322 = vpop.f32.mrb[0].mxu0
    %v2323 = vpop.f32.mrb[0].mxu0
    %v2324 = vadd.f32 0.0, %v2323
    %v2325 = vpop.f32.mrb[0].mxu0
    %2326 = vmatprep.mubr.bf16.mxu0 0
    %2327 = vmatmul.mubr.bf16.gmra.mrb[0].mxu0 %v1364
    %v2328 = vpop.f32.mrb[0].mxu0
    %v2329 = vadd.f32 0.0, %v2328
    %v2330 = vpop.f32.mrb[0].mxu0
    %v2331 = vpop.f32.mrb[0].mxu0
    %v2332 = vadd.f32 0.0, %v2331
    %v2333 = vpop.f32.mrb[0].mxu0
    %2334 = vmatprep.mubr.bf16.mxu0 0
    %2335 = vmatmul.mubr.bf16.gmra.mrb[0].mxu0 %v1367
    %v2336 = vpop.f32.mrb[0].mxu0
    %v2337 = vadd.f32 0.0, %v2336
    %v2338 = vpop.f32.mrb[0].mxu0
    %v2339 = vpop.f32.mrb[0].mxu0
    %v2340 = vadd.f32 0.0, %v2339
    %v2341 = vpop.f32.mrb[0].mxu0
    %2342 = vmatprep.mubr.bf16.mxu0 0
    %2343 = vmatmul.mubr.bf16.gmra.mrb[0].mxu0 %v1370
    %v2344 = vpop.f32.mrb[0].mxu0
    %v2345 = vadd.f32 0.0, %v2344
    %v2346 = vpop.f32.mrb[0].mxu0
    %v2347 = vpop.f32.mrb[0].mxu0
    %v2348 = vadd.f32 0.0, %v2347
    %v2349 = vpop.f32.mrb[0].mxu0
    %2350 = vmatprep.mubr.bf16.mxu0 0
    %2351 = vmatmul.mubr.bf16.gmra.mrb[0].mxu0 %v1373
    %v2352 = vpop.f32.mrb[0].mxu0
    %v2353 = vadd.f32 0.0, %v2352
    %v2354 = vpop.f32.mrb[0].mxu0
    %v2355 = vpop.f32.mrb[0].mxu0
    %v2356 = vadd.f32 0.0, %v2355
    %v2357 = vpop.f32.mrb[0].mxu0
    %2358 = vmatprep.mubr.bf16.mxu0 0
    %2359 = vmatmul.mubr.bf16.gmra.mrb[0].mxu0 %v1376
    %v2360 = vpop.f32.mrb[0].mxu0
    %v2361 = vadd.f32 0.0, %v2360
    %v2362 = vpop.f32.mrb[0].mxu0
    %v2363 = vpop.f32.mrb[0].mxu0
    %v2364 = vadd.f32 0.0, %v2363
    %v2365 = vpop.f32.mrb[0].mxu0
    %2366 = vmatprep.mubr.bf16.mxu0 0
    %2367 = vmatmul.mubr.bf16.gmra.mrb[0].mxu0 %v1379
    %v2368 = vpop.f32.mrb[0].mxu0
    %v2369 = vadd.f32 0.0, %v2368
    %v2370 = vpop.f32.mrb[0].mxu0
    %v2371 = vpop.f32.mrb[0].mxu0
    %v2372 = vadd.f32 0.0, %v2371
    %v2373 = vpop.f32.mrb[0].mxu0
    %2374 = vmatprep.mubr.bf16.mxu0 0
    %2375 = vmatmul.mubr.bf16.gmra.mrb[0].mxu0 %v1382
    %v2376 = vpop.f32.mrb[0].mxu0
    %v2377 = vadd.f32 0.0, %v2376
    %v2378 = vpop.f32.mrb[0].mxu0
    %v2379 = vpop.f32.mrb[0].mxu0
    %v2380 = vadd.f32 0.0, %v2379
    %v2381 = vpop.f32.mrb[0].mxu0
    %2382 = vmatprep.mubr.bf16.mxu0 0
    %2383 = vmatmul.mubr.bf16.gmra.mrb[0].mxu0 %v1385
    %v2384 = vpop.f32.mrb[0].mxu0
    %v2385 = vadd.f32 0.0, %v2384
    %v2386 = vpop.f32.mrb[0].mxu0
    %v2387 = vpop.f32.mrb[0].mxu0
    %v2388 = vadd.f32 0.0, %v2387
    %v2389 = vpop.f32.mrb[0].mxu0
    %2390 = vmatprep.mubr.bf16.mxu0 0
    %2391 = vmatmul.mubr.bf16.gmra.mrb[0].mxu0 %v1388
    %v2392 = vpop.f32.mrb[0].mxu0
    %v2393 = vadd.f32 0.0, %v2392
    %v2394 = vpop.f32.mrb[0].mxu0
    %v2395 = vpop.f32.mrb[0].mxu0
    %v2396 = vadd.f32 0.0, %v2395
    %v2397 = vpop.f32.mrb[0].mxu0
    %2398 = vmatprep.mubr.bf16.mxu0 0
    %2399 = vmatmul.mubr.bf16.gmra.mrb[0].mxu0 %v1391
    %v2400 = vpop.f32.mrb[0].mxu0
    %v2401 = vadd.f32 0.0, %v2400
    %v2402 = vpop.f32.mrb[0].mxu0
    %v2403 = vpop.f32.mrb[0].mxu0
    %v2404 = vadd.f32 0.0, %v2403
    %v2405 = vpop.f32.mrb[0].mxu0
    %2406 = vmatprep.mubr.bf16.mxu0 0
    %2407 = vmatmul.mubr.bf16.gmra.mrb[0].mxu0 %v1394
    %v2408 = vpop.f32.mrb[0].mxu0
    %v2409 = vadd.f32 0.0, %v2408
    %v2410 = vpop.f32.mrb[0].mxu0
    %v2411 = vpop.f32.mrb[0].mxu0
    %v2412 = vadd.f32 0.0, %v2411
    %v2413 = vpop.f32.mrb[0].mxu0
    %2414 = vmatprep.mubr.bf16.mxu0 0
    %2415 = vmatmul.mubr.bf16.gmra.mrb[0].mxu0 %v1397
    %v2416 = vpop.f32.mrb[0].mxu0
    %v2417 = vadd.f32 0.0, %v2416
    %v2418 = vpop.f32.mrb[0].mxu0
    %v2419 = vpop.f32.mrb[0].mxu0
    %v2420 = vadd.f32 0.0, %v2419
    %v2421 = vpop.f32.mrb[0].mxu0
    %2422 = vmatprep.mubr.bf16.mxu0 0
    %2423 = vmatmul.mubr.bf16.gmra.mrb[0].mxu0 %v1400
    %v2424 = vpop.f32.mrb[0].mxu0
    %v2425 = vadd.f32 0.0, %v2424
    %v2426 = vpop.f32.mrb[0].mxu0
    %v2427 = vpop.f32.mrb[0].mxu0
    %v2428 = vadd.f32 0.0, %v2427
    %v2429 = vpop.f32.mrb[0].mxu0
    %2430 = vmatprep.mubr.bf16.mxu0 0
    %2431 = vmatmul.mubr.bf16.gmra.mrb[0].mxu0 %v1403
    %v2432 = vpop.f32.mrb[0].mxu0
    %v2433 = vadd.f32 0.0, %v2432
    %v2434 = vpop.f32.mrb[0].mxu0
    %v2435 = vpop.f32.mrb[0].mxu0
    %v2436 = vadd.f32 0.0, %v2435
    %v2437 = vpop.f32.mrb[0].mxu0
    %2438 = vmatprep.mubr.bf16.mxu0 0
    %2439 = vmatmul.mubr.bf16.gmra.mrb[0].mxu0 %v1406
    %v2440 = vpop.f32.mrb[0].mxu0
    %v2441 = vadd.f32 0.0, %v2440
    %v2442 = vpop.f32.mrb[0].mxu0
    %v2443 = vpop.f32.mrb[0].mxu0
    %v2444 = vadd.f32 0.0, %v2443
    %v2445 = vpop.f32.mrb[0].mxu0
    %2446 = vmatprep.mubr.bf16.mxu0 0
    %2447 = vmatmul.mubr.bf16.gmra.mrb[0].mxu0 %v1409
    %v2448 = vpop.f32.mrb[0].mxu0
    %v2449 = vadd.f32 0.0, %v2448
    %v2450 = vpop.f32.mrb[0].mxu0
    %v2451 = vpop.f32.mrb[0].mxu0
    %v2452 = vadd.f32 0.0, %v2451
    %v2453 = vpop.f32.mrb[0].mxu0
    %2454 = vmatprep.mubr.bf16.mxu0 0
    %2455 = vmatmul.mubr.bf16.gmra.mrb[0].mxu0 %v1412
    %v2456 = vpop.f32.mrb[0].mxu0
    %v2457 = vadd.f32 0.0, %v2456
    %v2458 = vpop.f32.mrb[0].mxu0
    %v2459 = vpop.f32.mrb[0].mxu0
    %v2460 = vadd.f32 0.0, %v2459
    %v2461 = vpop.f32.mrb[0].mxu0
    %2462 = vmatprep.mubr.bf16.mxu0 0
    %2463 = vmatmul.mubr.bf16.gmra.mrb[0].mxu0 %v1415
    %v2464 = vpop.f32.mrb[0].mxu0
    %v2465 = vadd.f32 0.0, %v2464
    %v2466 = vpop.f32.mrb[0].mxu0
    %v2467 = vpop.f32.mrb[0].mxu0
    %v2468 = vadd.f32 0.0, %v2467
    %v2469 = vpop.f32.mrb[0].mxu0
    %2470 = vmatprep.mubr.bf16.mxu0 0
    %2471 = vmatmul.mubr.bf16.gmra.mrb[0].mxu0 %v1418
    %v2472 = vpop.f32.mrb[0].mxu0
    %v2473 = vadd.f32 0.0, %v2472
    %v2474 = vpop.f32.mrb[0].mxu0
    %v2475 = vpop.f32.mrb[0].mxu0
    %v2476 = vadd.f32 0.0, %v2475
    %v2477 = vpop.f32.mrb[0].mxu0
    %2478 = vmatprep.mubr.bf16.mxu0 0
    %2479 = vmatmul.mubr.bf16.gmra.mrb[0].mxu0 %v1421
    %v2480 = vpop.f32.mrb[0].mxu0
    %v2481 = vadd.f32 0.0, %v2480
    %v2482 = vpop.f32.mrb[0].mxu0
    %v2483 = vpop.f32.mrb[0].mxu0
    %v2484 = vadd.f32 0.0, %v2483
    %v2485 = vpop.f32.mrb[0].mxu0
    %2486 = vdwg.mxu0
    %v2487 = vmax.f32 %v1465, %v1721
    %v2488 = vmax.f32 %v1468, %v1724
    %v2489 = vmax.f32 %v1473, %v1729
    %v2490 = vmax.f32 %v1476, %v1732
    %v2491 = vmax.f32 %v1481, %v1737
    %v2492 = vmax.f32 %v1484, %v1740
    %v2493 = vmax.f32 %v1489, %v1745
    %v2494 = vmax.f32 %v1492, %v1748
    %v2495 = vmax.f32 %v1497, %v1753
    %v2496 = vmax.f32 %v1500, %v1756
    %v2497 = vmax.f32 %v1505, %v1761
    %v2498 = vmax.f32 %v1508, %v1764
    %v2499 = vmax.f32 %v1513, %v1769
    %v2500 = vmax.f32 %v1516, %v1772
    %v2501 = vmax.f32 %v1521, %v1777
    %v2502 = vmax.f32 %v1524, %v1780
    %v2503 = vmax.f32 %v1529, %v1785
    %v2504 = vmax.f32 %v1532, %v1788
    %v2505 = vmax.f32 %v1537, %v1793
    %v2506 = vmax.f32 %v1540, %v1796
    %v2507 = vmax.f32 %v1545, %v1801
    %v2508 = vmax.f32 %v1548, %v1804
    %v2509 = vmax.f32 %v1553, %v1809
    %v2510 = vmax.f32 %v1556, %v1812
    %v2511 = vmax.f32 %v1561, %v1817
    %v2512 = vmax.f32 %v1564, %v1820
    %v2513 = vmax.f32 %v1569, %v1825
    %v2514 = vmax.f32 %v1572, %v1828
    %v2515 = vmax.f32 %v1577, %v1833
    %v2516 = vmax.f32 %v1580, %v1836
    %v2517 = vmax.f32 %v1585, %v1841
    %v2518 = vmax.f32 %v1588, %v1844
    %v2519 = vmax.f32 %v1593, %v1849
    %v2520 = vmax.f32 %v1596, %v1852
    %v2521 = vmax.f32 %v1601, %v1857
    %v2522 = vmax.f32 %v1604, %v1860
    %v2523 = vmax.f32 %v1609, %v1865
    %v2524 = vmax.f32 %v1612, %v1868
    %v2525 = vmax.f32 %v1617, %v1873
    %v2526 = vmax.f32 %v1620, %v1876
    %v2527 = vmax.f32 %v1625, %v1881
    %v2528 = vmax.f32 %v1628, %v1884
    %v2529 = vmax.f32 %v1633, %v1889
    %v2530 = vmax.f32 %v1636, %v1892
    %v2531 = vmax.f32 %v1641, %v1897
    %v2532 = vmax.f32 %v1644, %v1900
    %v2533 = vmax.f32 %v1649, %v1905
    %v2534 = vmax.f32 %v1652, %v1908
    %v2535 = vmax.f32 %v1657, %v1913
    %v2536 = vmax.f32 %v1660, %v1916
    %v2537 = vmax.f32 %v1665, %v1921
    %v2538 = vmax.f32 %v1668, %v1924
    %v2539 = vmax.f32 %v1673, %v1929
    %v2540 = vmax.f32 %v1676, %v1932
    %v2541 = vmax.f32 %v1681, %v1937
    %v2542 = vmax.f32 %v1684, %v1940
    %v2543 = vmax.f32 %v1689, %v1945
    %v2544 = vmax.f32 %v1692, %v1948
    %v2545 = vmax.f32 %v1697, %v1953
    %v2546 = vmax.f32 %v1700, %v1956
    %v2547 = vmax.f32 %v1705, %v1961
    %v2548 = vmax.f32 %v1708, %v1964
    %v2549 = vmax.f32 %v1713, %v1969
    %v2550 = vmax.f32 %v1716, %v1972
    %v2551 = vmax.f32 %v2487, %v2488
    %v2552 = vmax.f32 %v2489, %v2490
    %v2553 = vmax.f32 %v2491, %v2492
    %v2554 = vmax.f32 %v2493, %v2494
    %v2555 = vmax.f32 %v2495, %v2496
    %v2556 = vmax.f32 %v2497, %v2498
    %v2557 = vmax.f32 %v2499, %v2500
    %v2558 = vmax.f32 %v2501, %v2502
    %v2559 = vmax.f32 %v2503, %v2504
    %v2560 = vmax.f32 %v2505, %v2506
    %v2561 = vmax.f32 %v2507, %v2508
    %v2562 = vmax.f32 %v2509, %v2510
    %v2563 = vmax.f32 %v2511, %v2512
    %v2564 = vmax.f32 %v2513, %v2514
    %v2565 = vmax.f32 %v2515, %v2516
    %v2566 = vmax.f32 %v2517, %v2518
    %v2567 = vmax.f32 %v2519, %v2520
    %v2568 = vmax.f32 %v2521, %v2522
    %v2569 = vmax.f32 %v2523, %v2524
    %v2570 = vmax.f32 %v2525, %v2526
    %v2571 = vmax.f32 %v2527, %v2528
    %v2572 = vmax.f32 %v2529, %v2530
    %v2573 = vmax.f32 %v2531, %v2532
    %v2574 = vmax.f32 %v2533, %v2534
    %v2575 = vmax.f32 %v2535, %v2536
    %v2576 = vmax.f32 %v2537, %v2538
    %v2577 = vmax.f32 %v2539, %v2540
    %v2578 = vmax.f32 %v2541, %v2542
    %v2579 = vmax.f32 %v2543, %v2544
    %v2580 = vmax.f32 %v2545, %v2546
    %v2581 = vmax.f32 %v2547, %v2548
    %v2582 = vmax.f32 %v2549, %v2550
    %v2583 = vld [vmem:[#allocation7] sm:$0x1]
    %v2585 = vlaneseq
    %v2586 = vshrl.u32 %v2585, 7
    %v2587 = vsub.s32 0, %v2586
    %v2588 = vrot.slane %v2583, %v2587
    %v2590 = vadd.f32 %v2551, %v2588
    %v2591 = vadd.f32 %v2552, %v2588
    %v2592 = vadd.f32 %v2553, %v2588
    %v2593 = vadd.f32 %v2554, %v2588
    %v2594 = vadd.f32 %v2555, %v2588
    %v2595 = vadd.f32 %v2556, %v2588
    %v2596 = vadd.f32 %v2557, %v2588
    %v2597 = vadd.f32 %v2558, %v2588
    %v2598 = vadd.f32 %v2559, %v2588
    %v2599 = vadd.f32 %v2560, %v2588
    %v2600 = vadd.f32 %v2561, %v2588
    %v2601 = vadd.f32 %v2562, %v2588
    %v2602 = vadd.f32 %v2563, %v2588
    %v2603 = vadd.f32 %v2564, %v2588
    %v2604 = vadd.f32 %v2565, %v2588
    %v2605 = vadd.f32 %v2566, %v2588
    %v2606 = vadd.f32 %v2567, %v2588
    %v2607 = vadd.f32 %v2568, %v2588
    %v2608 = vadd.f32 %v2569, %v2588
    %v2609 = vadd.f32 %v2570, %v2588
    %v2610 = vadd.f32 %v2571, %v2588
    %v2611 = vadd.f32 %v2572, %v2588
    %v2612 = vadd.f32 %v2573, %v2588
    %v2613 = vadd.f32 %v2574, %v2588
    %v2614 = vadd.f32 %v2575, %v2588
    %v2615 = vadd.f32 %v2576, %v2588
    %v2616 = vadd.f32 %v2577, %v2588
    %v2617 = vadd.f32 %v2578, %v2588
    %v2618 = vadd.f32 %v2579, %v2588
    %v2619 = vadd.f32 %v2580, %v2588
    %v2620 = vadd.f32 %v2581, %v2588
    %v2621 = vadd.f32 %v2582, %v2588
    %v2622 = vmax.f32 %v2590, 0.0
    %v2623 = vmax.f32 %v2591, 0.0
    %v2624 = vmax.f32 %v2592, 0.0
    %v2625 = vmax.f32 %v2593, 0.0
    %v2626 = vmax.f32 %v2594, 0.0
    %v2627 = vmax.f32 %v2595, 0.0
    %v2628 = vmax.f32 %v2596, 0.0
    %v2629 = vmax.f32 %v2597, 0.0
    %v2630 = vmax.f32 %v2598, 0.0
    %v2631 = vmax.f32 %v2599, 0.0
    %v2632 = vmax.f32 %v2600, 0.0
    %v2633 = vmax.f32 %v2601, 0.0
    %v2634 = vmax.f32 %v2602, 0.0
    %v2635 = vmax.f32 %v2603, 0.0
    %v2636 = vmax.f32 %v2604, 0.0
    %v2637 = vmax.f32 %v2605, 0.0
    %v2638 = vmax.f32 %v2606, 0.0
    %v2639 = vmax.f32 %v2607, 0.0
    %v2640 = vmax.f32 %v2608, 0.0
    %v2641 = vmax.f32 %v2609, 0.0
    %v2642 = vmax.f32 %v2610, 0.0
    %v2643 = vmax.f32 %v2611, 0.0
    %v2644 = vmax.f32 %v2612, 0.0
    %v2645 = vmax.f32 %v2613, 0.0
    %v2646 = vmax.f32 %v2614, 0.0
    %v2647 = vmax.f32 %v2615, 0.0
    %v2648 = vmax.f32 %v2616, 0.0
    %v2649 = vmax.f32 %v2617, 0.0
    %v2650 = vmax.f32 %v2618, 0.0
    %v2651 = vmax.f32 %v2619, 0.0
    %v2652 = vmax.f32 %v2620, 0.0
    %v2653 = vmax.f32 %v2621, 0.0
    %v2654 = vmax.f32 %v1977, %v2233
    %v2655 = vmax.f32 %v1980, %v2236
    %v2656 = vmax.f32 %v1985, %v2241
    %v2657 = vmax.f32 %v1988, %v2244
    %v2658 = vmax.f32 %v1993, %v2249
    %v2659 = vmax.f32 %v1996, %v2252
    %v2660 = vmax.f32 %v2001, %v2257
    %v2661 = vmax.f32 %v2004, %v2260
    %v2662 = vmax.f32 %v2009, %v2265
    %v2663 = vmax.f32 %v2012, %v2268
    %v2664 = vmax.f32 %v2017, %v2273
    %v2665 = vmax.f32 %v2020, %v2276
    %v2666 = vmax.f32 %v2025, %v2281
    %v2667 = vmax.f32 %v2028, %v2284
    %v2668 = vmax.f32 %v2033, %v2289
    %v2669 = vmax.f32 %v2036, %v2292
    %v2670 = vmax.f32 %v2041, %v2297
    %v2671 = vmax.f32 %v2044, %v2300
    %v2672 = vmax.f32 %v2049, %v2305
    %v2673 = vmax.f32 %v2052, %v2308
    %v2674 = vmax.f32 %v2057, %v2313
    %v2675 = vmax.f32 %v2060, %v2316
    %v2676 = vmax.f32 %v2065, %v2321
    %v2677 = vmax.f32 %v2068, %v2324
    %v2678 = vmax.f32 %v2073, %v2329
    %v2679 = vmax.f32 %v2076, %v2332
    %v2680 = vmax.f32 %v2081, %v2337
    %v2681 = vmax.f32 %v2084, %v2340
    %v2682 = vmax.f32 %v2089, %v2345
    %v2683 = vmax.f32 %v2092, %v2348
    %v2684 = vmax.f32 %v2097, %v2353
    %v2685 = vmax.f32 %v2100, %v2356
    %v2686 = vmax.f32 %v2105, %v2361
    %v2687 = vmax.f32 %v2108, %v2364
    %v2688 = vmax.f32 %v2113, %v2369
    %v2689 = vmax.f32 %v2116, %v2372
    %v2690 = vmax.f32 %v2121, %v2377
    %v2691 = vmax.f32 %v2124, %v2380
    %v2692 = vmax.f32 %v2129, %v2385
    %v2693 = vmax.f32 %v2132, %v2388
    %v2694 = vmax.f32 %v2137, %v2393
    %v2695 = vmax.f32 %v2140, %v2396
    %v2696 = vmax.f32 %v2145, %v2401
    %v2697 = vmax.f32 %v2148, %v2404
    %v2698 = vmax.f32 %v2153, %v2409
    %v2699 = vmax.f32 %v2156, %v2412
    %v2700 = vmax.f32 %v2161, %v2417
    %v2701 = vmax.f32 %v2164, %v2420
    %v2702 = vmax.f32 %v2169, %v2425
    %v2703 = vmax.f32 %v2172, %v2428
    %v2704 = vmax.f32 %v2177, %v2433
    %v2705 = vmax.f32 %v2180, %v2436
    %v2706 = vmax.f32 %v2185, %v2441
    %v2707 = vmax.f32 %v2188, %v2444
    %v2708 = vmax.f32 %v2193, %v2449
    %v2709 = vmax.f32 %v2196, %v2452
    %v2710 = vmax.f32 %v2201, %v2457
    %v2711 = vmax.f32 %v2204, %v2460
    %v2712 = vmax.f32 %v2209, %v2465
    %v2713 = vmax.f32 %v2212, %v2468
    %v2714 = vmax.f32 %v2217, %v2473
    %v2715 = vmax.f32 %v2220, %v2476
    %v2716 = vmax.f32 %v2225, %v2481
    %v2717 = vmax.f32 %v2228, %v2484
    %v2718 = vmax.f32 %v2654, %v2655
    %v2719 = vmax.f32 %v2656, %v2657
    %v2720 = vmax.f32 %v2658, %v2659
    %v2721 = vmax.f32 %v2660, %v2661
    %v2722 = vmax.f32 %v2662, %v2663
    %v2723 = vmax.f32 %v2664, %v2665
    %v2724 = vmax.f32 %v2666, %v2667
    %v2725 = vmax.f32 %v2668, %v2669
    %v2726 = vmax.f32 %v2670, %v2671
    %v2727 = vmax.f32 %v2672, %v2673
    %v2728 = vmax.f32 %v2674, %v2675
    %v2729 = vmax.f32 %v2676, %v2677
    %v2730 = vmax.f32 %v2678, %v2679
    %v2731 = vmax.f32 %v2680, %v2681
    %v2732 = vmax.f32 %v2682, %v2683
    %v2733 = vmax.f32 %v2684, %v2685
    %v2734 = vmax.f32 %v2686, %v2687
    %v2735 = vmax.f32 %v2688, %v2689
    %v2736 = vmax.f32 %v2690, %v2691
    %v2737 = vmax.f32 %v2692, %v2693
    %v2738 = vmax.f32 %v2694, %v2695
    %v2739 = vmax.f32 %v2696, %v2697
    %v2740 = vmax.f32 %v2698, %v2699
    %v2741 = vmax.f32 %v2700, %v2701
    %v2742 = vmax.f32 %v2702, %v2703
    %v2743 = vmax.f32 %v2704, %v2705
    %v2744 = vmax.f32 %v2706, %v2707
    %v2745 = vmax.f32 %v2708, %v2709
    %v2746 = vmax.f32 %v2710, %v2711
    %v2747 = vmax.f32 %v2712, %v2713
    %v2748 = vmax.f32 %v2714, %v2715
    %v2749 = vmax.f32 %v2716, %v2717
    %v2750 = vadd.f32 %v2718, %v2588
    %v2751 = vadd.f32 %v2719, %v2588
    %v2752 = vadd.f32 %v2720, %v2588
    %v2753 = vadd.f32 %v2721, %v2588
    %v2754 = vadd.f32 %v2722, %v2588
    %v2755 = vadd.f32 %v2723, %v2588
    %v2756 = vadd.f32 %v2724, %v2588
    %v2757 = vadd.f32 %v2725, %v2588
    %v2758 = vadd.f32 %v2726, %v2588
    %v2759 = vadd.f32 %v2727, %v2588
    %v2760 = vadd.f32 %v2728, %v2588
    %v2761 = vadd.f32 %v2729, %v2588
    %v2762 = vadd.f32 %v2730, %v2588
    %v2763 = vadd.f32 %v2731, %v2588
    %v2764 = vadd.f32 %v2732, %v2588
    %v2765 = vadd.f32 %v2733, %v2588
    %v2766 = vadd.f32 %v2734, %v2588
    %v2767 = vadd.f32 %v2735, %v2588
    %v2768 = vadd.f32 %v2736, %v2588
    %v2769 = vadd.f32 %v2737, %v2588
    %v2770 = vadd.f32 %v2738, %v2588
    %v2771 = vadd.f32 %v2739, %v2588
    %v2772 = vadd.f32 %v2740, %v2588
    %v2773 = vadd.f32 %v2741, %v2588
    %v2774 = vadd.f32 %v2742, %v2588
    %v2775 = vadd.f32 %v2743, %v2588
    %v2776 = vadd.f32 %v2744, %v2588
    %v2777 = vadd.f32 %v2745, %v2588
    %v2778 = vadd.f32 %v2746, %v2588
    %v2779 = vadd.f32 %v2747, %v2588
    %v2780 = vadd.f32 %v2748, %v2588
    %v2781 = vadd.f32 %v2749, %v2588
    %v2782 = vmax.f32 %v2750, 0.0
    %v2783 = vmax.f32 %v2751, 0.0
    %v2784 = vmax.f32 %v2752, 0.0
    %v2785 = vmax.f32 %v2753, 0.0
    %v2786 = vmax.f32 %v2754, 0.0
    %v2787 = vmax.f32 %v2755, 0.0
    %v2788 = vmax.f32 %v2756, 0.0
    %v2789 = vmax.f32 %v2757, 0.0
    %v2790 = vmax.f32 %v2758, 0.0
    %v2791 = vmax.f32 %v2759, 0.0
    %v2792 = vmax.f32 %v2760, 0.0
    %v2793 = vmax.f32 %v2761, 0.0
    %v2794 = vmax.f32 %v2762, 0.0
    %v2795 = vmax.f32 %v2763, 0.0
    %v2796 = vmax.f32 %v2764, 0.0
    %v2797 = vmax.f32 %v2765, 0.0
    %v2798 = vmax.f32 %v2766, 0.0
    %v2799 = vmax.f32 %v2767, 0.0
    %v2800 = vmax.f32 %v2768, 0.0
    %v2801 = vmax.f32 %v2769, 0.0
    %v2802 = vmax.f32 %v2770, 0.0
    %v2803 = vmax.f32 %v2771, 0.0
    %v2804 = vmax.f32 %v2772, 0.0
    %v2805 = vmax.f32 %v2773, 0.0
    %v2806 = vmax.f32 %v2774, 0.0
    %v2807 = vmax.f32 %v2775, 0.0
    %v2808 = vmax.f32 %v2776, 0.0
    %v2809 = vmax.f32 %v2777, 0.0
    %v2810 = vmax.f32 %v2778, 0.0
    %v2811 = vmax.f32 %v2779, 0.0
    %v2812 = vmax.f32 %v2780, 0.0
    %v2813 = vmax.f32 %v2781, 0.0
    %v2847 = vrot.slane 0.0, 7
    %v2848 = vrot.slane %v2782, 7
    %v2849 = vrot.slane %v2783, 7
    %v2850 = vrot.slane %v2784, 7
    %v2851 = vrot.slane %v2785, 7
    %v2852 = vrot.slane %v2786, 7
    %v2853 = vrot.slane %v2787, 7
    %v2854 = vrot.slane %v2788, 7
    %v2855 = vrot.slane %v2789, 7
    %v2856 = vrot.slane %v2790, 7
    %v2857 = vrot.slane %v2791, 7
    %v2858 = vrot.slane %v2792, 7
    %v2859 = vrot.slane %v2793, 7
    %v2860 = vrot.slane %v2794, 7
    %v2861 = vrot.slane %v2795, 7
    %v2862 = vrot.slane %v2796, 7
    %v2863 = vrot.slane %v2797, 7
    %v2864 = vrot.slane %v2798, 7
    %v2865 = vrot.slane %v2799, 7
    %v2866 = vrot.slane %v2800, 7
    %v2867 = vrot.slane %v2801, 7
    %v2868 = vrot.slane %v2802, 7
    %v2869 = vrot.slane %v2803, 7
    %v2870 = vrot.slane %v2804, 7
    %v2871 = vrot.slane %v2805, 7
    %v2872 = vrot.slane %v2806, 7
    %v2873 = vrot.slane %v2807, 7
    %v2874 = vrot.slane %v2808, 7
    %v2875 = vrot.slane %v2809, 7
    %v2876 = vrot.slane %v2810, 7
    %v2877 = vrot.slane %v2811, 7
    %v2878 = vrot.slane %v2812, 7
    %v2879 = vrot.slane %v2813, 7
    %vm2913 = vcmask 1040384
    %v2914 = vsel %vm2913, 0.0, %v2847
    %v2915 = vsel %vm2913, 0.0, %v2848
    %v2916 = vsel %vm2913, 0.0, %v2849
    %v2917 = vsel %vm2913, 0.0, %v2850
    %v2918 = vsel %vm2913, 0.0, %v2851
    %v2919 = vsel %vm2913, 0.0, %v2852
    %v2920 = vsel %vm2913, 0.0, %v2853
    %v2921 = vsel %vm2913, 0.0, %v2854
    %v2922 = vsel %vm2913, 0.0, %v2855
    %v2923 = vsel %vm2913, 0.0, %v2856
    %v2924 = vsel %vm2913, 0.0, %v2857
    %v2925 = vsel %vm2913, 0.0, %v2858
    %v2926 = vsel %vm2913, 0.0, %v2859
    %v2927 = vsel %vm2913, 0.0, %v2860
    %v2928 = vsel %vm2913, 0.0, %v2861
    %v2929 = vsel %vm2913, 0.0, %v2862
    %v2930 = vsel %vm2913, 0.0, %v2863
    %v2931 = vsel %vm2913, 0.0, %v2864
    %v2932 = vsel %vm2913, 0.0, %v2865
    %v2933 = vsel %vm2913, 0.0, %v2866
    %v2934 = vsel %vm2913, 0.0, %v2867
    %v2935 = vsel %vm2913, 0.0, %v2868
    %v2936 = vsel %vm2913, 0.0, %v2869
    %v2937 = vsel %vm2913, 0.0, %v2870
    %v2938 = vsel %vm2913, 0.0, %v2871
    %v2939 = vsel %vm2913, 0.0, %v2872
    %v2940 = vsel %vm2913, 0.0, %v2873
    %v2941 = vsel %vm2913, 0.0, %v2874
    %v2942 = vsel %vm2913, 0.0, %v2875
    %v2943 = vsel %vm2913, 0.0, %v2876
    %v2944 = vsel %vm2913, 0.0, %v2877
    %v2945 = vsel %vm2913, 0.0, %v2878
    %v2946 = vsel %vm2913, 0.0, %v2879
    %vm2978 = vcmask 1046528
    %v2979 = vrot.slane %v2914, 1
    %v2980 = vrot.slane %v2847, 1
    %v2981 = vsel %vm2978, %v2979, %v2980
    %v2982 = vrot.slane %v2915, 1
    %v2983 = vrot.slane %v2848, 1
    %v2984 = vsel %vm2978, %v2982, %v2983
    %v2985 = vrot.slane %v2916, 1
    %v2986 = vrot.slane %v2849, 1
    %v2987 = vsel %vm2978, %v2985, %v2986
    %v2988 = vrot.slane %v2917, 1
    %v2989 = vrot.slane %v2850, 1
    %v2990 = vsel %vm2978, %v2988, %v2989
    %v2991 = vrot.slane %v2918, 1
    %v2992 = vrot.slane %v2851, 1
    %v2993 = vsel %vm2978, %v2991, %v2992
    %v2994 = vrot.slane %v2919, 1
    %v2995 = vrot.slane %v2852, 1
    %v2996 = vsel %vm2978, %v2994, %v2995
    %v2997 = vrot.slane %v2920, 1
    %v2998 = vrot.slane %v2853, 1
    %v2999 = vsel %vm2978, %v2997, %v2998
    %v3000 = vrot.slane %v2921, 1
    %v3001 = vrot.slane %v2854, 1
    %v3002 = vsel %vm2978, %v3000, %v3001
    %v3003 = vrot.slane %v2922, 1
    %v3004 = vrot.slane %v2855, 1
    %v3005 = vsel %vm2978, %v3003, %v3004
    %v3006 = vrot.slane %v2923, 1
    %v3007 = vrot.slane %v2856, 1
    %v3008 = vsel %vm2978, %v3006, %v3007
    %v3009 = vrot.slane %v2924, 1
    %v3010 = vrot.slane %v2857, 1
    %v3011 = vsel %vm2978, %v3009, %v3010
    %v3012 = vrot.slane %v2925, 1
    %v3013 = vrot.slane %v2858, 1
    %v3014 = vsel %vm2978, %v3012, %v3013
    %v3015 = vrot.slane %v2926, 1
    %v3016 = vrot.slane %v2859, 1
    %v3017 = vsel %vm2978, %v3015, %v3016
    %v3018 = vrot.slane %v2927, 1
    %v3019 = vrot.slane %v2860, 1
    %v3020 = vsel %vm2978, %v3018, %v3019
    %v3021 = vrot.slane %v2928, 1
    %v3022 = vrot.slane %v2861, 1
    %v3023 = vsel %vm2978, %v3021, %v3022
    %v3024 = vrot.slane %v2929, 1
    %v3025 = vrot.slane %v2862, 1
    %v3026 = vsel %vm2978, %v3024, %v3025
    %v3027 = vrot.slane %v2931, 1
    %v3028 = vrot.slane %v2864, 1
    %v3029 = vsel %vm2978, %v3027, %v3028
    %v3030 = vrot.slane %v2932, 1
    %v3031 = vrot.slane %v2865, 1
    %v3032 = vsel %vm2978, %v3030, %v3031
    %v3033 = vrot.slane %v2933, 1
    %v3034 = vrot.slane %v2866, 1
    %v3035 = vsel %vm2978, %v3033, %v3034
    %v3036 = vrot.slane %v2934, 1
    %v3037 = vrot.slane %v2867, 1
    %v3038 = vsel %vm2978, %v3036, %v3037
    %v3039 = vrot.slane %v2935, 1
    %v3040 = vrot.slane %v2868, 1
    %v3041 = vsel %vm2978, %v3039, %v3040
    %v3042 = vrot.slane %v2936, 1
    %v3043 = vrot.slane %v2869, 1
    %v3044 = vsel %vm2978, %v3042, %v3043
    %v3045 = vrot.slane %v2937, 1
    %v3046 = vrot.slane %v2870, 1
    %v3047 = vsel %vm2978, %v3045, %v3046
    %v3048 = vrot.slane %v2938, 1
    %v3049 = vrot.slane %v2871, 1
    %v3050 = vsel %vm2978, %v3048, %v3049
    %v3051 = vrot.slane %v2939, 1
    %v3052 = vrot.slane %v2872, 1
    %v3053 = vsel %vm2978, %v3051, %v3052
    %v3054 = vrot.slane %v2940, 1
    %v3055 = vrot.slane %v2873, 1
    %v3056 = vsel %vm2978, %v3054, %v3055
    %v3057 = vrot.slane %v2941, 1
    %v3058 = vrot.slane %v2874, 1
    %v3059 = vsel %vm2978, %v3057, %v3058
    %v3060 = vrot.slane %v2942, 1
    %v3061 = vrot.slane %v2875, 1
    %v3062 = vsel %vm2978, %v3060, %v3061
    %v3063 = vrot.slane %v2943, 1
    %v3064 = vrot.slane %v2876, 1
    %v3065 = vsel %vm2978, %v3063, %v3064
    %v3066 = vrot.slane %v2944, 1
    %v3067 = vrot.slane %v2877, 1
    %v3068 = vsel %vm2978, %v3066, %v3067
    %v3069 = vrot.slane %v2945, 1
    %v3070 = vrot.slane %v2878, 1
    %v3071 = vsel %vm2978, %v3069, %v3070
    %v3074 = vrot.slane %v2930, 1
    %v3075 = vrot.slane %v2863, 1
    %v3076 = vsel %vm2978, %v3074, %v3075
    %v3077 = vrot.slane %v2946, 1
    %v3078 = vrot.slane %v2879, 1
    %v3079 = vsel %vm2978, %v3077, %v3078
    %3143 = vrot.lane.b32.xlu0 0.0, 32
    %v3144 = vpop.permute.xlu0 %3143
    %3145 = vrot.lane.b32.xlu0 %v2622, 32
    %v3146 = vpop.permute.xlu0 %3145
    %3147 = vrot.lane.b32.xlu0 %v2623, 32
    %v3148 = vpop.permute.xlu0 %3147
    %3149 = vrot.lane.b32.xlu0 %v2624, 32
    %v3150 = vpop.permute.xlu0 %3149
    %3151 = vrot.lane.b32.xlu0 %v2625, 32
    %v3152 = vpop.permute.xlu0 %3151
    %3153 = vrot.lane.b32.xlu0 %v2626, 32
    %v3154 = vpop.permute.xlu0 %3153
    %3155 = vrot.lane.b32.xlu0 %v2627, 32
    %v3156 = vpop.permute.xlu0 %3155
    %3157 = vrot.lane.b32.xlu0 %v2628, 32
    %v3158 = vpop.permute.xlu0 %3157
    %3159 = vrot.lane.b32.xlu0 %v2629, 32
    %v3160 = vpop.permute.xlu0 %3159
    %3161 = vrot.lane.b32.xlu0 %v2630, 32
    %v3162 = vpop.permute.xlu0 %3161
    %3163 = vrot.lane.b32.xlu0 %v2631, 32
    %v3164 = vpop.permute.xlu0 %3163
    %3165 = vrot.lane.b32.xlu0 %v2632, 32
    %v3166 = vpop.permute.xlu0 %3165
    %3167 = vrot.lane.b32.xlu0 %v2633, 32
    %v3168 = vpop.permute.xlu0 %3167
    %3169 = vrot.lane.b32.xlu0 %v2634, 32
    %v3170 = vpop.permute.xlu0 %3169
    %3171 = vrot.lane.b32.xlu0 %v2635, 32
    %v3172 = vpop.permute.xlu0 %3171
    %3173 = vrot.lane.b32.xlu0 %v2636, 32
    %v3174 = vpop.permute.xlu0 %3173
    %3175 = vrot.lane.b32.xlu0 %v2638, 32
    %v3176 = vpop.permute.xlu0 %3175
    %3177 = vrot.lane.b32.xlu0 %v2639, 32
    %v3178 = vpop.permute.xlu0 %3177
    %3179 = vrot.lane.b32.xlu0 %v2640, 32
    %v3180 = vpop.permute.xlu0 %3179
    %3181 = vrot.lane.b32.xlu0 %v2641, 32
    %v3182 = vpop.permute.xlu0 %3181
    %3183 = vrot.lane.b32.xlu0 %v2642, 32
    %v3184 = vpop.permute.xlu0 %3183
    %3185 = vrot.lane.b32.xlu0 %v2643, 32
    %v3186 = vpop.permute.xlu0 %3185
    %3187 = vrot.lane.b32.xlu0 %v2644, 32
    %v3188 = vpop.permute.xlu0 %3187
    %3189 = vrot.lane.b32.xlu0 %v2645, 32
    %v3190 = vpop.permute.xlu0 %3189
    %3191 = vrot.lane.b32.xlu0 %v2646, 32
    %v3192 = vpop.permute.xlu0 %3191
    %3193 = vrot.lane.b32.xlu0 %v2647, 32
    %v3194 = vpop.permute.xlu0 %3193
    %3195 = vrot.lane.b32.xlu0 %v2648, 32
    %v3196 = vpop.permute.xlu0 %3195
    %3197 = vrot.lane.b32.xlu0 %v2649, 32
    %v3198 = vpop.permute.xlu0 %3197
    %3199 = vrot.lane.b32.xlu0 %v2650, 32
    %v3200 = vpop.permute.xlu0 %3199
    %3201 = vrot.lane.b32.xlu0 %v2651, 32
    %v3202 = vpop.permute.xlu0 %3201
    %3203 = vrot.lane.b32.xlu0 %v2652, 32
    %v3204 = vpop.permute.xlu0 %3203
    %3236 = vrot.lane.b32.xlu0 %v2981, 64
    %v3237 = vpop.permute.xlu0 %3236
    %3238 = vrot.lane.b32.xlu0 %v2984, 64
    %v3239 = vpop.permute.xlu0 %3238
    %3240 = vrot.lane.b32.xlu0 %v2987, 64
    %v3241 = vpop.permute.xlu0 %3240
    %3242 = vrot.lane.b32.xlu0 %v2990, 64
    %v3243 = vpop.permute.xlu0 %3242
    %3244 = vrot.lane.b32.xlu0 %v2993, 64
    %v3245 = vpop.permute.xlu0 %3244
    %3246 = vrot.lane.b32.xlu0 %v2996, 64
    %v3247 = vpop.permute.xlu0 %3246
    %3248 = vrot.lane.b32.xlu0 %v2999, 64
    %v3249 = vpop.permute.xlu0 %3248
    %3250 = vrot.lane.b32.xlu0 %v3002, 64
    %v3251 = vpop.permute.xlu0 %3250
    %3252 = vrot.lane.b32.xlu0 %v3005, 64
    %v3253 = vpop.permute.xlu0 %3252
    %3254 = vrot.lane.b32.xlu0 %v3008, 64
    %v3255 = vpop.permute.xlu0 %3254
    %3256 = vrot.lane.b32.xlu0 %v3011, 64
    %v3257 = vpop.permute.xlu0 %3256
    %3258 = vrot.lane.b32.xlu0 %v3014, 64
    %v3259 = vpop.permute.xlu0 %3258
    %3260 = vrot.lane.b32.xlu0 %v3017, 64
    %v3261 = vpop.permute.xlu0 %3260
    %3262 = vrot.lane.b32.xlu0 %v3020, 64
    %v3263 = vpop.permute.xlu0 %3262
    %3264 = vrot.lane.b32.xlu0 %v3023, 64
    %v3265 = vpop.permute.xlu0 %3264
    %3266 = vrot.lane.b32.xlu0 %v3026, 64
    %v3267 = vpop.permute.xlu0 %3266
    %3268 = vrot.lane.b32.xlu0 %v3029, 64
    %v3269 = vpop.permute.xlu0 %3268
    %3270 = vrot.lane.b32.xlu0 %v3032, 64
    %v3271 = vpop.permute.xlu0 %3270
    %3272 = vrot.lane.b32.xlu0 %v3035, 64
    %v3273 = vpop.permute.xlu0 %3272
    %3274 = vrot.lane.b32.xlu0 %v3038, 64
    %v3275 = vpop.permute.xlu0 %3274
    %3276 = vrot.lane.b32.xlu0 %v3041, 64
    %v3277 = vpop.permute.xlu0 %3276
    %3278 = vrot.lane.b32.xlu0 %v3044, 64
    %v3279 = vpop.permute.xlu0 %3278
    %3280 = vrot.lane.b32.xlu0 %v3047, 64
    %v3281 = vpop.permute.xlu0 %3280
    %3282 = vrot.lane.b32.xlu0 %v3050, 64
    %v3283 = vpop.permute.xlu0 %3282
    %3284 = vrot.lane.b32.xlu0 %v3053, 64
    %v3285 = vpop.permute.xlu0 %3284
    %3286 = vrot.lane.b32.xlu0 %v3056, 64
    %v3287 = vpop.permute.xlu0 %3286
    %3288 = vrot.lane.b32.xlu0 %v3059, 64
    %v3289 = vpop.permute.xlu0 %3288
    %3290 = vrot.lane.b32.xlu0 %v3062, 64
    %v3291 = vpop.permute.xlu0 %3290
    %3292 = vrot.lane.b32.xlu0 %v3065, 64
    %v3293 = vpop.permute.xlu0 %3292
    %3294 = vrot.lane.b32.xlu0 %v3068, 64
    %v3295 = vpop.permute.xlu0 %3294
    %3296 = vrot.lane.b32.xlu0 %v3071, 64
    %v3297 = vpop.permute.xlu0 %3296
    %3329 = vrot.lane.b32.xlu0 %v2915, 96
    %v3330 = vpop.permute.xlu0 %3329
    %3331 = vrot.lane.b32.xlu0 %v2916, 96
    %v3332 = vpop.permute.xlu0 %3331
    %3333 = vrot.lane.b32.xlu0 %v2917, 96
    %v3334 = vpop.permute.xlu0 %3333
    %3335 = vrot.lane.b32.xlu0 %v2918, 96
    %v3336 = vpop.permute.xlu0 %3335
    %3337 = vrot.lane.b32.xlu0 %v2919, 96
    %v3338 = vpop.permute.xlu0 %3337
    %3339 = vrot.lane.b32.xlu0 %v2920, 96
    %v3340 = vpop.permute.xlu0 %3339
    %3341 = vrot.lane.b32.xlu0 %v2921, 96
    %v3342 = vpop.permute.xlu0 %3341
    %3343 = vrot.lane.b32.xlu0 %v2922, 96
    %v3344 = vpop.permute.xlu0 %3343
    %3345 = vrot.lane.b32.xlu0 %v2923, 96
    %v3346 = vpop.permute.xlu0 %3345
    %3347 = vrot.lane.b32.xlu0 %v2924, 96
    %v3348 = vpop.permute.xlu0 %3347
    %3349 = vrot.lane.b32.xlu0 %v2925, 96
    %v3350 = vpop.permute.xlu0 %3349
    %3351 = vrot.lane.b32.xlu0 %v2926, 96
    %v3352 = vpop.permute.xlu0 %3351
    %3353 = vrot.lane.b32.xlu0 %v2927, 96
    %v3354 = vpop.permute.xlu0 %3353
    %3355 = vrot.lane.b32.xlu0 %v2928, 96
    %v3356 = vpop.permute.xlu0 %3355
    %3357 = vrot.lane.b32.xlu0 %v2929, 96
    %v3358 = vpop.permute.xlu0 %3357
    %3359 = vrot.lane.b32.xlu0 %v2930, 96
    %v3360 = vpop.permute.xlu0 %3359
    %3361 = vrot.lane.b32.xlu0 %v2931, 96
    %v3362 = vpop.permute.xlu0 %3361
    %3363 = vrot.lane.b32.xlu0 %v2932, 96
    %v3364 = vpop.permute.xlu0 %3363
    %3365 = vrot.lane.b32.xlu0 %v2933, 96
    %v3366 = vpop.permute.xlu0 %3365
    %3367 = vrot.lane.b32.xlu0 %v2934, 96
    %v3368 = vpop.permute.xlu0 %3367
    %3369 = vrot.lane.b32.xlu0 %v2935, 96
    %v3370 = vpop.permute.xlu0 %3369
    %3371 = vrot.lane.b32.xlu0 %v2936, 96
    %v3372 = vpop.permute.xlu0 %3371
    %3373 = vrot.lane.b32.xlu0 %v2937, 96
    %v3374 = vpop.permute.xlu0 %3373
    %3375 = vrot.lane.b32.xlu0 %v2938, 96
    %v3376 = vpop.permute.xlu0 %3375
    %3377 = vrot.lane.b32.xlu0 %v2939, 96
    %v3378 = vpop.permute.xlu0 %3377
    %3379 = vrot.lane.b32.xlu0 %v2940, 96
    %v3380 = vpop.permute.xlu0 %3379
    %3381 = vrot.lane.b32.xlu0 %v2941, 96
    %v3382 = vpop.permute.xlu0 %3381
    %3383 = vrot.lane.b32.xlu0 %v2942, 96
    %v3384 = vpop.permute.xlu0 %3383
    %3385 = vrot.lane.b32.xlu0 %v2943, 96
    %v3386 = vpop.permute.xlu0 %3385
    %3387 = vrot.lane.b32.xlu0 %v2944, 96
    %v3388 = vpop.permute.xlu0 %3387
    %3389 = vrot.lane.b32.xlu0 %v2945, 96
    %v3390 = vpop.permute.xlu0 %3389
    %3391 = vrot.lane.b32.xlu0 %v2946, 96
    %v3392 = vpop.permute.xlu0 %3391
    %3425 = vrot.lane.b32.xlu0 %v2984, 32
    %v3426 = vpop.permute.xlu0 %3425
    %3427 = vrot.lane.b32.xlu0 %v2987, 32
    %v3428 = vpop.permute.xlu0 %3427
    %3429 = vrot.lane.b32.xlu0 %v2990, 32
    %v3430 = vpop.permute.xlu0 %3429
    %3431 = vrot.lane.b32.xlu0 %v2993, 32
    %v3432 = vpop.permute.xlu0 %3431
    %3433 = vrot.lane.b32.xlu0 %v2996, 32
    %v3434 = vpop.permute.xlu0 %3433
    %3435 = vrot.lane.b32.xlu0 %v2999, 32
    %v3436 = vpop.permute.xlu0 %3435
    %3437 = vrot.lane.b32.xlu0 %v3002, 32
    %v3438 = vpop.permute.xlu0 %3437
    %3439 = vrot.lane.b32.xlu0 %v3005, 32
    %v3440 = vpop.permute.xlu0 %3439
    %3441 = vrot.lane.b32.xlu0 %v3008, 32
    %v3442 = vpop.permute.xlu0 %3441
    %3443 = vrot.lane.b32.xlu0 %v3011, 32
    %v3444 = vpop.permute.xlu0 %3443
    %3445 = vrot.lane.b32.xlu0 %v3014, 32
    %v3446 = vpop.permute.xlu0 %3445
    %3447 = vrot.lane.b32.xlu0 %v3017, 32
    %v3448 = vpop.permute.xlu0 %3447
    %3449 = vrot.lane.b32.xlu0 %v3020, 32
    %v3450 = vpop.permute.xlu0 %3449
    %3451 = vrot.lane.b32.xlu0 %v3023, 32
    %v3452 = vpop.permute.xlu0 %3451
    %3453 = vrot.lane.b32.xlu0 %v3026, 32
    %v3454 = vpop.permute.xlu0 %3453
    %3455 = vrot.lane.b32.xlu0 %v3076, 32
    %v3456 = vpop.permute.xlu0 %3455
    %3457 = vrot.lane.b32.xlu0 %v3029, 32
    %v3458 = vpop.permute.xlu0 %3457
    %3459 = vrot.lane.b32.xlu0 %v3032, 32
    %v3460 = vpop.permute.xlu0 %3459
    %3461 = vrot.lane.b32.xlu0 %v3035, 32
    %v3462 = vpop.permute.xlu0 %3461
    %3463 = vrot.lane.b32.xlu0 %v3038, 32
    %v3464 = vpop.permute.xlu0 %3463
    %3465 = vrot.lane.b32.xlu0 %v3041, 32
    %v3466 = vpop.permute.xlu0 %3465
    %3467 = vrot.lane.b32.xlu0 %v3044, 32
    %v3468 = vpop.permute.xlu0 %3467
    %3469 = vrot.lane.b32.xlu0 %v3047, 32
    %v3470 = vpop.permute.xlu0 %3469
    %3471 = vrot.lane.b32.xlu0 %v3050, 32
    %v3472 = vpop.permute.xlu0 %3471
    %3473 = vrot.lane.b32.xlu0 %v3053, 32
    %v3474 = vpop.permute.xlu0 %3473
    %3475 = vrot.lane.b32.xlu0 %v3056, 32
    %v3476 = vpop.permute.xlu0 %3475
    %3477 = vrot.lane.b32.xlu0 %v3059, 32
    %v3478 = vpop.permute.xlu0 %3477
    %3479 = vrot.lane.b32.xlu0 %v3062, 32
    %v3480 = vpop.permute.xlu0 %3479
    %3481 = vrot.lane.b32.xlu0 %v3065, 32
    %v3482 = vpop.permute.xlu0 %3481
    %3483 = vrot.lane.b32.xlu0 %v3068, 32
    %v3484 = vpop.permute.xlu0 %3483
    %3485 = vrot.lane.b32.xlu0 %v3071, 32
    %v3486 = vpop.permute.xlu0 %3485
    %3487 = vrot.lane.b32.xlu0 %v3079, 32
    %v3488 = vpop.permute.xlu0 %3487
    %3521 = vrot.lane.b32.xlu0 %v2916, 64
    %v3522 = vpop.permute.xlu0 %3521
    %3523 = vrot.lane.b32.xlu0 %v2917, 64
    %v3524 = vpop.permute.xlu0 %3523
    %3525 = vrot.lane.b32.xlu0 %v2918, 64
    %v3526 = vpop.permute.xlu0 %3525
    %3527 = vrot.lane.b32.xlu0 %v2919, 64
    %v3528 = vpop.permute.xlu0 %3527
    %3529 = vrot.lane.b32.xlu0 %v2920, 64
    %v3530 = vpop.permute.xlu0 %3529
    %3531 = vrot.lane.b32.xlu0 %v2921, 64
    %v3532 = vpop.permute.xlu0 %3531
    %3533 = vrot.lane.b32.xlu0 %v2922, 64
    %v3534 = vpop.permute.xlu0 %3533
    %3535 = vrot.lane.b32.xlu0 %v2923, 64
    %v3536 = vpop.permute.xlu0 %3535
    %3537 = vrot.lane.b32.xlu0 %v2924, 64
    %v3538 = vpop.permute.xlu0 %3537
    %3539 = vrot.lane.b32.xlu0 %v2925, 64
    %v3540 = vpop.permute.xlu0 %3539
    %3541 = vrot.lane.b32.xlu0 %v2926, 64
    %v3542 = vpop.permute.xlu0 %3541
    %3543 = vrot.lane.b32.xlu0 %v2927, 64
    %v3544 = vpop.permute.xlu0 %3543
    %3545 = vrot.lane.b32.xlu0 %v2928, 64
    %v3546 = vpop.permute.xlu0 %3545
    %3547 = vrot.lane.b32.xlu0 %v2929, 64
    %v3548 = vpop.permute.xlu0 %3547
    %3549 = vrot.lane.b32.xlu0 %v2930, 64
    %v3550 = vpop.permute.xlu0 %3549
    %3551 = vrot.lane.b32.xlu0 %v2914, 64
    %v3552 = vpop.permute.xlu0 %3551
    %3553 = vrot.lane.b32.xlu0 %v2932, 64
    %v3554 = vpop.permute.xlu0 %3553
    %3555 = vrot.lane.b32.xlu0 %v2933, 64
    %v3556 = vpop.permute.xlu0 %3555
    %3557 = vrot.lane.b32.xlu0 %v2934, 64
    %v3558 = vpop.permute.xlu0 %3557
    %3559 = vrot.lane.b32.xlu0 %v2935, 64
    %v3560 = vpop.permute.xlu0 %3559
    %3561 = vrot.lane.b32.xlu0 %v2936, 64
    %v3562 = vpop.permute.xlu0 %3561
    %3563 = vrot.lane.b32.xlu0 %v2937, 64
    %v3564 = vpop.permute.xlu0 %3563
    %3565 = vrot.lane.b32.xlu0 %v2938, 64
    %v3566 = vpop.permute.xlu0 %3565
    %3567 = vrot.lane.b32.xlu0 %v2939, 64
    %v3568 = vpop.permute.xlu0 %3567
    %3569 = vrot.lane.b32.xlu0 %v2940, 64
    %v3570 = vpop.permute.xlu0 %3569
    %3571 = vrot.lane.b32.xlu0 %v2941, 64
    %v3572 = vpop.permute.xlu0 %3571
    %3573 = vrot.lane.b32.xlu0 %v2942, 64
    %v3574 = vpop.permute.xlu0 %3573
    %3575 = vrot.lane.b32.xlu0 %v2943, 64
    %v3576 = vpop.permute.xlu0 %3575
    %3577 = vrot.lane.b32.xlu0 %v2944, 64
    %v3578 = vpop.permute.xlu0 %3577
    %3579 = vrot.lane.b32.xlu0 %v2945, 64
    %v3580 = vpop.permute.xlu0 %3579
    %3581 = vrot.lane.b32.xlu0 %v2946, 64
    %v3582 = vpop.permute.xlu0 %3581
    %3616 = vrot.lane.b32.xlu0 %v2623, 96
    %v3617 = vpop.permute.xlu0 %3616
    %3618 = vrot.lane.b32.xlu0 %v2624, 96
    %v3619 = vpop.permute.xlu0 %3618
    %3620 = vrot.lane.b32.xlu0 %v2625, 96
    %v3621 = vpop.permute.xlu0 %3620
    %3622 = vrot.lane.b32.xlu0 %v2626, 96
    %v3623 = vpop.permute.xlu0 %3622
    %3624 = vrot.lane.b32.xlu0 %v2627, 96
    %v3625 = vpop.permute.xlu0 %3624
    %3626 = vrot.lane.b32.xlu0 %v2628, 96
    %v3627 = vpop.permute.xlu0 %3626
    %3628 = vrot.lane.b32.xlu0 %v2629, 96
    %v3629 = vpop.permute.xlu0 %3628
    %3630 = vrot.lane.b32.xlu0 %v2630, 96
    %v3631 = vpop.permute.xlu0 %3630
    %3632 = vrot.lane.b32.xlu0 %v2631, 96
    %v3633 = vpop.permute.xlu0 %3632
    %3634 = vrot.lane.b32.xlu0 %v2632, 96
    %v3635 = vpop.permute.xlu0 %3634
    %3636 = vrot.lane.b32.xlu0 %v2633, 96
    %v3637 = vpop.permute.xlu0 %3636
    %3638 = vrot.lane.b32.xlu0 %v2634, 96
    %v3639 = vpop.permute.xlu0 %3638
    %3640 = vrot.lane.b32.xlu0 %v2635, 96
    %v3641 = vpop.permute.xlu0 %3640
    %3642 = vrot.lane.b32.xlu0 %v2636, 96
    %v3643 = vpop.permute.xlu0 %3642
    %3644 = vrot.lane.b32.xlu0 %v2637, 96
    %v3645 = vpop.permute.xlu0 %3644
    %3646 = vrot.lane.b32.xlu0 0.0, 96
    %v3647 = vpop.permute.xlu0 %3646
    %3648 = vrot.lane.b32.xlu0 %v2639, 96
    %v3649 = vpop.permute.xlu0 %3648
    %3650 = vrot.lane.b32.xlu0 %v2640, 96
    %v3651 = vpop.permute.xlu0 %3650
    %3652 = vrot.lane.b32.xlu0 %v2641, 96
    %v3653 = vpop.permute.xlu0 %3652
    %3654 = vrot.lane.b32.xlu0 %v2642, 96
    %v3655 = vpop.permute.xlu0 %3654
    %3656 = vrot.lane.b32.xlu0 %v2643, 96
    %v3657 = vpop.permute.xlu0 %3656
    %3658 = vrot.lane.b32.xlu0 %v2644, 96
    %v3659 = vpop.permute.xlu0 %3658
    %3660 = vrot.lane.b32.xlu0 %v2645, 96
    %v3661 = vpop.permute.xlu0 %3660
    %3662 = vrot.lane.b32.xlu0 %v2646, 96
    %v3663 = vpop.permute.xlu0 %3662
    %3664 = vrot.lane.b32.xlu0 %v2647, 96
    %v3665 = vpop.permute.xlu0 %3664
    %3666 = vrot.lane.b32.xlu0 %v2648, 96
    %v3667 = vpop.permute.xlu0 %3666
    %3668 = vrot.lane.b32.xlu0 %v2649, 96
    %v3669 = vpop.permute.xlu0 %3668
    %3670 = vrot.lane.b32.xlu0 %v2650, 96
    %v3671 = vpop.permute.xlu0 %3670
    %3672 = vrot.lane.b32.xlu0 %v2651, 96
    %v3673 = vpop.permute.xlu0 %3672
    %3674 = vrot.lane.b32.xlu0 %v2652, 96
    %v3675 = vpop.permute.xlu0 %3674
    %3676 = vrot.lane.b32.xlu0 %v2653, 96
    %v3677 = vpop.permute.xlu0 %3676
    %vm3709 = vcmask 261120
    %v3710 = vsel %vm3709, %v2914, %v3144
    %v3711 = vsel %vm3709, %v2915, %v3146
    %v3712 = vsel %vm3709, %v2916, %v3148
    %v3713 = vsel %vm3709, %v2917, %v3150
    %v3714 = vsel %vm3709, %v2918, %v3152
    %v3715 = vsel %vm3709, %v2919, %v3154
    %v3716 = vsel %vm3709, %v2920, %v3156
    %v3717 = vsel %vm3709, %v2921, %v3158
    %v3718 = vsel %vm3709, %v2922, %v3160
    %v3719 = vsel %vm3709, %v2923, %v3162
    %v3720 = vsel %vm3709, %v2924, %v3164
    %v3721 = vsel %vm3709, %v2925, %v3166
    %v3722 = vsel %vm3709, %v2926, %v3168
    %v3723 = vsel %vm3709, %v2927, %v3170
    %v3724 = vsel %vm3709, %v2928, %v3172
    %v3725 = vsel %vm3709, %v2929, %v3174
    %v3726 = vsel %vm3709, %v2931, %v3176
    %v3727 = vsel %vm3709, %v2932, %v3178
    %v3728 = vsel %vm3709, %v2933, %v3180
    %v3729 = vsel %vm3709, %v2934, %v3182
    %v3730 = vsel %vm3709, %v2935, %v3184
    %v3731 = vsel %vm3709, %v2936, %v3186
    %v3732 = vsel %vm3709, %v2937, %v3188
    %v3733 = vsel %vm3709, %v2938, %v3190
    %v3734 = vsel %vm3709, %v2939, %v3192
    %v3735 = vsel %vm3709, %v2940, %v3194
    %v3736 = vsel %vm3709, %v2941, %v3196
    %v3737 = vsel %vm3709, %v2942, %v3198
    %v3738 = vsel %vm3709, %v2943, %v3200
    %v3739 = vsel %vm3709, %v2944, %v3202
    %v3740 = vsel %vm3709, %v2945, %v3204
    %vm3741 = vcmask 523264
    %v3742 = vsel %vm3741, %v3710, %v3237
    %v3743 = vsel %vm3741, %v3711, %v3239
    %v3744 = vsel %vm3741, %v3712, %v3241
    %v3745 = vsel %vm3741, %v3713, %v3243
    %v3746 = vsel %vm3741, %v3714, %v3245
    %v3747 = vsel %vm3741, %v3715, %v3247
    %v3748 = vsel %vm3741, %v3716, %v3249
    %v3749 = vsel %vm3741, %v3717, %v3251
    %v3750 = vsel %vm3741, %v3718, %v3253
    %v3751 = vsel %vm3741, %v3719, %v3255
    %v3752 = vsel %vm3741, %v3720, %v3257
    %v3753 = vsel %vm3741, %v3721, %v3259
    %v3754 = vsel %vm3741, %v3722, %v3261
    %v3755 = vsel %vm3741, %v3723, %v3263
    %v3756 = vsel %vm3741, %v3724, %v3265
    %v3757 = vsel %vm3741, %v3725, %v3267
    %v3758 = vsel %vm3741, %v3726, %v3269
    %v3759 = vsel %vm3741, %v3727, %v3271
    %v3760 = vsel %vm3741, %v3728, %v3273
    %v3761 = vsel %vm3741, %v3729, %v3275
    %v3762 = vsel %vm3741, %v3730, %v3277
    %v3763 = vsel %vm3741, %v3731, %v3279
    %v3764 = vsel %vm3741, %v3732, %v3281
    %v3765 = vsel %vm3741, %v3733, %v3283
    %v3766 = vsel %vm3741, %v3734, %v3285
    %v3767 = vsel %vm3741, %v3735, %v3287
    %v3768 = vsel %vm3741, %v3736, %v3289
    %v3769 = vsel %vm3741, %v3737, %v3291
    %v3770 = vsel %vm3741, %v3738, %v3293
    %v3771 = vsel %vm3741, %v3739, %v3295
    %v3772 = vsel %vm3741, %v3740, %v3297
    %vm3773 = vcmask 785408
    %v3774 = vsel %vm3773, %v3742, %v3330
    %v3775 = vsel %vm3773, %v3743, %v3332
    %v3776 = vsel %vm3773, %v3744, %v3334
    %v3777 = vsel %vm3773, %v3745, %v3336
    %v3778 = vsel %vm3773, %v3746, %v3338
    %v3779 = vsel %vm3773, %v3747, %v3340
    %v3780 = vsel %vm3773, %v3748, %v3342
    %v3781 = vsel %vm3773, %v3749, %v3344
    %v3782 = vsel %vm3773, %v3750, %v3346
    %v3783 = vsel %vm3773, %v3751, %v3348
    %v3784 = vsel %vm3773, %v3752, %v3350
    %v3785 = vsel %vm3773, %v3753, %v3352
    %v3786 = vsel %vm3773, %v3754, %v3354
    %v3787 = vsel %vm3773, %v3755, %v3356
    %v3788 = vsel %vm3773, %v3756, %v3358
    %v3789 = vsel %vm3773, %v3757, %v3360
    %v3790 = vsel %vm3773, %v3742, %v3362
    %v3791 = vsel %vm3773, %v3758, %v3364
    %v3792 = vsel %vm3773, %v3759, %v3366
    %v3793 = vsel %vm3773, %v3760, %v3368
    %v3794 = vsel %vm3773, %v3761, %v3370
    %v3795 = vsel %vm3773, %v3762, %v3372
    %v3796 = vsel %vm3773, %v3763, %v3374
    %v3797 = vsel %vm3773, %v3764, %v3376
    %v3798 = vsel %vm3773, %v3765, %v3378
    %v3799 = vsel %vm3773, %v3766, %v3380
    %v3800 = vsel %vm3773, %v3767, %v3382
    %v3801 = vsel %vm3773, %v3768, %v3384
    %v3802 = vsel %vm3773, %v3769, %v3386
    %v3803 = vsel %vm3773, %v3770, %v3388
    %v3804 = vsel %vm3773, %v3771, %v3390
    %v3805 = vsel %vm3773, %v3772, %v3392
    %v3806 = vsel %vm3709, %v2622, %v3426
    %v3807 = vsel %vm3709, %v2623, %v3428
    %v3808 = vsel %vm3709, %v2624, %v3430
    %v3809 = vsel %vm3709, %v2625, %v3432
    %v3810 = vsel %vm3709, %v2626, %v3434
    %v3811 = vsel %vm3709, %v2627, %v3436
    %v3812 = vsel %vm3709, %v2628, %v3438
    %v3813 = vsel %vm3709, %v2629, %v3440
    %v3814 = vsel %vm3709, %v2630, %v3442
    %v3815 = vsel %vm3709, %v2631, %v3444
    %v3816 = vsel %vm3709, %v2632, %v3446
    %v3817 = vsel %vm3709, %v2633, %v3448
    %v3818 = vsel %vm3709, %v2634, %v3450
    %v3819 = vsel %vm3709, %v2635, %v3452
    %v3820 = vsel %vm3709, %v2636, %v3454
    %v3821 = vsel %vm3709, %v2637, %v3456
    %v3822 = vsel %vm3709, %v2638, %v3458
    %v3823 = vsel %vm3709, %v2639, %v3460
    %v3824 = vsel %vm3709, %v2640, %v3462
    %v3825 = vsel %vm3709, %v2641, %v3464
    %v3826 = vsel %vm3709, %v2642, %v3466
    %v3827 = vsel %vm3709, %v2643, %v3468
    %v3828 = vsel %vm3709, %v2644, %v3470
    %v3829 = vsel %vm3709, %v2645, %v3472
    %v3830 = vsel %vm3709, %v2646, %v3474
    %v3831 = vsel %vm3709, %v2647, %v3476
    %v3832 = vsel %vm3709, %v2648, %v3478
    %v3833 = vsel %vm3709, %v2649, %v3480
    %v3834 = vsel %vm3709, %v2650, %v3482
    %v3835 = vsel %vm3709, %v2651, %v3484
    %v3836 = vsel %vm3709, %v2652, %v3486
    %v3837 = vsel %vm3709, %v2653, %v3488
    %v3838 = vsel %vm3741, %v3806, %v3522
    %v3839 = vsel %vm3741, %v3807, %v3524
    %v3840 = vsel %vm3741, %v3808, %v3526
    %v3841 = vsel %vm3741, %v3809, %v3528
    %v3842 = vsel %vm3741, %v3810, %v3530
    %v3843 = vsel %vm3741, %v3811, %v3532
    %v3844 = vsel %vm3741, %v3812, %v3534
    %v3845 = vsel %vm3741, %v3813, %v3536
    %v3846 = vsel %vm3741, %v3814, %v3538
    %v3847 = vsel %vm3741, %v3815, %v3540
    %v3848 = vsel %vm3741, %v3816, %v3542
    %v3849 = vsel %vm3741, %v3817, %v3544
    %v3850 = vsel %vm3741, %v3818, %v3546
    %v3851 = vsel %vm3741, %v3819, %v3548
    %v3852 = vsel %vm3741, %v3820, %v3550
    %v3853 = vsel %vm3741, %v3821, %v3552
    %v3854 = vsel %vm3741, %v3822, %v3554
    %v3855 = vsel %vm3741, %v3823, %v3556
    %v3856 = vsel %vm3741, %v3824, %v3558
    %v3857 = vsel %vm3741, %v3825, %v3560
    %v3858 = vsel %vm3741, %v3826, %v3562
    %v3859 = vsel %vm3741, %v3827, %v3564
    %v3860 = vsel %vm3741, %v3828, %v3566
    %v3861 = vsel %vm3741, %v3829, %v3568
    %v3862 = vsel %vm3741, %v3830, %v3570
    %v3863 = vsel %vm3741, %v3831, %v3572
    %v3864 = vsel %vm3741, %v3832, %v3574
    %v3865 = vsel %vm3741, %v3833, %v3576
    %v3866 = vsel %vm3741, %v3834, %v3578
    %v3867 = vsel %vm3741, %v3835, %v3580
    %v3868 = vsel %vm3741, %v3836, %v3582
    %v3869 = vsel %vm3741, %v3837, %v3552
    %v3870 = vsel %vm3773, %v3838, %v3617
    %v3871 = vsel %vm3773, %v3839, %v3619
    %v3872 = vsel %vm3773, %v3840, %v3621
    %v3873 = vsel %vm3773, %v3841, %v3623
    %v3874 = vsel %vm3773, %v3842, %v3625
    %v3875 = vsel %vm3773, %v3843, %v3627
    %v3876 = vsel %vm3773, %v3844, %v3629
    %v3877 = vsel %vm3773, %v3845, %v3631
    %v3878 = vsel %vm3773, %v3846, %v3633
    %v3879 = vsel %vm3773, %v3847, %v3635
    %v3880 = vsel %vm3773, %v3848, %v3637
    %v3881 = vsel %vm3773, %v3849, %v3639
    %v3882 = vsel %vm3773, %v3850, %v3641
    %v3883 = vsel %vm3773, %v3851, %v3643
    %v3884 = vsel %vm3773, %v3852, %v3645
    %v3885 = vsel %vm3773, %v3853, %v3647
    %v3886 = vsel %vm3773, %v3854, %v3649
    %v3887 = vsel %vm3773, %v3855, %v3651
    %v3888 = vsel %vm3773, %v3856, %v3653
    %v3889 = vsel %vm3773, %v3857, %v3655
    %v3890 = vsel %vm3773, %v3858, %v3657
    %v3891 = vsel %vm3773, %v3859, %v3659
    %v3892 = vsel %vm3773, %v3860, %v3661
    %v3893 = vsel %vm3773, %v3861, %v3663
    %v3894 = vsel %vm3773, %v3862, %v3665
    %v3895 = vsel %vm3773, %v3863, %v3667
    %v3896 = vsel %vm3773, %v3864, %v3669
    %v3897 = vsel %vm3773, %v3865, %v3671
    %v3898 = vsel %vm3773, %v3866, %v3673
    %v3899 = vsel %vm3773, %v3867, %v3675
    %v3900 = vsel %vm3773, %v3868, %v3677
    %v3901 = vsel %vm3773, %v3869, %v3647
    %v3902 = vpack.c.bf16 %v3775, %v3774
    %v3903 = vpack.c.bf16 %v3871, %v3870
    %v3904 = vpack.c.bf16 %v2990, %v2987
    %v3905 = vpack.c.bf16 %v3777, %v3776
    %v3906 = vpack.c.bf16 %v3873, %v3872
    %v3907 = vpack.c.bf16 %v2996, %v2993
    %v3908 = vpack.c.bf16 %v3779, %v3778
    %v3909 = vpack.c.bf16 %v3875, %v3874
    %v3910 = vpack.c.bf16 %v3002, %v2999
    %v3911 = vpack.c.bf16 %v3781, %v3780
    %v3912 = vpack.c.bf16 %v3877, %v3876
    %v3913 = vpack.c.bf16 %v3008, %v3005
    %v3914 = vpack.c.bf16 %v3783, %v3782
    %v3915 = vpack.c.bf16 %v3879, %v3878
    %v3916 = vpack.c.bf16 %v3014, %v3011
    %v3917 = vpack.c.bf16 %v3785, %v3784
    %v3918 = vpack.c.bf16 %v3881, %v3880
    %v3919 = vpack.c.bf16 %v3020, %v3017
    %v3920 = vpack.c.bf16 %v3787, %v3786
    %v3921 = vpack.c.bf16 %v3883, %v3882
    %v3922 = vpack.c.bf16 %v3026, %v3023
    %v3923 = vpack.c.bf16 %v3789, %v3788
    %v3924 = vpack.c.bf16 %v3885, %v3884
    %v3925 = vpack.c.bf16 %v2981, %v3076
    %v3926 = vpack.c.bf16 %v3791, %v3790
    %v3927 = vpack.c.bf16 %v3887, %v3886
    %v3928 = vpack.c.bf16 %v3035, %v3032
    %v3929 = vpack.c.bf16 %v3793, %v3792
    %v3930 = vpack.c.bf16 %v3889, %v3888
    %v3931 = vpack.c.bf16 %v3041, %v3038
    %v3932 = vpack.c.bf16 %v3795, %v3794
    %v3933 = vpack.c.bf16 %v3891, %v3890
    %v3934 = vpack.c.bf16 %v3047, %v3044
    %v3935 = vpack.c.bf16 %v3797, %v3796
    %v3936 = vpack.c.bf16 %v3893, %v3892
    %v3937 = vpack.c.bf16 %v3053, %v3050
    %v3938 = vpack.c.bf16 %v3799, %v3798
    %v3939 = vpack.c.bf16 %v3895, %v3894
    %v3940 = vpack.c.bf16 %v3059, %v3056
    %v3941 = vpack.c.bf16 %v3801, %v3800
    %v3942 = vpack.c.bf16 %v3897, %v3896
    %v3943 = vpack.c.bf16 %v3065, %v3062
    %v3944 = vpack.c.bf16 %v3803, %v3802
    %v3945 = vpack.c.bf16 %v3899, %v3898
    %v3946 = vpack.c.bf16 %v3071, %v3068
    %v3947 = vpack.c.bf16 %v3805, %v3804
    %v3948 = vpack.c.bf16 %v3901, %v3900
    %v3949 = vpack.c.bf16 %v2981, %v3079
    %v3950 = vld [vmem:[%s3] sm:$0xf]
    %v3951 = vld [vmem:[%s3 + $0x4] sm:$0xf]
    %v3952 = vld [vmem:[%s3 + $0x8] sm:$0xf]
    %v3953 = vld [vmem:[%s3 + $0xc] sm:$0xf]
    %v3954 = vld [vmem:[%s3 + $0x10] sm:$0xf]
    %v3955 = vld [vmem:[%s3 + $0x14] sm:$0xf]
    %v3956 = vld [vmem:[%s3 + $0x18] sm:$0xf]
    %v3957 = vld [vmem:[%s3 + $0x1c] sm:$0xf]
    %v3958 = vld [vmem:[%s3 + $0x20] sm:$0xf]
    %v3959 = vld [vmem:[%s3 + $0x24] sm:$0xf]
    %v3960 = vld [vmem:[%s3 + $0x28] sm:$0xf]
    %v3961 = vld [vmem:[%s3 + $0x2c] sm:$0xf]
    %v3962 = vld [vmem:[%s3 + $0x30] sm:$0xf]
    %v3963 = vld [vmem:[%s3 + $0x34] sm:$0xf]
    %v3964 = vld [vmem:[%s3 + $0x38] sm:$0xf]
    %v3965 = vld [vmem:[%s3 + $0x3c] sm:$0xf]
    %v3966 = vld [vmem:[%s3 + $0x40] sm:$0xf]
    %v3967 = vld [vmem:[%s3 + $0x44] sm:$0xf]
    %v3968 = vld [vmem:[%s3 + $0x48] sm:$0xf]
    %v3969 = vld [vmem:[%s3 + $0x4c] sm:$0xf]
    %v3970 = vld [vmem:[%s3 + $0x50] sm:$0xf]
    %v3971 = vld [vmem:[%s3 + $0x54] sm:$0xf]
    %v3972 = vld [vmem:[%s3 + $0x58] sm:$0xf]
    %v3973 = vld [vmem:[%s3 + $0x5c] sm:$0xf]
    %v3974 = vld [vmem:[%s3 + $0x60] sm:$0xf]
    %v3975 = vld [vmem:[%s3 + $0x64] sm:$0xf]
    %v3976 = vld [vmem:[%s3 + $0x68] sm:$0xf]
    %v3977 = vld [vmem:[%s3 + $0x6c] sm:$0xf]
    %v3978 = vld [vmem:[%s3 + $0x70] sm:$0xf]
    %v3979 = vld [vmem:[%s3 + $0x74] sm:$0xf]
    %v3980 = vld [vmem:[%s3 + $0x78] sm:$0xf]
    %v3981 = vld [vmem:[%s3 + $0x7c] sm:$0xf]
    %v3982 = vld [vmem:[%s3 + $0x80] sm:$0xf]
    %v3983 = vld [vmem:[%s3 + $0x84] sm:$0xf]
    %v3984 = vld [vmem:[%s3 + $0x88] sm:$0xf]
    %v3985 = vld [vmem:[%s3 + $0x8c] sm:$0xf]
    %v4022 = vunpack.c.l.b16 %v3950
    %v4023 = vunpack.c.l.b16 %v3951
    %v4024 = vunpack.c.l.b16 %v3952
    %v4025 = vunpack.c.l.b16 %v3953
    %v4026 = vunpack.c.l.b16 %v3954
    %v4027 = vunpack.c.l.b16 %v3955
    %v4028 = vunpack.c.l.b16 %v3956
    %v4029 = vunpack.c.l.b16 %v3957
    %v4030 = vunpack.c.l.b16 %v3958
    %v4031 = vunpack.c.l.b16 %v3959
    %v4032 = vunpack.c.l.b16 %v3960
    %v4033 = vunpack.c.l.b16 %v3961
    %v4034 = vunpack.c.l.b16 %v3962
    %v4035 = vunpack.c.l.b16 %v3963
    %v4036 = vunpack.c.l.b16 %v3964
    %v4037 = vunpack.c.l.b16 %v3965
    %v4038 = vunpack.c.l.b16 %v3966
    %v4039 = vunpack.c.l.b16 %v3967
    %v4040 = vunpack.c.l.b16 %v3968
    %v4041 = vunpack.c.l.b16 %v3969
    %v4042 = vunpack.c.l.b16 %v3970
    %v4043 = vunpack.c.l.b16 %v3971
    %v4044 = vunpack.c.l.b16 %v3972
    %v4045 = vunpack.c.l.b16 %v3973
    %v4046 = vunpack.c.l.b16 %v3974
    %v4047 = vunpack.c.l.b16 %v3975
    %v4048 = vunpack.c.l.b16 %v3976
    %v4049 = vunpack.c.l.b16 %v3977
    %v4050 = vunpack.c.l.b16 %v3978
    %v4051 = vunpack.c.l.b16 %v3979
    %v4052 = vunpack.c.l.b16 %v3980
    %v4053 = vunpack.c.l.b16 %v3981
    %v4054 = vunpack.c.l.b16 %v3982
    %v4055 = vunpack.c.l.b16 %v3983
    %v4056 = vunpack.c.l.b16 %v3984
    %v4057 = vunpack.c.l.b16 %v3985
    %v4058 = vpack.c.b16 %v4023, %v4022
    %v4059 = vpack.c.b16 %v4025, %v4024
    %v4060 = vpack.c.b16 %v4027, %v4026
    %v4061 = vpack.c.b16 %v4029, %v4028
    %v4062 = vpack.c.b16 %v4031, %v4030
    %v4063 = vpack.c.b16 %v4033, %v4032
    %v4064 = vpack.c.b16 %v4035, %v4034
    %v4065 = vpack.c.b16 %v4037, %v4036
    %v4066 = vpack.c.b16 %v4039, %v4038
    %v4067 = vpack.c.b16 %v4041, %v4040
    %v4068 = vpack.c.b16 %v4043, %v4042
    %v4069 = vpack.c.b16 %v4045, %v4044
    %v4070 = vpack.c.b16 %v4047, %v4046
    %v4071 = vpack.c.b16 %v4049, %v4048
    %v4072 = vpack.c.b16 %v4051, %v4050
    %v4073 = vpack.c.b16 %v4053, %v4052
    %v4074 = vpack.c.b16 %v4055, %v4054
    %v4075 = vpack.c.b16 %v4057, %v4056
    %v4095 = vsel %vm3709, %v3904, 0
    %v4098 = vsel %vm3709, %v3907, 0
    %v4101 = vsel %vm3709, %v3910, 0
    %v4104 = vsel %vm3709, %v3913, 0
    %v4107 = vsel %vm3709, %v3916, 0
    %v4110 = vsel %vm3709, %v3919, 0
    %v4113 = vsel %vm3709, %v3922, 0
    %v4116 = vsel %vm3709, %v3925, 0
    %v4119 = vsel %vm3709, %v3928, 0
    %v4122 = vsel %vm3709, %v3931, 0
    %v4125 = vsel %vm3709, %v3934, 0
    %v4128 = vsel %vm3709, %v3937, 0
    %v4131 = vsel %vm3709, %v3940, 0
    %v4134 = vsel %vm3709, %v3943, 0
    %v4137 = vsel %vm3709, %v3946, 0
    %v4140 = vsel %vm3709, %v3949, 0
    %4142 = vmatprep.subr.bf16.mxu0 0
    %4143 = vmatpush1.bf16.msra.mxu0 %v4058
    %4144 = vmatprep.subr.bf16.mxu0 0
    %4145 = vmatpush1.bf16.msra.mxu0 %v4059
    %4146 = vmatprep.subr.bf16.mxu0 0
    %4147 = vmatpush1.bf16.msra.mxu0 %v4060
    %4148 = vmatprep.subr.bf16.mxu0 0
    %4149 = vmatpush1.bf16.msra.mxu0 %v4061
    %4150 = vmatprep.subr.bf16.mxu0 0
    %4151 = vmatpush1.bf16.msra.mxu0 %v4062
    %4152 = vmatprep.subr.bf16.mxu0 0
    %4153 = vmatpush1.bf16.msra.mxu0 %v4063
    %4154 = vmatprep.subr.bf16.mxu0 0
    %4155 = vmatpush1.bf16.msra.mxu0 %v4064
    %4156 = vmatprep.subr.bf16.mxu0 0
    %4157 = vmatpush1.bf16.msra.mxu0 %v4065
    %4158 = vmatprep.subr.bf16.mxu0 0
    %4159 = vmatpush1.bf16.msra.mxu0 %v4066
    %4160 = vmatprep.subr.bf16.mxu0 0
    %4161 = vmatpush1.bf16.msra.mxu0 %v4067
    %4162 = vmatprep.subr.bf16.mxu0 0
    %4163 = vmatpush1.bf16.msra.mxu0 %v4068
    %4164 = vmatprep.subr.bf16.mxu0 0
    %4165 = vmatpush1.bf16.msra.mxu0 %v4069
    %4166 = vmatprep.subr.bf16.mxu0 0
    %4167 = vmatpush1.bf16.msra.mxu0 %v4070
    %4168 = vmatprep.subr.bf16.mxu0 0
    %4169 = vmatpush1.bf16.msra.mxu0 %v4071
    %4170 = vmatprep.subr.bf16.mxu0 0
    %4171 = vmatpush1.bf16.msra.mxu0 %v4072
    %4172 = vmatprep.subr.bf16.mxu0 0
    %4173 = vmatpush1.bf16.msra.mxu0 %v4073
    %4174 = vmatprep.mubr.bf16.mxu0 %v3903
    %4175 = vmatmul.mubr.bf16.gmra.mrb[0].mxu0 %v3902
    %v4176 = vpop.f32.mrb[0].mxu0
    %v4177 = vadd.f32 0.0, %v4176
    %v4178 = vpop.f32.mrb[0].mxu0
    %v4179 = vpop.f32.mrb[0].mxu0
    %v4180 = vadd.f32 0.0, %v4179
    %v4181 = vpop.f32.mrb[0].mxu0
    %4182 = vmatprep.mubr.bf16.mxu0 %v3906
    %4183 = vmatmul.mubr.bf16.gmra.mrb[0].mxu0 %v3905
    %v4184 = vpop.f32.mrb[0].mxu0
    %v4185 = vadd.f32 0.0, %v4184
    %v4186 = vpop.f32.mrb[0].mxu0
    %v4187 = vpop.f32.mrb[0].mxu0
    %v4188 = vadd.f32 0.0, %v4187
    %v4189 = vpop.f32.mrb[0].mxu0
    %4190 = vmatprep.mubr.bf16.mxu0 %v3909
    %4191 = vmatmul.mubr.bf16.gmra.mrb[0].mxu0 %v3908
    %v4192 = vpop.f32.mrb[0].mxu0
    %v4193 = vadd.f32 0.0, %v4192
    %v4194 = vpop.f32.mrb[0].mxu0
    %v4195 = vpop.f32.mrb[0].mxu0
    %v4196 = vadd.f32 0.0, %v4195
    %v4197 = vpop.f32.mrb[0].mxu0
    %4198 = vmatprep.mubr.bf16.mxu0 %v3912
    %4199 = vmatmul.mubr.bf16.gmra.mrb[0].mxu0 %v3911
    %v4200 = vpop.f32.mrb[0].mxu0
    %v4201 = vadd.f32 0.0, %v4200
    %v4202 = vpop.f32.mrb[0].mxu0
    %v4203 = vpop.f32.mrb[0].mxu0
    %v4204 = vadd.f32 0.0, %v4203
    %v4205 = vpop.f32.mrb[0].mxu0
    %4206 = vmatprep.mubr.bf16.mxu0 %v3915
    %4207 = vmatmul.mubr.bf16.gmra.mrb[0].mxu0 %v3914
    %v4208 = vpop.f32.mrb[0].mxu0
    %v4209 = vadd.f32 0.0, %v4208
    %v4210 = vpop.f32.mrb[0].mxu0
    %v4211 = vpop.f32.mrb[0].mxu0
    %v4212 = vadd.f32 0.0, %v4211
    %v4213 = vpop.f32.mrb[0].mxu0
    %4214 = vmatprep.mubr.bf16.mxu0 %v3918
    %4215 = vmatmul.mubr.bf16.gmra.mrb[0].mxu0 %v3917
    %v4216 = vpop.f32.mrb[0].mxu0
    %v4217 = vadd.f32 0.0, %v4216
    %v4218 = vpop.f32.mrb[0].mxu0
    %v4219 = vpop.f32.mrb[0].mxu0
    %v4220 = vadd.f32 0.0, %v4219
    %v4221 = vpop.f32.mrb[0].mxu0
    %4222 = vmatprep.mubr.bf16.mxu0 %v3921
    %4223 = vmatmul.mubr.bf16.gmra.mrb[0].mxu0 %v3920
    %v4224 = vpop.f32.mrb[0].mxu0
    %v4225 = vadd.f32 0.0, %v4224
    %v4226 = vpop.f32.mrb[0].mxu0
    %v4227 = vpop.f32.mrb[0].mxu0
    %v4228 = vadd.f32 0.0, %v4227
    %v4229 = vpop.f32.mrb[0].mxu0
    %4230 = vmatprep.mubr.bf16.mxu0 %v3924
    %4231 = vmatmul.mubr.bf16.gmra.mrb[0].mxu0 %v3923
    %v4232 = vpop.f32.mrb[0].mxu0
    %v4233 = vadd.f32 0.0, %v4232
    %v4234 = vpop.f32.mrb[0].mxu0
    %v4235 = vpop.f32.mrb[0].mxu0
    %v4236 = vadd.f32 0.0, %v4235
    %v4237 = vpop.f32.mrb[0].mxu0
    %4238 = vmatprep.mubr.bf16.mxu0 %v3927
    %4239 = vmatmul.mubr.bf16.gmra.mrb[0].mxu0 %v3926
    %v4240 = vpop.f32.mrb[0].mxu0
    %v4241 = vadd.f32 0.0, %v4240
    %v4242 = vpop.f32.mrb[0].mxu0
    %v4243 = vpop.f32.mrb[0].mxu0
    %v4244 = vadd.f32 0.0, %v4243
    %v4245 = vpop.f32.mrb[0].mxu0
    %4246 = vmatprep.mubr.bf16.mxu0 %v3930
    %4247 = vmatmul.mubr.bf16.gmra.mrb[0].mxu0 %v3929
    %v4248 = vpop.f32.mrb[0].mxu0
    %v4249 = vadd.f32 0.0, %v4248
    %v4250 = vpop.f32.mrb[0].mxu0
    %v4251 = vpop.f32.mrb[0].mxu0
    %v4252 = vadd.f32 0.0, %v4251
    %v4253 = vpop.f32.mrb[0].mxu0
    %4254 = vmatprep.mubr.bf16.mxu0 %v3933
    %4255 = vmatmul.mubr.bf16.gmra.mrb[0].mxu0 %v3932
    %v4256 = vpop.f32.mrb[0].mxu0
    %v4257 = vadd.f32 0.0, %v4256
    %v4258 = vpop.f32.mrb[0].mxu0
    %v4259 = vpop.f32.mrb[0].mxu0
    %v4260 = vadd.f32 0.0, %v4259
    %v4261 = vpop.f32.mrb[0].mxu0
    %4262 = vmatprep.mubr.bf16.mxu0 %v3936
    %4263 = vmatmul.mubr.bf16.gmra.mrb[0].mxu0 %v3935
    %v4264 = vpop.f32.mrb[0].mxu0
    %v4265 = vadd.f32 0.0, %v4264
    %v4266 = vpop.f32.mrb[0].mxu0
    %v4267 = vpop.f32.mrb[0].mxu0
    %v4268 = vadd.f32 0.0, %v4267
    %v4269 = vpop.f32.mrb[0].mxu0
    %4270 = vmatprep.mubr.bf16.mxu0 %v3939
    %4271 = vmatmul.mubr.bf16.gmra.mrb[0].mxu0 %v3938
    %v4272 = vpop.f32.mrb[0].mxu0
    %v4273 = vadd.f32 0.0, %v4272
    %v4274 = vpop.f32.mrb[0].mxu0
    %v4275 = vpop.f32.mrb[0].mxu0
    %v4276 = vadd.f32 0.0, %v4275
    %v4277 = vpop.f32.mrb[0].mxu0
    %4278 = vmatprep.mubr.bf16.mxu0 %v3942
    %4279 = vmatmul.mubr.bf16.gmra.mrb[0].mxu0 %v3941
    %v4280 = vpop.f32.mrb[0].mxu0
    %v4281 = vadd.f32 0.0, %v4280
    %v4282 = vpop.f32.mrb[0].mxu0
    %v4283 = vpop.f32.mrb[0].mxu0
    %v4284 = vadd.f32 0.0, %v4283
    %v4285 = vpop.f32.mrb[0].mxu0
    %4286 = vmatprep.mubr.bf16.mxu0 %v3945
    %4287 = vmatmul.mubr.bf16.gmra.mrb[0].mxu0 %v3944
    %v4288 = vpop.f32.mrb[0].mxu0
    %v4289 = vadd.f32 0.0, %v4288
    %v4290 = vpop.f32.mrb[0].mxu0
    %v4291 = vpop.f32.mrb[0].mxu0
    %v4292 = vadd.f32 0.0, %v4291
    %v4293 = vpop.f32.mrb[0].mxu0
    %4294 = vmatprep.mubr.bf16.mxu0 %v3948
    %4295 = vmatmul.mubr.bf16.gmra.mrb[0].mxu0 %v3947
    %v4296 = vpop.f32.mrb[0].mxu0
    %v4297 = vadd.f32 0.0, %v4296
    %v4298 = vpop.f32.mrb[0].mxu0
    %v4299 = vpop.f32.mrb[0].mxu0
    %v4300 = vadd.f32 0.0, %v4299
    %v4301 = vpop.f32.mrb[0].mxu0
    %4302 = vdwg.mxu0
    %4303 = vmatprep.subr.bf16.mxu0 0
    %4304 = vmatpush1.bf16.msra.mxu0 %v4074
    %4305 = vmatprep.subr.bf16.mxu0 0
    %4306 = vmatpush1.bf16.msra.mxu0 %v4075
    %4307 = vmatprep.subr.bf16.mxu0 0
    %4308 = vmatpush1.bf16.msra.mxu0 0
    %4309 = vmatprep.subr.bf16.mxu0 0
    %4310 = vmatpush1.bf16.msra.mxu0 0
    %4311 = vmatprep.subr.bf16.mxu0 0
    %4312 = vmatpush1.bf16.msra.mxu0 0
    %4313 = vmatprep.subr.bf16.mxu0 0
    %4314 = vmatpush1.bf16.msra.mxu0 0
    %4315 = vmatprep.subr.bf16.mxu0 0
    %4316 = vmatpush1.bf16.msra.mxu0 0
    %4317 = vmatprep.subr.bf16.mxu0 0
    %4318 = vmatpush1.bf16.msra.mxu0 0
    %4319 = vmatprep.subr.bf16.mxu0 0
    %4320 = vmatpush1.bf16.msra.mxu0 0
    %4321 = vmatprep.subr.bf16.mxu0 0
    %4322 = vmatpush1.bf16.msra.mxu0 0
    %4323 = vmatprep.subr.bf16.mxu0 0
    %4324 = vmatpush1.bf16.msra.mxu0 0
    %4325 = vmatprep.subr.bf16.mxu0 0
    %4326 = vmatpush1.bf16.msra.mxu0 0
    %4327 = vmatprep.subr.bf16.mxu0 0
    %4328 = vmatpush1.bf16.msra.mxu0 0
    %4329 = vmatprep.subr.bf16.mxu0 0
    %4330 = vmatpush1.bf16.msra.mxu0 0
    %4331 = vmatprep.subr.bf16.mxu0 0
    %4332 = vmatpush1.bf16.msra.mxu0 0
    %4333 = vmatprep.subr.bf16.mxu0 0
    %4334 = vmatpush1.bf16.msra.mxu0 0
    %4335 = vmatprep.mubr.bf16.mxu0 0
    %4336 = vmatmul.mubr.bf16.gmra.mrb[0].mxu0 %v4095
    %v4337 = vpop.f32.mrb[0].mxu0
    %v4338 = vadd.f32 %v4177, %v4337
    %v4339 = vpop.f32.mrb[0].mxu0
    %v4340 = vpop.f32.mrb[0].mxu0
    %v4341 = vadd.f32 %v4180, %v4340
    %v4342 = vpop.f32.mrb[0].mxu0
    %4343 = vmatprep.mubr.bf16.mxu0 0
    %4344 = vmatmul.mubr.bf16.gmra.mrb[0].mxu0 %v4098
    %v4345 = vpop.f32.mrb[0].mxu0
    %v4346 = vadd.f32 %v4185, %v4345
    %v4347 = vpop.f32.mrb[0].mxu0
    %v4348 = vpop.f32.mrb[0].mxu0
    %v4349 = vadd.f32 %v4188, %v4348
    %v4350 = vpop.f32.mrb[0].mxu0
    %4351 = vmatprep.mubr.bf16.mxu0 0
    %4352 = vmatmul.mubr.bf16.gmra.mrb[0].mxu0 %v4101
    %v4353 = vpop.f32.mrb[0].mxu0
    %v4354 = vadd.f32 %v4193, %v4353
    %v4355 = vpop.f32.mrb[0].mxu0
    %v4356 = vpop.f32.mrb[0].mxu0
    %v4357 = vadd.f32 %v4196, %v4356
    %v4358 = vpop.f32.mrb[0].mxu0
    %4359 = vmatprep.mubr.bf16.mxu0 0
    %4360 = vmatmul.mubr.bf16.gmra.mrb[0].mxu0 %v4104
    %v4361 = vpop.f32.mrb[0].mxu0
    %v4362 = vadd.f32 %v4201, %v4361
    %v4363 = vpop.f32.mrb[0].mxu0
    %v4364 = vpop.f32.mrb[0].mxu0
    %v4365 = vadd.f32 %v4204, %v4364
    %v4366 = vpop.f32.mrb[0].mxu0
    %4367 = vmatprep.mubr.bf16.mxu0 0
    %4368 = vmatmul.mubr.bf16.gmra.mrb[0].mxu0 %v4107
    %v4369 = vpop.f32.mrb[0].mxu0
    %v4370 = vadd.f32 %v4209, %v4369
    %v4371 = vpop.f32.mrb[0].mxu0
    %v4372 = vpop.f32.mrb[0].mxu0
    %v4373 = vadd.f32 %v4212, %v4372
    %v4374 = vpop.f32.mrb[0].mxu0
    %4375 = vmatprep.mubr.bf16.mxu0 0
    %4376 = vmatmul.mubr.bf16.gmra.mrb[0].mxu0 %v4110
    %v4377 = vpop.f32.mrb[0].mxu0
    %v4378 = vadd.f32 %v4217, %v4377
    %v4379 = vpop.f32.mrb[0].mxu0
    %v4380 = vpop.f32.mrb[0].mxu0
    %v4381 = vadd.f32 %v4220, %v4380
    %v4382 = vpop.f32.mrb[0].mxu0
    %4383 = vmatprep.mubr.bf16.mxu0 0
    %4384 = vmatmul.mubr.bf16.gmra.mrb[0].mxu0 %v4113
    %v4385 = vpop.f32.mrb[0].mxu0
    %v4386 = vadd.f32 %v4225, %v4385
    %v4387 = vpop.f32.mrb[0].mxu0
    %v4388 = vpop.f32.mrb[0].mxu0
    %v4389 = vadd.f32 %v4228, %v4388
    %v4390 = vpop.f32.mrb[0].mxu0
    %4391 = vmatprep.mubr.bf16.mxu0 0
    %4392 = vmatmul.mubr.bf16.gmra.mrb[0].mxu0 %v4116
    %v4393 = vpop.f32.mrb[0].mxu0
    %v4394 = vadd.f32 %v4233, %v4393
    %v4395 = vpop.f32.mrb[0].mxu0
    %v4396 = vpop.f32.mrb[0].mxu0
    %v4397 = vadd.f32 %v4236, %v4396
    %v4398 = vpop.f32.mrb[0].mxu0
    %4399 = vmatprep.mubr.bf16.mxu0 0
    %4400 = vmatmul.mubr.bf16.gmra.mrb[0].mxu0 %v4119
    %v4401 = vpop.f32.mrb[0].mxu0
    %v4402 = vadd.f32 %v4241, %v4401
    %v4403 = vpop.f32.mrb[0].mxu0
    %v4404 = vpop.f32.mrb[0].mxu0
    %v4405 = vadd.f32 %v4244, %v4404
    %v4406 = vpop.f32.mrb[0].mxu0
    %4407 = vmatprep.mubr.bf16.mxu0 0
    %4408 = vmatmul.mubr.bf16.gmra.mrb[0].mxu0 %v4122
    %v4409 = vpop.f32.mrb[0].mxu0
    %v4410 = vadd.f32 %v4249, %v4409
    %v4411 = vpop.f32.mrb[0].mxu0
    %v4412 = vpop.f32.mrb[0].mxu0
    %v4413 = vadd.f32 %v4252, %v4412
    %v4414 = vpop.f32.mrb[0].mxu0
    %4415 = vmatprep.mubr.bf16.mxu0 0
    %4416 = vmatmul.mubr.bf16.gmra.mrb[0].mxu0 %v4125
    %v4417 = vpop.f32.mrb[0].mxu0
    %v4418 = vadd.f32 %v4257, %v4417
    %v4419 = vpop.f32.mrb[0].mxu0
    %v4420 = vpop.f32.mrb[0].mxu0
    %v4421 = vadd.f32 %v4260, %v4420
    %v4422 = vpop.f32.mrb[0].mxu0
    %4423 = vmatprep.mubr.bf16.mxu0 0
    %4424 = vmatmul.mubr.bf16.gmra.mrb[0].mxu0 %v4128
    %v4425 = vpop.f32.mrb[0].mxu0
    %v4426 = vadd.f32 %v4265, %v4425
    %v4427 = vpop.f32.mrb[0].mxu0
    %v4428 = vpop.f32.mrb[0].mxu0
    %v4429 = vadd.f32 %v4268, %v4428
    %v4430 = vpop.f32.mrb[0].mxu0
    %4431 = vmatprep.mubr.bf16.mxu0 0
    %4432 = vmatmul.mubr.bf16.gmra.mrb[0].mxu0 %v4131
    %v4433 = vpop.f32.mrb[0].mxu0
    %v4434 = vadd.f32 %v4273, %v4433
    %v4435 = vpop.f32.mrb[0].mxu0
    %v4436 = vpop.f32.mrb[0].mxu0
    %v4437 = vadd.f32 %v4276, %v4436
    %v4438 = vpop.f32.mrb[0].mxu0
    %4439 = vmatprep.mubr.bf16.mxu0 0
    %4440 = vmatmul.mubr.bf16.gmra.mrb[0].mxu0 %v4134
    %v4441 = vpop.f32.mrb[0].mxu0
    %v4442 = vadd.f32 %v4281, %v4441
    %v4443 = vpop.f32.mrb[0].mxu0
    %v4444 = vpop.f32.mrb[0].mxu0
    %v4445 = vadd.f32 %v4284, %v4444
    %v4446 = vpop.f32.mrb[0].mxu0
    %4447 = vmatprep.mubr.bf16.mxu0 0
    %4448 = vmatmul.mubr.bf16.gmra.mrb[0].mxu0 %v4137
    %v4449 = vpop.f32.mrb[0].mxu0
    %v4450 = vadd.f32 %v4289, %v4449
    %v4451 = vpop.f32.mrb[0].mxu0
    %v4452 = vpop.f32.mrb[0].mxu0
    %v4453 = vadd.f32 %v4292, %v4452
    %v4454 = vpop.f32.mrb[0].mxu0
    %4455 = vmatprep.mubr.bf16.mxu0 0
    %4456 = vmatmul.mubr.bf16.gmra.mrb[0].mxu0 %v4140
    %v4457 = vpop.f32.mrb[0].mxu0
    %v4458 = vadd.f32 %v4297, %v4457
    %v4459 = vpop.f32.mrb[0].mxu0
    %v4460 = vpop.f32.mrb[0].mxu0
    %v4461 = vadd.f32 %v4300, %v4460
    %v4462 = vpop.f32.mrb[0].mxu0
    %4463 = vdwg.mxu0
    %v4464 = vrot.slane 0.0, 1
    %v4465 = vsel %vm2978, %v4464, %v4464
    %v4466 = vrot.slane %v2622, 1
    %v4467 = vsel %vm2978, %v4466, %v4464
    %v4468 = vrot.slane %v2623, 1
    %v4469 = vsel %vm2978, %v4468, %v4464
    %v4470 = vrot.slane %v2624, 1
    %v4471 = vsel %vm2978, %v4470, %v4464
    %v4472 = vrot.slane %v2625, 1
    %v4473 = vsel %vm2978, %v4472, %v4464
    %v4474 = vrot.slane %v2626, 1
    %v4475 = vsel %vm2978, %v4474, %v4464
    %v4476 = vrot.slane %v2627, 1
    %v4477 = vsel %vm2978, %v4476, %v4464
    %v4478 = vrot.slane %v2628, 1
    %v4479 = vsel %vm2978, %v4478, %v4464
    %v4480 = vrot.slane %v2629, 1
    %v4481 = vsel %vm2978, %v4480, %v4464
    %v4482 = vrot.slane %v2630, 1
    %v4483 = vsel %vm2978, %v4482, %v4464
    %v4484 = vrot.slane %v2631, 1
    %v4485 = vsel %vm2978, %v4484, %v4464
    %v4486 = vrot.slane %v2632, 1
    %v4487 = vsel %vm2978, %v4486, %v4464
    %v4488 = vrot.slane %v2633, 1
    %v4489 = vsel %vm2978, %v4488, %v4464
    %v4490 = vrot.slane %v2634, 1
    %v4491 = vsel %vm2978, %v4490, %v4464
    %v4492 = vrot.slane %v2635, 1
    %v4493 = vsel %vm2978, %v4492, %v4464
    %v4494 = vrot.slane %v2636, 1
    %v4495 = vsel %vm2978, %v4494, %v4464
    %v4496 = vrot.slane %v2638, 1
    %v4497 = vsel %vm2978, %v4496, %v4464
    %v4498 = vrot.slane %v2639, 1
    %v4499 = vsel %vm2978, %v4498, %v4464
    %v4500 = vrot.slane %v2640, 1
    %v4501 = vsel %vm2978, %v4500, %v4464
    %v4502 = vrot.slane %v2641, 1
    %v4503 = vsel %vm2978, %v4502, %v4464
    %v4504 = vrot.slane %v2642, 1
    %v4505 = vsel %vm2978, %v4504, %v4464
    %v4506 = vrot.slane %v2643, 1
    %v4507 = vsel %vm2978, %v4506, %v4464
    %v4508 = vrot.slane %v2644, 1
    %v4509 = vsel %vm2978, %v4508, %v4464
    %v4510 = vrot.slane %v2645, 1
    %v4511 = vsel %vm2978, %v4510, %v4464
    %v4512 = vrot.slane %v2646, 1
    %v4513 = vsel %vm2978, %v4512, %v4464
    %v4514 = vrot.slane %v2647, 1
    %v4515 = vsel %vm2978, %v4514, %v4464
    %v4516 = vrot.slane %v2648, 1
    %v4517 = vsel %vm2978, %v4516, %v4464
    %v4518 = vrot.slane %v2649, 1
    %v4519 = vsel %vm2978, %v4518, %v4464
    %v4520 = vrot.slane %v2650, 1
    %v4521 = vsel %vm2978, %v4520, %v4464
    %v4522 = vrot.slane %v2651, 1
    %v4523 = vsel %vm2978, %v4522, %v4464
    %v4524 = vrot.slane %v2652, 1
    %v4525 = vsel %vm2978, %v4524, %v4464
    %v4526 = vrot.slane %v2637, 1
    %v4527 = vsel %vm2978, %v4526, %v4464
    %v4528 = vrot.slane %v2653, 1
    %v4529 = vsel %vm2978, %v4528, %v4464
    %4561 = vrot.lane.b32.xlu0 %v2981, 32
    %v4562 = vpop.permute.xlu0 %4561
    %4564 = vrot.lane.b32.xlu0 %v4465, 64
    %v4565 = vpop.permute.xlu0 %4564
    %4566 = vrot.lane.b32.xlu0 %v4467, 64
    %v4567 = vpop.permute.xlu0 %4566
    %4568 = vrot.lane.b32.xlu0 %v4469, 64
    %v4569 = vpop.permute.xlu0 %4568
    %4570 = vrot.lane.b32.xlu0 %v4471, 64
    %v4571 = vpop.permute.xlu0 %4570
    %4572 = vrot.lane.b32.xlu0 %v4473, 64
    %v4573 = vpop.permute.xlu0 %4572
    %4574 = vrot.lane.b32.xlu0 %v4475, 64
    %v4575 = vpop.permute.xlu0 %4574
    %4576 = vrot.lane.b32.xlu0 %v4477, 64
    %v4577 = vpop.permute.xlu0 %4576
    %4578 = vrot.lane.b32.xlu0 %v4479, 64
    %v4579 = vpop.permute.xlu0 %4578
    %4580 = vrot.lane.b32.xlu0 %v4481, 64
    %v4581 = vpop.permute.xlu0 %4580
    %4582 = vrot.lane.b32.xlu0 %v4483, 64
    %v4583 = vpop.permute.xlu0 %4582
    %4584 = vrot.lane.b32.xlu0 %v4485, 64
    %v4585 = vpop.permute.xlu0 %4584
    %4586 = vrot.lane.b32.xlu0 %v4487, 64
    %v4587 = vpop.permute.xlu0 %4586
    %4588 = vrot.lane.b32.xlu0 %v4489, 64
    %v4589 = vpop.permute.xlu0 %4588
    %4590 = vrot.lane.b32.xlu0 %v4491, 64
    %v4591 = vpop.permute.xlu0 %4590
    %4592 = vrot.lane.b32.xlu0 %v4493, 64
    %v4593 = vpop.permute.xlu0 %4592
    %4594 = vrot.lane.b32.xlu0 %v4495, 64
    %v4595 = vpop.permute.xlu0 %4594
    %4596 = vrot.lane.b32.xlu0 %v4497, 64
    %v4597 = vpop.permute.xlu0 %4596
    %4598 = vrot.lane.b32.xlu0 %v4499, 64
    %v4599 = vpop.permute.xlu0 %4598
    %4600 = vrot.lane.b32.xlu0 %v4501, 64
    %v4601 = vpop.permute.xlu0 %4600
    %4602 = vrot.lane.b32.xlu0 %v4503, 64
    %v4603 = vpop.permute.xlu0 %4602
    %4604 = vrot.lane.b32.xlu0 %v4505, 64
    %v4605 = vpop.permute.xlu0 %4604
    %4606 = vrot.lane.b32.xlu0 %v4507, 64
    %v4607 = vpop.permute.xlu0 %4606
    %4608 = vrot.lane.b32.xlu0 %v4509, 64
    %v4609 = vpop.permute.xlu0 %4608
    %4610 = vrot.lane.b32.xlu0 %v4511, 64
    %v4611 = vpop.permute.xlu0 %4610
    %4612 = vrot.lane.b32.xlu0 %v4513, 64
    %v4613 = vpop.permute.xlu0 %4612
    %4614 = vrot.lane.b32.xlu0 %v4515, 64
    %v4615 = vpop.permute.xlu0 %4614
    %4616 = vrot.lane.b32.xlu0 %v4517, 64
    %v4617 = vpop.permute.xlu0 %4616
    %4618 = vrot.lane.b32.xlu0 %v4519, 64
    %v4619 = vpop.permute.xlu0 %4618
    %4620 = vrot.lane.b32.xlu0 %v4521, 64
    %v4621 = vpop.permute.xlu0 %4620
    %4622 = vrot.lane.b32.xlu0 %v4523, 64
    %v4623 = vpop.permute.xlu0 %4622
    %4624 = vrot.lane.b32.xlu0 %v4525, 64
    %v4625 = vpop.permute.xlu0 %4624
    %4657 = vrot.lane.b32.xlu0 %v2622, 96
    %v4658 = vpop.permute.xlu0 %4657
    %4659 = vrot.lane.b32.xlu0 %v2638, 96
    %v4660 = vpop.permute.xlu0 %4659
    %4663 = vrot.lane.b32.xlu0 %v4467, 32
    %v4664 = vpop.permute.xlu0 %4663
    %4665 = vrot.lane.b32.xlu0 %v4469, 32
    %v4666 = vpop.permute.xlu0 %4665
    %4667 = vrot.lane.b32.xlu0 %v4471, 32
    %v4668 = vpop.permute.xlu0 %4667
    %4669 = vrot.lane.b32.xlu0 %v4473, 32
    %v4670 = vpop.permute.xlu0 %4669
    %4671 = vrot.lane.b32.xlu0 %v4475, 32
    %v4672 = vpop.permute.xlu0 %4671
    %4673 = vrot.lane.b32.xlu0 %v4477, 32
    %v4674 = vpop.permute.xlu0 %4673
    %4675 = vrot.lane.b32.xlu0 %v4479, 32
    %v4676 = vpop.permute.xlu0 %4675
    %4677 = vrot.lane.b32.xlu0 %v4481, 32
    %v4678 = vpop.permute.xlu0 %4677
    %4679 = vrot.lane.b32.xlu0 %v4483, 32
    %v4680 = vpop.permute.xlu0 %4679
    %4681 = vrot.lane.b32.xlu0 %v4485, 32
    %v4682 = vpop.permute.xlu0 %4681
    %4683 = vrot.lane.b32.xlu0 %v4487, 32
    %v4684 = vpop.permute.xlu0 %4683
    %4685 = vrot.lane.b32.xlu0 %v4489, 32
    %v4686 = vpop.permute.xlu0 %4685
    %4687 = vrot.lane.b32.xlu0 %v4491, 32
    %v4688 = vpop.permute.xlu0 %4687
    %4689 = vrot.lane.b32.xlu0 %v4493, 32
    %v4690 = vpop.permute.xlu0 %4689
    %4691 = vrot.lane.b32.xlu0 %v4495, 32
    %v4692 = vpop.permute.xlu0 %4691
    %4693 = vrot.lane.b32.xlu0 %v4527, 32
    %v4694 = vpop.permute.xlu0 %4693
    %4695 = vrot.lane.b32.xlu0 %v4497, 32
    %v4696 = vpop.permute.xlu0 %4695
    %4697 = vrot.lane.b32.xlu0 %v4499, 32
    %v4698 = vpop.permute.xlu0 %4697
    %4699 = vrot.lane.b32.xlu0 %v4501, 32
    %v4700 = vpop.permute.xlu0 %4699
    %4701 = vrot.lane.b32.xlu0 %v4503, 32
    %v4702 = vpop.permute.xlu0 %4701
    %4703 = vrot.lane.b32.xlu0 %v4505, 32
    %v4704 = vpop.permute.xlu0 %4703
    %4705 = vrot.lane.b32.xlu0 %v4507, 32
    %v4706 = vpop.permute.xlu0 %4705
    %4707 = vrot.lane.b32.xlu0 %v4509, 32
    %v4708 = vpop.permute.xlu0 %4707
    %4709 = vrot.lane.b32.xlu0 %v4511, 32
    %v4710 = vpop.permute.xlu0 %4709
    %4711 = vrot.lane.b32.xlu0 %v4513, 32
    %v4712 = vpop.permute.xlu0 %4711
    %4713 = vrot.lane.b32.xlu0 %v4515, 32
    %v4714 = vpop.permute.xlu0 %4713
    %4715 = vrot.lane.b32.xlu0 %v4517, 32
    %v4716 = vpop.permute.xlu0 %4715
    %4717 = vrot.lane.b32.xlu0 %v4519, 32
    %v4718 = vpop.permute.xlu0 %4717
    %4719 = vrot.lane.b32.xlu0 %v4521, 32
    %v4720 = vpop.permute.xlu0 %4719
    %4721 = vrot.lane.b32.xlu0 %v4523, 32
    %v4722 = vpop.permute.xlu0 %4721
    %4723 = vrot.lane.b32.xlu0 %v4525, 32
    %v4724 = vpop.permute.xlu0 %4723
    %4725 = vrot.lane.b32.xlu0 %v4529, 32
    %v4726 = vpop.permute.xlu0 %4725
    %4759 = vrot.lane.b32.xlu0 %v2623, 64
    %v4760 = vpop.permute.xlu0 %4759
    %4761 = vrot.lane.b32.xlu0 %v2624, 64
    %v4762 = vpop.permute.xlu0 %4761
    %4763 = vrot.lane.b32.xlu0 %v2625, 64
    %v4764 = vpop.permute.xlu0 %4763
    %4765 = vrot.lane.b32.xlu0 %v2626, 64
    %v4766 = vpop.permute.xlu0 %4765
    %4767 = vrot.lane.b32.xlu0 %v2627, 64
    %v4768 = vpop.permute.xlu0 %4767
    %4769 = vrot.lane.b32.xlu0 %v2628, 64
    %v4770 = vpop.permute.xlu0 %4769
    %4771 = vrot.lane.b32.xlu0 %v2629, 64
    %v4772 = vpop.permute.xlu0 %4771
    %4773 = vrot.lane.b32.xlu0 %v2630, 64
    %v4774 = vpop.permute.xlu0 %4773
    %4775 = vrot.lane.b32.xlu0 %v2631, 64
    %v4776 = vpop.permute.xlu0 %4775
    %4777 = vrot.lane.b32.xlu0 %v2632, 64
    %v4778 = vpop.permute.xlu0 %4777
    %4779 = vrot.lane.b32.xlu0 %v2633, 64
    %v4780 = vpop.permute.xlu0 %4779
    %4781 = vrot.lane.b32.xlu0 %v2634, 64
    %v4782 = vpop.permute.xlu0 %4781
    %4783 = vrot.lane.b32.xlu0 %v2635, 64
    %v4784 = vpop.permute.xlu0 %4783
    %4785 = vrot.lane.b32.xlu0 %v2636, 64
    %v4786 = vpop.permute.xlu0 %4785
    %4787 = vrot.lane.b32.xlu0 %v2637, 64
    %v4788 = vpop.permute.xlu0 %4787
    %4789 = vrot.lane.b32.xlu0 0.0, 64
    %v4790 = vpop.permute.xlu0 %4789
    %4791 = vrot.lane.b32.xlu0 %v2639, 64
    %v4792 = vpop.permute.xlu0 %4791
    %4793 = vrot.lane.b32.xlu0 %v2640, 64
    %v4794 = vpop.permute.xlu0 %4793
    %4795 = vrot.lane.b32.xlu0 %v2641, 64
    %v4796 = vpop.permute.xlu0 %4795
    %4797 = vrot.lane.b32.xlu0 %v2642, 64
    %v4798 = vpop.permute.xlu0 %4797
    %4799 = vrot.lane.b32.xlu0 %v2643, 64
    %v4800 = vpop.permute.xlu0 %4799
    %4801 = vrot.lane.b32.xlu0 %v2644, 64
    %v4802 = vpop.permute.xlu0 %4801
    %4803 = vrot.lane.b32.xlu0 %v2645, 64
    %v4804 = vpop.permute.xlu0 %4803
    %4805 = vrot.lane.b32.xlu0 %v2646, 64
    %v4806 = vpop.permute.xlu0 %4805
    %4807 = vrot.lane.b32.xlu0 %v2647, 64
    %v4808 = vpop.permute.xlu0 %4807
    %4809 = vrot.lane.b32.xlu0 %v2648, 64
    %v4810 = vpop.permute.xlu0 %4809
    %4811 = vrot.lane.b32.xlu0 %v2649, 64
    %v4812 = vpop.permute.xlu0 %4811
    %4813 = vrot.lane.b32.xlu0 %v2650, 64
    %v4814 = vpop.permute.xlu0 %4813
    %4815 = vrot.lane.b32.xlu0 %v2651, 64
    %v4816 = vpop.permute.xlu0 %4815
    %4817 = vrot.lane.b32.xlu0 %v2652, 64
    %v4818 = vpop.permute.xlu0 %4817
    %4819 = vrot.lane.b32.xlu0 %v2653, 64
    %v4820 = vpop.permute.xlu0 %4819
    %4852 = vrot.lane.b32.xlu0 %v2987, 96
    %v4853 = vpop.permute.xlu0 %4852
    %4854 = vrot.lane.b32.xlu0 %v2990, 96
    %v4855 = vpop.permute.xlu0 %4854
    %4856 = vrot.lane.b32.xlu0 %v2993, 96
    %v4857 = vpop.permute.xlu0 %4856
    %4858 = vrot.lane.b32.xlu0 %v2996, 96
    %v4859 = vpop.permute.xlu0 %4858
    %4860 = vrot.lane.b32.xlu0 %v2999, 96
    %v4861 = vpop.permute.xlu0 %4860
    %4862 = vrot.lane.b32.xlu0 %v3002, 96
    %v4863 = vpop.permute.xlu0 %4862
    %4864 = vrot.lane.b32.xlu0 %v3005, 96
    %v4865 = vpop.permute.xlu0 %4864
    %4866 = vrot.lane.b32.xlu0 %v3008, 96
    %v4867 = vpop.permute.xlu0 %4866
    %4868 = vrot.lane.b32.xlu0 %v3011, 96
    %v4869 = vpop.permute.xlu0 %4868
    %4870 = vrot.lane.b32.xlu0 %v3014, 96
    %v4871 = vpop.permute.xlu0 %4870
    %4872 = vrot.lane.b32.xlu0 %v3017, 96
    %v4873 = vpop.permute.xlu0 %4872
    %4874 = vrot.lane.b32.xlu0 %v3020, 96
    %v4875 = vpop.permute.xlu0 %4874
    %4876 = vrot.lane.b32.xlu0 %v3023, 96
    %v4877 = vpop.permute.xlu0 %4876
    %4878 = vrot.lane.b32.xlu0 %v3026, 96
    %v4879 = vpop.permute.xlu0 %4878
    %4880 = vrot.lane.b32.xlu0 %v3076, 96
    %v4881 = vpop.permute.xlu0 %4880
    %4882 = vrot.lane.b32.xlu0 %v2981, 96
    %v4883 = vpop.permute.xlu0 %4882
    %4884 = vrot.lane.b32.xlu0 %v3032, 96
    %v4885 = vpop.permute.xlu0 %4884
    %4886 = vrot.lane.b32.xlu0 %v3035, 96
    %v4887 = vpop.permute.xlu0 %4886
    %4888 = vrot.lane.b32.xlu0 %v3038, 96
    %v4889 = vpop.permute.xlu0 %4888
    %4890 = vrot.lane.b32.xlu0 %v3041, 96
    %v4891 = vpop.permute.xlu0 %4890
    %4892 = vrot.lane.b32.xlu0 %v3044, 96
    %v4893 = vpop.permute.xlu0 %4892
    %4894 = vrot.lane.b32.xlu0 %v3047, 96
    %v4895 = vpop.permute.xlu0 %4894
    %4896 = vrot.lane.b32.xlu0 %v3050, 96
    %v4897 = vpop.permute.xlu0 %4896
    %4898 = vrot.lane.b32.xlu0 %v3053, 96
    %v4899 = vpop.permute.xlu0 %4898
    %4900 = vrot.lane.b32.xlu0 %v3056, 96
    %v4901 = vpop.permute.xlu0 %4900
    %4902 = vrot.lane.b32.xlu0 %v3059, 96
    %v4903 = vpop.permute.xlu0 %4902
    %4904 = vrot.lane.b32.xlu0 %v3062, 96
    %v4905 = vpop.permute.xlu0 %4904
    %4906 = vrot.lane.b32.xlu0 %v3065, 96
    %v4907 = vpop.permute.xlu0 %4906
    %4908 = vrot.lane.b32.xlu0 %v3068, 96
    %v4909 = vpop.permute.xlu0 %4908
    %4910 = vrot.lane.b32.xlu0 %v3071, 96
    %v4911 = vpop.permute.xlu0 %4910
    %4912 = vrot.lane.b32.xlu0 %v3079, 96
    %v4913 = vpop.permute.xlu0 %4912
    %v4945 = vsel %vm3709, 0.0, %v4562
    %v4946 = vsel %vm3741, %v4945, %v4565
    %v4947 = vsel %vm3741, %v3806, %v4567
    %v4948 = vsel %vm3741, %v3807, %v4569
    %v4949 = vsel %vm3741, %v3808, %v4571
    %v4950 = vsel %vm3741, %v3809, %v4573
    %v4951 = vsel %vm3741, %v3810, %v4575
    %v4952 = vsel %vm3741, %v3811, %v4577
    %v4953 = vsel %vm3741, %v3812, %v4579
    %v4954 = vsel %vm3741, %v3813, %v4581
    %v4955 = vsel %vm3741, %v3814, %v4583
    %v4956 = vsel %vm3741, %v3815, %v4585
    %v4957 = vsel %vm3741, %v3816, %v4587
    %v4958 = vsel %vm3741, %v3817, %v4589
    %v4959 = vsel %vm3741, %v3818, %v4591
    %v4960 = vsel %vm3741, %v3819, %v4593
    %v4961 = vsel %vm3741, %v3820, %v4595
    %v4962 = vsel %vm3741, %v3822, %v4597
    %v4963 = vsel %vm3741, %v3823, %v4599
    %v4964 = vsel %vm3741, %v3824, %v4601
    %v4965 = vsel %vm3741, %v3825, %v4603
    %v4966 = vsel %vm3741, %v3826, %v4605
    %v4967 = vsel %vm3741, %v3827, %v4607
    %v4968 = vsel %vm3741, %v3828, %v4609
    %v4969 = vsel %vm3741, %v3829, %v4611
    %v4970 = vsel %vm3741, %v3830, %v4613
    %v4971 = vsel %vm3741, %v3831, %v4615
    %v4972 = vsel %vm3741, %v3832, %v4617
    %v4973 = vsel %vm3741, %v3833, %v4619
    %v4974 = vsel %vm3741, %v3834, %v4621
    %v4975 = vsel %vm3741, %v3835, %v4623
    %v4976 = vsel %vm3741, %v3836, %v4625
    %v4977 = vsel %vm3773, %v4946, %v4658
    %v4978 = vsel %vm3773, %v4947, %v3617
    %v4979 = vsel %vm3773, %v4948, %v3619
    %v4980 = vsel %vm3773, %v4949, %v3621
    %v4981 = vsel %vm3773, %v4950, %v3623
    %v4982 = vsel %vm3773, %v4951, %v3625
    %v4983 = vsel %vm3773, %v4952, %v3627
    %v4984 = vsel %vm3773, %v4953, %v3629
    %v4985 = vsel %vm3773, %v4954, %v3631
    %v4986 = vsel %vm3773, %v4955, %v3633
    %v4987 = vsel %vm3773, %v4956, %v3635
    %v4988 = vsel %vm3773, %v4957, %v3637
    %v4989 = vsel %vm3773, %v4958, %v3639
    %v4990 = vsel %vm3773, %v4959, %v3641
    %v4991 = vsel %vm3773, %v4960, %v3643
    %v4992 = vsel %vm3773, %v4961, %v3645
    %v4993 = vsel %vm3773, %v4946, %v4660
    %v4994 = vsel %vm3773, %v4962, %v3649
    %v4995 = vsel %vm3773, %v4963, %v3651
    %v4996 = vsel %vm3773, %v4964, %v3653
    %v4997 = vsel %vm3773, %v4965, %v3655
    %v4998 = vsel %vm3773, %v4966, %v3657
    %v4999 = vsel %vm3773, %v4967, %v3659
    %v5000 = vsel %vm3773, %v4968, %v3661
    %v5001 = vsel %vm3773, %v4969, %v3663
    %v5002 = vsel %vm3773, %v4970, %v3665
    %v5003 = vsel %vm3773, %v4971, %v3667
    %v5004 = vsel %vm3773, %v4972, %v3669
    %v5005 = vsel %vm3773, %v4973, %v3671
    %v5006 = vsel %vm3773, %v4974, %v3673
    %v5007 = vsel %vm3773, %v4975, %v3675
    %v5008 = vsel %vm3773, %v4976, %v3677
    %v5009 = vsel %vm3709, %v2984, %v4664
    %v5010 = vsel %vm3709, %v2987, %v4666
    %v5011 = vsel %vm3709, %v2990, %v4668
    %v5012 = vsel %vm3709, %v2993, %v4670
    %v5013 = vsel %vm3709, %v2996, %v4672
    %v5014 = vsel %vm3709, %v2999, %v4674
    %v5015 = vsel %vm3709, %v3002, %v4676
    %v5016 = vsel %vm3709, %v3005, %v4678
    %v5017 = vsel %vm3709, %v3008, %v4680
    %v5018 = vsel %vm3709, %v3011, %v4682
    %v5019 = vsel %vm3709, %v3014, %v4684
    %v5020 = vsel %vm3709, %v3017, %v4686
    %v5021 = vsel %vm3709, %v3020, %v4688
    %v5022 = vsel %vm3709, %v3023, %v4690
    %v5023 = vsel %vm3709, %v3026, %v4692
    %v5024 = vsel %vm3709, %v3076, %v4694
    %v5025 = vsel %vm3709, %v3029, %v4696
    %v5026 = vsel %vm3709, %v3032, %v4698
    %v5027 = vsel %vm3709, %v3035, %v4700
    %v5028 = vsel %vm3709, %v3038, %v4702
    %v5029 = vsel %vm3709, %v3041, %v4704
    %v5030 = vsel %vm3709, %v3044, %v4706
    %v5031 = vsel %vm3709, %v3047, %v4708
    %v5032 = vsel %vm3709, %v3050, %v4710
    %v5033 = vsel %vm3709, %v3053, %v4712
    %v5034 = vsel %vm3709, %v3056, %v4714
    %v5035 = vsel %vm3709, %v3059, %v4716
    %v5036 = vsel %vm3709, %v3062, %v4718
    %v5037 = vsel %vm3709, %v3065, %v4720
    %v5038 = vsel %vm3709, %v3068, %v4722
    %v5039 = vsel %vm3709, %v3071, %v4724
    %v5040 = vsel %vm3709, %v3079, %v4726
    %v5041 = vsel %vm3741, %v5009, %v4760
    %v5042 = vsel %vm3741, %v5010, %v4762
    %v5043 = vsel %vm3741, %v5011, %v4764
    %v5044 = vsel %vm3741, %v5012, %v4766
    %v5045 = vsel %vm3741, %v5013, %v4768
    %v5046 = vsel %vm3741, %v5014, %v4770
    %v5047 = vsel %vm3741, %v5015, %v4772
    %v5048 = vsel %vm3741, %v5016, %v4774
    %v5049 = vsel %vm3741, %v5017, %v4776
    %v5050 = vsel %vm3741, %v5018, %v4778
    %v5051 = vsel %vm3741, %v5019, %v4780
    %v5052 = vsel %vm3741, %v5020, %v4782
    %v5053 = vsel %vm3741, %v5021, %v4784
    %v5054 = vsel %vm3741, %v5022, %v4786
    %v5055 = vsel %vm3741, %v5023, %v4788
    %v5056 = vsel %vm3741, %v5024, %v4790
    %v5057 = vsel %vm3741, %v5025, %v4792
    %v5058 = vsel %vm3741, %v5026, %v4794
    %v5059 = vsel %vm3741, %v5027, %v4796
    %v5060 = vsel %vm3741, %v5028, %v4798
    %v5061 = vsel %vm3741, %v5029, %v4800
    %v5062 = vsel %vm3741, %v5030, %v4802
    %v5063 = vsel %vm3741, %v5031, %v4804
    %v5064 = vsel %vm3741, %v5032, %v4806
    %v5065 = vsel %vm3741, %v5033, %v4808
    %v5066 = vsel %vm3741, %v5034, %v4810
    %v5067 = vsel %vm3741, %v5035, %v4812
    %v5068 = vsel %vm3741, %v5036, %v4814
    %v5069 = vsel %vm3741, %v5037, %v4816
    %v5070 = vsel %vm3741, %v5038, %v4818
    %v5071 = vsel %vm3741, %v5039, %v4820
    %v5072 = vsel %vm3741, %v5040, %v4790
    %v5073 = vsel %vm3773, %v5041, %v4853
    %v5074 = vsel %vm3773, %v5042, %v4855
    %v5075 = vsel %vm3773, %v5043, %v4857
    %v5076 = vsel %vm3773, %v5044, %v4859
    %v5077 = vsel %vm3773, %v5045, %v4861
    %v5078 = vsel %vm3773, %v5046, %v4863
    %v5079 = vsel %vm3773, %v5047, %v4865
    %v5080 = vsel %vm3773, %v5048, %v4867
    %v5081 = vsel %vm3773, %v5049, %v4869
    %v5082 = vsel %vm3773, %v5050, %v4871
    %v5083 = vsel %vm3773, %v5051, %v4873
    %v5084 = vsel %vm3773, %v5052, %v4875
    %v5085 = vsel %vm3773, %v5053, %v4877
    %v5086 = vsel %vm3773, %v5054, %v4879
    %v5087 = vsel %vm3773, %v5055, %v4881
    %v5088 = vsel %vm3773, %v5056, %v4883
    %v5089 = vsel %vm3773, %v5057, %v4885
    %v5090 = vsel %vm3773, %v5058, %v4887
    %v5091 = vsel %vm3773, %v5059, %v4889
    %v5092 = vsel %vm3773, %v5060, %v4891
    %v5093 = vsel %vm3773, %v5061, %v4893
    %v5094 = vsel %vm3773, %v5062, %v4895
    %v5095 = vsel %vm3773, %v5063, %v4897
    %v5096 = vsel %vm3773, %v5064, %v4899
    %v5097 = vsel %vm3773, %v5065, %v4901
    %v5098 = vsel %vm3773, %v5066, %v4903
    %v5099 = vsel %vm3773, %v5067, %v4905
    %v5100 = vsel %vm3773, %v5068, %v4907
    %v5101 = vsel %vm3773, %v5069, %v4909
    %v5102 = vsel %vm3773, %v5070, %v4911
    %v5103 = vsel %vm3773, %v5071, %v4913
    %v5104 = vsel %vm3773, %v5072, %v4883
    %v5105 = vpack.c.bf16 %v4978, %v4977
    %v5106 = vpack.c.bf16 %v5074, %v5073
    %v5107 = vpack.c.bf16 %v4471, %v4469
    %v5108 = vpack.c.bf16 %v4980, %v4979
    %v5109 = vpack.c.bf16 %v5076, %v5075
    %v5110 = vpack.c.bf16 %v4475, %v4473
    %v5111 = vpack.c.bf16 %v4982, %v4981
    %v5112 = vpack.c.bf16 %v5078, %v5077
    %v5113 = vpack.c.bf16 %v4479, %v4477
    %v5114 = vpack.c.bf16 %v4984, %v4983
    %v5115 = vpack.c.bf16 %v5080, %v5079
    %v5116 = vpack.c.bf16 %v4483, %v4481
    %v5117 = vpack.c.bf16 %v4986, %v4985
    %v5118 = vpack.c.bf16 %v5082, %v5081
    %v5119 = vpack.c.bf16 %v4487, %v4485
    %v5120 = vpack.c.bf16 %v4988, %v4987
    %v5121 = vpack.c.bf16 %v5084, %v5083
    %v5122 = vpack.c.bf16 %v4491, %v4489
    %v5123 = vpack.c.bf16 %v4990, %v4989
    %v5124 = vpack.c.bf16 %v5086, %v5085
    %v5125 = vpack.c.bf16 %v4495, %v4493
    %v5126 = vpack.c.bf16 %v4992, %v4991
    %v5127 = vpack.c.bf16 %v5088, %v5087
    %v5128 = vpack.c.bf16 %v4465, %v4527
    %v5129 = vpack.c.bf16 %v4994, %v4993
    %v5130 = vpack.c.bf16 %v5090, %v5089
    %v5131 = vpack.c.bf16 %v4501, %v4499
    %v5132 = vpack.c.bf16 %v4996, %v4995
    %v5133 = vpack.c.bf16 %v5092, %v5091
    %v5134 = vpack.c.bf16 %v4505, %v4503
    %v5135 = vpack.c.bf16 %v4998, %v4997
    %v5136 = vpack.c.bf16 %v5094, %v5093
    %v5137 = vpack.c.bf16 %v4509, %v4507
    %v5138 = vpack.c.bf16 %v5000, %v4999
    %v5139 = vpack.c.bf16 %v5096, %v5095
    %v5140 = vpack.c.bf16 %v4513, %v4511
    %v5141 = vpack.c.bf16 %v5002, %v5001
    %v5142 = vpack.c.bf16 %v5098, %v5097
    %v5143 = vpack.c.bf16 %v4517, %v4515
    %v5144 = vpack.c.bf16 %v5004, %v5003
    %v5145 = vpack.c.bf16 %v5100, %v5099
    %v5146 = vpack.c.bf16 %v4521, %v4519
    %v5147 = vpack.c.bf16 %v5006, %v5005
    %v5148 = vpack.c.bf16 %v5102, %v5101
    %v5149 = vpack.c.bf16 %v4525, %v4523
    %v5150 = vpack.c.bf16 %v5008, %v5007
    %v5151 = vpack.c.bf16 %v5104, %v5103
    %v5152 = vpack.c.bf16 %v4465, %v4529
    %v5154 = vsel %vm3709, %v5107, 0
    %v5157 = vsel %vm3709, %v5110, 0
    %v5160 = vsel %vm3709, %v5113, 0
    %v5163 = vsel %vm3709, %v5116, 0
    %v5166 = vsel %vm3709, %v5119, 0
    %v5169 = vsel %vm3709, %v5122, 0
    %v5172 = vsel %vm3709, %v5125, 0
    %v5175 = vsel %vm3709, %v5128, 0
    %v5178 = vsel %vm3709, %v5131, 0
    %v5181 = vsel %vm3709, %v5134, 0
    %v5184 = vsel %vm3709, %v5137, 0
    %v5187 = vsel %vm3709, %v5140, 0
    %v5190 = vsel %vm3709, %v5143, 0
    %v5193 = vsel %vm3709, %v5146, 0
    %v5196 = vsel %vm3709, %v5149, 0
    %v5199 = vsel %vm3709, %v5152, 0
    %5201 = vmatprep.subr.bf16.mxu0 0
    %5202 = vmatpush1.bf16.msra.mxu0 %v4058
    %5203 = vmatprep.subr.bf16.mxu0 0
    %5204 = vmatpush1.bf16.msra.mxu0 %v4059
    %5205 = vmatprep.subr.bf16.mxu0 0
    %5206 = vmatpush1.bf16.msra.mxu0 %v4060
    %5207 = vmatprep.subr.bf16.mxu0 0
    %5208 = vmatpush1.bf16.msra.mxu0 %v4061
    %5209 = vmatprep.subr.bf16.mxu0 0
    %5210 = vmatpush1.bf16.msra.mxu0 %v4062
    %5211 = vmatprep.subr.bf16.mxu0 0
    %5212 = vmatpush1.bf16.msra.mxu0 %v4063
    %5213 = vmatprep.subr.bf16.mxu0 0
    %5214 = vmatpush1.bf16.msra.mxu0 %v4064
    %5215 = vmatprep.subr.bf16.mxu0 0
    %5216 = vmatpush1.bf16.msra.mxu0 %v4065
    %5217 = vmatprep.subr.bf16.mxu0 0
    %5218 = vmatpush1.bf16.msra.mxu0 %v4066
    %5219 = vmatprep.subr.bf16.mxu0 0
    %5220 = vmatpush1.bf16.msra.mxu0 %v4067
    %5221 = vmatprep.subr.bf16.mxu0 0
    %5222 = vmatpush1.bf16.msra.mxu0 %v4068
    %5223 = vmatprep.subr.bf16.mxu0 0
    %5224 = vmatpush1.bf16.msra.mxu0 %v4069
    %5225 = vmatprep.subr.bf16.mxu0 0
    %5226 = vmatpush1.bf16.msra.mxu0 %v4070
    %5227 = vmatprep.subr.bf16.mxu0 0
    %5228 = vmatpush1.bf16.msra.mxu0 %v4071
    %5229 = vmatprep.subr.bf16.mxu0 0
    %5230 = vmatpush1.bf16.msra.mxu0 %v4072
    %5231 = vmatprep.subr.bf16.mxu0 0
    %5232 = vmatpush1.bf16.msra.mxu0 %v4073
    %5233 = vmatprep.mubr.bf16.mxu0 %v5106
    %5234 = vmatmul.mubr.bf16.gmra.mrb[0].mxu0 %v5105
    %v5235 = vpop.f32.mrb[0].mxu0
    %v5236 = vadd.f32 0.0, %v5235
    %v5237 = vpop.f32.mrb[0].mxu0
    %v5238 = vpop.f32.mrb[0].mxu0
    %v5239 = vadd.f32 0.0, %v5238
    %v5240 = vpop.f32.mrb[0].mxu0
    %5241 = vmatprep.mubr.bf16.mxu0 %v5109
    %5242 = vmatmul.mubr.bf16.gmra.mrb[0].mxu0 %v5108
    %v5243 = vpop.f32.mrb[0].mxu0
    %v5244 = vadd.f32 0.0, %v5243
    %v5245 = vpop.f32.mrb[0].mxu0
    %v5246 = vpop.f32.mrb[0].mxu0
    %v5247 = vadd.f32 0.0, %v5246
    %v5248 = vpop.f32.mrb[0].mxu0
    %5249 = vmatprep.mubr.bf16.mxu0 %v5112
    %5250 = vmatmul.mubr.bf16.gmra.mrb[0].mxu0 %v5111
    %v5251 = vpop.f32.mrb[0].mxu0
    %v5252 = vadd.f32 0.0, %v5251
    %v5253 = vpop.f32.mrb[0].mxu0
    %v5254 = vpop.f32.mrb[0].mxu0
    %v5255 = vadd.f32 0.0, %v5254
    %v5256 = vpop.f32.mrb[0].mxu0
    %5257 = vmatprep.mubr.bf16.mxu0 %v5115
    %5258 = vmatmul.mubr.bf16.gmra.mrb[0].mxu0 %v5114
    %v5259 = vpop.f32.mrb[0].mxu0
    %v5260 = vadd.f32 0.0, %v5259
    %v5261 = vpop.f32.mrb[0].mxu0
    %v5262 = vpop.f32.mrb[0].mxu0
    %v5263 = vadd.f32 0.0, %v5262
    %v5264 = vpop.f32.mrb[0].mxu0
    %5265 = vmatprep.mubr.bf16.mxu0 %v5118
    %5266 = vmatmul.mubr.bf16.gmra.mrb[0].mxu0 %v5117
    %v5267 = vpop.f32.mrb[0].mxu0
    %v5268 = vadd.f32 0.0, %v5267
    %v5269 = vpop.f32.mrb[0].mxu0
    %v5270 = vpop.f32.mrb[0].mxu0
    %v5271 = vadd.f32 0.0, %v5270
    %v5272 = vpop.f32.mrb[0].mxu0
    %5273 = vmatprep.mubr.bf16.mxu0 %v5121
    %5274 = vmatmul.mubr.bf16.gmra.mrb[0].mxu0 %v5120
    %v5275 = vpop.f32.mrb[0].mxu0
    %v5276 = vadd.f32 0.0, %v5275
    %v5277 = vpop.f32.mrb[0].mxu0
    %v5278 = vpop.f32.mrb[0].mxu0
    %v5279 = vadd.f32 0.0, %v5278
    %v5280 = vpop.f32.mrb[0].mxu0
    %5281 = vmatprep.mubr.bf16.mxu0 %v5124
    %5282 = vmatmul.mubr.bf16.gmra.mrb[0].mxu0 %v5123
    %v5283 = vpop.f32.mrb[0].mxu0
    %v5284 = vadd.f32 0.0, %v5283
    %v5285 = vpop.f32.mrb[0].mxu0
    %v5286 = vpop.f32.mrb[0].mxu0
    %v5287 = vadd.f32 0.0, %v5286
    %v5288 = vpop.f32.mrb[0].mxu0
    %5289 = vmatprep.mubr.bf16.mxu0 %v5127
    %5290 = vmatmul.mubr.bf16.gmra.mrb[0].mxu0 %v5126
    %v5291 = vpop.f32.mrb[0].mxu0
    %v5292 = vadd.f32 0.0, %v5291
    %v5293 = vpop.f32.mrb[0].mxu0
    %v5294 = vpop.f32.mrb[0].mxu0
    %v5295 = vadd.f32 0.0, %v5294
    %v5296 = vpop.f32.mrb[0].mxu0
    %5297 = vmatprep.mubr.bf16.mxu0 %v5130
    %5298 = vmatmul.mubr.bf16.gmra.mrb[0].mxu0 %v5129
    %v5299 = vpop.f32.mrb[0].mxu0
    %v5300 = vadd.f32 0.0, %v5299
    %v5301 = vpop.f32.mrb[0].mxu0
    %v5302 = vpop.f32.mrb[0].mxu0
    %v5303 = vadd.f32 0.0, %v5302
    %v5304 = vpop.f32.mrb[0].mxu0
    %5305 = vmatprep.mubr.bf16.mxu0 %v5133
    %5306 = vmatmul.mubr.bf16.gmra.mrb[0].mxu0 %v5132
    %v5307 = vpop.f32.mrb[0].mxu0
    %v5308 = vadd.f32 0.0, %v5307
    %v5309 = vpop.f32.mrb[0].mxu0
    %v5310 = vpop.f32.mrb[0].mxu0
    %v5311 = vadd.f32 0.0, %v5310
    %v5312 = vpop.f32.mrb[0].mxu0
    %5313 = vmatprep.mubr.bf16.mxu0 %v5136
    %5314 = vmatmul.mubr.bf16.gmra.mrb[0].mxu0 %v5135
    %v5315 = vpop.f32.mrb[0].mxu0
    %v5316 = vadd.f32 0.0, %v5315
    %v5317 = vpop.f32.mrb[0].mxu0
    %v5318 = vpop.f32.mrb[0].mxu0
    %v5319 = vadd.f32 0.0, %v5318
    %v5320 = vpop.f32.mrb[0].mxu0
    %5321 = vmatprep.mubr.bf16.mxu0 %v5139
    %5322 = vmatmul.mubr.bf16.gmra.mrb[0].mxu0 %v5138
    %v5323 = vpop.f32.mrb[0].mxu0
    %v5324 = vadd.f32 0.0, %v5323
    %v5325 = vpop.f32.mrb[0].mxu0
    %v5326 = vpop.f32.mrb[0].mxu0
    %v5327 = vadd.f32 0.0, %v5326
    %v5328 = vpop.f32.mrb[0].mxu0
    %5329 = vmatprep.mubr.bf16.mxu0 %v5142
    %5330 = vmatmul.mubr.bf16.gmra.mrb[0].mxu0 %v5141
    %v5331 = vpop.f32.mrb[0].mxu0
    %v5332 = vadd.f32 0.0, %v5331
    %v5333 = vpop.f32.mrb[0].mxu0
    %v5334 = vpop.f32.mrb[0].mxu0
    %v5335 = vadd.f32 0.0, %v5334
    %v5336 = vpop.f32.mrb[0].mxu0
    %5337 = vmatprep.mubr.bf16.mxu0 %v5145
    %5338 = vmatmul.mubr.bf16.gmra.mrb[0].mxu0 %v5144
    %v5339 = vpop.f32.mrb[0].mxu0
    %v5340 = vadd.f32 0.0, %v5339
    %v5341 = vpop.f32.mrb[0].mxu0
    %v5342 = vpop.f32.mrb[0].mxu0
    %v5343 = vadd.f32 0.0, %v5342
    %v5344 = vpop.f32.mrb[0].mxu0
    %5345 = vmatprep.mubr.bf16.mxu0 %v5148
    %5346 = vmatmul.mubr.bf16.gmra.mrb[0].mxu0 %v5147
    %v5347 = vpop.f32.mrb[0].mxu0
    %v5348 = vadd.f32 0.0, %v5347
    %v5349 = vpop.f32.mrb[0].mxu0
    %v5350 = vpop.f32.mrb[0].mxu0
    %v5351 = vadd.f32 0.0, %v5350
    %v5352 = vpop.f32.mrb[0].mxu0
    %5353 = vmatprep.mubr.bf16.mxu0 %v5151
    %5354 = vmatmul.mubr.bf16.gmra.mrb[0].mxu0 %v5150
    %v5355 = vpop.f32.mrb[0].mxu0
    %v5356 = vadd.f32 0.0, %v5355
    %v5357 = vpop.f32.mrb[0].mxu0
    %v5358 = vpop.f32.mrb[0].mxu0
    %v5359 = vadd.f32 0.0, %v5358
    %v5360 = vpop.f32.mrb[0].mxu0
    %5361 = vdwg.mxu0
    %5362 = vmatprep.subr.bf16.mxu0 0
    %5363 = vmatpush1.bf16.msra.mxu0 %v4074
    %5364 = vmatprep.subr.bf16.mxu0 0
    %5365 = vmatpush1.bf16.msra.mxu0 %v4075
    %5366 = vmatprep.subr.bf16.mxu0 0
    %5367 = vmatpush1.bf16.msra.mxu0 0
    %5368 = vmatprep.subr.bf16.mxu0 0
    %5369 = vmatpush1.bf16.msra.mxu0 0
    %5370 = vmatprep.subr.bf16.mxu0 0
    %5371 = vmatpush1.bf16.msra.mxu0 0
    %5372 = vmatprep.subr.bf16.mxu0 0
    %5373 = vmatpush1.bf16.msra.mxu0 0
    %5374 = vmatprep.subr.bf16.mxu0 0
    %5375 = vmatpush1.bf16.msra.mxu0 0
    %5376 = vmatprep.subr.bf16.mxu0 0
    %5377 = vmatpush1.bf16.msra.mxu0 0
    %5378 = vmatprep.subr.bf16.mxu0 0
    %5379 = vmatpush1.bf16.msra.mxu0 0
    %5380 = vmatprep.subr.bf16.mxu0 0
    %5381 = vmatpush1.bf16.msra.mxu0 0
    %5382 = vmatprep.subr.bf16.mxu0 0
    %5383 = vmatpush1.bf16.msra.mxu0 0
    %5384 = vmatprep.subr.bf16.mxu0 0
    %5385 = vmatpush1.bf16.msra.mxu0 0
    %5386 = vmatprep.subr.bf16.mxu0 0
    %5387 = vmatpush1.bf16.msra.mxu0 0
    %5388 = vmatprep.subr.bf16.mxu0 0
    %5389 = vmatpush1.bf16.msra.mxu0 0
    %5390 = vmatprep.subr.bf16.mxu0 0
    %5391 = vmatpush1.bf16.msra.mxu0 0
    %5392 = vmatprep.subr.bf16.mxu0 0
    %5393 = vmatpush1.bf16.msra.mxu0 0
    %5394 = vmatprep.mubr.bf16.mxu0 0
    %5395 = vmatmul.mubr.bf16.gmra.mrb[0].mxu0 %v5154
    %v5396 = vpop.f32.mrb[0].mxu0
    %v5397 = vadd.f32 %v5236, %v5396
    %v5398 = vpop.f32.mrb[0].mxu0
    %v5399 = vpop.f32.mrb[0].mxu0
    %v5400 = vadd.f32 %v5239, %v5399
    %v5401 = vpop.f32.mrb[0].mxu0
    %5402 = vmatprep.mubr.bf16.mxu0 0
    %5403 = vmatmul.mubr.bf16.gmra.mrb[0].mxu0 %v5157
    %v5404 = vpop.f32.mrb[0].mxu0
    %v5405 = vadd.f32 %v5244, %v5404
    %v5406 = vpop.f32.mrb[0].mxu0
    %v5407 = vpop.f32.mrb[0].mxu0
    %v5408 = vadd.f32 %v5247, %v5407
    %v5409 = vpop.f32.mrb[0].mxu0
    %5410 = vmatprep.mubr.bf16.mxu0 0
    %5411 = vmatmul.mubr.bf16.gmra.mrb[0].mxu0 %v5160
    %v5412 = vpop.f32.mrb[0].mxu0
    %v5413 = vadd.f32 %v5252, %v5412
    %v5414 = vpop.f32.mrb[0].mxu0
    %v5415 = vpop.f32.mrb[0].mxu0
    %v5416 = vadd.f32 %v5255, %v5415
    %v5417 = vpop.f32.mrb[0].mxu0
    %5418 = vmatprep.mubr.bf16.mxu0 0
    %5419 = vmatmul.mubr.bf16.gmra.mrb[0].mxu0 %v5163
    %v5420 = vpop.f32.mrb[0].mxu0
    %v5421 = vadd.f32 %v5260, %v5420
    %v5422 = vpop.f32.mrb[0].mxu0
    %v5423 = vpop.f32.mrb[0].mxu0
    %v5424 = vadd.f32 %v5263, %v5423
    %v5425 = vpop.f32.mrb[0].mxu0
    %5426 = vmatprep.mubr.bf16.mxu0 0
    %5427 = vmatmul.mubr.bf16.gmra.mrb[0].mxu0 %v5166
    %v5428 = vpop.f32.mrb[0].mxu0
    %v5429 = vadd.f32 %v5268, %v5428
    %v5430 = vpop.f32.mrb[0].mxu0
    %v5431 = vpop.f32.mrb[0].mxu0
    %v5432 = vadd.f32 %v5271, %v5431
    %v5433 = vpop.f32.mrb[0].mxu0
    %5434 = vmatprep.mubr.bf16.mxu0 0
    %5435 = vmatmul.mubr.bf16.gmra.mrb[0].mxu0 %v5169
    %v5436 = vpop.f32.mrb[0].mxu0
    %v5437 = vadd.f32 %v5276, %v5436
    %v5438 = vpop.f32.mrb[0].mxu0
    %v5439 = vpop.f32.mrb[0].mxu0
    %v5440 = vadd.f32 %v5279, %v5439
    %v5441 = vpop.f32.mrb[0].mxu0
    %5442 = vmatprep.mubr.bf16.mxu0 0
    %5443 = vmatmul.mubr.bf16.gmra.mrb[0].mxu0 %v5172
    %v5444 = vpop.f32.mrb[0].mxu0
    %v5445 = vadd.f32 %v5284, %v5444
    %v5446 = vpop.f32.mrb[0].mxu0
    %v5447 = vpop.f32.mrb[0].mxu0
    %v5448 = vadd.f32 %v5287, %v5447
    %v5449 = vpop.f32.mrb[0].mxu0
    %5450 = vmatprep.mubr.bf16.mxu0 0
    %5451 = vmatmul.mubr.bf16.gmra.mrb[0].mxu0 %v5175
    %v5452 = vpop.f32.mrb[0].mxu0
    %v5453 = vadd.f32 %v5292, %v5452
    %v5454 = vpop.f32.mrb[0].mxu0
    %v5455 = vpop.f32.mrb[0].mxu0
    %v5456 = vadd.f32 %v5295, %v5455
    %v5457 = vpop.f32.mrb[0].mxu0
    %5458 = vmatprep.mubr.bf16.mxu0 0
    %5459 = vmatmul.mubr.bf16.gmra.mrb[0].mxu0 %v5178
    %v5460 = vpop.f32.mrb[0].mxu0
    %v5461 = vadd.f32 %v5300, %v5460
    %v5462 = vpop.f32.mrb[0].mxu0
    %v5463 = vpop.f32.mrb[0].mxu0
    %v5464 = vadd.f32 %v5303, %v5463
    %v5465 = vpop.f32.mrb[0].mxu0
    %5466 = vmatprep.mubr.bf16.mxu0 0
    %5467 = vmatmul.mubr.bf16.gmra.mrb[0].mxu0 %v5181
    %v5468 = vpop.f32.mrb[0].mxu0
    %v5469 = vadd.f32 %v5308, %v5468
    %v5470 = vpop.f32.mrb[0].mxu0
    %v5471 = vpop.f32.mrb[0].mxu0
    %v5472 = vadd.f32 %v5311, %v5471
    %v5473 = vpop.f32.mrb[0].mxu0
    %5474 = vmatprep.mubr.bf16.mxu0 0
    %5475 = vmatmul.mubr.bf16.gmra.mrb[0].mxu0 %v5184
    %v5476 = vpop.f32.mrb[0].mxu0
    %v5477 = vadd.f32 %v5316, %v5476
    %v5478 = vpop.f32.mrb[0].mxu0
    %v5479 = vpop.f32.mrb[0].mxu0
    %v5480 = vadd.f32 %v5319, %v5479
    %v5481 = vpop.f32.mrb[0].mxu0
    %5482 = vmatprep.mubr.bf16.mxu0 0
    %5483 = vmatmul.mubr.bf16.gmra.mrb[0].mxu0 %v5187
    %v5484 = vpop.f32.mrb[0].mxu0
    %v5485 = vadd.f32 %v5324, %v5484
    %v5486 = vpop.f32.mrb[0].mxu0
    %v5487 = vpop.f32.mrb[0].mxu0
    %v5488 = vadd.f32 %v5327, %v5487
    %v5489 = vpop.f32.mrb[0].mxu0
    %5490 = vmatprep.mubr.bf16.mxu0 0
    %5491 = vmatmul.mubr.bf16.gmra.mrb[0].mxu0 %v5190
    %v5492 = vpop.f32.mrb[0].mxu0
    %v5493 = vadd.f32 %v5332, %v5492
    %v5494 = vpop.f32.mrb[0].mxu0
    %v5495 = vpop.f32.mrb[0].mxu0
    %v5496 = vadd.f32 %v5335, %v5495
    %v5497 = vpop.f32.mrb[0].mxu0
    %5498 = vmatprep.mubr.bf16.mxu0 0
    %5499 = vmatmul.mubr.bf16.gmra.mrb[0].mxu0 %v5193
    %v5500 = vpop.f32.mrb[0].mxu0
    %v5501 = vadd.f32 %v5340, %v5500
    %v5502 = vpop.f32.mrb[0].mxu0
    %v5503 = vpop.f32.mrb[0].mxu0
    %v5504 = vadd.f32 %v5343, %v5503
    %v5505 = vpop.f32.mrb[0].mxu0
    %5506 = vmatprep.mubr.bf16.mxu0 0
    %5507 = vmatmul.mubr.bf16.gmra.mrb[0].mxu0 %v5196
    %v5508 = vpop.f32.mrb[0].mxu0
    %v5509 = vadd.f32 %v5348, %v5508
    %v5510 = vpop.f32.mrb[0].mxu0
    %v5511 = vpop.f32.mrb[0].mxu0
    %v5512 = vadd.f32 %v5351, %v5511
    %v5513 = vpop.f32.mrb[0].mxu0
    %5514 = vmatprep.mubr.bf16.mxu0 0
    %5515 = vmatmul.mubr.bf16.gmra.mrb[0].mxu0 %v5199
    %v5516 = vpop.f32.mrb[0].mxu0
    %v5517 = vadd.f32 %v5356, %v5516
    %v5518 = vpop.f32.mrb[0].mxu0
    %v5519 = vpop.f32.mrb[0].mxu0
    %v5520 = vadd.f32 %v5359, %v5519
    %v5521 = vpop.f32.mrb[0].mxu0
    %5522 = vdwg.mxu0
    %v5523 = vmax.f32 %v4338, %v5397
    %v5524 = vmax.f32 %v4341, %v5400
    %v5525 = vmax.f32 %v4346, %v5405
    %v5526 = vmax.f32 %v4349, %v5408
    %v5527 = vmax.f32 %v4354, %v5413
    %v5528 = vmax.f32 %v4357, %v5416
    %v5529 = vmax.f32 %v4362, %v5421
    %v5530 = vmax.f32 %v4365, %v5424
    %v5531 = vmax.f32 %v4370, %v5429
    %v5532 = vmax.f32 %v4373, %v5432
    %v5533 = vmax.f32 %v4378, %v5437
    %v5534 = vmax.f32 %v4381, %v5440
    %v5535 = vmax.f32 %v4386, %v5445
    %v5536 = vmax.f32 %v4389, %v5448
    %v5537 = vmax.f32 %v4394, %v5453
    %v5538 = vmax.f32 %v4397, %v5456
    %v5539 = vmax.f32 %v4402, %v5461
    %v5540 = vmax.f32 %v4405, %v5464
    %v5541 = vmax.f32 %v4410, %v5469
    %v5542 = vmax.f32 %v4413, %v5472
    %v5543 = vmax.f32 %v4418, %v5477
    %v5544 = vmax.f32 %v4421, %v5480
    %v5545 = vmax.f32 %v4426, %v5485
    %v5546 = vmax.f32 %v4429, %v5488
    %v5547 = vmax.f32 %v4434, %v5493
    %v5548 = vmax.f32 %v4437, %v5496
    %v5549 = vmax.f32 %v4442, %v5501
    %v5550 = vmax.f32 %v4445, %v5504
    %v5551 = vmax.f32 %v4450, %v5509
    %v5552 = vmax.f32 %v4453, %v5512
    %v5553 = vmax.f32 %v4458, %v5517
    %v5554 = vmax.f32 %v4461, %v5520
    %v5555 = vmax.f32 %v5523, %v5524
    %v5556 = vmax.f32 %v5525, %v5526
    %v5557 = vmax.f32 %v5527, %v5528
    %v5558 = vmax.f32 %v5529, %v5530
    %v5559 = vmax.f32 %v5531, %v5532
    %v5560 = vmax.f32 %v5533, %v5534
    %v5561 = vmax.f32 %v5535, %v5536
    %v5562 = vmax.f32 %v5537, %v5538
    %v5563 = vmax.f32 %v5539, %v5540
    %v5564 = vmax.f32 %v5541, %v5542
    %v5565 = vmax.f32 %v5543, %v5544
    %v5566 = vmax.f32 %v5545, %v5546
    %v5567 = vmax.f32 %v5547, %v5548
    %v5568 = vmax.f32 %v5549, %v5550
    %v5569 = vmax.f32 %v5551, %v5552
    %v5570 = vmax.f32 %v5553, %v5554
    %v5571 = vld [vmem:[#allocation9] sm:$0x1]
    %v5573 = vlaneseq
    %v5574 = vshrl.u32 %v5573, 7
    %v5575 = vsub.s32 0, %v5574
    %v5576 = vrot.slane %v5571, %v5575
    %v5578 = vadd.f32 %v5555, %v5576
    %v5579 = vadd.f32 %v5556, %v5576
    %v5580 = vadd.f32 %v5557, %v5576
    %v5581 = vadd.f32 %v5558, %v5576
    %v5582 = vadd.f32 %v5559, %v5576
    %v5583 = vadd.f32 %v5560, %v5576
    %v5584 = vadd.f32 %v5561, %v5576
    %v5585 = vadd.f32 %v5562, %v5576
    %v5586 = vadd.f32 %v5563, %v5576
    %v5587 = vadd.f32 %v5564, %v5576
    %v5588 = vadd.f32 %v5565, %v5576
    %v5589 = vadd.f32 %v5566, %v5576
    %v5590 = vadd.f32 %v5567, %v5576
    %v5591 = vadd.f32 %v5568, %v5576
    %v5592 = vadd.f32 %v5569, %v5576
    %v5593 = vadd.f32 %v5570, %v5576
    %v5594 = vmax.f32 %v5578, 0.0
    %v5595 = vmax.f32 %v5579, 0.0
    %v5596 = vmax.f32 %v5580, 0.0
    %v5597 = vmax.f32 %v5581, 0.0
    %v5598 = vmax.f32 %v5582, 0.0
    %v5599 = vmax.f32 %v5583, 0.0
    %v5600 = vmax.f32 %v5584, 0.0
    %v5601 = vmax.f32 %v5585, 0.0
    %v5602 = vmax.f32 %v5586, 0.0
    %v5603 = vmax.f32 %v5587, 0.0
    %v5604 = vmax.f32 %v5588, 0.0
    %v5605 = vmax.f32 %v5589, 0.0
    %v5606 = vmax.f32 %v5590, 0.0
    %v5607 = vmax.f32 %v5591, 0.0
    %v5608 = vmax.f32 %v5592, 0.0
    %v5609 = vmax.f32 %v5593, 0.0
    %v5612 = vrot.slane %v5602, 7
    %vm5613 = vcmask 1041409
    %v5614 = vsel %vm5613, %v5612, %v5594
    %v5616 = vrot.slane %v5594, 1
    %v5617 = vsel %vm5613, %v5602, %v5616
    %5618 = vrot.lane.b32.xlu0 %v5617, 64
    %v5619 = vpop.permute.xlu0 %5618
    %v5621 = vrot.slane %v5594, 2
    %v5622 = vrot.slane %v5602, 1
    %v5623 = vsel %vm5613, %v5622, %v5621
    %v5625 = vrot.slane %v5594, 3
    %v5626 = vrot.slane %v5602, 2
    %v5627 = vsel %vm5613, %v5626, %v5625
    %5628 = vrot.lane.b32.xlu0 %v5627, 64
    %v5629 = vpop.permute.xlu0 %5628
    %v5631 = vrot.slane %v5594, 4
    %v5632 = vrot.slane %v5602, 3
    %v5633 = vsel %vm5613, %v5632, %v5631
    %v5635 = vrot.slane %v5594, 5
    %v5636 = vrot.slane %v5602, 4
    %v5637 = vsel %vm5613, %v5636, %v5635
    %5638 = vrot.lane.b32.xlu0 %v5637, 64
    %v5639 = vpop.permute.xlu0 %5638
    %v5641 = vrot.slane %v5594, 6
    %v5642 = vrot.slane %v5602, 5
    %v5643 = vsel %vm5613, %v5642, %v5641
    %v5645 = vrot.slane %v5594, 7
    %v5646 = vrot.slane %v5602, 6
    %v5647 = vsel %vm5613, %v5646, %v5645
    %5648 = vrot.lane.b32.xlu0 %v5647, 64
    %v5649 = vpop.permute.xlu0 %5648
    %v5653 = vrot.slane %v5603, 7
    %v5654 = vsel %vm5613, %v5653, %v5595
    %v5656 = vrot.slane %v5595, 1
    %v5657 = vsel %vm5613, %v5603, %v5656
    %5658 = vrot.lane.b32.xlu0 %v5657, 64
    %v5659 = vpop.permute.xlu0 %5658
    %v5661 = vrot.slane %v5595, 2
    %v5662 = vrot.slane %v5603, 1
    %v5663 = vsel %vm5613, %v5662, %v5661
    %v5665 = vrot.slane %v5595, 3
    %v5666 = vrot.slane %v5603, 2
    %v5667 = vsel %vm5613, %v5666, %v5665
    %5668 = vrot.lane.b32.xlu0 %v5667, 64
    %v5669 = vpop.permute.xlu0 %5668
    %v5671 = vrot.slane %v5595, 4
    %v5672 = vrot.slane %v5603, 3
    %v5673 = vsel %vm5613, %v5672, %v5671
    %v5675 = vrot.slane %v5595, 5
    %v5676 = vrot.slane %v5603, 4
    %v5677 = vsel %vm5613, %v5676, %v5675
    %5678 = vrot.lane.b32.xlu0 %v5677, 64
    %v5679 = vpop.permute.xlu0 %5678
    %v5681 = vrot.slane %v5595, 6
    %v5682 = vrot.slane %v5603, 5
    %v5683 = vsel %vm5613, %v5682, %v5681
    %v5685 = vrot.slane %v5595, 7
    %v5686 = vrot.slane %v5603, 6
    %v5687 = vsel %vm5613, %v5686, %v5685
    %5688 = vrot.lane.b32.xlu0 %v5687, 64
    %v5689 = vpop.permute.xlu0 %5688
    %v5691 = vsel %vm3741, %v5614, %v5619
    %v5692 = vsel %vm3741, %v5623, %v5629
    %v5693 = vsel %vm3741, %v5633, %v5639
    %v5694 = vsel %vm3741, %v5643, %v5649
    %v5695 = vsel %vm3741, %v5654, %v5659
    %v5696 = vsel %vm3741, %v5663, %v5669
    %v5697 = vsel %vm3741, %v5673, %v5679
    %v5698 = vsel %vm3741, %v5683, %v5689
    %v5701 = vrot.slane %v5604, 7
    %v5702 = vsel %vm5613, %v5701, %v5596
    %v5704 = vrot.slane %v5596, 1
    %v5705 = vsel %vm5613, %v5604, %v5704
    %5706 = vrot.lane.b32.xlu0 %v5705, 64
    %v5707 = vpop.permute.xlu0 %5706
    %v5709 = vrot.slane %v5596, 2
    %v5710 = vrot.slane %v5604, 1
    %v5711 = vsel %vm5613, %v5710, %v5709
    %v5713 = vrot.slane %v5596, 3
    %v5714 = vrot.slane %v5604, 2
    %v5715 = vsel %vm5613, %v5714, %v5713
    %5716 = vrot.lane.b32.xlu0 %v5715, 64
    %v5717 = vpop.permute.xlu0 %5716
    %v5719 = vrot.slane %v5596, 4
    %v5720 = vrot.slane %v5604, 3
    %v5721 = vsel %vm5613, %v5720, %v5719
    %v5723 = vrot.slane %v5596, 5
    %v5724 = vrot.slane %v5604, 4
    %v5725 = vsel %vm5613, %v5724, %v5723
    %5726 = vrot.lane.b32.xlu0 %v5725, 64
    %v5727 = vpop.permute.xlu0 %5726
    %v5729 = vrot.slane %v5596, 6
    %v5730 = vrot.slane %v5604, 5
    %v5731 = vsel %vm5613, %v5730, %v5729
    %v5733 = vrot.slane %v5596, 7
    %v5734 = vrot.slane %v5604, 6
    %v5735 = vsel %vm5613, %v5734, %v5733
    %5736 = vrot.lane.b32.xlu0 %v5735, 64
    %v5737 = vpop.permute.xlu0 %5736
    %v5741 = vrot.slane %v5605, 7
    %v5742 = vsel %vm5613, %v5741, %v5597
    %v5744 = vrot.slane %v5597, 1
    %v5745 = vsel %vm5613, %v5605, %v5744
    %5746 = vrot.lane.b32.xlu0 %v5745, 64
    %v5747 = vpop.permute.xlu0 %5746
    %v5749 = vrot.slane %v5597, 2
    %v5750 = vrot.slane %v5605, 1
    %v5751 = vsel %vm5613, %v5750, %v5749
    %v5753 = vrot.slane %v5597, 3
    %v5754 = vrot.slane %v5605, 2
    %v5755 = vsel %vm5613, %v5754, %v5753
    %5756 = vrot.lane.b32.xlu0 %v5755, 64
    %v5757 = vpop.permute.xlu0 %5756
    %v5759 = vrot.slane %v5597, 4
    %v5760 = vrot.slane %v5605, 3
    %v5761 = vsel %vm5613, %v5760, %v5759
    %v5763 = vrot.slane %v5597, 5
    %v5764 = vrot.slane %v5605, 4
    %v5765 = vsel %vm5613, %v5764, %v5763
    %5766 = vrot.lane.b32.xlu0 %v5765, 64
    %v5767 = vpop.permute.xlu0 %5766
    %v5769 = vrot.slane %v5597, 6
    %v5770 = vrot.slane %v5605, 5
    %v5771 = vsel %vm5613, %v5770, %v5769
    %v5773 = vrot.slane %v5597, 7
    %v5774 = vrot.slane %v5605, 6
    %v5775 = vsel %vm5613, %v5774, %v5773
    %5776 = vrot.lane.b32.xlu0 %v5775, 64
    %v5777 = vpop.permute.xlu0 %5776
    %v5779 = vsel %vm3741, %v5702, %v5707
    %v5780 = vsel %vm3741, %v5711, %v5717
    %v5781 = vsel %vm3741, %v5721, %v5727
    %v5782 = vsel %vm3741, %v5731, %v5737
    %v5783 = vsel %vm3741, %v5742, %v5747
    %v5784 = vsel %vm3741, %v5751, %v5757
    %v5785 = vsel %vm3741, %v5761, %v5767
    %v5786 = vsel %vm3741, %v5771, %v5777
    %v5789 = vrot.slane %v5606, 7
    %v5790 = vsel %vm5613, %v5789, %v5598
    %v5792 = vrot.slane %v5598, 1
    %v5793 = vsel %vm5613, %v5606, %v5792
    %5794 = vrot.lane.b32.xlu0 %v5793, 64
    %v5795 = vpop.permute.xlu0 %5794
    %v5797 = vrot.slane %v5598, 2
    %v5798 = vrot.slane %v5606, 1
    %v5799 = vsel %vm5613, %v5798, %v5797
    %v5801 = vrot.slane %v5598, 3
    %v5802 = vrot.slane %v5606, 2
    %v5803 = vsel %vm5613, %v5802, %v5801
    %5804 = vrot.lane.b32.xlu0 %v5803, 64
    %v5805 = vpop.permute.xlu0 %5804
    %v5807 = vrot.slane %v5598, 4
    %v5808 = vrot.slane %v5606, 3
    %v5809 = vsel %vm5613, %v5808, %v5807
    %v5811 = vrot.slane %v5598, 5
    %v5812 = vrot.slane %v5606, 4
    %v5813 = vsel %vm5613, %v5812, %v5811
    %5814 = vrot.lane.b32.xlu0 %v5813, 64
    %v5815 = vpop.permute.xlu0 %5814
    %v5817 = vrot.slane %v5598, 6
    %v5818 = vrot.slane %v5606, 5
    %v5819 = vsel %vm5613, %v5818, %v5817
    %v5821 = vrot.slane %v5598, 7
    %v5822 = vrot.slane %v5606, 6
    %v5823 = vsel %vm5613, %v5822, %v5821
    %5824 = vrot.lane.b32.xlu0 %v5823, 64
    %v5825 = vpop.permute.xlu0 %5824
    %v5829 = vrot.slane %v5607, 7
    %v5830 = vsel %vm5613, %v5829, %v5599
    %v5832 = vrot.slane %v5599, 1
    %v5833 = vsel %vm5613, %v5607, %v5832
    %5834 = vrot.lane.b32.xlu0 %v5833, 64
    %v5835 = vpop.permute.xlu0 %5834
    %v5837 = vrot.slane %v5599, 2
    %v5838 = vrot.slane %v5607, 1
    %v5839 = vsel %vm5613, %v5838, %v5837
    %v5841 = vrot.slane %v5599, 3
    %v5842 = vrot.slane %v5607, 2
    %v5843 = vsel %vm5613, %v5842, %v5841
    %5844 = vrot.lane.b32.xlu0 %v5843, 64
    %v5845 = vpop.permute.xlu0 %5844
    %v5847 = vrot.slane %v5599, 4
    %v5848 = vrot.slane %v5607, 3
    %v5849 = vsel %vm5613, %v5848, %v5847
    %v5851 = vrot.slane %v5599, 5
    %v5852 = vrot.slane %v5607, 4
    %v5853 = vsel %vm5613, %v5852, %v5851
    %5854 = vrot.lane.b32.xlu0 %v5853, 64
    %v5855 = vpop.permute.xlu0 %5854
    %v5857 = vrot.slane %v5599, 6
    %v5858 = vrot.slane %v5607, 5
    %v5859 = vsel %vm5613, %v5858, %v5857
    %v5861 = vrot.slane %v5599, 7
    %v5862 = vrot.slane %v5607, 6
    %v5863 = vsel %vm5613, %v5862, %v5861
    %5864 = vrot.lane.b32.xlu0 %v5863, 64
    %v5865 = vpop.permute.xlu0 %5864
    %v5867 = vsel %vm3741, %v5790, %v5795
    %v5868 = vsel %vm3741, %v5799, %v5805
    %v5869 = vsel %vm3741, %v5809, %v5815
    %v5870 = vsel %vm3741, %v5819, %v5825
    %v5871 = vsel %vm3741, %v5830, %v5835
    %v5872 = vsel %vm3741, %v5839, %v5845
    %v5873 = vsel %vm3741, %v5849, %v5855
    %v5874 = vsel %vm3741, %v5859, %v5865
    %v5877 = vrot.slane %v5608, 7
    %v5878 = vsel %vm5613, %v5877, %v5600
    %v5880 = vrot.slane %v5600, 1
    %v5881 = vsel %vm5613, %v5608, %v5880
    %5882 = vrot.lane.b32.xlu0 %v5881, 64
    %v5883 = vpop.permute.xlu0 %5882
    %v5885 = vrot.slane %v5600, 2
    %v5886 = vrot.slane %v5608, 1
    %v5887 = vsel %vm5613, %v5886, %v5885
    %v5889 = vrot.slane %v5600, 3
    %v5890 = vrot.slane %v5608, 2
    %v5891 = vsel %vm5613, %v5890, %v5889
    %5892 = vrot.lane.b32.xlu0 %v5891, 64
    %v5893 = vpop.permute.xlu0 %5892
    %v5895 = vrot.slane %v5600, 4
    %v5896 = vrot.slane %v5608, 3
    %v5897 = vsel %vm5613, %v5896, %v5895
    %v5899 = vrot.slane %v5600, 5
    %v5900 = vrot.slane %v5608, 4
    %v5901 = vsel %vm5613, %v5900, %v5899
    %5902 = vrot.lane.b32.xlu0 %v5901, 64
    %v5903 = vpop.permute.xlu0 %5902
    %v5905 = vrot.slane %v5600, 6
    %v5906 = vrot.slane %v5608, 5
    %v5907 = vsel %vm5613, %v5906, %v5905
    %v5909 = vrot.slane %v5600, 7
    %v5910 = vrot.slane %v5608, 6
    %v5911 = vsel %vm5613, %v5910, %v5909
    %5912 = vrot.lane.b32.xlu0 %v5911, 64
    %v5913 = vpop.permute.xlu0 %5912
    %v5917 = vrot.slane %v5609, 7
    %v5918 = vsel %vm5613, %v5917, %v5601
    %v5920 = vrot.slane %v5601, 1
    %v5921 = vsel %vm5613, %v5609, %v5920
    %5922 = vrot.lane.b32.xlu0 %v5921, 64
    %v5923 = vpop.permute.xlu0 %5922
    %v5925 = vrot.slane %v5601, 2
    %v5926 = vrot.slane %v5609, 1
    %v5927 = vsel %vm5613, %v5926, %v5925
    %v5929 = vrot.slane %v5601, 3
    %v5930 = vrot.slane %v5609, 2
    %v5931 = vsel %vm5613, %v5930, %v5929
    %5932 = vrot.lane.b32.xlu0 %v5931, 64
    %v5933 = vpop.permute.xlu0 %5932
    %v5935 = vrot.slane %v5601, 4
    %v5936 = vrot.slane %v5609, 3
    %v5937 = vsel %vm5613, %v5936, %v5935
    %v5939 = vrot.slane %v5601, 5
    %v5940 = vrot.slane %v5609, 4
    %v5941 = vsel %vm5613, %v5940, %v5939
    %5942 = vrot.lane.b32.xlu0 %v5941, 64
    %v5943 = vpop.permute.xlu0 %5942
    %v5945 = vrot.slane %v5601, 6
    %v5946 = vrot.slane %v5609, 5
    %v5947 = vsel %vm5613, %v5946, %v5945
    %v5949 = vrot.slane %v5601, 7
    %v5950 = vrot.slane %v5609, 6
    %v5951 = vsel %vm5613, %v5950, %v5949
    %5952 = vrot.lane.b32.xlu0 %v5951, 64
    %v5953 = vpop.permute.xlu0 %5952
    %v5955 = vsel %vm3741, %v5878, %v5883
    %v5956 = vsel %vm3741, %v5887, %v5893
    %v5957 = vsel %vm3741, %v5897, %v5903
    %v5958 = vsel %vm3741, %v5907, %v5913
    %v5959 = vsel %vm3741, %v5918, %v5923
    %v5960 = vsel %vm3741, %v5927, %v5933
    %v5961 = vsel %vm3741, %v5937, %v5943
    %v5962 = vsel %vm3741, %v5947, %v5953
    %v5963 = vpack.c.bf16 %v5691, %v5691
    %v5964 = vpack.c.bf16 %v5692, %v5692
    %v5965 = vpack.c.bf16 %v5693, %v5693
    %v5966 = vpack.c.bf16 %v5694, %v5694
    %v5967 = vpack.c.bf16 %v5695, %v5695
    %v5968 = vpack.c.bf16 %v5696, %v5696
    %v5969 = vpack.c.bf16 %v5697, %v5697
    %v5970 = vpack.c.bf16 %v5698, %v5698
    %v5971 = vpack.c.bf16 %v5779, %v5779
    %v5972 = vpack.c.bf16 %v5780, %v5780
    %v5973 = vpack.c.bf16 %v5781, %v5781
    %v5974 = vpack.c.bf16 %v5782, %v5782
    %v5975 = vpack.c.bf16 %v5783, %v5783
    %v5976 = vpack.c.bf16 %v5784, %v5784
    %v5977 = vpack.c.bf16 %v5785, %v5785
    %v5978 = vpack.c.bf16 %v5786, %v5786
    %v5979 = vpack.c.bf16 %v5867, %v5867
    %v5980 = vpack.c.bf16 %v5868, %v5868
    %v5981 = vpack.c.bf16 %v5869, %v5869
    %v5982 = vpack.c.bf16 %v5870, %v5870
    %v5983 = vpack.c.bf16 %v5871, %v5871
    %v5984 = vpack.c.bf16 %v5872, %v5872
    %v5985 = vpack.c.bf16 %v5873, %v5873
    %v5986 = vpack.c.bf16 %v5874, %v5874
    %v5987 = vpack.c.bf16 %v5955, %v5955
    %v5988 = vpack.c.bf16 %v5956, %v5956
    %v5989 = vpack.c.bf16 %v5957, %v5957
    %v5990 = vpack.c.bf16 %v5958, %v5958
    %v5991 = vpack.c.bf16 %v5959, %v5959
    %v5992 = vpack.c.bf16 %v5960, %v5960
    %v5993 = vpack.c.bf16 %v5961, %v5961
    %v5994 = vpack.c.bf16 %v5962, %v5962
    %s5995 = smul.u32 4, 512
    %s5996 = smul.u32 %s5995, 4
    %s5997 = sshll.u32 %s5996, 4
    %5998 = dma.done [#allocation3], %s5997
    %v5999 = vld [vmem:[#allocation2] sm:$0xff]
    %v6000 = vld [vmem:[#allocation2 + $0x8] sm:$0xff]
    %v6001 = vld [vmem:[#allocation2 + $0x10] sm:$0xff]
    %v6002 = vld [vmem:[#allocation2 + $0x18] sm:$0xff]
    %v6003 = vld [vmem:[#allocation2 + $0x20] sm:$0xff]
    %v6004 = vld [vmem:[#allocation2 + $0x28] sm:$0xff]
    %v6005 = vld [vmem:[#allocation2 + $0x30] sm:$0xff]
    %v6006 = vld [vmem:[#allocation2 + $0x38] sm:$0xff]
    %v6007 = vld [vmem:[#allocation2 + $0x40] sm:$0xff]
    %v6008 = vld [vmem:[#allocation2 + $0x48] sm:$0xff]
    %v6009 = vld [vmem:[#allocation2 + $0x50] sm:$0xff]
    %v6010 = vld [vmem:[#allocation2 + $0x58] sm:$0xff]
    %v6011 = vld [vmem:[#allocation2 + $0x60] sm:$0xff]
    %v6012 = vld [vmem:[#allocation2 + $0x68] sm:$0xff]
    %v6013 = vld [vmem:[#allocation2 + $0x70] sm:$0xff]
    %v6014 = vld [vmem:[#allocation2 + $0x78] sm:$0xff]
    %v6015 = vld [vmem:[#allocation2 + $0x80] sm:$0xff]
    %v6016 = vld [vmem:[#allocation2 + $0x88] sm:$0xff]
    %v6017 = vld [vmem:[#allocation2 + $0x90] sm:$0xff]
    %v6018 = vld [vmem:[#allocation2 + $0x98] sm:$0xff]
    %v6019 = vld [vmem:[#allocation2 + $0xa0] sm:$0xff]
    %v6020 = vld [vmem:[#allocation2 + $0xa8] sm:$0xff]
    %v6021 = vld [vmem:[#allocation2 + $0xb0] sm:$0xff]
    %v6022 = vld [vmem:[#allocation2 + $0xb8] sm:$0xff]
    %v6023 = vld [vmem:[#allocation2 + $0xc0] sm:$0xff]
    %v6024 = vld [vmem:[#allocation2 + $0xc8] sm:$0xff]
    %v6025 = vld [vmem:[#allocation2 + $0xd0] sm:$0xff]
    %v6026 = vld [vmem:[#allocation2 + $0xd8] sm:$0xff]
    %v6027 = vld [vmem:[#allocation2 + $0xe0] sm:$0xff]
    %v6028 = vld [vmem:[#allocation2 + $0xe8] sm:$0xff]
    %v6029 = vld [vmem:[#allocation2 + $0xf0] sm:$0xff]
    %v6030 = vld [vmem:[#allocation2 + $0xf8] sm:$0xff]
    %v6031 = vld [vmem:[#allocation2 + $0x100] sm:$0xff]
    %v6032 = vld [vmem:[#allocation2 + $0x108] sm:$0xff]
    %v6033 = vld [vmem:[#allocation2 + $0x110] sm:$0xff]
    %v6034 = vld [vmem:[#allocation2 + $0x118] sm:$0xff]
    %v6035 = vld [vmem:[#allocation2 + $0x120] sm:$0xff]
    %v6036 = vld [vmem:[#allocation2 + $0x128] sm:$0xff]
    %v6037 = vld [vmem:[#allocation2 + $0x130] sm:$0xff]
    %v6038 = vld [vmem:[#allocation2 + $0x138] sm:$0xff]
    %v6039 = vld [vmem:[#allocation2 + $0x140] sm:$0xff]
    %v6040 = vld [vmem:[#allocation2 + $0x148] sm:$0xff]
    %v6041 = vld [vmem:[#allocation2 + $0x150] sm:$0xff]
    %v6042 = vld [vmem:[#allocation2 + $0x158] sm:$0xff]
    %v6043 = vld [vmem:[#allocation2 + $0x160] sm:$0xff]
    %v6044 = vld [vmem:[#allocation2 + $0x168] sm:$0xff]
    %v6045 = vld [vmem:[#allocation2 + $0x170] sm:$0xff]
    %v6046 = vld [vmem:[#allocation2 + $0x178] sm:$0xff]
    %v6047 = vld [vmem:[#allocation2 + $0x180] sm:$0xff]
    %v6048 = vld [vmem:[#allocation2 + $0x188] sm:$0xff]
    %v6049 = vld [vmem:[#allocation2 + $0x190] sm:$0xff]
    %v6050 = vld [vmem:[#allocation2 + $0x198] sm:$0xff]
    %v6051 = vld [vmem:[#allocation2 + $0x1a0] sm:$0xff]
    %v6052 = vld [vmem:[#allocation2 + $0x1a8] sm:$0xff]
    %v6053 = vld [vmem:[#allocation2 + $0x1b0] sm:$0xff]
    %v6054 = vld [vmem:[#allocation2 + $0x1b8] sm:$0xff]
    %v6055 = vld [vmem:[#allocation2 + $0x1c0] sm:$0xff]
    %v6056 = vld [vmem:[#allocation2 + $0x1c8] sm:$0xff]
    %v6057 = vld [vmem:[#allocation2 + $0x1d0] sm:$0xff]
    %v6058 = vld [vmem:[#allocation2 + $0x1d8] sm:$0xff]
    %v6059 = vld [vmem:[#allocation2 + $0x1e0] sm:$0xff]
    %v6060 = vld [vmem:[#allocation2 + $0x1e8] sm:$0xff]
    %v6061 = vld [vmem:[#allocation2 + $0x1f0] sm:$0xff]
    %v6062 = vld [vmem:[#allocation2 + $0x1f8] sm:$0xff]
    %v6063 = vld [vmem:[#allocation2 + $0x200] sm:$0xff]
    %v6064 = vld [vmem:[#allocation2 + $0x208] sm:$0xff]
    %v6065 = vld [vmem:[#allocation2 + $0x210] sm:$0xff]
    %v6066 = vld [vmem:[#allocation2 + $0x218] sm:$0xff]
    %v6067 = vld [vmem:[#allocation2 + $0x220] sm:$0xff]
    %v6068 = vld [vmem:[#allocation2 + $0x228] sm:$0xff]
    %v6069 = vld [vmem:[#allocation2 + $0x230] sm:$0xff]
    %v6070 = vld [vmem:[#allocation2 + $0x238] sm:$0xff]
    %v6071 = vld [vmem:[#allocation2 + $0x240] sm:$0xff]
    %v6072 = vld [vmem:[#allocation2 + $0x248] sm:$0xff]
    %v6073 = vld [vmem:[#allocation2 + $0x250] sm:$0xff]
    %v6074 = vld [vmem:[#allocation2 + $0x258] sm:$0xff]
    %v6075 = vld [vmem:[#allocation2 + $0x260] sm:$0xff]
    %v6076 = vld [vmem:[#allocation2 + $0x268] sm:$0xff]
    %v6077 = vld [vmem:[#allocation2 + $0x270] sm:$0xff]
    %v6078 = vld [vmem:[#allocation2 + $0x278] sm:$0xff]
    %v6079 = vld [vmem:[#allocation2 + $0x280] sm:$0xff]
    %v6080 = vld [vmem:[#allocation2 + $0x288] sm:$0xff]
    %v6081 = vld [vmem:[#allocation2 + $0x290] sm:$0xff]
    %v6082 = vld [vmem:[#allocation2 + $0x298] sm:$0xff]
    %v6083 = vld [vmem:[#allocation2 + $0x2a0] sm:$0xff]
    %v6084 = vld [vmem:[#allocation2 + $0x2a8] sm:$0xff]
    %v6085 = vld [vmem:[#allocation2 + $0x2b0] sm:$0xff]
    %v6086 = vld [vmem:[#allocation2 + $0x2b8] sm:$0xff]
    %v6087 = vld [vmem:[#allocation2 + $0x2c0] sm:$0xff]
    %v6088 = vld [vmem:[#allocation2 + $0x2c8] sm:$0xff]
    %v6089 = vld [vmem:[#allocation2 + $0x2d0] sm:$0xff]
    %v6090 = vld [vmem:[#allocation2 + $0x2d8] sm:$0xff]
    %v6091 = vld [vmem:[#allocation2 + $0x2e0] sm:$0xff]
    %v6092 = vld [vmem:[#allocation2 + $0x2e8] sm:$0xff]
    %v6093 = vld [vmem:[#allocation2 + $0x2f0] sm:$0xff]
    %v6094 = vld [vmem:[#allocation2 + $0x2f8] sm:$0xff]
    %v6095 = vld [vmem:[#allocation2 + $0x300] sm:$0xff]
    %v6096 = vld [vmem:[#allocation2 + $0x308] sm:$0xff]
    %v6097 = vld [vmem:[#allocation2 + $0x310] sm:$0xff]
    %v6098 = vld [vmem:[#allocation2 + $0x318] sm:$0xff]
    %v6099 = vld [vmem:[#allocation2 + $0x320] sm:$0xff]
    %v6100 = vld [vmem:[#allocation2 + $0x328] sm:$0xff]
    %v6101 = vld [vmem:[#allocation2 + $0x330] sm:$0xff]
    %v6102 = vld [vmem:[#allocation2 + $0x338] sm:$0xff]
    %v6103 = vld [vmem:[#allocation2 + $0x340] sm:$0xff]
    %v6104 = vld [vmem:[#allocation2 + $0x348] sm:$0xff]
    %v6105 = vld [vmem:[#allocation2 + $0x350] sm:$0xff]
    %v6106 = vld [vmem:[#allocation2 + $0x358] sm:$0xff]
    %v6107 = vld [vmem:[#allocation2 + $0x360] sm:$0xff]
    %v6108 = vld [vmem:[#allocation2 + $0x368] sm:$0xff]
    %v6109 = vld [vmem:[#allocation2 + $0x370] sm:$0xff]
    %v6110 = vld [vmem:[#allocation2 + $0x378] sm:$0xff]
    %v6111 = vld [vmem:[#allocation2 + $0x380] sm:$0xff]
    %v6112 = vld [vmem:[#allocation2 + $0x388] sm:$0xff]
    %v6113 = vld [vmem:[#allocation2 + $0x390] sm:$0xff]
    %v6114 = vld [vmem:[#allocation2 + $0x398] sm:$0xff]
    %v6115 = vld [vmem:[#allocation2 + $0x3a0] sm:$0xff]
    %v6116 = vld [vmem:[#allocation2 + $0x3a8] sm:$0xff]
    %v6117 = vld [vmem:[#allocation2 + $0x3b0] sm:$0xff]
    %v6118 = vld [vmem:[#allocation2 + $0x3b8] sm:$0xff]
    %v6119 = vld [vmem:[#allocation2 + $0x3c0] sm:$0xff]
    %v6120 = vld [vmem:[#allocation2 + $0x3c8] sm:$0xff]
    %v6121 = vld [vmem:[#allocation2 + $0x3d0] sm:$0xff]
    %v6122 = vld [vmem:[#allocation2 + $0x3d8] sm:$0xff]
    %v6123 = vld [vmem:[#allocation2 + $0x3e0] sm:$0xff]
    %v6124 = vld [vmem:[#allocation2 + $0x3e8] sm:$0xff]
    %v6125 = vld [vmem:[#allocation2 + $0x3f0] sm:$0xff]
    %v6126 = vld [vmem:[#allocation2 + $0x3f8] sm:$0xff]
    %v6127 = vld [vmem:[#allocation2 + $0x400] sm:$0xff]
    %v6128 = vld [vmem:[#allocation2 + $0x408] sm:$0xff]
    %v6129 = vld [vmem:[#allocation2 + $0x410] sm:$0xff]
    %v6130 = vld [vmem:[#allocation2 + $0x418] sm:$0xff]
    %v6131 = vld [vmem:[#allocation2 + $0x420] sm:$0xff]
    %v6132 = vld [vmem:[#allocation2 + $0x428] sm:$0xff]
    %v6133 = vld [vmem:[#allocation2 + $0x430] sm:$0xff]
    %v6134 = vld [vmem:[#allocation2 + $0x438] sm:$0xff]
    %v6135 = vld [vmem:[#allocation2 + $0x440] sm:$0xff]
    %v6136 = vld [vmem:[#allocation2 + $0x448] sm:$0xff]
    %v6137 = vld [vmem:[#allocation2 + $0x450] sm:$0xff]
    %v6138 = vld [vmem:[#allocation2 + $0x458] sm:$0xff]
    %v6139 = vld [vmem:[#allocation2 + $0x460] sm:$0xff]
    %v6140 = vld [vmem:[#allocation2 + $0x468] sm:$0xff]
    %v6141 = vld [vmem:[#allocation2 + $0x470] sm:$0xff]
    %v6142 = vld [vmem:[#allocation2 + $0x478] sm:$0xff]
    %v6143 = vld [vmem:[#allocation2 + $0x480] sm:$0xff]
    %v6144 = vld [vmem:[#allocation2 + $0x488] sm:$0xff]
    %v6145 = vld [vmem:[#allocation2 + $0x490] sm:$0xff]
    %v6146 = vld [vmem:[#allocation2 + $0x498] sm:$0xff]
    %v6147 = vld [vmem:[#allocation2 + $0x4a0] sm:$0xff]
    %v6148 = vld [vmem:[#allocation2 + $0x4a8] sm:$0xff]
    %v6149 = vld [vmem:[#allocation2 + $0x4b0] sm:$0xff]
    %v6150 = vld [vmem:[#allocation2 + $0x4b8] sm:$0xff]
    %v6151 = vld [vmem:[#allocation2 + $0x4c0] sm:$0xff]
    %v6152 = vld [vmem:[#allocation2 + $0x4c8] sm:$0xff]
    %v6153 = vld [vmem:[#allocation2 + $0x4d0] sm:$0xff]
    %v6154 = vld [vmem:[#allocation2 + $0x4d8] sm:$0xff]
    %v6155 = vld [vmem:[#allocation2 + $0x4e0] sm:$0xff]
    %v6156 = vld [vmem:[#allocation2 + $0x4e8] sm:$0xff]
    %v6157 = vld [vmem:[#allocation2 + $0x4f0] sm:$0xff]
    %v6158 = vld [vmem:[#allocation2 + $0x4f8] sm:$0xff]
    %v6159 = vld [vmem:[#allocation2 + $0x500] sm:$0xff]
    %v6160 = vld [vmem:[#allocation2 + $0x508] sm:$0xff]
    %v6161 = vld [vmem:[#allocation2 + $0x510] sm:$0xff]
    %v6162 = vld [vmem:[#allocation2 + $0x518] sm:$0xff]
    %v6163 = vld [vmem:[#allocation2 + $0x520] sm:$0xff]
    %v6164 = vld [vmem:[#allocation2 + $0x528] sm:$0xff]
    %v6165 = vld [vmem:[#allocation2 + $0x530] sm:$0xff]
    %v6166 = vld [vmem:[#allocation2 + $0x538] sm:$0xff]
    %v6167 = vld [vmem:[#allocation2 + $0x540] sm:$0xff]
    %v6168 = vld [vmem:[#allocation2 + $0x548] sm:$0xff]
    %v6169 = vld [vmem:[#allocation2 + $0x550] sm:$0xff]
    %v6170 = vld [vmem:[#allocation2 + $0x558] sm:$0xff]
    %v6171 = vld [vmem:[#allocation2 + $0x560] sm:$0xff]
    %v6172 = vld [vmem:[#allocation2 + $0x568] sm:$0xff]
    %v6173 = vld [vmem:[#allocation2 + $0x570] sm:$0xff]
    %v6174 = vld [vmem:[#allocation2 + $0x578] sm:$0xff]
    %v6175 = vld [vmem:[#allocation2 + $0x580] sm:$0xff]
    %v6176 = vld [vmem:[#allocation2 + $0x588] sm:$0xff]
    %v6177 = vld [vmem:[#allocation2 + $0x590] sm:$0xff]
    %v6178 = vld [vmem:[#allocation2 + $0x598] sm:$0xff]
    %v6179 = vld [vmem:[#allocation2 + $0x5a0] sm:$0xff]
    %v6180 = vld [vmem:[#allocation2 + $0x5a8] sm:$0xff]
    %v6181 = vld [vmem:[#allocation2 + $0x5b0] sm:$0xff]
    %v6182 = vld [vmem:[#allocation2 + $0x5b8] sm:$0xff]
    %v6183 = vld [vmem:[#allocation2 + $0x5c0] sm:$0xff]
    %v6184 = vld [vmem:[#allocation2 + $0x5c8] sm:$0xff]
    %v6185 = vld [vmem:[#allocation2 + $0x5d0] sm:$0xff]
    %v6186 = vld [vmem:[#allocation2 + $0x5d8] sm:$0xff]
    %v6187 = vld [vmem:[#allocation2 + $0x5e0] sm:$0xff]
    %v6188 = vld [vmem:[#allocation2 + $0x5e8] sm:$0xff]
    %v6189 = vld [vmem:[#allocation2 + $0x5f0] sm:$0xff]
    %v6190 = vld [vmem:[#allocation2 + $0x5f8] sm:$0xff]
    %v6191 = vld [vmem:[#allocation2 + $0x600] sm:$0xff]
    %v6192 = vld [vmem:[#allocation2 + $0x608] sm:$0xff]
    %v6193 = vld [vmem:[#allocation2 + $0x610] sm:$0xff]
    %v6194 = vld [vmem:[#allocation2 + $0x618] sm:$0xff]
    %v6195 = vld [vmem:[#allocation2 + $0x620] sm:$0xff]
    %v6196 = vld [vmem:[#allocation2 + $0x628] sm:$0xff]
    %v6197 = vld [vmem:[#allocation2 + $0x630] sm:$0xff]
    %v6198 = vld [vmem:[#allocation2 + $0x638] sm:$0xff]
    %v6199 = vld [vmem:[#allocation2 + $0x640] sm:$0xff]
    %v6200 = vld [vmem:[#allocation2 + $0x648] sm:$0xff]
    %v6201 = vld [vmem:[#allocation2 + $0x650] sm:$0xff]
    %v6202 = vld [vmem:[#allocation2 + $0x658] sm:$0xff]
    %v6203 = vld [vmem:[#allocation2 + $0x660] sm:$0xff]
    %v6204 = vld [vmem:[#allocation2 + $0x668] sm:$0xff]
    %v6205 = vld [vmem:[#allocation2 + $0x670] sm:$0xff]
    %v6206 = vld [vmem:[#allocation2 + $0x678] sm:$0xff]
    %v6207 = vld [vmem:[#allocation2 + $0x680] sm:$0xff]
    %v6208 = vld [vmem:[#allocation2 + $0x688] sm:$0xff]
    %v6209 = vld [vmem:[#allocation2 + $0x690] sm:$0xff]
    %v6210 = vld [vmem:[#allocation2 + $0x698] sm:$0xff]
    %v6211 = vld [vmem:[#allocation2 + $0x6a0] sm:$0xff]
    %v6212 = vld [vmem:[#allocation2 + $0x6a8] sm:$0xff]
    %v6213 = vld [vmem:[#allocation2 + $0x6b0] sm:$0xff]
    %v6214 = vld [vmem:[#allocation2 + $0x6b8] sm:$0xff]
    %v6215 = vld [vmem:[#allocation2 + $0x6c0] sm:$0xff]
    %v6216 = vld [vmem:[#allocation2 + $0x6c8] sm:$0xff]
    %v6217 = vld [vmem:[#allocation2 + $0x6d0] sm:$0xff]
    %v6218 = vld [vmem:[#allocation2 + $0x6d8] sm:$0xff]
    %v6219 = vld [vmem:[#allocation2 + $0x6e0] sm:$0xff]
    %v6220 = vld [vmem:[#allocation2 + $0x6e8] sm:$0xff]
    %v6221 = vld [vmem:[#allocation2 + $0x6f0] sm:$0xff]
    %v6222 = vld [vmem:[#allocation2 + $0x6f8] sm:$0xff]
    %v6223 = vld [vmem:[#allocation2 + $0x700] sm:$0xff]
    %v6224 = vld [vmem:[#allocation2 + $0x708] sm:$0xff]
    %v6225 = vld [vmem:[#allocation2 + $0x710] sm:$0xff]
    %v6226 = vld [vmem:[#allocation2 + $0x718] sm:$0xff]
    %v6227 = vld [vmem:[#allocation2 + $0x720] sm:$0xff]
    %v6228 = vld [vmem:[#allocation2 + $0x728] sm:$0xff]
    %v6229 = vld [vmem:[#allocation2 + $0x730] sm:$0xff]
    %v6230 = vld [vmem:[#allocation2 + $0x738] sm:$0xff]
    %v6231 = vld [vmem:[#allocation2 + $0x740] sm:$0xff]
    %v6232 = vld [vmem:[#allocation2 + $0x748] sm:$0xff]
    %v6233 = vld [vmem:[#allocation2 + $0x750] sm:$0xff]
    %v6234 = vld [vmem:[#allocation2 + $0x758] sm:$0xff]
    %v6235 = vld [vmem:[#allocation2 + $0x760] sm:$0xff]
    %v6236 = vld [vmem:[#allocation2 + $0x768] sm:$0xff]
    %v6237 = vld [vmem:[#allocation2 + $0x770] sm:$0xff]
    %v6238 = vld [vmem:[#allocation2 + $0x778] sm:$0xff]
    %v6239 = vld [vmem:[#allocation2 + $0x780] sm:$0xff]
    %v6240 = vld [vmem:[#allocation2 + $0x788] sm:$0xff]
    %v6241 = vld [vmem:[#allocation2 + $0x790] sm:$0xff]
    %v6242 = vld [vmem:[#allocation2 + $0x798] sm:$0xff]
    %v6243 = vld [vmem:[#allocation2 + $0x7a0] sm:$0xff]
    %v6244 = vld [vmem:[#allocation2 + $0x7a8] sm:$0xff]
    %v6245 = vld [vmem:[#allocation2 + $0x7b0] sm:$0xff]
    %v6246 = vld [vmem:[#allocation2 + $0x7b8] sm:$0xff]
    %v6247 = vld [vmem:[#allocation2 + $0x7c0] sm:$0xff]
    %v6248 = vld [vmem:[#allocation2 + $0x7c8] sm:$0xff]
    %v6249 = vld [vmem:[#allocation2 + $0x7d0] sm:$0xff]
    %v6250 = vld [vmem:[#allocation2 + $0x7d8] sm:$0xff]
    %v6251 = vld [vmem:[#allocation2 + $0x7e0] sm:$0xff]
    %v6252 = vld [vmem:[#allocation2 + $0x7e8] sm:$0xff]
    %v6253 = vld [vmem:[#allocation2 + $0x7f0] sm:$0xff]
    %v6254 = vld [vmem:[#allocation2 + $0x7f8] sm:$0xff]
    %v6255 = vld [vmem:[#allocation2 + $0x800] sm:$0xff]
    %v6256 = vld [vmem:[#allocation2 + $0x808] sm:$0xff]
    %v6257 = vld [vmem:[#allocation2 + $0x810] sm:$0xff]
    %v6258 = vld [vmem:[#allocation2 + $0x818] sm:$0xff]
    %v6259 = vld [vmem:[#allocation2 + $0x820] sm:$0xff]
    %v6260 = vld [vmem:[#allocation2 + $0x828] sm:$0xff]
    %v6261 = vld [vmem:[#allocation2 + $0x830] sm:$0xff]
    %v6262 = vld [vmem:[#allocation2 + $0x838] sm:$0xff]
    %v6263 = vld [vmem:[#allocation2 + $0x840] sm:$0xff]
    %v6264 = vld [vmem:[#allocation2 + $0x848] sm:$0xff]
    %v6265 = vld [vmem:[#allocation2 + $0x850] sm:$0xff]
    %v6266 = vld [vmem:[#allocation2 + $0x858] sm:$0xff]
    %v6267 = vld [vmem:[#allocation2 + $0x860] sm:$0xff]
    %v6268 = vld [vmem:[#allocation2 + $0x868] sm:$0xff]
    %v6269 = vld [vmem:[#allocation2 + $0x870] sm:$0xff]
    %v6270 = vld [vmem:[#allocation2 + $0x878] sm:$0xff]
    %v6271 = vld [vmem:[#allocation2 + $0x880] sm:$0xff]
    %v6272 = vld [vmem:[#allocation2 + $0x888] sm:$0xff]
    %v6273 = vld [vmem:[#allocation2 + $0x890] sm:$0xff]
    %v6274 = vld [vmem:[#allocation2 + $0x898] sm:$0xff]
    %v6275 = vld [vmem:[#allocation2 + $0x8a0] sm:$0xff]
    %v6276 = vld [vmem:[#allocation2 + $0x8a8] sm:$0xff]
    %v6277 = vld [vmem:[#allocation2 + $0x8b0] sm:$0xff]
    %v6278 = vld [vmem:[#allocation2 + $0x8b8] sm:$0xff]
    %v6279 = vld [vmem:[#allocation2 + $0x8c0] sm:$0xff]
    %v6280 = vld [vmem:[#allocation2 + $0x8c8] sm:$0xff]
    %v6281 = vld [vmem:[#allocation2 + $0x8d0] sm:$0xff]
    %v6282 = vld [vmem:[#allocation2 + $0x8d8] sm:$0xff]
    %v6283 = vld [vmem:[#allocation2 + $0x8e0] sm:$0xff]
    %v6284 = vld [vmem:[#allocation2 + $0x8e8] sm:$0xff]
    %v6285 = vld [vmem:[#allocation2 + $0x8f0] sm:$0xff]
    %v6286 = vld [vmem:[#allocation2 + $0x8f8] sm:$0xff]
    %v6287 = vld [vmem:[#allocation2 + $0x900] sm:$0xff]
    %v6288 = vld [vmem:[#allocation2 + $0x908] sm:$0xff]
    %v6289 = vld [vmem:[#allocation2 + $0x910] sm:$0xff]
    %v6290 = vld [vmem:[#allocation2 + $0x918] sm:$0xff]
    %v6291 = vld [vmem:[#allocation2 + $0x920] sm:$0xff]
    %v6292 = vld [vmem:[#allocation2 + $0x928] sm:$0xff]
    %v6293 = vld [vmem:[#allocation2 + $0x930] sm:$0xff]
    %v6294 = vld [vmem:[#allocation2 + $0x938] sm:$0xff]
    %v6295 = vld [vmem:[#allocation2 + $0x940] sm:$0xff]
    %v6296 = vld [vmem:[#allocation2 + $0x948] sm:$0xff]
    %v6297 = vld [vmem:[#allocation2 + $0x950] sm:$0xff]
    %v6298 = vld [vmem:[#allocation2 + $0x958] sm:$0xff]
    %v6299 = vld [vmem:[#allocation2 + $0x960] sm:$0xff]
    %v6300 = vld [vmem:[#allocation2 + $0x968] sm:$0xff]
    %v6301 = vld [vmem:[#allocation2 + $0x970] sm:$0xff]
    %v6302 = vld [vmem:[#allocation2 + $0x978] sm:$0xff]
    %v6303 = vld [vmem:[#allocation2 + $0x980] sm:$0xff]
    %v6304 = vld [vmem:[#allocation2 + $0x988] sm:$0xff]
    %v6305 = vld [vmem:[#allocation2 + $0x990] sm:$0xff]
    %v6306 = vld [vmem:[#allocation2 + $0x998] sm:$0xff]
    %v6307 = vld [vmem:[#allocation2 + $0x9a0] sm:$0xff]
    %v6308 = vld [vmem:[#allocation2 + $0x9a8] sm:$0xff]
    %v6309 = vld [vmem:[#allocation2 + $0x9b0] sm:$0xff]
    %v6310 = vld [vmem:[#allocation2 + $0x9b8] sm:$0xff]
    %v6311 = vld [vmem:[#allocation2 + $0x9c0] sm:$0xff]
    %v6312 = vld [vmem:[#allocation2 + $0x9c8] sm:$0xff]
    %v6313 = vld [vmem:[#allocation2 + $0x9d0] sm:$0xff]
    %v6314 = vld [vmem:[#allocation2 + $0x9d8] sm:$0xff]
    %v6315 = vld [vmem:[#allocation2 + $0x9e0] sm:$0xff]
    %v6316 = vld [vmem:[#allocation2 + $0x9e8] sm:$0xff]
    %v6317 = vld [vmem:[#allocation2 + $0x9f0] sm:$0xff]
    %v6318 = vld [vmem:[#allocation2 + $0x9f8] sm:$0xff]
    %v6319 = vld [vmem:[#allocation2 + $0xa00] sm:$0xff]
    %v6320 = vld [vmem:[#allocation2 + $0xa08] sm:$0xff]
    %v6321 = vld [vmem:[#allocation2 + $0xa10] sm:$0xff]
    %v6322 = vld [vmem:[#allocation2 + $0xa18] sm:$0xff]
    %v6323 = vld [vmem:[#allocation2 + $0xa20] sm:$0xff]
    %v6324 = vld [vmem:[#allocation2 + $0xa28] sm:$0xff]
    %v6325 = vld [vmem:[#allocation2 + $0xa30] sm:$0xff]
    %v6326 = vld [vmem:[#allocation2 + $0xa38] sm:$0xff]
    %v6327 = vld [vmem:[#allocation2 + $0xa40] sm:$0xff]
    %v6328 = vld [vmem:[#allocation2 + $0xa48] sm:$0xff]
    %v6329 = vld [vmem:[#allocation2 + $0xa50] sm:$0xff]
    %v6330 = vld [vmem:[#allocation2 + $0xa58] sm:$0xff]
    %v6331 = vld [vmem:[#allocation2 + $0xa60] sm:$0xff]
    %v6332 = vld [vmem:[#allocation2 + $0xa68] sm:$0xff]
    %v6333 = vld [vmem:[#allocation2 + $0xa70] sm:$0xff]
    %v6334 = vld [vmem:[#allocation2 + $0xa78] sm:$0xff]
    %v6335 = vld [vmem:[#allocation2 + $0xa80] sm:$0xff]
    %v6336 = vld [vmem:[#allocation2 + $0xa88] sm:$0xff]
    %v6337 = vld [vmem:[#allocation2 + $0xa90] sm:$0xff]
    %v6338 = vld [vmem:[#allocation2 + $0xa98] sm:$0xff]
    %v6339 = vld [vmem:[#allocation2 + $0xaa0] sm:$0xff]
    %v6340 = vld [vmem:[#allocation2 + $0xaa8] sm:$0xff]
    %v6341 = vld [vmem:[#allocation2 + $0xab0] sm:$0xff]
    %v6342 = vld [vmem:[#allocation2 + $0xab8] sm:$0xff]
    %v6343 = vld [vmem:[#allocation2 + $0xac0] sm:$0xff]
    %v6344 = vld [vmem:[#allocation2 + $0xac8] sm:$0xff]
    %v6345 = vld [vmem:[#allocation2 + $0xad0] sm:$0xff]
    %v6346 = vld [vmem:[#allocation2 + $0xad8] sm:$0xff]
    %v6347 = vld [vmem:[#allocation2 + $0xae0] sm:$0xff]
    %v6348 = vld [vmem:[#allocation2 + $0xae8] sm:$0xff]
    %v6349 = vld [vmem:[#allocation2 + $0xaf0] sm:$0xff]
    %v6350 = vld [vmem:[#allocation2 + $0xaf8] sm:$0xff]
    %v6351 = vld [vmem:[#allocation2 + $0xb00] sm:$0xff]
    %v6352 = vld [vmem:[#allocation2 + $0xb08] sm:$0xff]
    %v6353 = vld [vmem:[#allocation2 + $0xb10] sm:$0xff]
    %v6354 = vld [vmem:[#allocation2 + $0xb18] sm:$0xff]
    %v6355 = vld [vmem:[#allocation2 + $0xb20] sm:$0xff]
    %v6356 = vld [vmem:[#allocation2 + $0xb28] sm:$0xff]
    %v6357 = vld [vmem:[#allocation2 + $0xb30] sm:$0xff]
    %v6358 = vld [vmem:[#allocation2 + $0xb38] sm:$0xff]
    %v6359 = vld [vmem:[#allocation2 + $0xb40] sm:$0xff]
    %v6360 = vld [vmem:[#allocation2 + $0xb48] sm:$0xff]
    %v6361 = vld [vmem:[#allocation2 + $0xb50] sm:$0xff]
    %v6362 = vld [vmem:[#allocation2 + $0xb58] sm:$0xff]
    %v6363 = vld [vmem:[#allocation2 + $0xb60] sm:$0xff]
    %v6364 = vld [vmem:[#allocation2 + $0xb68] sm:$0xff]
    %v6365 = vld [vmem:[#allocation2 + $0xb70] sm:$0xff]
    %v6366 = vld [vmem:[#allocation2 + $0xb78] sm:$0xff]
    %v6367 = vld [vmem:[#allocation2 + $0xb80] sm:$0xff]
    %v6368 = vld [vmem:[#allocation2 + $0xb88] sm:$0xff]
    %v6369 = vld [vmem:[#allocation2 + $0xb90] sm:$0xff]
    %v6370 = vld [vmem:[#allocation2 + $0xb98] sm:$0xff]
    %v6371 = vld [vmem:[#allocation2 + $0xba0] sm:$0xff]
    %v6372 = vld [vmem:[#allocation2 + $0xba8] sm:$0xff]
    %v6373 = vld [vmem:[#allocation2 + $0xbb0] sm:$0xff]
    %v6374 = vld [vmem:[#allocation2 + $0xbb8] sm:$0xff]
    %v6375 = vld [vmem:[#allocation2 + $0xbc0] sm:$0xff]
    %v6376 = vld [vmem:[#allocation2 + $0xbc8] sm:$0xff]
    %v6377 = vld [vmem:[#allocation2 + $0xbd0] sm:$0xff]
    %v6378 = vld [vmem:[#allocation2 + $0xbd8] sm:$0xff]
    %v6379 = vld [vmem:[#allocation2 + $0xbe0] sm:$0xff]
    %v6380 = vld [vmem:[#allocation2 + $0xbe8] sm:$0xff]
    %v6381 = vld [vmem:[#allocation2 + $0xbf0] sm:$0xff]
    %v6382 = vld [vmem:[#allocation2 + $0xbf8] sm:$0xff]
    %v6383 = vld [vmem:[#allocation2 + $0xc00] sm:$0xff]
    %v6384 = vld [vmem:[#allocation2 + $0xc08] sm:$0xff]
    %v6385 = vld [vmem:[#allocation2 + $0xc10] sm:$0xff]
    %v6386 = vld [vmem:[#allocation2 + $0xc18] sm:$0xff]
    %v6387 = vld [vmem:[#allocation2 + $0xc20] sm:$0xff]
    %v6388 = vld [vmem:[#allocation2 + $0xc28] sm:$0xff]
    %v6389 = vld [vmem:[#allocation2 + $0xc30] sm:$0xff]
    %v6390 = vld [vmem:[#allocation2 + $0xc38] sm:$0xff]
    %v6391 = vld [vmem:[#allocation2 + $0xc40] sm:$0xff]
    %v6392 = vld [vmem:[#allocation2 + $0xc48] sm:$0xff]
    %v6393 = vld [vmem:[#allocation2 + $0xc50] sm:$0xff]
    %v6394 = vld [vmem:[#allocation2 + $0xc58] sm:$0xff]
    %v6395 = vld [vmem:[#allocation2 + $0xc60] sm:$0xff]
    %v6396 = vld [vmem:[#allocation2 + $0xc68] sm:$0xff]
    %v6397 = vld [vmem:[#allocation2 + $0xc70] sm:$0xff]
    %v6398 = vld [vmem:[#allocation2 + $0xc78] sm:$0xff]
    %v6399 = vld [vmem:[#allocation2 + $0xc80] sm:$0xff]
    %v6400 = vld [vmem:[#allocation2 + $0xc88] sm:$0xff]
    %v6401 = vld [vmem:[#allocation2 + $0xc90] sm:$0xff]
    %v6402 = vld [vmem:[#allocation2 + $0xc98] sm:$0xff]
    %v6403 = vld [vmem:[#allocation2 + $0xca0] sm:$0xff]
    %v6404 = vld [vmem:[#allocation2 + $0xca8] sm:$0xff]
    %v6405 = vld [vmem:[#allocation2 + $0xcb0] sm:$0xff]
    %v6406 = vld [vmem:[#allocation2 + $0xcb8] sm:$0xff]
    %v6407 = vld [vmem:[#allocation2 + $0xcc0] sm:$0xff]
    %v6408 = vld [vmem:[#allocation2 + $0xcc8] sm:$0xff]
    %v6409 = vld [vmem:[#allocation2 + $0xcd0] sm:$0xff]
    %v6410 = vld [vmem:[#allocation2 + $0xcd8] sm:$0xff]
    %v6411 = vld [vmem:[#allocation2 + $0xce0] sm:$0xff]
    %v6412 = vld [vmem:[#allocation2 + $0xce8] sm:$0xff]
    %v6413 = vld [vmem:[#allocation2 + $0xcf0] sm:$0xff]
    %v6414 = vld [vmem:[#allocation2 + $0xcf8] sm:$0xff]
    %v6415 = vld [vmem:[#allocation2 + $0xd00] sm:$0xff]
    %v6416 = vld [vmem:[#allocation2 + $0xd08] sm:$0xff]
    %v6417 = vld [vmem:[#allocation2 + $0xd10] sm:$0xff]
    %v6418 = vld [vmem:[#allocation2 + $0xd18] sm:$0xff]
    %v6419 = vld [vmem:[#allocation2 + $0xd20] sm:$0xff]
    %v6420 = vld [vmem:[#allocation2 + $0xd28] sm:$0xff]
    %v6421 = vld [vmem:[#allocation2 + $0xd30] sm:$0xff]
    %v6422 = vld [vmem:[#allocation2 + $0xd38] sm:$0xff]
    %v6423 = vld [vmem:[#allocation2 + $0xd40] sm:$0xff]
    %v6424 = vld [vmem:[#allocation2 + $0xd48] sm:$0xff]
    %v6425 = vld [vmem:[#allocation2 + $0xd50] sm:$0xff]
    %v6426 = vld [vmem:[#allocation2 + $0xd58] sm:$0xff]
    %v6427 = vld [vmem:[#allocation2 + $0xd60] sm:$0xff]
    %v6428 = vld [vmem:[#allocation2 + $0xd68] sm:$0xff]
    %v6429 = vld [vmem:[#allocation2 + $0xd70] sm:$0xff]
    %v6430 = vld [vmem:[#allocation2 + $0xd78] sm:$0xff]
    %v6431 = vld [vmem:[#allocation2 + $0xd80] sm:$0xff]
    %v6432 = vld [vmem:[#allocation2 + $0xd88] sm:$0xff]
    %v6433 = vld [vmem:[#allocation2 + $0xd90] sm:$0xff]
    %v6434 = vld [vmem:[#allocation2 + $0xd98] sm:$0xff]
    %v6435 = vld [vmem:[#allocation2 + $0xda0] sm:$0xff]
    %v6436 = vld [vmem:[#allocation2 + $0xda8] sm:$0xff]
    %v6437 = vld [vmem:[#allocation2 + $0xdb0] sm:$0xff]
    %v6438 = vld [vmem:[#allocation2 + $0xdb8] sm:$0xff]
    %v6439 = vld [vmem:[#allocation2 + $0xdc0] sm:$0xff]
    %v6440 = vld [vmem:[#allocation2 + $0xdc8] sm:$0xff]
    %v6441 = vld [vmem:[#allocation2 + $0xdd0] sm:$0xff]
    %v6442 = vld [vmem:[#allocation2 + $0xdd8] sm:$0xff]
    %v6443 = vld [vmem:[#allocation2 + $0xde0] sm:$0xff]
    %v6444 = vld [vmem:[#allocation2 + $0xde8] sm:$0xff]
    %v6445 = vld [vmem:[#allocation2 + $0xdf0] sm:$0xff]
    %v6446 = vld [vmem:[#allocation2 + $0xdf8] sm:$0xff]
    %v6447 = vld [vmem:[#allocation2 + $0xe00] sm:$0xff]
    %v6448 = vld [vmem:[#allocation2 + $0xe08] sm:$0xff]
    %v6449 = vld [vmem:[#allocation2 + $0xe10] sm:$0xff]
    %v6450 = vld [vmem:[#allocation2 + $0xe18] sm:$0xff]
    %v6451 = vld [vmem:[#allocation2 + $0xe20] sm:$0xff]
    %v6452 = vld [vmem:[#allocation2 + $0xe28] sm:$0xff]
    %v6453 = vld [vmem:[#allocation2 + $0xe30] sm:$0xff]
    %v6454 = vld [vmem:[#allocation2 + $0xe38] sm:$0xff]
    %v6455 = vld [vmem:[#allocation2 + $0xe40] sm:$0xff]
    %v6456 = vld [vmem:[#allocation2 + $0xe48] sm:$0xff]
    %v6457 = vld [vmem:[#allocation2 + $0xe50] sm:$0xff]
    %v6458 = vld [vmem:[#allocation2 + $0xe58] sm:$0xff]
    %v6459 = vld [vmem:[#allocation2 + $0xe60] sm:$0xff]
    %v6460 = vld [vmem:[#allocation2 + $0xe68] sm:$0xff]
    %v6461 = vld [vmem:[#allocation2 + $0xe70] sm:$0xff]
    %v6462 = vld [vmem:[#allocation2 + $0xe78] sm:$0xff]
    %v6463 = vld [vmem:[#allocation2 + $0xe80] sm:$0xff]
    %v6464 = vld [vmem:[#allocation2 + $0xe88] sm:$0xff]
    %v6465 = vld [vmem:[#allocation2 + $0xe90] sm:$0xff]
    %v6466 = vld [vmem:[#allocation2 + $0xe98] sm:$0xff]
    %v6467 = vld [vmem:[#allocation2 + $0xea0] sm:$0xff]
    %v6468 = vld [vmem:[#allocation2 + $0xea8] sm:$0xff]
    %v6469 = vld [vmem:[#allocation2 + $0xeb0] sm:$0xff]
    %v6470 = vld [vmem:[#allocation2 + $0xeb8] sm:$0xff]
    %v6471 = vld [vmem:[#allocation2 + $0xec0] sm:$0xff]
    %v6472 = vld [vmem:[#allocation2 + $0xec8] sm:$0xff]
    %v6473 = vld [vmem:[#allocation2 + $0xed0] sm:$0xff]
    %v6474 = vld [vmem:[#allocation2 + $0xed8] sm:$0xff]
    %v6475 = vld [vmem:[#allocation2 + $0xee0] sm:$0xff]
    %v6476 = vld [vmem:[#allocation2 + $0xee8] sm:$0xff]
    %v6477 = vld [vmem:[#allocation2 + $0xef0] sm:$0xff]
    %v6478 = vld [vmem:[#allocation2 + $0xef8] sm:$0xff]
    %v6479 = vld [vmem:[#allocation2 + $0xf00] sm:$0xff]
    %v6480 = vld [vmem:[#allocation2 + $0xf08] sm:$0xff]
    %v6481 = vld [vmem:[#allocation2 + $0xf10] sm:$0xff]
    %v6482 = vld [vmem:[#allocation2 + $0xf18] sm:$0xff]
    %v6483 = vld [vmem:[#allocation2 + $0xf20] sm:$0xff]
    %v6484 = vld [vmem:[#allocation2 + $0xf28] sm:$0xff]
    %v6485 = vld [vmem:[#allocation2 + $0xf30] sm:$0xff]
    %v6486 = vld [vmem:[#allocation2 + $0xf38] sm:$0xff]
    %v6487 = vld [vmem:[#allocation2 + $0xf40] sm:$0xff]
    %v6488 = vld [vmem:[#allocation2 + $0xf48] sm:$0xff]
    %v6489 = vld [vmem:[#allocation2 + $0xf50] sm:$0xff]
    %v6490 = vld [vmem:[#allocation2 + $0xf58] sm:$0xff]
    %v6491 = vld [vmem:[#allocation2 + $0xf60] sm:$0xff]
    %v6492 = vld [vmem:[#allocation2 + $0xf68] sm:$0xff]
    %v6493 = vld [vmem:[#allocation2 + $0xf70] sm:$0xff]
    %v6494 = vld [vmem:[#allocation2 + $0xf78] sm:$0xff]
    %v6495 = vld [vmem:[#allocation2 + $0xf80] sm:$0xff]
    %v6496 = vld [vmem:[#allocation2 + $0xf88] sm:$0xff]
    %v6497 = vld [vmem:[#allocation2 + $0xf90] sm:$0xff]
    %v6498 = vld [vmem:[#allocation2 + $0xf98] sm:$0xff]
    %v6499 = vld [vmem:[#allocation2 + $0xfa0] sm:$0xff]
    %v6500 = vld [vmem:[#allocation2 + $0xfa8] sm:$0xff]
    %v6501 = vld [vmem:[#allocation2 + $0xfb0] sm:$0xff]
    %v6502 = vld [vmem:[#allocation2 + $0xfb8] sm:$0xff]
    %v6503 = vld [vmem:[#allocation2 + $0xfc0] sm:$0xff]
    %v6504 = vld [vmem:[#allocation2 + $0xfc8] sm:$0xff]
    %v6505 = vld [vmem:[#allocation2 + $0xfd0] sm:$0xff]
    %v6506 = vld [vmem:[#allocation2 + $0xfd8] sm:$0xff]
    %v6507 = vld [vmem:[#allocation2 + $0xfe0] sm:$0xff]
    %v6508 = vld [vmem:[#allocation2 + $0xfe8] sm:$0xff]
    %v6509 = vld [vmem:[#allocation2 + $0xff0] sm:$0xff]
    %v6510 = vld [vmem:[#allocation2 + $0xff8] sm:$0xff]
    %v6511 = vld [vmem:[#allocation2 + $0x1000] sm:$0xff]
    %v6512 = vld [vmem:[#allocation2 + $0x1008] sm:$0xff]
    %v6513 = vld [vmem:[#allocation2 + $0x1010] sm:$0xff]
    %v6514 = vld [vmem:[#allocation2 + $0x1018] sm:$0xff]
    %v6515 = vld [vmem:[#allocation2 + $0x1020] sm:$0xff]
    %v6516 = vld [vmem:[#allocation2 + $0x1028] sm:$0xff]
    %v6517 = vld [vmem:[#allocation2 + $0x1030] sm:$0xff]
    %v6518 = vld [vmem:[#allocation2 + $0x1038] sm:$0xff]
    %v6519 = vld [vmem:[#allocation2 + $0x1040] sm:$0xff]
    %v6520 = vld [vmem:[#allocation2 + $0x1048] sm:$0xff]
    %v6521 = vld [vmem:[#allocation2 + $0x1050] sm:$0xff]
    %v6522 = vld [vmem:[#allocation2 + $0x1058] sm:$0xff]
    %v6523 = vld [vmem:[#allocation2 + $0x1060] sm:$0xff]
    %v6524 = vld [vmem:[#allocation2 + $0x1068] sm:$0xff]
    %v6525 = vld [vmem:[#allocation2 + $0x1070] sm:$0xff]
    %v6526 = vld [vmem:[#allocation2 + $0x1078] sm:$0xff]
    %v6527 = vld [vmem:[#allocation2 + $0x1080] sm:$0xff]
    %v6528 = vld [vmem:[#allocation2 + $0x1088] sm:$0xff]
    %v6529 = vld [vmem:[#allocation2 + $0x1090] sm:$0xff]
    %v6530 = vld [vmem:[#allocation2 + $0x1098] sm:$0xff]
    %v6531 = vld [vmem:[#allocation2 + $0x10a0] sm:$0xff]
    %v6532 = vld [vmem:[#allocation2 + $0x10a8] sm:$0xff]
    %v6533 = vld [vmem:[#allocation2 + $0x10b0] sm:$0xff]
    %v6534 = vld [vmem:[#allocation2 + $0x10b8] sm:$0xff]
    %v6535 = vld [vmem:[#allocation2 + $0x10c0] sm:$0xff]
    %v6536 = vld [vmem:[#allocation2 + $0x10c8] sm:$0xff]
    %v6537 = vld [vmem:[#allocation2 + $0x10d0] sm:$0xff]
    %v6538 = vld [vmem:[#allocation2 + $0x10d8] sm:$0xff]
    %v6539 = vld [vmem:[#allocation2 + $0x10e0] sm:$0xff]
    %v6540 = vld [vmem:[#allocation2 + $0x10e8] sm:$0xff]
    %v6541 = vld [vmem:[#allocation2 + $0x10f0] sm:$0xff]
    %v6542 = vld [vmem:[#allocation2 + $0x10f8] sm:$0xff]
    %v6543 = vld [vmem:[#allocation2 + $0x1100] sm:$0xff]
    %v6544 = vld [vmem:[#allocation2 + $0x1108] sm:$0xff]
    %v6545 = vld [vmem:[#allocation2 + $0x1110] sm:$0xff]
    %v6546 = vld [vmem:[#allocation2 + $0x1118] sm:$0xff]
    %v6547 = vld [vmem:[#allocation2 + $0x1120] sm:$0xff]
    %v6548 = vld [vmem:[#allocation2 + $0x1128] sm:$0xff]
    %v6549 = vld [vmem:[#allocation2 + $0x1130] sm:$0xff]
    %v6550 = vld [vmem:[#allocation2 + $0x1138] sm:$0xff]
    %v6551 = vld [vmem:[#allocation2 + $0x1140] sm:$0xff]
    %v6552 = vld [vmem:[#allocation2 + $0x1148] sm:$0xff]
    %v6553 = vld [vmem:[#allocation2 + $0x1150] sm:$0xff]
    %v6554 = vld [vmem:[#allocation2 + $0x1158] sm:$0xff]
    %v6555 = vld [vmem:[#allocation2 + $0x1160] sm:$0xff]
    %v6556 = vld [vmem:[#allocation2 + $0x1168] sm:$0xff]
    %v6557 = vld [vmem:[#allocation2 + $0x1170] sm:$0xff]
    %v6558 = vld [vmem:[#allocation2 + $0x1178] sm:$0xff]
    %v6559 = vld [vmem:[#allocation2 + $0x1180] sm:$0xff]
    %v6560 = vld [vmem:[#allocation2 + $0x1188] sm:$0xff]
    %v6561 = vld [vmem:[#allocation2 + $0x1190] sm:$0xff]
    %v6562 = vld [vmem:[#allocation2 + $0x1198] sm:$0xff]
    %v6563 = vld [vmem:[#allocation2 + $0x11a0] sm:$0xff]
    %v6564 = vld [vmem:[#allocation2 + $0x11a8] sm:$0xff]
    %v6565 = vld [vmem:[#allocation2 + $0x11b0] sm:$0xff]
    %v6566 = vld [vmem:[#allocation2 + $0x11b8] sm:$0xff]
    %v6567 = vld [vmem:[#allocation2 + $0x11c0] sm:$0xff]
    %v6568 = vld [vmem:[#allocation2 + $0x11c8] sm:$0xff]
    %v6569 = vld [vmem:[#allocation2 + $0x11d0] sm:$0xff]
    %v6570 = vld [vmem:[#allocation2 + $0x11d8] sm:$0xff]
    %v6571 = vld [vmem:[#allocation2 + $0x11e0] sm:$0xff]
    %v6572 = vld [vmem:[#allocation2 + $0x11e8] sm:$0xff]
    %v6573 = vld [vmem:[#allocation2 + $0x11f0] sm:$0xff]
    %v6574 = vld [vmem:[#allocation2 + $0x11f8] sm:$0xff]
    %v6575 = vld [vmem:[#allocation2 + $0x1200] sm:$0xff]
    %v6576 = vld [vmem:[#allocation2 + $0x1208] sm:$0xff]
    %v6577 = vld [vmem:[#allocation2 + $0x1210] sm:$0xff]
    %v6578 = vld [vmem:[#allocation2 + $0x1218] sm:$0xff]
    %v6579 = vld [vmem:[#allocation2 + $0x1220] sm:$0xff]
    %v6580 = vld [vmem:[#allocation2 + $0x1228] sm:$0xff]
    %v6581 = vld [vmem:[#allocation2 + $0x1230] sm:$0xff]
    %v6582 = vld [vmem:[#allocation2 + $0x1238] sm:$0xff]
    %v6583 = vld [vmem:[#allocation2 + $0x1240] sm:$0xff]
    %v6584 = vld [vmem:[#allocation2 + $0x1248] sm:$0xff]
    %v6585 = vld [vmem:[#allocation2 + $0x1250] sm:$0xff]
    %v6586 = vld [vmem:[#allocation2 + $0x1258] sm:$0xff]
    %v6587 = vld [vmem:[#allocation2 + $0x1260] sm:$0xff]
    %v6588 = vld [vmem:[#allocation2 + $0x1268] sm:$0xff]
    %v6589 = vld [vmem:[#allocation2 + $0x1270] sm:$0xff]
    %v6590 = vld [vmem:[#allocation2 + $0x1278] sm:$0xff]
    %v6591 = vld [vmem:[#allocation2 + $0x1280] sm:$0xff]
    %v6592 = vld [vmem:[#allocation2 + $0x1288] sm:$0xff]
    %v6593 = vld [vmem:[#allocation2 + $0x1290] sm:$0xff]
    %v6594 = vld [vmem:[#allocation2 + $0x1298] sm:$0xff]
    %v6595 = vld [vmem:[#allocation2 + $0x12a0] sm:$0xff]
    %v6596 = vld [vmem:[#allocation2 + $0x12a8] sm:$0xff]
    %v6597 = vld [vmem:[#allocation2 + $0x12b0] sm:$0xff]
    %v6598 = vld [vmem:[#allocation2 + $0x12b8] sm:$0xff]
    %v6599 = vld [vmem:[#allocation2 + $0x12c0] sm:$0xff]
    %v6600 = vld [vmem:[#allocation2 + $0x12c8] sm:$0xff]
    %v6601 = vld [vmem:[#allocation2 + $0x12d0] sm:$0xff]
    %v6602 = vld [vmem:[#allocation2 + $0x12d8] sm:$0xff]
    %v6603 = vld [vmem:[#allocation2 + $0x12e0] sm:$0xff]
    %v6604 = vld [vmem:[#allocation2 + $0x12e8] sm:$0xff]
    %v6605 = vld [vmem:[#allocation2 + $0x12f0] sm:$0xff]
    %v6606 = vld [vmem:[#allocation2 + $0x12f8] sm:$0xff]
    %v6607 = vld [vmem:[#allocation2 + $0x1300] sm:$0xff]
    %v6608 = vld [vmem:[#allocation2 + $0x1308] sm:$0xff]
    %v6609 = vld [vmem:[#allocation2 + $0x1310] sm:$0xff]
    %v6610 = vld [vmem:[#allocation2 + $0x1318] sm:$0xff]
    %v6611 = vld [vmem:[#allocation2 + $0x1320] sm:$0xff]
    %v6612 = vld [vmem:[#allocation2 + $0x1328] sm:$0xff]
    %v6613 = vld [vmem:[#allocation2 + $0x1330] sm:$0xff]
    %v6614 = vld [vmem:[#allocation2 + $0x1338] sm:$0xff]
    %v6615 = vld [vmem:[#allocation2 + $0x1340] sm:$0xff]
    %v6616 = vld [vmem:[#allocation2 + $0x1348] sm:$0xff]
    %v6617 = vld [vmem:[#allocation2 + $0x1350] sm:$0xff]
    %v6618 = vld [vmem:[#allocation2 + $0x1358] sm:$0xff]
    %v6619 = vld [vmem:[#allocation2 + $0x1360] sm:$0xff]
    %v6620 = vld [vmem:[#allocation2 + $0x1368] sm:$0xff]
    %v6621 = vld [vmem:[#allocation2 + $0x1370] sm:$0xff]
    %v6622 = vld [vmem:[#allocation2 + $0x1378] sm:$0xff]
    %v6623 = vld [vmem:[#allocation2 + $0x1380] sm:$0xff]
    %v6624 = vld [vmem:[#allocation2 + $0x1388] sm:$0xff]
    %v6625 = vld [vmem:[#allocation2 + $0x1390] sm:$0xff]
    %v6626 = vld [vmem:[#allocation2 + $0x1398] sm:$0xff]
    %v6627 = vld [vmem:[#allocation2 + $0x13a0] sm:$0xff]
    %v6628 = vld [vmem:[#allocation2 + $0x13a8] sm:$0xff]
    %v6629 = vld [vmem:[#allocation2 + $0x13b0] sm:$0xff]
    %v6630 = vld [vmem:[#allocation2 + $0x13b8] sm:$0xff]
    %v6631 = vld [vmem:[#allocation2 + $0x13c0] sm:$0xff]
    %v6632 = vld [vmem:[#allocation2 + $0x13c8] sm:$0xff]
    %v6633 = vld [vmem:[#allocation2 + $0x13d0] sm:$0xff]
    %v6634 = vld [vmem:[#allocation2 + $0x13d8] sm:$0xff]
    %v6635 = vld [vmem:[#allocation2 + $0x13e0] sm:$0xff]
    %v6636 = vld [vmem:[#allocation2 + $0x13e8] sm:$0xff]
    %v6637 = vld [vmem:[#allocation2 + $0x13f0] sm:$0xff]
    %v6638 = vld [vmem:[#allocation2 + $0x13f8] sm:$0xff]
    %v6639 = vld [vmem:[#allocation2 + $0x1400] sm:$0xff]
    %v6640 = vld [vmem:[#allocation2 + $0x1408] sm:$0xff]
    %v6641 = vld [vmem:[#allocation2 + $0x1410] sm:$0xff]
    %v6642 = vld [vmem:[#allocation2 + $0x1418] sm:$0xff]
    %v6643 = vld [vmem:[#allocation2 + $0x1420] sm:$0xff]
    %v6644 = vld [vmem:[#allocation2 + $0x1428] sm:$0xff]
    %v6645 = vld [vmem:[#allocation2 + $0x1430] sm:$0xff]
    %v6646 = vld [vmem:[#allocation2 + $0x1438] sm:$0xff]
    %v6647 = vld [vmem:[#allocation2 + $0x1440] sm:$0xff]
    %v6648 = vld [vmem:[#allocation2 + $0x1448] sm:$0xff]
    %v6649 = vld [vmem:[#allocation2 + $0x1450] sm:$0xff]
    %v6650 = vld [vmem:[#allocation2 + $0x1458] sm:$0xff]
    %v6651 = vld [vmem:[#allocation2 + $0x1460] sm:$0xff]
    %v6652 = vld [vmem:[#allocation2 + $0x1468] sm:$0xff]
    %v6653 = vld [vmem:[#allocation2 + $0x1470] sm:$0xff]
    %v6654 = vld [vmem:[#allocation2 + $0x1478] sm:$0xff]
    %v6655 = vld [vmem:[#allocation2 + $0x1480] sm:$0xff]
    %v6656 = vld [vmem:[#allocation2 + $0x1488] sm:$0xff]
    %v6657 = vld [vmem:[#allocation2 + $0x1490] sm:$0xff]
    %v6658 = vld [vmem:[#allocation2 + $0x1498] sm:$0xff]
    %v6659 = vld [vmem:[#allocation2 + $0x14a0] sm:$0xff]
    %v6660 = vld [vmem:[#allocation2 + $0x14a8] sm:$0xff]
    %v6661 = vld [vmem:[#allocation2 + $0x14b0] sm:$0xff]
    %v6662 = vld [vmem:[#allocation2 + $0x14b8] sm:$0xff]
    %v6663 = vld [vmem:[#allocation2 + $0x14c0] sm:$0xff]
    %v6664 = vld [vmem:[#allocation2 + $0x14c8] sm:$0xff]
    %v6665 = vld [vmem:[#allocation2 + $0x14d0] sm:$0xff]
    %v6666 = vld [vmem:[#allocation2 + $0x14d8] sm:$0xff]
    %v6667 = vld [vmem:[#allocation2 + $0x14e0] sm:$0xff]
    %v6668 = vld [vmem:[#allocation2 + $0x14e8] sm:$0xff]
    %v6669 = vld [vmem:[#allocation2 + $0x14f0] sm:$0xff]
    %v6670 = vld [vmem:[#allocation2 + $0x14f8] sm:$0xff]
    %v6671 = vld [vmem:[#allocation2 + $0x1500] sm:$0xff]
    %v6672 = vld [vmem:[#allocation2 + $0x1508] sm:$0xff]
    %v6673 = vld [vmem:[#allocation2 + $0x1510] sm:$0xff]
    %v6674 = vld [vmem:[#allocation2 + $0x1518] sm:$0xff]
    %v6675 = vld [vmem:[#allocation2 + $0x1520] sm:$0xff]
    %v6676 = vld [vmem:[#allocation2 + $0x1528] sm:$0xff]
    %v6677 = vld [vmem:[#allocation2 + $0x1530] sm:$0xff]
    %v6678 = vld [vmem:[#allocation2 + $0x1538] sm:$0xff]
    %v6679 = vld [vmem:[#allocation2 + $0x1540] sm:$0xff]
    %v6680 = vld [vmem:[#allocation2 + $0x1548] sm:$0xff]
    %v6681 = vld [vmem:[#allocation2 + $0x1550] sm:$0xff]
    %v6682 = vld [vmem:[#allocation2 + $0x1558] sm:$0xff]
    %v6683 = vld [vmem:[#allocation2 + $0x1560] sm:$0xff]
    %v6684 = vld [vmem:[#allocation2 + $0x1568] sm:$0xff]
    %v6685 = vld [vmem:[#allocation2 + $0x1570] sm:$0xff]
    %v6686 = vld [vmem:[#allocation2 + $0x1578] sm:$0xff]
    %v6687 = vld [vmem:[#allocation2 + $0x1580] sm:$0xff]
    %v6688 = vld [vmem:[#allocation2 + $0x1588] sm:$0xff]
    %v6689 = vld [vmem:[#allocation2 + $0x1590] sm:$0xff]
    %v6690 = vld [vmem:[#allocation2 + $0x1598] sm:$0xff]
    %v6691 = vld [vmem:[#allocation2 + $0x15a0] sm:$0xff]
    %v6692 = vld [vmem:[#allocation2 + $0x15a8] sm:$0xff]
    %v6693 = vld [vmem:[#allocation2 + $0x15b0] sm:$0xff]
    %v6694 = vld [vmem:[#allocation2 + $0x15b8] sm:$0xff]
    %v6695 = vld [vmem:[#allocation2 + $0x15c0] sm:$0xff]
    %v6696 = vld [vmem:[#allocation2 + $0x15c8] sm:$0xff]
    %v6697 = vld [vmem:[#allocation2 + $0x15d0] sm:$0xff]
    %v6698 = vld [vmem:[#allocation2 + $0x15d8] sm:$0xff]
    %v6699 = vld [vmem:[#allocation2 + $0x15e0] sm:$0xff]
    %v6700 = vld [vmem:[#allocation2 + $0x15e8] sm:$0xff]
    %v6701 = vld [vmem:[#allocation2 + $0x15f0] sm:$0xff]
    %v6702 = vld [vmem:[#allocation2 + $0x15f8] sm:$0xff]
    %v6703 = vld [vmem:[#allocation2 + $0x1600] sm:$0xff]
    %v6704 = vld [vmem:[#allocation2 + $0x1608] sm:$0xff]
    %v6705 = vld [vmem:[#allocation2 + $0x1610] sm:$0xff]
    %v6706 = vld [vmem:[#allocation2 + $0x1618] sm:$0xff]
    %v6707 = vld [vmem:[#allocation2 + $0x1620] sm:$0xff]
    %v6708 = vld [vmem:[#allocation2 + $0x1628] sm:$0xff]
    %v6709 = vld [vmem:[#allocation2 + $0x1630] sm:$0xff]
    %v6710 = vld [vmem:[#allocation2 + $0x1638] sm:$0xff]
    %v6711 = vld [vmem:[#allocation2 + $0x1640] sm:$0xff]
    %v6712 = vld [vmem:[#allocation2 + $0x1648] sm:$0xff]
    %v6713 = vld [vmem:[#allocation2 + $0x1650] sm:$0xff]
    %v6714 = vld [vmem:[#allocation2 + $0x1658] sm:$0xff]
    %v6715 = vld [vmem:[#allocation2 + $0x1660] sm:$0xff]
    %v6716 = vld [vmem:[#allocation2 + $0x1668] sm:$0xff]
    %v6717 = vld [vmem:[#allocation2 + $0x1670] sm:$0xff]
    %v6718 = vld [vmem:[#allocation2 + $0x1678] sm:$0xff]
    %v6719 = vld [vmem:[#allocation2 + $0x1680] sm:$0xff]
    %v6720 = vld [vmem:[#allocation2 + $0x1688] sm:$0xff]
    %v6721 = vld [vmem:[#allocation2 + $0x1690] sm:$0xff]
    %v6722 = vld [vmem:[#allocation2 + $0x1698] sm:$0xff]
    %v6723 = vld [vmem:[#allocation2 + $0x16a0] sm:$0xff]
    %v6724 = vld [vmem:[#allocation2 + $0x16a8] sm:$0xff]
    %v6725 = vld [vmem:[#allocation2 + $0x16b0] sm:$0xff]
    %v6726 = vld [vmem:[#allocation2 + $0x16b8] sm:$0xff]
    %v6727 = vld [vmem:[#allocation2 + $0x16c0] sm:$0xff]
    %v6728 = vld [vmem:[#allocation2 + $0x16c8] sm:$0xff]
    %v6729 = vld [vmem:[#allocation2 + $0x16d0] sm:$0xff]
    %v6730 = vld [vmem:[#allocation2 + $0x16d8] sm:$0xff]
    %v6731 = vld [vmem:[#allocation2 + $0x16e0] sm:$0xff]
    %v6732 = vld [vmem:[#allocation2 + $0x16e8] sm:$0xff]
    %v6733 = vld [vmem:[#allocation2 + $0x16f0] sm:$0xff]
    %v6734 = vld [vmem:[#allocation2 + $0x16f8] sm:$0xff]
    %v6735 = vld [vmem:[#allocation2 + $0x1700] sm:$0xff]
    %v6736 = vld [vmem:[#allocation2 + $0x1708] sm:$0xff]
    %v6737 = vld [vmem:[#allocation2 + $0x1710] sm:$0xff]
    %v6738 = vld [vmem:[#allocation2 + $0x1718] sm:$0xff]
    %v6739 = vld [vmem:[#allocation2 + $0x1720] sm:$0xff]
    %v6740 = vld [vmem:[#allocation2 + $0x1728] sm:$0xff]
    %v6741 = vld [vmem:[#allocation2 + $0x1730] sm:$0xff]
    %v6742 = vld [vmem:[#allocation2 + $0x1738] sm:$0xff]
    %v6743 = vld [vmem:[#allocation2 + $0x1740] sm:$0xff]
    %v6744 = vld [vmem:[#allocation2 + $0x1748] sm:$0xff]
    %v6745 = vld [vmem:[#allocation2 + $0x1750] sm:$0xff]
    %v6746 = vld [vmem:[#allocation2 + $0x1758] sm:$0xff]
    %v6747 = vld [vmem:[#allocation2 + $0x1760] sm:$0xff]
    %v6748 = vld [vmem:[#allocation2 + $0x1768] sm:$0xff]
    %v6749 = vld [vmem:[#allocation2 + $0x1770] sm:$0xff]
    %v6750 = vld [vmem:[#allocation2 + $0x1778] sm:$0xff]
    %v6751 = vld [vmem:[#allocation2 + $0x1780] sm:$0xff]
    %v6752 = vld [vmem:[#allocation2 + $0x1788] sm:$0xff]
    %v6753 = vld [vmem:[#allocation2 + $0x1790] sm:$0xff]
    %v6754 = vld [vmem:[#allocation2 + $0x1798] sm:$0xff]
    %v6755 = vld [vmem:[#allocation2 + $0x17a0] sm:$0xff]
    %v6756 = vld [vmem:[#allocation2 + $0x17a8] sm:$0xff]
    %v6757 = vld [vmem:[#allocation2 + $0x17b0] sm:$0xff]
    %v6758 = vld [vmem:[#allocation2 + $0x17b8] sm:$0xff]
    %v6759 = vld [vmem:[#allocation2 + $0x17c0] sm:$0xff]
    %v6760 = vld [vmem:[#allocation2 + $0x17c8] sm:$0xff]
    %v6761 = vld [vmem:[#allocation2 + $0x17d0] sm:$0xff]
    %v6762 = vld [vmem:[#allocation2 + $0x17d8] sm:$0xff]
    %v6763 = vld [vmem:[#allocation2 + $0x17e0] sm:$0xff]
    %v6764 = vld [vmem:[#allocation2 + $0x17e8] sm:$0xff]
    %v6765 = vld [vmem:[#allocation2 + $0x17f0] sm:$0xff]
    %v6766 = vld [vmem:[#allocation2 + $0x17f8] sm:$0xff]
    %v6767 = vld [vmem:[#allocation2 + $0x1800] sm:$0xff]
    %v6768 = vld [vmem:[#allocation2 + $0x1808] sm:$0xff]
    %v6769 = vld [vmem:[#allocation2 + $0x1810] sm:$0xff]
    %v6770 = vld [vmem:[#allocation2 + $0x1818] sm:$0xff]
    %v6771 = vld [vmem:[#allocation2 + $0x1820] sm:$0xff]
    %v6772 = vld [vmem:[#allocation2 + $0x1828] sm:$0xff]
    %v6773 = vld [vmem:[#allocation2 + $0x1830] sm:$0xff]
    %v6774 = vld [vmem:[#allocation2 + $0x1838] sm:$0xff]
    %v6775 = vld [vmem:[#allocation2 + $0x1840] sm:$0xff]
    %v6776 = vld [vmem:[#allocation2 + $0x1848] sm:$0xff]
    %v6777 = vld [vmem:[#allocation2 + $0x1850] sm:$0xff]
    %v6778 = vld [vmem:[#allocation2 + $0x1858] sm:$0xff]
    %v6779 = vld [vmem:[#allocation2 + $0x1860] sm:$0xff]
    %v6780 = vld [vmem:[#allocation2 + $0x1868] sm:$0xff]
    %v6781 = vld [vmem:[#allocation2 + $0x1870] sm:$0xff]
    %v6782 = vld [vmem:[#allocation2 + $0x1878] sm:$0xff]
    %v6783 = vld [vmem:[#allocation2 + $0x1880] sm:$0xff]
    %v6784 = vld [vmem:[#allocation2 + $0x1888] sm:$0xff]
    %v6785 = vld [vmem:[#allocation2 + $0x1890] sm:$0xff]
    %v6786 = vld [vmem:[#allocation2 + $0x1898] sm:$0xff]
    %v6787 = vld [vmem:[#allocation2 + $0x18a0] sm:$0xff]
    %v6788 = vld [vmem:[#allocation2 + $0x18a8] sm:$0xff]
    %v6789 = vld [vmem:[#allocation2 + $0x18b0] sm:$0xff]
    %v6790 = vld [vmem:[#allocation2 + $0x18b8] sm:$0xff]
    %v6791 = vld [vmem:[#allocation2 + $0x18c0] sm:$0xff]
    %v6792 = vld [vmem:[#allocation2 + $0x18c8] sm:$0xff]
    %v6793 = vld [vmem:[#allocation2 + $0x18d0] sm:$0xff]
    %v6794 = vld [vmem:[#allocation2 + $0x18d8] sm:$0xff]
    %v6795 = vld [vmem:[#allocation2 + $0x18e0] sm:$0xff]
    %v6796 = vld [vmem:[#allocation2 + $0x18e8] sm:$0xff]
    %v6797 = vld [vmem:[#allocation2 + $0x18f0] sm:$0xff]
    %v6798 = vld [vmem:[#allocation2 + $0x18f8] sm:$0xff]
    %v6799 = vld [vmem:[#allocation2 + $0x1900] sm:$0xff]
    %v6800 = vld [vmem:[#allocation2 + $0x1908] sm:$0xff]
    %v6801 = vld [vmem:[#allocation2 + $0x1910] sm:$0xff]
    %v6802 = vld [vmem:[#allocation2 + $0x1918] sm:$0xff]
    %v6803 = vld [vmem:[#allocation2 + $0x1920] sm:$0xff]
    %v6804 = vld [vmem:[#allocation2 + $0x1928] sm:$0xff]
    %v6805 = vld [vmem:[#allocation2 + $0x1930] sm:$0xff]
    %v6806 = vld [vmem:[#allocation2 + $0x1938] sm:$0xff]
    %v6807 = vld [vmem:[#allocation2 + $0x1940] sm:$0xff]
    %v6808 = vld [vmem:[#allocation2 + $0x1948] sm:$0xff]
    %v6809 = vld [vmem:[#allocation2 + $0x1950] sm:$0xff]
    %v6810 = vld [vmem:[#allocation2 + $0x1958] sm:$0xff]
    %v6811 = vld [vmem:[#allocation2 + $0x1960] sm:$0xff]
    %v6812 = vld [vmem:[#allocation2 + $0x1968] sm:$0xff]
    %v6813 = vld [vmem:[#allocation2 + $0x1970] sm:$0xff]
    %v6814 = vld [vmem:[#allocation2 + $0x1978] sm:$0xff]
    %v6815 = vld [vmem:[#allocation2 + $0x1980] sm:$0xff]
    %v6816 = vld [vmem:[#allocation2 + $0x1988] sm:$0xff]
    %v6817 = vld [vmem:[#allocation2 + $0x1990] sm:$0xff]
    %v6818 = vld [vmem:[#allocation2 + $0x1998] sm:$0xff]
    %v6819 = vld [vmem:[#allocation2 + $0x19a0] sm:$0xff]
    %v6820 = vld [vmem:[#allocation2 + $0x19a8] sm:$0xff]
    %v6821 = vld [vmem:[#allocation2 + $0x19b0] sm:$0xff]
    %v6822 = vld [vmem:[#allocation2 + $0x19b8] sm:$0xff]
    %v6823 = vld [vmem:[#allocation2 + $0x19c0] sm:$0xff]
    %v6824 = vld [vmem:[#allocation2 + $0x19c8] sm:$0xff]
    %v6825 = vld [vmem:[#allocation2 + $0x19d0] sm:$0xff]
    %v6826 = vld [vmem:[#allocation2 + $0x19d8] sm:$0xff]
    %v6827 = vld [vmem:[#allocation2 + $0x19e0] sm:$0xff]
    %v6828 = vld [vmem:[#allocation2 + $0x19e8] sm:$0xff]
    %v6829 = vld [vmem:[#allocation2 + $0x19f0] sm:$0xff]
    %v6830 = vld [vmem:[#allocation2 + $0x19f8] sm:$0xff]
    %v6831 = vld [vmem:[#allocation2 + $0x1a00] sm:$0xff]
    %v6832 = vld [vmem:[#allocation2 + $0x1a08] sm:$0xff]
    %v6833 = vld [vmem:[#allocation2 + $0x1a10] sm:$0xff]
    %v6834 = vld [vmem:[#allocation2 + $0x1a18] sm:$0xff]
    %v6835 = vld [vmem:[#allocation2 + $0x1a20] sm:$0xff]
    %v6836 = vld [vmem:[#allocation2 + $0x1a28] sm:$0xff]
    %v6837 = vld [vmem:[#allocation2 + $0x1a30] sm:$0xff]
    %v6838 = vld [vmem:[#allocation2 + $0x1a38] sm:$0xff]
    %v6839 = vld [vmem:[#allocation2 + $0x1a40] sm:$0xff]
    %v6840 = vld [vmem:[#allocation2 + $0x1a48] sm:$0xff]
    %v6841 = vld [vmem:[#allocation2 + $0x1a50] sm:$0xff]
    %v6842 = vld [vmem:[#allocation2 + $0x1a58] sm:$0xff]
    %v6843 = vld [vmem:[#allocation2 + $0x1a60] sm:$0xff]
    %v6844 = vld [vmem:[#allocation2 + $0x1a68] sm:$0xff]
    %v6845 = vld [vmem:[#allocation2 + $0x1a70] sm:$0xff]
    %v6846 = vld [vmem:[#allocation2 + $0x1a78] sm:$0xff]
    %v6847 = vld [vmem:[#allocation2 + $0x1a80] sm:$0xff]
    %v6848 = vld [vmem:[#allocation2 + $0x1a88] sm:$0xff]
    %v6849 = vld [vmem:[#allocation2 + $0x1a90] sm:$0xff]
    %v6850 = vld [vmem:[#allocation2 + $0x1a98] sm:$0xff]
    %v6851 = vld [vmem:[#allocation2 + $0x1aa0] sm:$0xff]
    %v6852 = vld [vmem:[#allocation2 + $0x1aa8] sm:$0xff]
    %v6853 = vld [vmem:[#allocation2 + $0x1ab0] sm:$0xff]
    %v6854 = vld [vmem:[#allocation2 + $0x1ab8] sm:$0xff]
    %v6855 = vld [vmem:[#allocation2 + $0x1ac0] sm:$0xff]
    %v6856 = vld [vmem:[#allocation2 + $0x1ac8] sm:$0xff]
    %v6857 = vld [vmem:[#allocation2 + $0x1ad0] sm:$0xff]
    %v6858 = vld [vmem:[#allocation2 + $0x1ad8] sm:$0xff]
    %v6859 = vld [vmem:[#allocation2 + $0x1ae0] sm:$0xff]
    %v6860 = vld [vmem:[#allocation2 + $0x1ae8] sm:$0xff]
    %v6861 = vld [vmem:[#allocation2 + $0x1af0] sm:$0xff]
    %v6862 = vld [vmem:[#allocation2 + $0x1af8] sm:$0xff]
    %v6863 = vld [vmem:[#allocation2 + $0x1b00] sm:$0xff]
    %v6864 = vld [vmem:[#allocation2 + $0x1b08] sm:$0xff]
    %v6865 = vld [vmem:[#allocation2 + $0x1b10] sm:$0xff]
    %v6866 = vld [vmem:[#allocation2 + $0x1b18] sm:$0xff]
    %v6867 = vld [vmem:[#allocation2 + $0x1b20] sm:$0xff]
    %v6868 = vld [vmem:[#allocation2 + $0x1b28] sm:$0xff]
    %v6869 = vld [vmem:[#allocation2 + $0x1b30] sm:$0xff]
    %v6870 = vld [vmem:[#allocation2 + $0x1b38] sm:$0xff]
    %v6871 = vld [vmem:[#allocation2 + $0x1b40] sm:$0xff]
    %v6872 = vld [vmem:[#allocation2 + $0x1b48] sm:$0xff]
    %v6873 = vld [vmem:[#allocation2 + $0x1b50] sm:$0xff]
    %v6874 = vld [vmem:[#allocation2 + $0x1b58] sm:$0xff]
    %v6875 = vld [vmem:[#allocation2 + $0x1b60] sm:$0xff]
    %v6876 = vld [vmem:[#allocation2 + $0x1b68] sm:$0xff]
    %v6877 = vld [vmem:[#allocation2 + $0x1b70] sm:$0xff]
    %v6878 = vld [vmem:[#allocation2 + $0x1b78] sm:$0xff]
    %v6879 = vld [vmem:[#allocation2 + $0x1b80] sm:$0xff]
    %v6880 = vld [vmem:[#allocation2 + $0x1b88] sm:$0xff]
    %v6881 = vld [vmem:[#allocation2 + $0x1b90] sm:$0xff]
    %v6882 = vld [vmem:[#allocation2 + $0x1b98] sm:$0xff]
    %v6883 = vld [vmem:[#allocation2 + $0x1ba0] sm:$0xff]
    %v6884 = vld [vmem:[#allocation2 + $0x1ba8] sm:$0xff]
    %v6885 = vld [vmem:[#allocation2 + $0x1bb0] sm:$0xff]
    %v6886 = vld [vmem:[#allocation2 + $0x1bb8] sm:$0xff]
    %v6887 = vld [vmem:[#allocation2 + $0x1bc0] sm:$0xff]
    %v6888 = vld [vmem:[#allocation2 + $0x1bc8] sm:$0xff]
    %v6889 = vld [vmem:[#allocation2 + $0x1bd0] sm:$0xff]
    %v6890 = vld [vmem:[#allocation2 + $0x1bd8] sm:$0xff]
    %v6891 = vld [vmem:[#allocation2 + $0x1be0] sm:$0xff]
    %v6892 = vld [vmem:[#allocation2 + $0x1be8] sm:$0xff]
    %v6893 = vld [vmem:[#allocation2 + $0x1bf0] sm:$0xff]
    %v6894 = vld [vmem:[#allocation2 + $0x1bf8] sm:$0xff]
    %v6895 = vld [vmem:[#allocation2 + $0x1c00] sm:$0xff]
    %v6896 = vld [vmem:[#allocation2 + $0x1c08] sm:$0xff]
    %v6897 = vld [vmem:[#allocation2 + $0x1c10] sm:$0xff]
    %v6898 = vld [vmem:[#allocation2 + $0x1c18] sm:$0xff]
    %v6899 = vld [vmem:[#allocation2 + $0x1c20] sm:$0xff]
    %v6900 = vld [vmem:[#allocation2 + $0x1c28] sm:$0xff]
    %v6901 = vld [vmem:[#allocation2 + $0x1c30] sm:$0xff]
    %v6902 = vld [vmem:[#allocation2 + $0x1c38] sm:$0xff]
    %v6903 = vld [vmem:[#allocation2 + $0x1c40] sm:$0xff]
    %v6904 = vld [vmem:[#allocation2 + $0x1c48] sm:$0xff]
    %v6905 = vld [vmem:[#allocation2 + $0x1c50] sm:$0xff]
    %v6906 = vld [vmem:[#allocation2 + $0x1c58] sm:$0xff]
    %v6907 = vld [vmem:[#allocation2 + $0x1c60] sm:$0xff]
    %v6908 = vld [vmem:[#allocation2 + $0x1c68] sm:$0xff]
    %v6909 = vld [vmem:[#allocation2 + $0x1c70] sm:$0xff]
    %v6910 = vld [vmem:[#allocation2 + $0x1c78] sm:$0xff]
    %v6911 = vld [vmem:[#allocation2 + $0x1c80] sm:$0xff]
    %v6912 = vld [vmem:[#allocation2 + $0x1c88] sm:$0xff]
    %v6913 = vld [vmem:[#allocation2 + $0x1c90] sm:$0xff]
    %v6914 = vld [vmem:[#allocation2 + $0x1c98] sm:$0xff]
    %v6915 = vld [vmem:[#allocation2 + $0x1ca0] sm:$0xff]
    %v6916 = vld [vmem:[#allocation2 + $0x1ca8] sm:$0xff]
    %v6917 = vld [vmem:[#allocation2 + $0x1cb0] sm:$0xff]
    %v6918 = vld [vmem:[#allocation2 + $0x1cb8] sm:$0xff]
    %v6919 = vld [vmem:[#allocation2 + $0x1cc0] sm:$0xff]
    %v6920 = vld [vmem:[#allocation2 + $0x1cc8] sm:$0xff]
    %v6921 = vld [vmem:[#allocation2 + $0x1cd0] sm:$0xff]
    %v6922 = vld [vmem:[#allocation2 + $0x1cd8] sm:$0xff]
    %v6923 = vld [vmem:[#allocation2 + $0x1ce0] sm:$0xff]
    %v6924 = vld [vmem:[#allocation2 + $0x1ce8] sm:$0xff]
    %v6925 = vld [vmem:[#allocation2 + $0x1cf0] sm:$0xff]
    %v6926 = vld [vmem:[#allocation2 + $0x1cf8] sm:$0xff]
    %v6927 = vld [vmem:[#allocation2 + $0x1d00] sm:$0xff]
    %v6928 = vld [vmem:[#allocation2 + $0x1d08] sm:$0xff]
    %v6929 = vld [vmem:[#allocation2 + $0x1d10] sm:$0xff]
    %v6930 = vld [vmem:[#allocation2 + $0x1d18] sm:$0xff]
    %v6931 = vld [vmem:[#allocation2 + $0x1d20] sm:$0xff]
    %v6932 = vld [vmem:[#allocation2 + $0x1d28] sm:$0xff]
    %v6933 = vld [vmem:[#allocation2 + $0x1d30] sm:$0xff]
    %v6934 = vld [vmem:[#allocation2 + $0x1d38] sm:$0xff]
    %v6935 = vld [vmem:[#allocation2 + $0x1d40] sm:$0xff]
    %v6936 = vld [vmem:[#allocation2 + $0x1d48] sm:$0xff]
    %v6937 = vld [vmem:[#allocation2 + $0x1d50] sm:$0xff]
    %v6938 = vld [vmem:[#allocation2 + $0x1d58] sm:$0xff]
    %v6939 = vld [vmem:[#allocation2 + $0x1d60] sm:$0xff]
    %v6940 = vld [vmem:[#allocation2 + $0x1d68] sm:$0xff]
    %v6941 = vld [vmem:[#allocation2 + $0x1d70] sm:$0xff]
    %v6942 = vld [vmem:[#allocation2 + $0x1d78] sm:$0xff]
    %v6943 = vld [vmem:[#allocation2 + $0x1d80] sm:$0xff]
    %v6944 = vld [vmem:[#allocation2 + $0x1d88] sm:$0xff]
    %v6945 = vld [vmem:[#allocation2 + $0x1d90] sm:$0xff]
    %v6946 = vld [vmem:[#allocation2 + $0x1d98] sm:$0xff]
    %v6947 = vld [vmem:[#allocation2 + $0x1da0] sm:$0xff]
    %v6948 = vld [vmem:[#allocation2 + $0x1da8] sm:$0xff]
    %v6949 = vld [vmem:[#allocation2 + $0x1db0] sm:$0xff]
    %v6950 = vld [vmem:[#allocation2 + $0x1db8] sm:$0xff]
    %v6951 = vld [vmem:[#allocation2 + $0x1dc0] sm:$0xff]
    %v6952 = vld [vmem:[#allocation2 + $0x1dc8] sm:$0xff]
    %v6953 = vld [vmem:[#allocation2 + $0x1dd0] sm:$0xff]
    %v6954 = vld [vmem:[#allocation2 + $0x1dd8] sm:$0xff]
    %v6955 = vld [vmem:[#allocation2 + $0x1de0] sm:$0xff]
    %v6956 = vld [vmem:[#allocation2 + $0x1de8] sm:$0xff]
    %v6957 = vld [vmem:[#allocation2 + $0x1df0] sm:$0xff]
    %v6958 = vld [vmem:[#allocation2 + $0x1df8] sm:$0xff]
    %v6959 = vld [vmem:[#allocation2 + $0x1e00] sm:$0xff]
    %v6960 = vld [vmem:[#allocation2 + $0x1e08] sm:$0xff]
    %v6961 = vld [vmem:[#allocation2 + $0x1e10] sm:$0xff]
    %v6962 = vld [vmem:[#allocation2 + $0x1e18] sm:$0xff]
    %v6963 = vld [vmem:[#allocation2 + $0x1e20] sm:$0xff]
    %v6964 = vld [vmem:[#allocation2 + $0x1e28] sm:$0xff]
    %v6965 = vld [vmem:[#allocation2 + $0x1e30] sm:$0xff]
    %v6966 = vld [vmem:[#allocation2 + $0x1e38] sm:$0xff]
    %v6967 = vld [vmem:[#allocation2 + $0x1e40] sm:$0xff]
    %v6968 = vld [vmem:[#allocation2 + $0x1e48] sm:$0xff]
    %v6969 = vld [vmem:[#allocation2 + $0x1e50] sm:$0xff]
    %v6970 = vld [vmem:[#allocation2 + $0x1e58] sm:$0xff]
    %v6971 = vld [vmem:[#allocation2 + $0x1e60] sm:$0xff]
    %v6972 = vld [vmem:[#allocation2 + $0x1e68] sm:$0xff]
    %v6973 = vld [vmem:[#allocation2 + $0x1e70] sm:$0xff]
    %v6974 = vld [vmem:[#allocation2 + $0x1e78] sm:$0xff]
    %v6975 = vld [vmem:[#allocation2 + $0x1e80] sm:$0xff]
    %v6976 = vld [vmem:[#allocation2 + $0x1e88] sm:$0xff]
    %v6977 = vld [vmem:[#allocation2 + $0x1e90] sm:$0xff]
    %v6978 = vld [vmem:[#allocation2 + $0x1e98] sm:$0xff]
    %v6979 = vld [vmem:[#allocation2 + $0x1ea0] sm:$0xff]
    %v6980 = vld [vmem:[#allocation2 + $0x1ea8] sm:$0xff]
    %v6981 = vld [vmem:[#allocation2 + $0x1eb0] sm:$0xff]
    %v6982 = vld [vmem:[#allocation2 + $0x1eb8] sm:$0xff]
    %v6983 = vld [vmem:[#allocation2 + $0x1ec0] sm:$0xff]
    %v6984 = vld [vmem:[#allocation2 + $0x1ec8] sm:$0xff]
    %v6985 = vld [vmem:[#allocation2 + $0x1ed0] sm:$0xff]
    %v6986 = vld [vmem:[#allocation2 + $0x1ed8] sm:$0xff]
    %v6987 = vld [vmem:[#allocation2 + $0x1ee0] sm:$0xff]
    %v6988 = vld [vmem:[#allocation2 + $0x1ee8] sm:$0xff]
    %v6989 = vld [vmem:[#allocation2 + $0x1ef0] sm:$0xff]
    %v6990 = vld [vmem:[#allocation2 + $0x1ef8] sm:$0xff]
    %v6991 = vld [vmem:[#allocation2 + $0x1f00] sm:$0xff]
    %v6992 = vld [vmem:[#allocation2 + $0x1f08] sm:$0xff]
    %v6993 = vld [vmem:[#allocation2 + $0x1f10] sm:$0xff]
    %v6994 = vld [vmem:[#allocation2 + $0x1f18] sm:$0xff]
    %v6995 = vld [vmem:[#allocation2 + $0x1f20] sm:$0xff]
    %v6996 = vld [vmem:[#allocation2 + $0x1f28] sm:$0xff]
    %v6997 = vld [vmem:[#allocation2 + $0x1f30] sm:$0xff]
    %v6998 = vld [vmem:[#allocation2 + $0x1f38] sm:$0xff]
    %v6999 = vld [vmem:[#allocation2 + $0x1f40] sm:$0xff]
    %v7000 = vld [vmem:[#allocation2 + $0x1f48] sm:$0xff]
    %v7001 = vld [vmem:[#allocation2 + $0x1f50] sm:$0xff]
    %v7002 = vld [vmem:[#allocation2 + $0x1f58] sm:$0xff]
    %v7003 = vld [vmem:[#allocation2 + $0x1f60] sm:$0xff]
    %v7004 = vld [vmem:[#allocation2 + $0x1f68] sm:$0xff]
    %v7005 = vld [vmem:[#allocation2 + $0x1f70] sm:$0xff]
    %v7006 = vld [vmem:[#allocation2 + $0x1f78] sm:$0xff]
    %v7007 = vld [vmem:[#allocation2 + $0x1f80] sm:$0xff]
    %v7008 = vld [vmem:[#allocation2 + $0x1f88] sm:$0xff]
    %v7009 = vld [vmem:[#allocation2 + $0x1f90] sm:$0xff]
    %v7010 = vld [vmem:[#allocation2 + $0x1f98] sm:$0xff]
    %v7011 = vld [vmem:[#allocation2 + $0x1fa0] sm:$0xff]
    %v7012 = vld [vmem:[#allocation2 + $0x1fa8] sm:$0xff]
    %v7013 = vld [vmem:[#allocation2 + $0x1fb0] sm:$0xff]
    %v7014 = vld [vmem:[#allocation2 + $0x1fb8] sm:$0xff]
    %v7015 = vld [vmem:[#allocation2 + $0x1fc0] sm:$0xff]
    %v7016 = vld [vmem:[#allocation2 + $0x1fc8] sm:$0xff]
    %v7017 = vld [vmem:[#allocation2 + $0x1fd0] sm:$0xff]
    %v7018 = vld [vmem:[#allocation2 + $0x1fd8] sm:$0xff]
    %v7019 = vld [vmem:[#allocation2 + $0x1fe0] sm:$0xff]
    %v7020 = vld [vmem:[#allocation2 + $0x1fe8] sm:$0xff]
    %v7021 = vld [vmem:[#allocation2 + $0x1ff0] sm:$0xff]
    %v7022 = vld [vmem:[#allocation2 + $0x1ff8] sm:$0xff]
    %v7023 = vld [vmem:[#allocation10] sm:$0xf]
    %v7025 = vlaneseq
    %v7026 = vshrl.u32 %v7025, 7
    %v7027 = vsub.s32 0, %v7026
    %v7028 = vrot.slane %v7023, %v7027
    %v7029 = vlaneseq
    %v7030 = vshrl.u32 %v7029, 7
    %v7031 = vsub.s32 1, %v7030
    %v7032 = vrot.slane %v7023, %v7031
    %v7033 = vlaneseq
    %v7034 = vshrl.u32 %v7033, 7
    %v7035 = vsub.s32 2, %v7034
    %v7036 = vrot.slane %v7023, %v7035
    %v7037 = vlaneseq
    %v7038 = vshrl.u32 %v7037, 7
    %v7039 = vsub.s32 3, %v7038
    %v7040 = vrot.slane %v7023, %v7039
    %7045 = vmatprep.subr.bf16.mxu0 %v6000
    %7046 = vmatpush1.bf16.msra.mxu0 %v5999
    %7047 = vmatprep.subr.bf16.mxu0 %v6004
    %7048 = vmatpush1.bf16.msra.mxu0 %v6003
    %7049 = vmatprep.subr.bf16.mxu0 %v6008
    %7050 = vmatpush1.bf16.msra.mxu0 %v6007
    %7051 = vmatprep.subr.bf16.mxu0 %v6012
    %7052 = vmatpush1.bf16.msra.mxu0 %v6011
    %7053 = vmatprep.subr.bf16.mxu0 %v6016
    %7054 = vmatpush1.bf16.msra.mxu0 %v6015
    %7055 = vmatprep.subr.bf16.mxu0 %v6020
    %7056 = vmatpush1.bf16.msra.mxu0 %v6019
    %7057 = vmatprep.subr.bf16.mxu0 %v6024
    %7058 = vmatpush1.bf16.msra.mxu0 %v6023
    %7059 = vmatprep.subr.bf16.mxu0 %v6028
    %7060 = vmatpush1.bf16.msra.mxu0 %v6027
    %7061 = vmatprep.subr.bf16.mxu0 %v6032
    %7062 = vmatpush1.bf16.msra.mxu0 %v6031
    %7063 = vmatprep.subr.bf16.mxu0 %v6036
    %7064 = vmatpush1.bf16.msra.mxu0 %v6035
    %7065 = vmatprep.subr.bf16.mxu0 %v6040
    %7066 = vmatpush1.bf16.msra.mxu0 %v6039
    %7067 = vmatprep.subr.bf16.mxu0 %v6044
    %7068 = vmatpush1.bf16.msra.mxu0 %v6043
    %7069 = vmatprep.subr.bf16.mxu0 %v6048
    %7070 = vmatpush1.bf16.msra.mxu0 %v6047
    %7071 = vmatprep.subr.bf16.mxu0 %v6052
    %7072 = vmatpush1.bf16.msra.mxu0 %v6051
    %7073 = vmatprep.subr.bf16.mxu0 %v6056
    %7074 = vmatpush1.bf16.msra.mxu0 %v6055
    %7075 = vmatprep.subr.bf16.mxu0 %v6060
    %7076 = vmatpush1.bf16.msra.mxu0 %v6059
    %7077 = vmatprep.mubr.bf16.mxu0 %v5964
    %7078 = vmatmul.mubr.bf16.gmra.mrb[0].mxu0 %v5963
    %v7079 = vpop.f32.mrb[0].mxu0
    %v7080 = vadd.f32 %v7028, %v7079
    %v7081 = vpop.f32.mrb[0].mxu0
    %v7082 = vadd.f32 %v7032, %v7081
    %v7083 = vpop.f32.mrb[0].mxu0
    %v7084 = vpop.f32.mrb[0].mxu0
    %7085 = vdwg.mxu0
    %7086 = vmatprep.subr.bf16.mxu0 %v6064
    %7087 = vmatpush1.bf16.msra.mxu0 %v6063
    %7088 = vmatprep.subr.bf16.mxu0 %v6068
    %7089 = vmatpush1.bf16.msra.mxu0 %v6067
    %7090 = vmatprep.subr.bf16.mxu0 %v6072
    %7091 = vmatpush1.bf16.msra.mxu0 %v6071
    %7092 = vmatprep.subr.bf16.mxu0 %v6076
    %7093 = vmatpush1.bf16.msra.mxu0 %v6075
    %7094 = vmatprep.subr.bf16.mxu0 %v6080
    %7095 = vmatpush1.bf16.msra.mxu0 %v6079
    %7096 = vmatprep.subr.bf16.mxu0 %v6084
    %7097 = vmatpush1.bf16.msra.mxu0 %v6083
    %7098 = vmatprep.subr.bf16.mxu0 %v6088
    %7099 = vmatpush1.bf16.msra.mxu0 %v6087
    %7100 = vmatprep.subr.bf16.mxu0 %v6092
    %7101 = vmatpush1.bf16.msra.mxu0 %v6091
    %7102 = vmatprep.subr.bf16.mxu0 %v6096
    %7103 = vmatpush1.bf16.msra.mxu0 %v6095
    %7104 = vmatprep.subr.bf16.mxu0 %v6100
    %7105 = vmatpush1.bf16.msra.mxu0 %v6099
    %7106 = vmatprep.subr.bf16.mxu0 %v6104
    %7107 = vmatpush1.bf16.msra.mxu0 %v6103
    %7108 = vmatprep.subr.bf16.mxu0 %v6108
    %7109 = vmatpush1.bf16.msra.mxu0 %v6107
    %7110 = vmatprep.subr.bf16.mxu0 %v6112
    %7111 = vmatpush1.bf16.msra.mxu0 %v6111
    %7112 = vmatprep.subr.bf16.mxu0 %v6116
    %7113 = vmatpush1.bf16.msra.mxu0 %v6115
    %7114 = vmatprep.subr.bf16.mxu0 %v6120
    %7115 = vmatpush1.bf16.msra.mxu0 %v6119
    %7116 = vmatprep.subr.bf16.mxu0 %v6124
    %7117 = vmatpush1.bf16.msra.mxu0 %v6123
    %7118 = vmatprep.mubr.bf16.mxu0 %v5966
    %7119 = vmatmul.mubr.bf16.gmra.mrb[0].mxu0 %v5965
    %v7120 = vpop.f32.mrb[0].mxu0
    %v7121 = vadd.f32 %v7080, %v7120
    %v7122 = vpop.f32.mrb[0].mxu0
    %v7123 = vadd.f32 %v7082, %v7122
    %v7124 = vpop.f32.mrb[0].mxu0
    %v7125 = vpop.f32.mrb[0].mxu0
    %7126 = vdwg.mxu0
    %7127 = vmatprep.subr.bf16.mxu0 %v6128
    %7128 = vmatpush1.bf16.msra.mxu0 %v6127
    %7129 = vmatprep.subr.bf16.mxu0 %v6132
    %7130 = vmatpush1.bf16.msra.mxu0 %v6131
    %7131 = vmatprep.subr.bf16.mxu0 %v6136
    %7132 = vmatpush1.bf16.msra.mxu0 %v6135
    %7133 = vmatprep.subr.bf16.mxu0 %v6140
    %7134 = vmatpush1.bf16.msra.mxu0 %v6139
    %7135 = vmatprep.subr.bf16.mxu0 %v6144
    %7136 = vmatpush1.bf16.msra.mxu0 %v6143
    %7137 = vmatprep.subr.bf16.mxu0 %v6148
    %7138 = vmatpush1.bf16.msra.mxu0 %v6147
    %7139 = vmatprep.subr.bf16.mxu0 %v6152
    %7140 = vmatpush1.bf16.msra.mxu0 %v6151
    %7141 = vmatprep.subr.bf16.mxu0 %v6156
    %7142 = vmatpush1.bf16.msra.mxu0 %v6155
    %7143 = vmatprep.subr.bf16.mxu0 %v6160
    %7144 = vmatpush1.bf16.msra.mxu0 %v6159
    %7145 = vmatprep.subr.bf16.mxu0 %v6164
    %7146 = vmatpush1.bf16.msra.mxu0 %v6163
    %7147 = vmatprep.subr.bf16.mxu0 %v6168
    %7148 = vmatpush1.bf16.msra.mxu0 %v6167
    %7149 = vmatprep.subr.bf16.mxu0 %v6172
    %7150 = vmatpush1.bf16.msra.mxu0 %v6171
    %7151 = vmatprep.subr.bf16.mxu0 %v6176
    %7152 = vmatpush1.bf16.msra.mxu0 %v6175
    %7153 = vmatprep.subr.bf16.mxu0 %v6180
    %7154 = vmatpush1.bf16.msra.mxu0 %v6179
    %7155 = vmatprep.subr.bf16.mxu0 %v6184
    %7156 = vmatpush1.bf16.msra.mxu0 %v6183
    %7157 = vmatprep.subr.bf16.mxu0 %v6188
    %7158 = vmatpush1.bf16.msra.mxu0 %v6187
    %7159 = vmatprep.mubr.bf16.mxu0 %v5968
    %7160 = vmatmul.mubr.bf16.gmra.mrb[0].mxu0 %v5967
    %v7161 = vpop.f32.mrb[0].mxu0
    %v7162 = vadd.f32 %v7121, %v7161
    %v7163 = vpop.f32.mrb[0].mxu0
    %v7164 = vadd.f32 %v7123, %v7163
    %v7165 = vpop.f32.mrb[0].mxu0
    %v7166 = vpop.f32.mrb[0].mxu0
    %7167 = vdwg.mxu0
    %7168 = vmatprep.subr.bf16.mxu0 %v6192
    %7169 = vmatpush1.bf16.msra.mxu0 %v6191
    %7170 = vmatprep.subr.bf16.mxu0 %v6196
    %7171 = vmatpush1.bf16.msra.mxu0 %v6195
    %7172 = vmatprep.subr.bf16.mxu0 %v6200
    %7173 = vmatpush1.bf16.msra.mxu0 %v6199
    %7174 = vmatprep.subr.bf16.mxu0 %v6204
    %7175 = vmatpush1.bf16.msra.mxu0 %v6203
    %7176 = vmatprep.subr.bf16.mxu0 %v6208
    %7177 = vmatpush1.bf16.msra.mxu0 %v6207
    %7178 = vmatprep.subr.bf16.mxu0 %v6212
    %7179 = vmatpush1.bf16.msra.mxu0 %v6211
    %7180 = vmatprep.subr.bf16.mxu0 %v6216
    %7181 = vmatpush1.bf16.msra.mxu0 %v6215
    %7182 = vmatprep.subr.bf16.mxu0 %v6220
    %7183 = vmatpush1.bf16.msra.mxu0 %v6219
    %7184 = vmatprep.subr.bf16.mxu0 %v6224
    %7185 = vmatpush1.bf16.msra.mxu0 %v6223
    %7186 = vmatprep.subr.bf16.mxu0 %v6228
    %7187 = vmatpush1.bf16.msra.mxu0 %v6227
    %7188 = vmatprep.subr.bf16.mxu0 %v6232
    %7189 = vmatpush1.bf16.msra.mxu0 %v6231
    %7190 = vmatprep.subr.bf16.mxu0 %v6236
    %7191 = vmatpush1.bf16.msra.mxu0 %v6235
    %7192 = vmatprep.subr.bf16.mxu0 %v6240
    %7193 = vmatpush1.bf16.msra.mxu0 %v6239
    %7194 = vmatprep.subr.bf16.mxu0 %v6244
    %7195 = vmatpush1.bf16.msra.mxu0 %v6243
    %7196 = vmatprep.subr.bf16.mxu0 %v6248
    %7197 = vmatpush1.bf16.msra.mxu0 %v6247
    %7198 = vmatprep.subr.bf16.mxu0 %v6252
    %7199 = vmatpush1.bf16.msra.mxu0 %v6251
    %7200 = vmatprep.mubr.bf16.mxu0 %v5970
    %7201 = vmatmul.mubr.bf16.gmra.mrb[0].mxu0 %v5969
    %v7202 = vpop.f32.mrb[0].mxu0
    %v7203 = vadd.f32 %v7162, %v7202
    %v7204 = vpop.f32.mrb[0].mxu0
    %v7205 = vadd.f32 %v7164, %v7204
    %v7206 = vpop.f32.mrb[0].mxu0
    %v7207 = vpop.f32.mrb[0].mxu0
    %7208 = vdwg.mxu0
    %7209 = vmatprep.subr.bf16.mxu0 %v6256
    %7210 = vmatpush1.bf16.msra.mxu0 %v6255
    %7211 = vmatprep.subr.bf16.mxu0 %v6260
    %7212 = vmatpush1.bf16.msra.mxu0 %v6259
    %7213 = vmatprep.subr.bf16.mxu0 %v6264
    %7214 = vmatpush1.bf16.msra.mxu0 %v6263
    %7215 = vmatprep.subr.bf16.mxu0 %v6268
    %7216 = vmatpush1.bf16.msra.mxu0 %v6267
    %7217 = vmatprep.subr.bf16.mxu0 %v6272
    %7218 = vmatpush1.bf16.msra.mxu0 %v6271
    %7219 = vmatprep.subr.bf16.mxu0 %v6276
    %7220 = vmatpush1.bf16.msra.mxu0 %v6275
    %7221 = vmatprep.subr.bf16.mxu0 %v6280
    %7222 = vmatpush1.bf16.msra.mxu0 %v6279
    %7223 = vmatprep.subr.bf16.mxu0 %v6284
    %7224 = vmatpush1.bf16.msra.mxu0 %v6283
    %7225 = vmatprep.subr.bf16.mxu0 %v6288
    %7226 = vmatpush1.bf16.msra.mxu0 %v6287
    %7227 = vmatprep.subr.bf16.mxu0 %v6292
    %7228 = vmatpush1.bf16.msra.mxu0 %v6291
    %7229 = vmatprep.subr.bf16.mxu0 %v6296
    %7230 = vmatpush1.bf16.msra.mxu0 %v6295
    %7231 = vmatprep.subr.bf16.mxu0 %v6300
    %7232 = vmatpush1.bf16.msra.mxu0 %v6299
    %7233 = vmatprep.subr.bf16.mxu0 %v6304
    %7234 = vmatpush1.bf16.msra.mxu0 %v6303
    %7235 = vmatprep.subr.bf16.mxu0 %v6308
    %7236 = vmatpush1.bf16.msra.mxu0 %v6307
    %7237 = vmatprep.subr.bf16.mxu0 %v6312
    %7238 = vmatpush1.bf16.msra.mxu0 %v6311
    %7239 = vmatprep.subr.bf16.mxu0 %v6316
    %7240 = vmatpush1.bf16.msra.mxu0 %v6315
    %7241 = vmatprep.mubr.bf16.mxu0 %v5972
    %7242 = vmatmul.mubr.bf16.gmra.mrb[0].mxu0 %v5971
    %v7243 = vpop.f32.mrb[0].mxu0
    %v7244 = vadd.f32 %v7203, %v7243
    %v7245 = vpop.f32.mrb[0].mxu0
    %v7246 = vadd.f32 %v7205, %v7245
    %v7247 = vpop.f32.mrb[0].mxu0
    %v7248 = vpop.f32.mrb[0].mxu0
    %7249 = vdwg.mxu0
    %7250 = vmatprep.subr.bf16.mxu0 %v6320
    %7251 = vmatpush1.bf16.msra.mxu0 %v6319
    %7252 = vmatprep.subr.bf16.mxu0 %v6324
    %7253 = vmatpush1.bf16.msra.mxu0 %v6323
    %7254 = vmatprep.subr.bf16.mxu0 %v6328
    %7255 = vmatpush1.bf16.msra.mxu0 %v6327
    %7256 = vmatprep.subr.bf16.mxu0 %v6332
    %7257 = vmatpush1.bf16.msra.mxu0 %v6331
    %7258 = vmatprep.subr.bf16.mxu0 %v6336
    %7259 = vmatpush1.bf16.msra.mxu0 %v6335
    %7260 = vmatprep.subr.bf16.mxu0 %v6340
    %7261 = vmatpush1.bf16.msra.mxu0 %v6339
    %7262 = vmatprep.subr.bf16.mxu0 %v6344
    %7263 = vmatpush1.bf16.msra.mxu0 %v6343
    %7264 = vmatprep.subr.bf16.mxu0 %v6348
    %7265 = vmatpush1.bf16.msra.mxu0 %v6347
    %7266 = vmatprep.subr.bf16.mxu0 %v6352
    %7267 = vmatpush1.bf16.msra.mxu0 %v6351
    %7268 = vmatprep.subr.bf16.mxu0 %v6356
    %7269 = vmatpush1.bf16.msra.mxu0 %v6355
    %7270 = vmatprep.subr.bf16.mxu0 %v6360
    %7271 = vmatpush1.bf16.msra.mxu0 %v6359
    %7272 = vmatprep.subr.bf16.mxu0 %v6364
    %7273 = vmatpush1.bf16.msra.mxu0 %v6363
    %7274 = vmatprep.subr.bf16.mxu0 %v6368
    %7275 = vmatpush1.bf16.msra.mxu0 %v6367
    %7276 = vmatprep.subr.bf16.mxu0 %v6372
    %7277 = vmatpush1.bf16.msra.mxu0 %v6371
    %7278 = vmatprep.subr.bf16.mxu0 %v6376
    %7279 = vmatpush1.bf16.msra.mxu0 %v6375
    %7280 = vmatprep.subr.bf16.mxu0 %v6380
    %7281 = vmatpush1.bf16.msra.mxu0 %v6379
    %7282 = vmatprep.mubr.bf16.mxu0 %v5974
    %7283 = vmatmul.mubr.bf16.gmra.mrb[0].mxu0 %v5973
    %v7284 = vpop.f32.mrb[0].mxu0
    %v7285 = vadd.f32 %v7244, %v7284
    %v7286 = vpop.f32.mrb[0].mxu0
    %v7287 = vadd.f32 %v7246, %v7286
    %v7288 = vpop.f32.mrb[0].mxu0
    %v7289 = vpop.f32.mrb[0].mxu0
    %7290 = vdwg.mxu0
    %7291 = vmatprep.subr.bf16.mxu0 %v6384
    %7292 = vmatpush1.bf16.msra.mxu0 %v6383
    %7293 = vmatprep.subr.bf16.mxu0 %v6388
    %7294 = vmatpush1.bf16.msra.mxu0 %v6387
    %7295 = vmatprep.subr.bf16.mxu0 %v6392
    %7296 = vmatpush1.bf16.msra.mxu0 %v6391
    %7297 = vmatprep.subr.bf16.mxu0 %v6396
    %7298 = vmatpush1.bf16.msra.mxu0 %v6395
    %7299 = vmatprep.subr.bf16.mxu0 %v6400
    %7300 = vmatpush1.bf16.msra.mxu0 %v6399
    %7301 = vmatprep.subr.bf16.mxu0 %v6404
    %7302 = vmatpush1.bf16.msra.mxu0 %v6403
    %7303 = vmatprep.subr.bf16.mxu0 %v6408
    %7304 = vmatpush1.bf16.msra.mxu0 %v6407
    %7305 = vmatprep.subr.bf16.mxu0 %v6412
    %7306 = vmatpush1.bf16.msra.mxu0 %v6411
    %7307 = vmatprep.subr.bf16.mxu0 %v6416
    %7308 = vmatpush1.bf16.msra.mxu0 %v6415
    %7309 = vmatprep.subr.bf16.mxu0 %v6420
    %7310 = vmatpush1.bf16.msra.mxu0 %v6419
    %7311 = vmatprep.subr.bf16.mxu0 %v6424
    %7312 = vmatpush1.bf16.msra.mxu0 %v6423
    %7313 = vmatprep.subr.bf16.mxu0 %v6428
    %7314 = vmatpush1.bf16.msra.mxu0 %v6427
    %7315 = vmatprep.subr.bf16.mxu0 %v6432
    %7316 = vmatpush1.bf16.msra.mxu0 %v6431
    %7317 = vmatprep.subr.bf16.mxu0 %v6436
    %7318 = vmatpush1.bf16.msra.mxu0 %v6435
    %7319 = vmatprep.subr.bf16.mxu0 %v6440
    %7320 = vmatpush1.bf16.msra.mxu0 %v6439
    %7321 = vmatprep.subr.bf16.mxu0 %v6444
    %7322 = vmatpush1.bf16.msra.mxu0 %v6443
    %7323 = vmatprep.mubr.bf16.mxu0 %v5976
    %7324 = vmatmul.mubr.bf16.gmra.mrb[0].mxu0 %v5975
    %v7325 = vpop.f32.mrb[0].mxu0
    %v7326 = vadd.f32 %v7285, %v7325
    %v7327 = vpop.f32.mrb[0].mxu0
    %v7328 = vadd.f32 %v7287, %v7327
    %v7329 = vpop.f32.mrb[0].mxu0
    %v7330 = vpop.f32.mrb[0].mxu0
    %7331 = vdwg.mxu0
    %7332 = vmatprep.subr.bf16.mxu0 %v6448
    %7333 = vmatpush1.bf16.msra.mxu0 %v6447
    %7334 = vmatprep.subr.bf16.mxu0 %v6452
    %7335 = vmatpush1.bf16.msra.mxu0 %v6451
    %7336 = vmatprep.subr.bf16.mxu0 %v6456
    %7337 = vmatpush1.bf16.msra.mxu0 %v6455
    %7338 = vmatprep.subr.bf16.mxu0 %v6460
    %7339 = vmatpush1.bf16.msra.mxu0 %v6459
    %7340 = vmatprep.subr.bf16.mxu0 %v6464
    %7341 = vmatpush1.bf16.msra.mxu0 %v6463
    %7342 = vmatprep.subr.bf16.mxu0 %v6468
    %7343 = vmatpush1.bf16.msra.mxu0 %v6467
    %7344 = vmatprep.subr.bf16.mxu0 %v6472
    %7345 = vmatpush1.bf16.msra.mxu0 %v6471
    %7346 = vmatprep.subr.bf16.mxu0 %v6476
    %7347 = vmatpush1.bf16.msra.mxu0 %v6475
    %7348 = vmatprep.subr.bf16.mxu0 %v6480
    %7349 = vmatpush1.bf16.msra.mxu0 %v6479
    %7350 = vmatprep.subr.bf16.mxu0 %v6484
    %7351 = vmatpush1.bf16.msra.mxu0 %v6483
    %7352 = vmatprep.subr.bf16.mxu0 %v6488
    %7353 = vmatpush1.bf16.msra.mxu0 %v6487
    %7354 = vmatprep.subr.bf16.mxu0 %v6492
    %7355 = vmatpush1.bf16.msra.mxu0 %v6491
    %7356 = vmatprep.subr.bf16.mxu0 %v6496
    %7357 = vmatpush1.bf16.msra.mxu0 %v6495
    %7358 = vmatprep.subr.bf16.mxu0 %v6500
    %7359 = vmatpush1.bf16.msra.mxu0 %v6499
    %7360 = vmatprep.subr.bf16.mxu0 %v6504
    %7361 = vmatpush1.bf16.msra.mxu0 %v6503
    %7362 = vmatprep.subr.bf16.mxu0 %v6508
    %7363 = vmatpush1.bf16.msra.mxu0 %v6507
    %7364 = vmatprep.mubr.bf16.mxu0 %v5978
    %7365 = vmatmul.mubr.bf16.gmra.mrb[0].mxu0 %v5977
    %v7366 = vpop.f32.mrb[0].mxu0
    %v7367 = vadd.f32 %v7326, %v7366
    %v7368 = vpop.f32.mrb[0].mxu0
    %v7369 = vadd.f32 %v7328, %v7368
    %v7370 = vpop.f32.mrb[0].mxu0
    %v7371 = vpop.f32.mrb[0].mxu0
    %7372 = vdwg.mxu0
    %7373 = vmatprep.subr.bf16.mxu0 %v6512
    %7374 = vmatpush1.bf16.msra.mxu0 %v6511
    %7375 = vmatprep.subr.bf16.mxu0 %v6516
    %7376 = vmatpush1.bf16.msra.mxu0 %v6515
    %7377 = vmatprep.subr.bf16.mxu0 %v6520
    %7378 = vmatpush1.bf16.msra.mxu0 %v6519
    %7379 = vmatprep.subr.bf16.mxu0 %v6524
    %7380 = vmatpush1.bf16.msra.mxu0 %v6523
    %7381 = vmatprep.subr.bf16.mxu0 %v6528
    %7382 = vmatpush1.bf16.msra.mxu0 %v6527
    %7383 = vmatprep.subr.bf16.mxu0 %v6532
    %7384 = vmatpush1.bf16.msra.mxu0 %v6531
    %7385 = vmatprep.subr.bf16.mxu0 %v6536
    %7386 = vmatpush1.bf16.msra.mxu0 %v6535
    %7387 = vmatprep.subr.bf16.mxu0 %v6540
    %7388 = vmatpush1.bf16.msra.mxu0 %v6539
    %7389 = vmatprep.subr.bf16.mxu0 %v6544
    %7390 = vmatpush1.bf16.msra.mxu0 %v6543
    %7391 = vmatprep.subr.bf16.mxu0 %v6548
    %7392 = vmatpush1.bf16.msra.mxu0 %v6547
    %7393 = vmatprep.subr.bf16.mxu0 %v6552
    %7394 = vmatpush1.bf16.msra.mxu0 %v6551
    %7395 = vmatprep.subr.bf16.mxu0 %v6556
    %7396 = vmatpush1.bf16.msra.mxu0 %v6555
    %7397 = vmatprep.subr.bf16.mxu0 %v6560
    %7398 = vmatpush1.bf16.msra.mxu0 %v6559
    %7399 = vmatprep.subr.bf16.mxu0 %v6564
    %7400 = vmatpush1.bf16.msra.mxu0 %v6563
    %7401 = vmatprep.subr.bf16.mxu0 %v6568
    %7402 = vmatpush1.bf16.msra.mxu0 %v6567
    %7403 = vmatprep.subr.bf16.mxu0 %v6572
    %7404 = vmatpush1.bf16.msra.mxu0 %v6571
    %7405 = vmatprep.mubr.bf16.mxu0 %v5980
    %7406 = vmatmul.mubr.bf16.gmra.mrb[0].mxu0 %v5979
    %v7407 = vpop.f32.mrb[0].mxu0
    %v7408 = vadd.f32 %v7367, %v7407
    %v7409 = vpop.f32.mrb[0].mxu0
    %v7410 = vadd.f32 %v7369, %v7409
    %v7411 = vpop.f32.mrb[0].mxu0
    %v7412 = vpop.f32.mrb[0].mxu0
    %7413 = vdwg.mxu0
    %7414 = vmatprep.subr.bf16.mxu0 %v6576
    %7415 = vmatpush1.bf16.msra.mxu0 %v6575
    %7416 = vmatprep.subr.bf16.mxu0 %v6580
    %7417 = vmatpush1.bf16.msra.mxu0 %v6579
    %7418 = vmatprep.subr.bf16.mxu0 %v6584
    %7419 = vmatpush1.bf16.msra.mxu0 %v6583
    %7420 = vmatprep.subr.bf16.mxu0 %v6588
    %7421 = vmatpush1.bf16.msra.mxu0 %v6587
    %7422 = vmatprep.subr.bf16.mxu0 %v6592
    %7423 = vmatpush1.bf16.msra.mxu0 %v6591
    %7424 = vmatprep.subr.bf16.mxu0 %v6596
    %7425 = vmatpush1.bf16.msra.mxu0 %v6595
    %7426 = vmatprep.subr.bf16.mxu0 %v6600
    %7427 = vmatpush1.bf16.msra.mxu0 %v6599
    %7428 = vmatprep.subr.bf16.mxu0 %v6604
    %7429 = vmatpush1.bf16.msra.mxu0 %v6603
    %7430 = vmatprep.subr.bf16.mxu0 %v6608
    %7431 = vmatpush1.bf16.msra.mxu0 %v6607
    %7432 = vmatprep.subr.bf16.mxu0 %v6612
    %7433 = vmatpush1.bf16.msra.mxu0 %v6611
    %7434 = vmatprep.subr.bf16.mxu0 %v6616
    %7435 = vmatpush1.bf16.msra.mxu0 %v6615
    %7436 = vmatprep.subr.bf16.mxu0 %v6620
    %7437 = vmatpush1.bf16.msra.mxu0 %v6619
    %7438 = vmatprep.subr.bf16.mxu0 %v6624
    %7439 = vmatpush1.bf16.msra.mxu0 %v6623
    %7440 = vmatprep.subr.bf16.mxu0 %v6628
    %7441 = vmatpush1.bf16.msra.mxu0 %v6627
    %7442 = vmatprep.subr.bf16.mxu0 %v6632
    %7443 = vmatpush1.bf16.msra.mxu0 %v6631
    %7444 = vmatprep.subr.bf16.mxu0 %v6636
    %7445 = vmatpush1.bf16.msra.mxu0 %v6635
    %7446 = vmatprep.mubr.bf16.mxu0 %v5982
    %7447 = vmatmul.mubr.bf16.gmra.mrb[0].mxu0 %v5981
    %v7448 = vpop.f32.mrb[0].mxu0
    %v7449 = vadd.f32 %v7408, %v7448
    %v7450 = vpop.f32.mrb[0].mxu0
    %v7451 = vadd.f32 %v7410, %v7450
    %v7452 = vpop.f32.mrb[0].mxu0
    %v7453 = vpop.f32.mrb[0].mxu0
    %7454 = vdwg.mxu0
    %7455 = vmatprep.subr.bf16.mxu0 %v6640
    %7456 = vmatpush1.bf16.msra.mxu0 %v6639
    %7457 = vmatprep.subr.bf16.mxu0 %v6644
    %7458 = vmatpush1.bf16.msra.mxu0 %v6643
    %7459 = vmatprep.subr.bf16.mxu0 %v6648
    %7460 = vmatpush1.bf16.msra.mxu0 %v6647
    %7461 = vmatprep.subr.bf16.mxu0 %v6652
    %7462 = vmatpush1.bf16.msra.mxu0 %v6651
    %7463 = vmatprep.subr.bf16.mxu0 %v6656
    %7464 = vmatpush1.bf16.msra.mxu0 %v6655
    %7465 = vmatprep.subr.bf16.mxu0 %v6660
    %7466 = vmatpush1.bf16.msra.mxu0 %v6659
    %7467 = vmatprep.subr.bf16.mxu0 %v6664
    %7468 = vmatpush1.bf16.msra.mxu0 %v6663
    %7469 = vmatprep.subr.bf16.mxu0 %v6668
    %7470 = vmatpush1.bf16.msra.mxu0 %v6667
    %7471 = vmatprep.subr.bf16.mxu0 %v6672
    %7472 = vmatpush1.bf16.msra.mxu0 %v6671
    %7473 = vmatprep.subr.bf16.mxu0 %v6676
    %7474 = vmatpush1.bf16.msra.mxu0 %v6675
    %7475 = vmatprep.subr.bf16.mxu0 %v6680
    %7476 = vmatpush1.bf16.msra.mxu0 %v6679
    %7477 = vmatprep.subr.bf16.mxu0 %v6684
    %7478 = vmatpush1.bf16.msra.mxu0 %v6683
    %7479 = vmatprep.subr.bf16.mxu0 %v6688
    %7480 = vmatpush1.bf16.msra.mxu0 %v6687
    %7481 = vmatprep.subr.bf16.mxu0 %v6692
    %7482 = vmatpush1.bf16.msra.mxu0 %v6691
    %7483 = vmatprep.subr.bf16.mxu0 %v6696
    %7484 = vmatpush1.bf16.msra.mxu0 %v6695
    %7485 = vmatprep.subr.bf16.mxu0 %v6700
    %7486 = vmatpush1.bf16.msra.mxu0 %v6699
    %7487 = vmatprep.mubr.bf16.mxu0 %v5984
    %7488 = vmatmul.mubr.bf16.gmra.mrb[0].mxu0 %v5983
    %v7489 = vpop.f32.mrb[0].mxu0
    %v7490 = vadd.f32 %v7449, %v7489
    %v7491 = vpop.f32.mrb[0].mxu0
    %v7492 = vadd.f32 %v7451, %v7491
    %v7493 = vpop.f32.mrb[0].mxu0
    %v7494 = vpop.f32.mrb[0].mxu0
    %7495 = vdwg.mxu0
    %7496 = vmatprep.subr.bf16.mxu0 %v6704
    %7497 = vmatpush1.bf16.msra.mxu0 %v6703
    %7498 = vmatprep.subr.bf16.mxu0 %v6708
    %7499 = vmatpush1.bf16.msra.mxu0 %v6707
    %7500 = vmatprep.subr.bf16.mxu0 %v6712
    %7501 = vmatpush1.bf16.msra.mxu0 %v6711
    %7502 = vmatprep.subr.bf16.mxu0 %v6716
    %7503 = vmatpush1.bf16.msra.mxu0 %v6715
    %7504 = vmatprep.subr.bf16.mxu0 %v6720
    %7505 = vmatpush1.bf16.msra.mxu0 %v6719
    %7506 = vmatprep.subr.bf16.mxu0 %v6724
    %7507 = vmatpush1.bf16.msra.mxu0 %v6723
    %7508 = vmatprep.subr.bf16.mxu0 %v6728
    %7509 = vmatpush1.bf16.msra.mxu0 %v6727
    %7510 = vmatprep.subr.bf16.mxu0 %v6732
    %7511 = vmatpush1.bf16.msra.mxu0 %v6731
    %7512 = vmatprep.subr.bf16.mxu0 %v6736
    %7513 = vmatpush1.bf16.msra.mxu0 %v6735
    %7514 = vmatprep.subr.bf16.mxu0 %v6740
    %7515 = vmatpush1.bf16.msra.mxu0 %v6739
    %7516 = vmatprep.subr.bf16.mxu0 %v6744
    %7517 = vmatpush1.bf16.msra.mxu0 %v6743
    %7518 = vmatprep.subr.bf16.mxu0 %v6748
    %7519 = vmatpush1.bf16.msra.mxu0 %v6747
    %7520 = vmatprep.subr.bf16.mxu0 %v6752
    %7521 = vmatpush1.bf16.msra.mxu0 %v6751
    %7522 = vmatprep.subr.bf16.mxu0 %v6756
    %7523 = vmatpush1.bf16.msra.mxu0 %v6755
    %7524 = vmatprep.subr.bf16.mxu0 %v6760
    %7525 = vmatpush1.bf16.msra.mxu0 %v6759
    %7526 = vmatprep.subr.bf16.mxu0 %v6764
    %7527 = vmatpush1.bf16.msra.mxu0 %v6763
    %7528 = vmatprep.mubr.bf16.mxu0 %v5986
    %7529 = vmatmul.mubr.bf16.gmra.mrb[0].mxu0 %v5985
    %v7530 = vpop.f32.mrb[0].mxu0
    %v7531 = vadd.f32 %v7490, %v7530
    %v7532 = vpop.f32.mrb[0].mxu0
    %v7533 = vadd.f32 %v7492, %v7532
    %v7534 = vpop.f32.mrb[0].mxu0
    %v7535 = vpop.f32.mrb[0].mxu0
    %7536 = vdwg.mxu0
    %7537 = vmatprep.subr.bf16.mxu0 %v6768
    %7538 = vmatpush1.bf16.msra.mxu0 %v6767
    %7539 = vmatprep.subr.bf16.mxu0 %v6772
    %7540 = vmatpush1.bf16.msra.mxu0 %v6771
    %7541 = vmatprep.subr.bf16.mxu0 %v6776
    %7542 = vmatpush1.bf16.msra.mxu0 %v6775
    %7543 = vmatprep.subr.bf16.mxu0 %v6780
    %7544 = vmatpush1.bf16.msra.mxu0 %v6779
    %7545 = vmatprep.subr.bf16.mxu0 %v6784
    %7546 = vmatpush1.bf16.msra.mxu0 %v6783
    %7547 = vmatprep.subr.bf16.mxu0 %v6788
    %7548 = vmatpush1.bf16.msra.mxu0 %v6787
    %7549 = vmatprep.subr.bf16.mxu0 %v6792
    %7550 = vmatpush1.bf16.msra.mxu0 %v6791
    %7551 = vmatprep.subr.bf16.mxu0 %v6796
    %7552 = vmatpush1.bf16.msra.mxu0 %v6795
    %7553 = vmatprep.subr.bf16.mxu0 %v6800
    %7554 = vmatpush1.bf16.msra.mxu0 %v6799
    %7555 = vmatprep.subr.bf16.mxu0 %v6804
    %7556 = vmatpush1.bf16.msra.mxu0 %v6803
    %7557 = vmatprep.subr.bf16.mxu0 %v6808
    %7558 = vmatpush1.bf16.msra.mxu0 %v6807
    %7559 = vmatprep.subr.bf16.mxu0 %v6812
    %7560 = vmatpush1.bf16.msra.mxu0 %v6811
    %7561 = vmatprep.subr.bf16.mxu0 %v6816
    %7562 = vmatpush1.bf16.msra.mxu0 %v6815
    %7563 = vmatprep.subr.bf16.mxu0 %v6820
    %7564 = vmatpush1.bf16.msra.mxu0 %v6819
    %7565 = vmatprep.subr.bf16.mxu0 %v6824
    %7566 = vmatpush1.bf16.msra.mxu0 %v6823
    %7567 = vmatprep.subr.bf16.mxu0 %v6828
    %7568 = vmatpush1.bf16.msra.mxu0 %v6827
    %7569 = vmatprep.mubr.bf16.mxu0 %v5988
    %7570 = vmatmul.mubr.bf16.gmra.mrb[0].mxu0 %v5987
    %v7571 = vpop.f32.mrb[0].mxu0
    %v7572 = vadd.f32 %v7531, %v7571
    %v7573 = vpop.f32.mrb[0].mxu0
    %v7574 = vadd.f32 %v7533, %v7573
    %v7575 = vpop.f32.mrb[0].mxu0
    %v7576 = vpop.f32.mrb[0].mxu0
    %7577 = vdwg.mxu0
    %7578 = vmatprep.subr.bf16.mxu0 %v6832
    %7579 = vmatpush1.bf16.msra.mxu0 %v6831
    %7580 = vmatprep.subr.bf16.mxu0 %v6836
    %7581 = vmatpush1.bf16.msra.mxu0 %v6835
    %7582 = vmatprep.subr.bf16.mxu0 %v6840
    %7583 = vmatpush1.bf16.msra.mxu0 %v6839
    %7584 = vmatprep.subr.bf16.mxu0 %v6844
    %7585 = vmatpush1.bf16.msra.mxu0 %v6843
    %7586 = vmatprep.subr.bf16.mxu0 %v6848
    %7587 = vmatpush1.bf16.msra.mxu0 %v6847
    %7588 = vmatprep.subr.bf16.mxu0 %v6852
    %7589 = vmatpush1.bf16.msra.mxu0 %v6851
    %7590 = vmatprep.subr.bf16.mxu0 %v6856
    %7591 = vmatpush1.bf16.msra.mxu0 %v6855
    %7592 = vmatprep.subr.bf16.mxu0 %v6860
    %7593 = vmatpush1.bf16.msra.mxu0 %v6859
    %7594 = vmatprep.subr.bf16.mxu0 %v6864
    %7595 = vmatpush1.bf16.msra.mxu0 %v6863
    %7596 = vmatprep.subr.bf16.mxu0 %v6868
    %7597 = vmatpush1.bf16.msra.mxu0 %v6867
    %7598 = vmatprep.subr.bf16.mxu0 %v6872
    %7599 = vmatpush1.bf16.msra.mxu0 %v6871
    %7600 = vmatprep.subr.bf16.mxu0 %v6876
    %7601 = vmatpush1.bf16.msra.mxu0 %v6875
    %7602 = vmatprep.subr.bf16.mxu0 %v6880
    %7603 = vmatpush1.bf16.msra.mxu0 %v6879
    %7604 = vmatprep.subr.bf16.mxu0 %v6884
    %7605 = vmatpush1.bf16.msra.mxu0 %v6883
    %7606 = vmatprep.subr.bf16.mxu0 %v6888
    %7607 = vmatpush1.bf16.msra.mxu0 %v6887
    %7608 = vmatprep.subr.bf16.mxu0 %v6892
    %7609 = vmatpush1.bf16.msra.mxu0 %v6891
    %7610 = vmatprep.mubr.bf16.mxu0 %v5990
    %7611 = vmatmul.mubr.bf16.gmra.mrb[0].mxu0 %v5989
    %v7612 = vpop.f32.mrb[0].mxu0
    %v7613 = vadd.f32 %v7572, %v7612
    %v7614 = vpop.f32.mrb[0].mxu0
    %v7615 = vadd.f32 %v7574, %v7614
    %v7616 = vpop.f32.mrb[0].mxu0
    %v7617 = vpop.f32.mrb[0].mxu0
    %7618 = vdwg.mxu0
    %7619 = vmatprep.subr.bf16.mxu0 %v6896
    %7620 = vmatpush1.bf16.msra.mxu0 %v6895
    %7621 = vmatprep.subr.bf16.mxu0 %v6900
    %7622 = vmatpush1.bf16.msra.mxu0 %v6899
    %7623 = vmatprep.subr.bf16.mxu0 %v6904
    %7624 = vmatpush1.bf16.msra.mxu0 %v6903
    %7625 = vmatprep.subr.bf16.mxu0 %v6908
    %7626 = vmatpush1.bf16.msra.mxu0 %v6907
    %7627 = vmatprep.subr.bf16.mxu0 %v6912
    %7628 = vmatpush1.bf16.msra.mxu0 %v6911
    %7629 = vmatprep.subr.bf16.mxu0 %v6916
    %7630 = vmatpush1.bf16.msra.mxu0 %v6915
    %7631 = vmatprep.subr.bf16.mxu0 %v6920
    %7632 = vmatpush1.bf16.msra.mxu0 %v6919
    %7633 = vmatprep.subr.bf16.mxu0 %v6924
    %7634 = vmatpush1.bf16.msra.mxu0 %v6923
    %7635 = vmatprep.subr.bf16.mxu0 %v6928
    %7636 = vmatpush1.bf16.msra.mxu0 %v6927
    %7637 = vmatprep.subr.bf16.mxu0 %v6932
    %7638 = vmatpush1.bf16.msra.mxu0 %v6931
    %7639 = vmatprep.subr.bf16.mxu0 %v6936
    %7640 = vmatpush1.bf16.msra.mxu0 %v6935
    %7641 = vmatprep.subr.bf16.mxu0 %v6940
    %7642 = vmatpush1.bf16.msra.mxu0 %v6939
    %7643 = vmatprep.subr.bf16.mxu0 %v6944
    %7644 = vmatpush1.bf16.msra.mxu0 %v6943
    %7645 = vmatprep.subr.bf16.mxu0 %v6948
    %7646 = vmatpush1.bf16.msra.mxu0 %v6947
    %7647 = vmatprep.subr.bf16.mxu0 %v6952
    %7648 = vmatpush1.bf16.msra.mxu0 %v6951
    %7649 = vmatprep.subr.bf16.mxu0 %v6956
    %7650 = vmatpush1.bf16.msra.mxu0 %v6955
    %7651 = vmatprep.mubr.bf16.mxu0 %v5992
    %7652 = vmatmul.mubr.bf16.gmra.mrb[0].mxu0 %v5991
    %v7653 = vpop.f32.mrb[0].mxu0
    %v7654 = vadd.f32 %v7613, %v7653
    %v7655 = vpop.f32.mrb[0].mxu0
    %v7656 = vadd.f32 %v7615, %v7655
    %v7657 = vpop.f32.mrb[0].mxu0
    %v7658 = vpop.f32.mrb[0].mxu0
    %7659 = vdwg.mxu0
    %7660 = vmatprep.subr.bf16.mxu0 %v6960
    %7661 = vmatpush1.bf16.msra.mxu0 %v6959
    %7662 = vmatprep.subr.bf16.mxu0 %v6964
    %7663 = vmatpush1.bf16.msra.mxu0 %v6963
    %7664 = vmatprep.subr.bf16.mxu0 %v6968
    %7665 = vmatpush1.bf16.msra.mxu0 %v6967
    %7666 = vmatprep.subr.bf16.mxu0 %v6972
    %7667 = vmatpush1.bf16.msra.mxu0 %v6971
    %7668 = vmatprep.subr.bf16.mxu0 %v6976
    %7669 = vmatpush1.bf16.msra.mxu0 %v6975
    %7670 = vmatprep.subr.bf16.mxu0 %v6980
    %7671 = vmatpush1.bf16.msra.mxu0 %v6979
    %7672 = vmatprep.subr.bf16.mxu0 %v6984
    %7673 = vmatpush1.bf16.msra.mxu0 %v6983
    %7674 = vmatprep.subr.bf16.mxu0 %v6988
    %7675 = vmatpush1.bf16.msra.mxu0 %v6987
    %7676 = vmatprep.subr.bf16.mxu0 %v6992
    %7677 = vmatpush1.bf16.msra.mxu0 %v6991
    %7678 = vmatprep.subr.bf16.mxu0 %v6996
    %7679 = vmatpush1.bf16.msra.mxu0 %v6995
    %7680 = vmatprep.subr.bf16.mxu0 %v7000
    %7681 = vmatpush1.bf16.msra.mxu0 %v6999
    %7682 = vmatprep.subr.bf16.mxu0 %v7004
    %7683 = vmatpush1.bf16.msra.mxu0 %v7003
    %7684 = vmatprep.subr.bf16.mxu0 %v7008
    %7685 = vmatpush1.bf16.msra.mxu0 %v7007
    %7686 = vmatprep.subr.bf16.mxu0 %v7012
    %7687 = vmatpush1.bf16.msra.mxu0 %v7011
    %7688 = vmatprep.subr.bf16.mxu0 %v7016
    %7689 = vmatpush1.bf16.msra.mxu0 %v7015
    %7690 = vmatprep.subr.bf16.mxu0 %v7020
    %7691 = vmatpush1.bf16.msra.mxu0 %v7019
    %7692 = vmatprep.mubr.bf16.mxu0 %v5994
    %7693 = vmatmul.mubr.bf16.gmra.mrb[0].mxu0 %v5993
    %v7694 = vpop.f32.mrb[0].mxu0
    %v7695 = vadd.f32 %v7654, %v7694
    %v7696 = vpop.f32.mrb[0].mxu0
    %v7697 = vadd.f32 %v7656, %v7696
    %v7698 = vpop.f32.mrb[0].mxu0
    %v7699 = vpop.f32.mrb[0].mxu0
    %7700 = vdwg.mxu0
    %7701 = vmatprep.subr.bf16.mxu0 %v6002
    %7702 = vmatpush1.bf16.msra.mxu0 %v6001
    %7703 = vmatprep.subr.bf16.mxu0 %v6006
    %7704 = vmatpush1.bf16.msra.mxu0 %v6005
    %7705 = vmatprep.subr.bf16.mxu0 %v6010
    %7706 = vmatpush1.bf16.msra.mxu0 %v6009
    %7707 = vmatprep.subr.bf16.mxu0 %v6014
    %7708 = vmatpush1.bf16.msra.mxu0 %v6013
    %7709 = vmatprep.subr.bf16.mxu0 %v6018
    %7710 = vmatpush1.bf16.msra.mxu0 %v6017
    %7711 = vmatprep.subr.bf16.mxu0 %v6022
    %7712 = vmatpush1.bf16.msra.mxu0 %v6021
    %7713 = vmatprep.subr.bf16.mxu0 %v6026
    %7714 = vmatpush1.bf16.msra.mxu0 %v6025
    %7715 = vmatprep.subr.bf16.mxu0 %v6030
    %7716 = vmatpush1.bf16.msra.mxu0 %v6029
    %7717 = vmatprep.subr.bf16.mxu0 %v6034
    %7718 = vmatpush1.bf16.msra.mxu0 %v6033
    %7719 = vmatprep.subr.bf16.mxu0 %v6038
    %7720 = vmatpush1.bf16.msra.mxu0 %v6037
    %7721 = vmatprep.subr.bf16.mxu0 %v6042
    %7722 = vmatpush1.bf16.msra.mxu0 %v6041
    %7723 = vmatprep.subr.bf16.mxu0 %v6046
    %7724 = vmatpush1.bf16.msra.mxu0 %v6045
    %7725 = vmatprep.subr.bf16.mxu0 %v6050
    %7726 = vmatpush1.bf16.msra.mxu0 %v6049
    %7727 = vmatprep.subr.bf16.mxu0 %v6054
    %7728 = vmatpush1.bf16.msra.mxu0 %v6053
    %7729 = vmatprep.subr.bf16.mxu0 %v6058
    %7730 = vmatpush1.bf16.msra.mxu0 %v6057
    %7731 = vmatprep.subr.bf16.mxu0 %v6062
    %7732 = vmatpush1.bf16.msra.mxu0 %v6061
    %7733 = vmatprep.mubr.bf16.mxu0 %v5964
    %7734 = vmatmul.mubr.bf16.gmra.mrb[0].mxu0 %v5963
    %v7735 = vpop.f32.mrb[0].mxu0
    %v7736 = vadd.f32 %v7036, %v7735
    %v7737 = vpop.f32.mrb[0].mxu0
    %v7738 = vadd.f32 %v7040, %v7737
    %v7739 = vpop.f32.mrb[0].mxu0
    %v7740 = vpop.f32.mrb[0].mxu0
    %7741 = vdwg.mxu0
    %7742 = vmatprep.subr.bf16.mxu0 %v6066
    %7743 = vmatpush1.bf16.msra.mxu0 %v6065
    %7744 = vmatprep.subr.bf16.mxu0 %v6070
    %7745 = vmatpush1.bf16.msra.mxu0 %v6069
    %7746 = vmatprep.subr.bf16.mxu0 %v6074
    %7747 = vmatpush1.bf16.msra.mxu0 %v6073
    %7748 = vmatprep.subr.bf16.mxu0 %v6078
    %7749 = vmatpush1.bf16.msra.mxu0 %v6077
    %7750 = vmatprep.subr.bf16.mxu0 %v6082
    %7751 = vmatpush1.bf16.msra.mxu0 %v6081
    %7752 = vmatprep.subr.bf16.mxu0 %v6086
    %7753 = vmatpush1.bf16.msra.mxu0 %v6085
    %7754 = vmatprep.subr.bf16.mxu0 %v6090
    %7755 = vmatpush1.bf16.msra.mxu0 %v6089
    %7756 = vmatprep.subr.bf16.mxu0 %v6094
    %7757 = vmatpush1.bf16.msra.mxu0 %v6093
    %7758 = vmatprep.subr.bf16.mxu0 %v6098
    %7759 = vmatpush1.bf16.msra.mxu0 %v6097
    %7760 = vmatprep.subr.bf16.mxu0 %v6102
    %7761 = vmatpush1.bf16.msra.mxu0 %v6101
    %7762 = vmatprep.subr.bf16.mxu0 %v6106
    %7763 = vmatpush1.bf16.msra.mxu0 %v6105
    %7764 = vmatprep.subr.bf16.mxu0 %v6110
    %7765 = vmatpush1.bf16.msra.mxu0 %v6109
    %7766 = vmatprep.subr.bf16.mxu0 %v6114
    %7767 = vmatpush1.bf16.msra.mxu0 %v6113
    %7768 = vmatprep.subr.bf16.mxu0 %v6118
    %7769 = vmatpush1.bf16.msra.mxu0 %v6117
    %7770 = vmatprep.subr.bf16.mxu0 %v6122
    %7771 = vmatpush1.bf16.msra.mxu0 %v6121
    %7772 = vmatprep.subr.bf16.mxu0 %v6126
    %7773 = vmatpush1.bf16.msra.mxu0 %v6125
    %7774 = vmatprep.mubr.bf16.mxu0 %v5966
    %7775 = vmatmul.mubr.bf16.gmra.mrb[0].mxu0 %v5965
    %v7776 = vpop.f32.mrb[0].mxu0
    %v7777 = vadd.f32 %v7736, %v7776
    %v7778 = vpop.f32.mrb[0].mxu0
    %v7779 = vadd.f32 %v7738, %v7778
    %v7780 = vpop.f32.mrb[0].mxu0
    %v7781 = vpop.f32.mrb[0].mxu0
    %7782 = vdwg.mxu0
    %7783 = vmatprep.subr.bf16.mxu0 %v6130
    %7784 = vmatpush1.bf16.msra.mxu0 %v6129
    %7785 = vmatprep.subr.bf16.mxu0 %v6134
    %7786 = vmatpush1.bf16.msra.mxu0 %v6133
    %7787 = vmatprep.subr.bf16.mxu0 %v6138
    %7788 = vmatpush1.bf16.msra.mxu0 %v6137
    %7789 = vmatprep.subr.bf16.mxu0 %v6142
    %7790 = vmatpush1.bf16.msra.mxu0 %v6141
    %7791 = vmatprep.subr.bf16.mxu0 %v6146
    %7792 = vmatpush1.bf16.msra.mxu0 %v6145
    %7793 = vmatprep.subr.bf16.mxu0 %v6150
    %7794 = vmatpush1.bf16.msra.mxu0 %v6149
    %7795 = vmatprep.subr.bf16.mxu0 %v6154
    %7796 = vmatpush1.bf16.msra.mxu0 %v6153
    %7797 = vmatprep.subr.bf16.mxu0 %v6158
    %7798 = vmatpush1.bf16.msra.mxu0 %v6157
    %7799 = vmatprep.subr.bf16.mxu0 %v6162
    %7800 = vmatpush1.bf16.msra.mxu0 %v6161
    %7801 = vmatprep.subr.bf16.mxu0 %v6166
    %7802 = vmatpush1.bf16.msra.mxu0 %v6165
    %7803 = vmatprep.subr.bf16.mxu0 %v6170
    %7804 = vmatpush1.bf16.msra.mxu0 %v6169
    %7805 = vmatprep.subr.bf16.mxu0 %v6174
    %7806 = vmatpush1.bf16.msra.mxu0 %v6173
    %7807 = vmatprep.subr.bf16.mxu0 %v6178
    %7808 = vmatpush1.bf16.msra.mxu0 %v6177
    %7809 = vmatprep.subr.bf16.mxu0 %v6182
    %7810 = vmatpush1.bf16.msra.mxu0 %v6181
    %7811 = vmatprep.subr.bf16.mxu0 %v6186
    %7812 = vmatpush1.bf16.msra.mxu0 %v6185
    %7813 = vmatprep.subr.bf16.mxu0 %v6190
    %7814 = vmatpush1.bf16.msra.mxu0 %v6189
    %7815 = vmatprep.mubr.bf16.mxu0 %v5968
    %7816 = vmatmul.mubr.bf16.gmra.mrb[0].mxu0 %v5967
    %v7817 = vpop.f32.mrb[0].mxu0
    %v7818 = vadd.f32 %v7777, %v7817
    %v7819 = vpop.f32.mrb[0].mxu0
    %v7820 = vadd.f32 %v7779, %v7819
    %v7821 = vpop.f32.mrb[0].mxu0
    %v7822 = vpop.f32.mrb[0].mxu0
    %7823 = vdwg.mxu0
    %7824 = vmatprep.subr.bf16.mxu0 %v6194
    %7825 = vmatpush1.bf16.msra.mxu0 %v6193
    %7826 = vmatprep.subr.bf16.mxu0 %v6198
    %7827 = vmatpush1.bf16.msra.mxu0 %v6197
    %7828 = vmatprep.subr.bf16.mxu0 %v6202
    %7829 = vmatpush1.bf16.msra.mxu0 %v6201
    %7830 = vmatprep.subr.bf16.mxu0 %v6206
    %7831 = vmatpush1.bf16.msra.mxu0 %v6205
    %7832 = vmatprep.subr.bf16.mxu0 %v6210
    %7833 = vmatpush1.bf16.msra.mxu0 %v6209
    %7834 = vmatprep.subr.bf16.mxu0 %v6214
    %7835 = vmatpush1.bf16.msra.mxu0 %v6213
    %7836 = vmatprep.subr.bf16.mxu0 %v6218
    %7837 = vmatpush1.bf16.msra.mxu0 %v6217
    %7838 = vmatprep.subr.bf16.mxu0 %v6222
    %7839 = vmatpush1.bf16.msra.mxu0 %v6221
    %7840 = vmatprep.subr.bf16.mxu0 %v6226
    %7841 = vmatpush1.bf16.msra.mxu0 %v6225
    %7842 = vmatprep.subr.bf16.mxu0 %v6230
    %7843 = vmatpush1.bf16.msra.mxu0 %v6229
    %7844 = vmatprep.subr.bf16.mxu0 %v6234
    %7845 = vmatpush1.bf16.msra.mxu0 %v6233
    %7846 = vmatprep.subr.bf16.mxu0 %v6238
    %7847 = vmatpush1.bf16.msra.mxu0 %v6237
    %7848 = vmatprep.subr.bf16.mxu0 %v6242
    %7849 = vmatpush1.bf16.msra.mxu0 %v6241
    %7850 = vmatprep.subr.bf16.mxu0 %v6246
    %7851 = vmatpush1.bf16.msra.mxu0 %v6245
    %7852 = vmatprep.subr.bf16.mxu0 %v6250
    %7853 = vmatpush1.bf16.msra.mxu0 %v6249
    %7854 = vmatprep.subr.bf16.mxu0 %v6254
    %7855 = vmatpush1.bf16.msra.mxu0 %v6253
    %7856 = vmatprep.mubr.bf16.mxu0 %v5970
    %7857 = vmatmul.mubr.bf16.gmra.mrb[0].mxu0 %v5969
    %v7858 = vpop.f32.mrb[0].mxu0
    %v7859 = vadd.f32 %v7818, %v7858
    %v7860 = vpop.f32.mrb[0].mxu0
    %v7861 = vadd.f32 %v7820, %v7860
    %v7862 = vpop.f32.mrb[0].mxu0
    %v7863 = vpop.f32.mrb[0].mxu0
    %7864 = vdwg.mxu0
    %7865 = vmatprep.subr.bf16.mxu0 %v6258
    %7866 = vmatpush1.bf16.msra.mxu0 %v6257
    %7867 = vmatprep.subr.bf16.mxu0 %v6262
    %7868 = vmatpush1.bf16.msra.mxu0 %v6261
    %7869 = vmatprep.subr.bf16.mxu0 %v6266
    %7870 = vmatpush1.bf16.msra.mxu0 %v6265
    %7871 = vmatprep.subr.bf16.mxu0 %v6270
    %7872 = vmatpush1.bf16.msra.mxu0 %v6269
    %7873 = vmatprep.subr.bf16.mxu0 %v6274
    %7874 = vmatpush1.bf16.msra.mxu0 %v6273
    %7875 = vmatprep.subr.bf16.mxu0 %v6278
    %7876 = vmatpush1.bf16.msra.mxu0 %v6277
    %7877 = vmatprep.subr.bf16.mxu0 %v6282
    %7878 = vmatpush1.bf16.msra.mxu0 %v6281
    %7879 = vmatprep.subr.bf16.mxu0 %v6286
    %7880 = vmatpush1.bf16.msra.mxu0 %v6285
    %7881 = vmatprep.subr.bf16.mxu0 %v6290
    %7882 = vmatpush1.bf16.msra.mxu0 %v6289
    %7883 = vmatprep.subr.bf16.mxu0 %v6294
    %7884 = vmatpush1.bf16.msra.mxu0 %v6293
    %7885 = vmatprep.subr.bf16.mxu0 %v6298
    %7886 = vmatpush1.bf16.msra.mxu0 %v6297
    %7887 = vmatprep.subr.bf16.mxu0 %v6302
    %7888 = vmatpush1.bf16.msra.mxu0 %v6301
    %7889 = vmatprep.subr.bf16.mxu0 %v6306
    %7890 = vmatpush1.bf16.msra.mxu0 %v6305
    %7891 = vmatprep.subr.bf16.mxu0 %v6310
    %7892 = vmatpush1.bf16.msra.mxu0 %v6309
    %7893 = vmatprep.subr.bf16.mxu0 %v6314
    %7894 = vmatpush1.bf16.msra.mxu0 %v6313
    %7895 = vmatprep.subr.bf16.mxu0 %v6318
    %7896 = vmatpush1.bf16.msra.mxu0 %v6317
    %7897 = vmatprep.mubr.bf16.mxu0 %v5972
    %7898 = vmatmul.mubr.bf16.gmra.mrb[0].mxu0 %v5971
    %v7899 = vpop.f32.mrb[0].mxu0
    %v7900 = vadd.f32 %v7859, %v7899
    %v7901 = vpop.f32.mrb[0].mxu0
    %v7902 = vadd.f32 %v7861, %v7901
    %v7903 = vpop.f32.mrb[0].mxu0
    %v7904 = vpop.f32.mrb[0].mxu0
    %7905 = vdwg.mxu0
    %7906 = vmatprep.subr.bf16.mxu0 %v6322
    %7907 = vmatpush1.bf16.msra.mxu0 %v6321
    %7908 = vmatprep.subr.bf16.mxu0 %v6326
    %7909 = vmatpush1.bf16.msra.mxu0 %v6325
    %7910 = vmatprep.subr.bf16.mxu0 %v6330
    %7911 = vmatpush1.bf16.msra.mxu0 %v6329
    %7912 = vmatprep.subr.bf16.mxu0 %v6334
    %7913 = vmatpush1.bf16.msra.mxu0 %v6333
    %7914 = vmatprep.subr.bf16.mxu0 %v6338
    %7915 = vmatpush1.bf16.msra.mxu0 %v6337
    %7916 = vmatprep.subr.bf16.mxu0 %v6342
    %7917 = vmatpush1.bf16.msra.mxu0 %v6341
    %7918 = vmatprep.subr.bf16.mxu0 %v6346
    %7919 = vmatpush1.bf16.msra.mxu0 %v6345
    %7920 = vmatprep.subr.bf16.mxu0 %v6350
    %7921 = vmatpush1.bf16.msra.mxu0 %v6349
    %7922 = vmatprep.subr.bf16.mxu0 %v6354
    %7923 = vmatpush1.bf16.msra.mxu0 %v6353
    %7924 = vmatprep.subr.bf16.mxu0 %v6358
    %7925 = vmatpush1.bf16.msra.mxu0 %v6357
    %7926 = vmatprep.subr.bf16.mxu0 %v6362
    %7927 = vmatpush1.bf16.msra.mxu0 %v6361
    %7928 = vmatprep.subr.bf16.mxu0 %v6366
    %7929 = vmatpush1.bf16.msra.mxu0 %v6365
    %7930 = vmatprep.subr.bf16.mxu0 %v6370
    %7931 = vmatpush1.bf16.msra.mxu0 %v6369
    %7932 = vmatprep.subr.bf16.mxu0 %v6374
    %7933 = vmatpush1.bf16.msra.mxu0 %v6373
    %7934 = vmatprep.subr.bf16.mxu0 %v6378
    %7935 = vmatpush1.bf16.msra.mxu0 %v6377
    %7936 = vmatprep.subr.bf16.mxu0 %v6382
    %7937 = vmatpush1.bf16.msra.mxu0 %v6381
    %7938 = vmatprep.mubr.bf16.mxu0 %v5974
    %7939 = vmatmul.mubr.bf16.gmra.mrb[0].mxu0 %v5973
    %v7940 = vpop.f32.mrb[0].mxu0
    %v7941 = vadd.f32 %v7900, %v7940
    %v7942 = vpop.f32.mrb[0].mxu0
    %v7943 = vadd.f32 %v7902, %v7942
    %v7944 = vpop.f32.mrb[0].mxu0
    %v7945 = vpop.f32.mrb[0].mxu0
    %7946 = vdwg.mxu0
    %7947 = vmatprep.subr.bf16.mxu0 %v6386
    %7948 = vmatpush1.bf16.msra.mxu0 %v6385
    %7949 = vmatprep.subr.bf16.mxu0 %v6390
    %7950 = vmatpush1.bf16.msra.mxu0 %v6389
    %7951 = vmatprep.subr.bf16.mxu0 %v6394
    %7952 = vmatpush1.bf16.msra.mxu0 %v6393
    %7953 = vmatprep.subr.bf16.mxu0 %v6398
    %7954 = vmatpush1.bf16.msra.mxu0 %v6397
    %7955 = vmatprep.subr.bf16.mxu0 %v6402
    %7956 = vmatpush1.bf16.msra.mxu0 %v6401
    %7957 = vmatprep.subr.bf16.mxu0 %v6406
    %7958 = vmatpush1.bf16.msra.mxu0 %v6405
    %7959 = vmatprep.subr.bf16.mxu0 %v6410
    %7960 = vmatpush1.bf16.msra.mxu0 %v6409
    %7961 = vmatprep.subr.bf16.mxu0 %v6414
    %7962 = vmatpush1.bf16.msra.mxu0 %v6413
    %7963 = vmatprep.subr.bf16.mxu0 %v6418
    %7964 = vmatpush1.bf16.msra.mxu0 %v6417
    %7965 = vmatprep.subr.bf16.mxu0 %v6422
    %7966 = vmatpush1.bf16.msra.mxu0 %v6421
    %7967 = vmatprep.subr.bf16.mxu0 %v6426
    %7968 = vmatpush1.bf16.msra.mxu0 %v6425
    %7969 = vmatprep.subr.bf16.mxu0 %v6430
    %7970 = vmatpush1.bf16.msra.mxu0 %v6429
    %7971 = vmatprep.subr.bf16.mxu0 %v6434
    %7972 = vmatpush1.bf16.msra.mxu0 %v6433
    %7973 = vmatprep.subr.bf16.mxu0 %v6438
    %7974 = vmatpush1.bf16.msra.mxu0 %v6437
    %7975 = vmatprep.subr.bf16.mxu0 %v6442
    %7976 = vmatpush1.bf16.msra.mxu0 %v6441
    %7977 = vmatprep.subr.bf16.mxu0 %v6446
    %7978 = vmatpush1.bf16.msra.mxu0 %v6445
    %7979 = vmatprep.mubr.bf16.mxu0 %v5976
    %7980 = vmatmul.mubr.bf16.gmra.mrb[0].mxu0 %v5975
    %v7981 = vpop.f32.mrb[0].mxu0
    %v7982 = vadd.f32 %v7941, %v7981
    %v7983 = vpop.f32.mrb[0].mxu0
    %v7984 = vadd.f32 %v7943, %v7983
    %v7985 = vpop.f32.mrb[0].mxu0
    %v7986 = vpop.f32.mrb[0].mxu0
    %7987 = vdwg.mxu0
    %7988 = vmatprep.subr.bf16.mxu0 %v6450
    %7989 = vmatpush1.bf16.msra.mxu0 %v6449
    %7990 = vmatprep.subr.bf16.mxu0 %v6454
    %7991 = vmatpush1.bf16.msra.mxu0 %v6453
    %7992 = vmatprep.subr.bf16.mxu0 %v6458
    %7993 = vmatpush1.bf16.msra.mxu0 %v6457
    %7994 = vmatprep.subr.bf16.mxu0 %v6462
    %7995 = vmatpush1.bf16.msra.mxu0 %v6461
    %7996 = vmatprep.subr.bf16.mxu0 %v6466
    %7997 = vmatpush1.bf16.msra.mxu0 %v6465
    %7998 = vmatprep.subr.bf16.mxu0 %v6470
    %7999 = vmatpush1.bf16.msra.mxu0 %v6469
    %8000 = vmatprep.subr.bf16.mxu0 %v6474
    %8001 = vmatpush1.bf16.msra.mxu0 %v6473
    %8002 = vmatprep.subr.bf16.mxu0 %v6478
    %8003 = vmatpush1.bf16.msra.mxu0 %v6477
    %8004 = vmatprep.subr.bf16.mxu0 %v6482
    %8005 = vmatpush1.bf16.msra.mxu0 %v6481
    %8006 = vmatprep.subr.bf16.mxu0 %v6486
    %8007 = vmatpush1.bf16.msra.mxu0 %v6485
    %8008 = vmatprep.subr.bf16.mxu0 %v6490
    %8009 = vmatpush1.bf16.msra.mxu0 %v6489
    %8010 = vmatprep.subr.bf16.mxu0 %v6494
    %8011 = vmatpush1.bf16.msra.mxu0 %v6493
    %8012 = vmatprep.subr.bf16.mxu0 %v6498
    %8013 = vmatpush1.bf16.msra.mxu0 %v6497
    %8014 = vmatprep.subr.bf16.mxu0 %v6502
    %8015 = vmatpush1.bf16.msra.mxu0 %v6501
    %8016 = vmatprep.subr.bf16.mxu0 %v6506
    %8017 = vmatpush1.bf16.msra.mxu0 %v6505
    %8018 = vmatprep.subr.bf16.mxu0 %v6510
    %8019 = vmatpush1.bf16.msra.mxu0 %v6509
    %8020 = vmatprep.mubr.bf16.mxu0 %v5978
    %8021 = vmatmul.mubr.bf16.gmra.mrb[0].mxu0 %v5977
    %v8022 = vpop.f32.mrb[0].mxu0
    %v8023 = vadd.f32 %v7982, %v8022
    %v8024 = vpop.f32.mrb[0].mxu0
    %v8025 = vadd.f32 %v7984, %v8024
    %v8026 = vpop.f32.mrb[0].mxu0
    %v8027 = vpop.f32.mrb[0].mxu0
    %8028 = vdwg.mxu0
    %8029 = vmatprep.subr.bf16.mxu0 %v6514
    %8030 = vmatpush1.bf16.msra.mxu0 %v6513
    %8031 = vmatprep.subr.bf16.mxu0 %v6518
    %8032 = vmatpush1.bf16.msra.mxu0 %v6517
    %8033 = vmatprep.subr.bf16.mxu0 %v6522
    %8034 = vmatpush1.bf16.msra.mxu0 %v6521
    %8035 = vmatprep.subr.bf16.mxu0 %v6526
    %8036 = vmatpush1.bf16.msra.mxu0 %v6525
    %8037 = vmatprep.subr.bf16.mxu0 %v6530
    %8038 = vmatpush1.bf16.msra.mxu0 %v6529
    %8039 = vmatprep.subr.bf16.mxu0 %v6534
    %8040 = vmatpush1.bf16.msra.mxu0 %v6533
    %8041 = vmatprep.subr.bf16.mxu0 %v6538
    %8042 = vmatpush1.bf16.msra.mxu0 %v6537
    %8043 = vmatprep.subr.bf16.mxu0 %v6542
    %8044 = vmatpush1.bf16.msra.mxu0 %v6541
    %8045 = vmatprep.subr.bf16.mxu0 %v6546
    %8046 = vmatpush1.bf16.msra.mxu0 %v6545
    %8047 = vmatprep.subr.bf16.mxu0 %v6550
    %8048 = vmatpush1.bf16.msra.mxu0 %v6549
    %8049 = vmatprep.subr.bf16.mxu0 %v6554
    %8050 = vmatpush1.bf16.msra.mxu0 %v6553
    %8051 = vmatprep.subr.bf16.mxu0 %v6558
    %8052 = vmatpush1.bf16.msra.mxu0 %v6557
    %8053 = vmatprep.subr.bf16.mxu0 %v6562
    %8054 = vmatpush1.bf16.msra.mxu0 %v6561
    %8055 = vmatprep.subr.bf16.mxu0 %v6566
    %8056 = vmatpush1.bf16.msra.mxu0 %v6565
    %8057 = vmatprep.subr.bf16.mxu0 %v6570
    %8058 = vmatpush1.bf16.msra.mxu0 %v6569
    %8059 = vmatprep.subr.bf16.mxu0 %v6574
    %8060 = vmatpush1.bf16.msra.mxu0 %v6573
    %8061 = vmatprep.mubr.bf16.mxu0 %v5980
    %8062 = vmatmul.mubr.bf16.gmra.mrb[0].mxu0 %v5979
    %v8063 = vpop.f32.mrb[0].mxu0
    %v8064 = vadd.f32 %v8023, %v8063
    %v8065 = vpop.f32.mrb[0].mxu0
    %v8066 = vadd.f32 %v8025, %v8065
    %v8067 = vpop.f32.mrb[0].mxu0
    %v8068 = vpop.f32.mrb[0].mxu0
    %8069 = vdwg.mxu0
    %8070 = vmatprep.subr.bf16.mxu0 %v6578
    %8071 = vmatpush1.bf16.msra.mxu0 %v6577
    %8072 = vmatprep.subr.bf16.mxu0 %v6582
    %8073 = vmatpush1.bf16.msra.mxu0 %v6581
    %8074 = vmatprep.subr.bf16.mxu0 %v6586
    %8075 = vmatpush1.bf16.msra.mxu0 %v6585
    %8076 = vmatprep.subr.bf16.mxu0 %v6590
    %8077 = vmatpush1.bf16.msra.mxu0 %v6589
    %8078 = vmatprep.subr.bf16.mxu0 %v6594
    %8079 = vmatpush1.bf16.msra.mxu0 %v6593
    %8080 = vmatprep.subr.bf16.mxu0 %v6598
    %8081 = vmatpush1.bf16.msra.mxu0 %v6597
    %8082 = vmatprep.subr.bf16.mxu0 %v6602
    %8083 = vmatpush1.bf16.msra.mxu0 %v6601
    %8084 = vmatprep.subr.bf16.mxu0 %v6606
    %8085 = vmatpush1.bf16.msra.mxu0 %v6605
    %8086 = vmatprep.subr.bf16.mxu0 %v6610
    %8087 = vmatpush1.bf16.msra.mxu0 %v6609
    %8088 = vmatprep.subr.bf16.mxu0 %v6614
    %8089 = vmatpush1.bf16.msra.mxu0 %v6613
    %8090 = vmatprep.subr.bf16.mxu0 %v6618
    %8091 = vmatpush1.bf16.msra.mxu0 %v6617
    %8092 = vmatprep.subr.bf16.mxu0 %v6622
    %8093 = vmatpush1.bf16.msra.mxu0 %v6621
    %8094 = vmatprep.subr.bf16.mxu0 %v6626
    %8095 = vmatpush1.bf16.msra.mxu0 %v6625
    %8096 = vmatprep.subr.bf16.mxu0 %v6630
    %8097 = vmatpush1.bf16.msra.mxu0 %v6629
    %8098 = vmatprep.subr.bf16.mxu0 %v6634
    %8099 = vmatpush1.bf16.msra.mxu0 %v6633
    %8100 = vmatprep.subr.bf16.mxu0 %v6638
    %8101 = vmatpush1.bf16.msra.mxu0 %v6637
    %8102 = vmatprep.mubr.bf16.mxu0 %v5982
    %8103 = vmatmul.mubr.bf16.gmra.mrb[0].mxu0 %v5981
    %v8104 = vpop.f32.mrb[0].mxu0
    %v8105 = vadd.f32 %v8064, %v8104
    %v8106 = vpop.f32.mrb[0].mxu0
    %v8107 = vadd.f32 %v8066, %v8106
    %v8108 = vpop.f32.mrb[0].mxu0
    %v8109 = vpop.f32.mrb[0].mxu0
    %8110 = vdwg.mxu0
    %8111 = vmatprep.subr.bf16.mxu0 %v6642
    %8112 = vmatpush1.bf16.msra.mxu0 %v6641
    %8113 = vmatprep.subr.bf16.mxu0 %v6646
    %8114 = vmatpush1.bf16.msra.mxu0 %v6645
    %8115 = vmatprep.subr.bf16.mxu0 %v6650
    %8116 = vmatpush1.bf16.msra.mxu0 %v6649
    %8117 = vmatprep.subr.bf16.mxu0 %v6654
    %8118 = vmatpush1.bf16.msra.mxu0 %v6653
    %8119 = vmatprep.subr.bf16.mxu0 %v6658
    %8120 = vmatpush1.bf16.msra.mxu0 %v6657
    %8121 = vmatprep.subr.bf16.mxu0 %v6662
    %8122 = vmatpush1.bf16.msra.mxu0 %v6661
    %8123 = vmatprep.subr.bf16.mxu0 %v6666
    %8124 = vmatpush1.bf16.msra.mxu0 %v6665
    %8125 = vmatprep.subr.bf16.mxu0 %v6670
    %8126 = vmatpush1.bf16.msra.mxu0 %v6669
    %8127 = vmatprep.subr.bf16.mxu0 %v6674
    %8128 = vmatpush1.bf16.msra.mxu0 %v6673
    %8129 = vmatprep.subr.bf16.mxu0 %v6678
    %8130 = vmatpush1.bf16.msra.mxu0 %v6677
    %8131 = vmatprep.subr.bf16.mxu0 %v6682
    %8132 = vmatpush1.bf16.msra.mxu0 %v6681
    %8133 = vmatprep.subr.bf16.mxu0 %v6686
    %8134 = vmatpush1.bf16.msra.mxu0 %v6685
    %8135 = vmatprep.subr.bf16.mxu0 %v6690
    %8136 = vmatpush1.bf16.msra.mxu0 %v6689
    %8137 = vmatprep.subr.bf16.mxu0 %v6694
    %8138 = vmatpush1.bf16.msra.mxu0 %v6693
    %8139 = vmatprep.subr.bf16.mxu0 %v6698
    %8140 = vmatpush1.bf16.msra.mxu0 %v6697
    %8141 = vmatprep.subr.bf16.mxu0 %v6702
    %8142 = vmatpush1.bf16.msra.mxu0 %v6701
    %8143 = vmatprep.mubr.bf16.mxu0 %v5984
    %8144 = vmatmul.mubr.bf16.gmra.mrb[0].mxu0 %v5983
    %v8145 = vpop.f32.mrb[0].mxu0
    %v8146 = vadd.f32 %v8105, %v8145
    %v8147 = vpop.f32.mrb[0].mxu0
    %v8148 = vadd.f32 %v8107, %v8147
    %v8149 = vpop.f32.mrb[0].mxu0
    %v8150 = vpop.f32.mrb[0].mxu0
    %8151 = vdwg.mxu0
    %8152 = vmatprep.subr.bf16.mxu0 %v6706
    %8153 = vmatpush1.bf16.msra.mxu0 %v6705
    %8154 = vmatprep.subr.bf16.mxu0 %v6710
    %8155 = vmatpush1.bf16.msra.mxu0 %v6709
    %8156 = vmatprep.subr.bf16.mxu0 %v6714
    %8157 = vmatpush1.bf16.msra.mxu0 %v6713
    %8158 = vmatprep.subr.bf16.mxu0 %v6718
    %8159 = vmatpush1.bf16.msra.mxu0 %v6717
    %8160 = vmatprep.subr.bf16.mxu0 %v6722
    %8161 = vmatpush1.bf16.msra.mxu0 %v6721
    %8162 = vmatprep.subr.bf16.mxu0 %v6726
    %8163 = vmatpush1.bf16.msra.mxu0 %v6725
    %8164 = vmatprep.subr.bf16.mxu0 %v6730
    %8165 = vmatpush1.bf16.msra.mxu0 %v6729
    %8166 = vmatprep.subr.bf16.mxu0 %v6734
    %8167 = vmatpush1.bf16.msra.mxu0 %v6733
    %8168 = vmatprep.subr.bf16.mxu0 %v6738
    %8169 = vmatpush1.bf16.msra.mxu0 %v6737
    %8170 = vmatprep.subr.bf16.mxu0 %v6742
    %8171 = vmatpush1.bf16.msra.mxu0 %v6741
    %8172 = vmatprep.subr.bf16.mxu0 %v6746
    %8173 = vmatpush1.bf16.msra.mxu0 %v6745
    %8174 = vmatprep.subr.bf16.mxu0 %v6750
    %8175 = vmatpush1.bf16.msra.mxu0 %v6749
    %8176 = vmatprep.subr.bf16.mxu0 %v6754
    %8177 = vmatpush1.bf16.msra.mxu0 %v6753
    %8178 = vmatprep.subr.bf16.mxu0 %v6758
    %8179 = vmatpush1.bf16.msra.mxu0 %v6757
    %8180 = vmatprep.subr.bf16.mxu0 %v6762
    %8181 = vmatpush1.bf16.msra.mxu0 %v6761
    %8182 = vmatprep.subr.bf16.mxu0 %v6766
    %8183 = vmatpush1.bf16.msra.mxu0 %v6765
    %8184 = vmatprep.mubr.bf16.mxu0 %v5986
    %8185 = vmatmul.mubr.bf16.gmra.mrb[0].mxu0 %v5985
    %v8186 = vpop.f32.mrb[0].mxu0
    %v8187 = vadd.f32 %v8146, %v8186
    %v8188 = vpop.f32.mrb[0].mxu0
    %v8189 = vadd.f32 %v8148, %v8188
    %v8190 = vpop.f32.mrb[0].mxu0
    %v8191 = vpop.f32.mrb[0].mxu0
    %8192 = vdwg.mxu0
    %8193 = vmatprep.subr.bf16.mxu0 %v6770
    %8194 = vmatpush1.bf16.msra.mxu0 %v6769
    %8195 = vmatprep.subr.bf16.mxu0 %v6774
    %8196 = vmatpush1.bf16.msra.mxu0 %v6773
    %8197 = vmatprep.subr.bf16.mxu0 %v6778
    %8198 = vmatpush1.bf16.msra.mxu0 %v6777
    %8199 = vmatprep.subr.bf16.mxu0 %v6782
    %8200 = vmatpush1.bf16.msra.mxu0 %v6781
    %8201 = vmatprep.subr.bf16.mxu0 %v6786
    %8202 = vmatpush1.bf16.msra.mxu0 %v6785
    %8203 = vmatprep.subr.bf16.mxu0 %v6790
    %8204 = vmatpush1.bf16.msra.mxu0 %v6789
    %8205 = vmatprep.subr.bf16.mxu0 %v6794
    %8206 = vmatpush1.bf16.msra.mxu0 %v6793
    %8207 = vmatprep.subr.bf16.mxu0 %v6798
    %8208 = vmatpush1.bf16.msra.mxu0 %v6797
    %8209 = vmatprep.subr.bf16.mxu0 %v6802
    %8210 = vmatpush1.bf16.msra.mxu0 %v6801
    %8211 = vmatprep.subr.bf16.mxu0 %v6806
    %8212 = vmatpush1.bf16.msra.mxu0 %v6805
    %8213 = vmatprep.subr.bf16.mxu0 %v6810
    %8214 = vmatpush1.bf16.msra.mxu0 %v6809
    %8215 = vmatprep.subr.bf16.mxu0 %v6814
    %8216 = vmatpush1.bf16.msra.mxu0 %v6813
    %8217 = vmatprep.subr.bf16.mxu0 %v6818
    %8218 = vmatpush1.bf16.msra.mxu0 %v6817
    %8219 = vmatprep.subr.bf16.mxu0 %v6822
    %8220 = vmatpush1.bf16.msra.mxu0 %v6821
    %8221 = vmatprep.subr.bf16.mxu0 %v6826
    %8222 = vmatpush1.bf16.msra.mxu0 %v6825
    %8223 = vmatprep.subr.bf16.mxu0 %v6830
    %8224 = vmatpush1.bf16.msra.mxu0 %v6829
    %8225 = vmatprep.mubr.bf16.mxu0 %v5988
    %8226 = vmatmul.mubr.bf16.gmra.mrb[0].mxu0 %v5987
    %v8227 = vpop.f32.mrb[0].mxu0
    %v8228 = vadd.f32 %v8187, %v8227
    %v8229 = vpop.f32.mrb[0].mxu0
    %v8230 = vadd.f32 %v8189, %v8229
    %v8231 = vpop.f32.mrb[0].mxu0
    %v8232 = vpop.f32.mrb[0].mxu0
    %8233 = vdwg.mxu0
    %8234 = vmatprep.subr.bf16.mxu0 %v6834
    %8235 = vmatpush1.bf16.msra.mxu0 %v6833
    %8236 = vmatprep.subr.bf16.mxu0 %v6838
    %8237 = vmatpush1.bf16.msra.mxu0 %v6837
    %8238 = vmatprep.subr.bf16.mxu0 %v6842
    %8239 = vmatpush1.bf16.msra.mxu0 %v6841
    %8240 = vmatprep.subr.bf16.mxu0 %v6846
    %8241 = vmatpush1.bf16.msra.mxu0 %v6845
    %8242 = vmatprep.subr.bf16.mxu0 %v6850
    %8243 = vmatpush1.bf16.msra.mxu0 %v6849
    %8244 = vmatprep.subr.bf16.mxu0 %v6854
    %8245 = vmatpush1.bf16.msra.mxu0 %v6853
    %8246 = vmatprep.subr.bf16.mxu0 %v6858
    %8247 = vmatpush1.bf16.msra.mxu0 %v6857
    %8248 = vmatprep.subr.bf16.mxu0 %v6862
    %8249 = vmatpush1.bf16.msra.mxu0 %v6861
    %8250 = vmatprep.subr.bf16.mxu0 %v6866
    %8251 = vmatpush1.bf16.msra.mxu0 %v6865
    %8252 = vmatprep.subr.bf16.mxu0 %v6870
    %8253 = vmatpush1.bf16.msra.mxu0 %v6869
    %8254 = vmatprep.subr.bf16.mxu0 %v6874
    %8255 = vmatpush1.bf16.msra.mxu0 %v6873
    %8256 = vmatprep.subr.bf16.mxu0 %v6878
    %8257 = vmatpush1.bf16.msra.mxu0 %v6877
    %8258 = vmatprep.subr.bf16.mxu0 %v6882
    %8259 = vmatpush1.bf16.msra.mxu0 %v6881
    %8260 = vmatprep.subr.bf16.mxu0 %v6886
    %8261 = vmatpush1.bf16.msra.mxu0 %v6885
    %8262 = vmatprep.subr.bf16.mxu0 %v6890
    %8263 = vmatpush1.bf16.msra.mxu0 %v6889
    %8264 = vmatprep.subr.bf16.mxu0 %v6894
    %8265 = vmatpush1.bf16.msra.mxu0 %v6893
    %8266 = vmatprep.mubr.bf16.mxu0 %v5990
    %8267 = vmatmul.mubr.bf16.gmra.mrb[0].mxu0 %v5989
    %v8268 = vpop.f32.mrb[0].mxu0
    %v8269 = vadd.f32 %v8228, %v8268
    %v8270 = vpop.f32.mrb[0].mxu0
    %v8271 = vadd.f32 %v8230, %v8270
    %v8272 = vpop.f32.mrb[0].mxu0
    %v8273 = vpop.f32.mrb[0].mxu0
    %8274 = vdwg.mxu0
    %8275 = vmatprep.subr.bf16.mxu0 %v6898
    %8276 = vmatpush1.bf16.msra.mxu0 %v6897
    %8277 = vmatprep.subr.bf16.mxu0 %v6902
    %8278 = vmatpush1.bf16.msra.mxu0 %v6901
    %8279 = vmatprep.subr.bf16.mxu0 %v6906
    %8280 = vmatpush1.bf16.msra.mxu0 %v6905
    %8281 = vmatprep.subr.bf16.mxu0 %v6910
    %8282 = vmatpush1.bf16.msra.mxu0 %v6909
    %8283 = vmatprep.subr.bf16.mxu0 %v6914
    %8284 = vmatpush1.bf16.msra.mxu0 %v6913
    %8285 = vmatprep.subr.bf16.mxu0 %v6918
    %8286 = vmatpush1.bf16.msra.mxu0 %v6917
    %8287 = vmatprep.subr.bf16.mxu0 %v6922
    %8288 = vmatpush1.bf16.msra.mxu0 %v6921
    %8289 = vmatprep.subr.bf16.mxu0 %v6926
    %8290 = vmatpush1.bf16.msra.mxu0 %v6925
    %8291 = vmatprep.subr.bf16.mxu0 %v6930
    %8292 = vmatpush1.bf16.msra.mxu0 %v6929
    %8293 = vmatprep.subr.bf16.mxu0 %v6934
    %8294 = vmatpush1.bf16.msra.mxu0 %v6933
    %8295 = vmatprep.subr.bf16.mxu0 %v6938
    %8296 = vmatpush1.bf16.msra.mxu0 %v6937
    %8297 = vmatprep.subr.bf16.mxu0 %v6942
    %8298 = vmatpush1.bf16.msra.mxu0 %v6941
    %8299 = vmatprep.subr.bf16.mxu0 %v6946
    %8300 = vmatpush1.bf16.msra.mxu0 %v6945
    %8301 = vmatprep.subr.bf16.mxu0 %v6950
    %8302 = vmatpush1.bf16.msra.mxu0 %v6949
    %8303 = vmatprep.subr.bf16.mxu0 %v6954
    %8304 = vmatpush1.bf16.msra.mxu0 %v6953
    %8305 = vmatprep.subr.bf16.mxu0 %v6958
    %8306 = vmatpush1.bf16.msra.mxu0 %v6957
    %8307 = vmatprep.mubr.bf16.mxu0 %v5992
    %8308 = vmatmul.mubr.bf16.gmra.mrb[0].mxu0 %v5991
    %v8309 = vpop.f32.mrb[0].mxu0
    %v8310 = vadd.f32 %v8269, %v8309
    %v8311 = vpop.f32.mrb[0].mxu0
    %v8312 = vadd.f32 %v8271, %v8311
    %v8313 = vpop.f32.mrb[0].mxu0
    %v8314 = vpop.f32.mrb[0].mxu0
    %8315 = vdwg.mxu0
    %8316 = vmatprep.subr.bf16.mxu0 %v6962
    %8317 = vmatpush1.bf16.msra.mxu0 %v6961
    %8318 = vmatprep.subr.bf16.mxu0 %v6966
    %8319 = vmatpush1.bf16.msra.mxu0 %v6965
    %8320 = vmatprep.subr.bf16.mxu0 %v6970
    %8321 = vmatpush1.bf16.msra.mxu0 %v6969
    %8322 = vmatprep.subr.bf16.mxu0 %v6974
    %8323 = vmatpush1.bf16.msra.mxu0 %v6973
    %8324 = vmatprep.subr.bf16.mxu0 %v6978
    %8325 = vmatpush1.bf16.msra.mxu0 %v6977
    %8326 = vmatprep.subr.bf16.mxu0 %v6982
    %8327 = vmatpush1.bf16.msra.mxu0 %v6981
    %8328 = vmatprep.subr.bf16.mxu0 %v6986
    %8329 = vmatpush1.bf16.msra.mxu0 %v6985
    %8330 = vmatprep.subr.bf16.mxu0 %v6990
    %8331 = vmatpush1.bf16.msra.mxu0 %v6989
    %8332 = vmatprep.subr.bf16.mxu0 %v6994
    %8333 = vmatpush1.bf16.msra.mxu0 %v6993
    %8334 = vmatprep.subr.bf16.mxu0 %v6998
    %8335 = vmatpush1.bf16.msra.mxu0 %v6997
    %8336 = vmatprep.subr.bf16.mxu0 %v7002
    %8337 = vmatpush1.bf16.msra.mxu0 %v7001
    %8338 = vmatprep.subr.bf16.mxu0 %v7006
    %8339 = vmatpush1.bf16.msra.mxu0 %v7005
    %8340 = vmatprep.subr.bf16.mxu0 %v7010
    %8341 = vmatpush1.bf16.msra.mxu0 %v7009
    %8342 = vmatprep.subr.bf16.mxu0 %v7014
    %8343 = vmatpush1.bf16.msra.mxu0 %v7013
    %8344 = vmatprep.subr.bf16.mxu0 %v7018
    %8345 = vmatpush1.bf16.msra.mxu0 %v7017
    %8346 = vmatprep.subr.bf16.mxu0 %v7022
    %8347 = vmatpush1.bf16.msra.mxu0 %v7021
    %8348 = vmatprep.mubr.bf16.mxu0 %v5994
    %8349 = vmatmul.mubr.bf16.gmra.mrb[0].mxu0 %v5993
    %v8350 = vpop.f32.mrb[0].mxu0
    %v8351 = vadd.f32 %v8310, %v8350
    %v8352 = vpop.f32.mrb[0].mxu0
    %v8353 = vadd.f32 %v8312, %v8352
    %v8354 = vpop.f32.mrb[0].mxu0
    %v8355 = vpop.f32.mrb[0].mxu0
    %8356 = vdwg.mxu0
    %v8357 = vmax.f32 %v7695, 0.0
    %v8358 = vmax.f32 %v7697, 0.0
    %v8359 = vmax.f32 %v8351, 0.0
    %v8360 = vmax.f32 %v8353, 0.0
    %v8361 = vld [vmem:[%s7] sm:$0xff]
    %v8362 = vld [vmem:[%s7 + $0x8] sm:$0xff]
    %v8363 = vld [vmem:[%s7 + $0x10] sm:$0xff]
    %v8364 = vld [vmem:[%s7 + $0x18] sm:$0xff]
    %v8365 = vld [vmem:[%s7 + $0x20] sm:$0xff]
    %v8366 = vld [vmem:[%s7 + $0x28] sm:$0xff]
    %v8367 = vld [vmem:[%s7 + $0x30] sm:$0xff]
    %v8368 = vld [vmem:[%s7 + $0x38] sm:$0xff]
    %v8369 = vld [vmem:[%s7 + $0x40] sm:$0xff]
    %v8370 = vld [vmem:[%s7 + $0x48] sm:$0xff]
    %v8371 = vld [vmem:[%s7 + $0x50] sm:$0xff]
    %v8372 = vld [vmem:[%s7 + $0x58] sm:$0xff]
    %v8373 = vld [vmem:[%s7 + $0x60] sm:$0xff]
    %v8374 = vld [vmem:[%s7 + $0x68] sm:$0xff]
    %v8375 = vld [vmem:[%s7 + $0x70] sm:$0xff]
    %v8376 = vld [vmem:[%s7 + $0x78] sm:$0xff]
    %v8377 = vld [vmem:[%s7 + $0x80] sm:$0xff]
    %v8378 = vld [vmem:[%s7 + $0x88] sm:$0xff]
    %v8379 = vld [vmem:[%s7 + $0x90] sm:$0xff]
    %v8380 = vld [vmem:[%s7 + $0x98] sm:$0xff]
    %v8381 = vld [vmem:[%s7 + $0xa0] sm:$0xff]
    %v8382 = vld [vmem:[%s7 + $0xa8] sm:$0xff]
    %v8383 = vld [vmem:[%s7 + $0xb0] sm:$0xff]
    %v8384 = vld [vmem:[%s7 + $0xb8] sm:$0xff]
    %v8385 = vld [vmem:[%s7 + $0xc0] sm:$0xff]
    %v8386 = vld [vmem:[%s7 + $0xc8] sm:$0xff]
    %v8387 = vld [vmem:[%s7 + $0xd0] sm:$0xff]
    %v8388 = vld [vmem:[%s7 + $0xd8] sm:$0xff]
    %v8389 = vld [vmem:[%s7 + $0xe0] sm:$0xff]
    %v8390 = vld [vmem:[%s7 + $0xe8] sm:$0xff]
    %v8391 = vld [vmem:[%s7 + $0xf0] sm:$0xff]
    %v8392 = vld [vmem:[%s7 + $0xf8] sm:$0xff]
    %v8393 = vld [vmem:[%s7 + $0x100] sm:$0xff]
    %v8394 = vld [vmem:[%s7 + $0x108] sm:$0xff]
    %v8395 = vld [vmem:[%s7 + $0x110] sm:$0xff]
    %v8396 = vld [vmem:[%s7 + $0x118] sm:$0xff]
    %v8397 = vld [vmem:[%s7 + $0x120] sm:$0xff]
    %v8398 = vld [vmem:[%s7 + $0x128] sm:$0xff]
    %v8399 = vld [vmem:[%s7 + $0x130] sm:$0xff]
    %v8400 = vld [vmem:[%s7 + $0x138] sm:$0xff]
    %v8401 = vld [vmem:[%s7 + $0x140] sm:$0xff]
    %v8402 = vld [vmem:[%s7 + $0x148] sm:$0xff]
    %v8403 = vld [vmem:[%s7 + $0x150] sm:$0xff]
    %v8404 = vld [vmem:[%s7 + $0x158] sm:$0xff]
    %v8405 = vld [vmem:[%s7 + $0x160] sm:$0xff]
    %v8406 = vld [vmem:[%s7 + $0x168] sm:$0xff]
    %v8407 = vld [vmem:[%s7 + $0x170] sm:$0xff]
    %v8408 = vld [vmem:[%s7 + $0x178] sm:$0xff]
    %v8409 = vld [vmem:[%s7 + $0x180] sm:$0xff]
    %v8410 = vld [vmem:[%s7 + $0x188] sm:$0xff]
    %v8411 = vld [vmem:[%s7 + $0x190] sm:$0xff]
    %v8412 = vld [vmem:[%s7 + $0x198] sm:$0xff]
    %v8413 = vld [vmem:[%s7 + $0x1a0] sm:$0xff]
    %v8414 = vld [vmem:[%s7 + $0x1a8] sm:$0xff]
    %v8415 = vld [vmem:[%s7 + $0x1b0] sm:$0xff]
    %v8416 = vld [vmem:[%s7 + $0x1b8] sm:$0xff]
    %v8417 = vld [vmem:[%s7 + $0x1c0] sm:$0xff]
    %v8418 = vld [vmem:[%s7 + $0x1c8] sm:$0xff]
    %v8419 = vld [vmem:[%s7 + $0x1d0] sm:$0xff]
    %v8420 = vld [vmem:[%s7 + $0x1d8] sm:$0xff]
    %v8421 = vld [vmem:[%s7 + $0x1e0] sm:$0xff]
    %v8422 = vld [vmem:[%s7 + $0x1e8] sm:$0xff]
    %v8423 = vld [vmem:[%s7 + $0x1f0] sm:$0xff]
    %v8424 = vld [vmem:[%s7 + $0x1f8] sm:$0xff]
    %v8425 = vld [vmem:[#allocation12] sm:$0x1]
    %v8427 = vlaneseq
    %v8428 = vshrl.u32 %v8427, 7
    %v8429 = vsub.s32 0, %v8428
    %v8430 = vrot.slane %v8425, %v8429
    %8432 = vmatprep.subr.mxu0 0.0
    %8433 = vmatpush1.msra.mxu0 %v8361
    %8434 = vmatprep.subr.mxu0 0.0
    %8435 = vmatpush1.msra.mxu0 %v8362
    %8436 = vmatprep.subr.mxu0 0.0
    %8437 = vmatpush1.msra.mxu0 %v8363
    %8438 = vmatprep.subr.mxu0 0.0
    %8439 = vmatpush1.msra.mxu0 %v8364
    %8440 = vmatprep.subr.mxu0 0.0
    %8441 = vmatpush1.msra.mxu0 %v8365
    %8442 = vmatprep.subr.mxu0 0.0
    %8443 = vmatpush1.msra.mxu0 %v8366
    %8444 = vmatprep.subr.mxu0 0.0
    %8445 = vmatpush1.msra.mxu0 %v8367
    %8446 = vmatprep.subr.mxu0 0.0
    %8447 = vmatpush1.msra.mxu0 %v8368
    %8448 = vmatprep.subr.mxu0 0.0
    %8449 = vmatpush1.msra.mxu0 %v8369
    %8450 = vmatprep.subr.mxu0 0.0
    %8451 = vmatpush1.msra.mxu0 %v8370
    %8452 = vmatprep.subr.mxu0 0.0
    %8453 = vmatpush1.msra.mxu0 %v8371
    %8454 = vmatprep.subr.mxu0 0.0
    %8455 = vmatpush1.msra.mxu0 %v8372
    %8456 = vmatprep.subr.mxu0 0.0
    %8457 = vmatpush1.msra.mxu0 %v8373
    %8458 = vmatprep.subr.mxu0 0.0
    %8459 = vmatpush1.msra.mxu0 %v8374
    %8460 = vmatprep.subr.mxu0 0.0
    %8461 = vmatpush1.msra.mxu0 %v8375
    %8462 = vmatprep.subr.mxu0 0.0
    %8463 = vmatpush1.msra.mxu0 %v8376
    %8464 = vmatprep.subr.mxu0 0.0
    %8465 = vmatpush1.msra.mxu0 %v8377
    %8466 = vmatprep.subr.mxu0 0.0
    %8467 = vmatpush1.msra.mxu0 %v8378
    %8468 = vmatprep.subr.mxu0 0.0
    %8469 = vmatpush1.msra.mxu0 %v8379
    %8470 = vmatprep.subr.mxu0 0.0
    %8471 = vmatpush1.msra.mxu0 %v8380
    %8472 = vmatprep.subr.mxu0 0.0
    %8473 = vmatpush1.msra.mxu0 %v8381
    %8474 = vmatprep.subr.mxu0 0.0
    %8475 = vmatpush1.msra.mxu0 %v8382
    %8476 = vmatprep.subr.mxu0 0.0
    %8477 = vmatpush1.msra.mxu0 %v8383
    %8478 = vmatprep.subr.mxu0 0.0
    %8479 = vmatpush1.msra.mxu0 %v8384
    %8480 = vmatprep.subr.mxu0 0.0
    %8481 = vmatpush1.msra.mxu0 %v8385
    %8482 = vmatprep.subr.mxu0 0.0
    %8483 = vmatpush1.msra.mxu0 %v8386
    %8484 = vmatprep.subr.mxu0 0.0
    %8485 = vmatpush1.msra.mxu0 %v8387
    %8486 = vmatprep.subr.mxu0 0.0
    %8487 = vmatpush1.msra.mxu0 %v8388
    %8488 = vmatprep.subr.mxu0 0.0
    %8489 = vmatpush1.msra.mxu0 %v8389
    %8490 = vmatprep.subr.mxu0 0.0
    %8491 = vmatpush1.msra.mxu0 %v8390
    %8492 = vmatprep.subr.mxu0 0.0
    %8493 = vmatpush1.msra.mxu0 %v8391
    %8494 = vmatprep.subr.mxu0 0.0
    %8495 = vmatpush1.msra.mxu0 %v8392
    %8496 = vmatprep.mubr.f32.mxu0 %v8358
    %8497 = vmatmul.mubr.f32.gmra.mrb[0].mxu0 %v8357
    %v8498 = vpop.f32.mrb[0].mxu0
    %v8499 = vadd.f32 %v8430, %v8498
    %v8500 = vpop.f32.mrb[0].mxu0
    %8501 = vdwg.mxu0
    %8502 = vmatprep.subr.mxu0 0.0
    %8503 = vmatpush1.msra.mxu0 %v8393
    %8504 = vmatprep.subr.mxu0 0.0
    %8505 = vmatpush1.msra.mxu0 %v8394
    %8506 = vmatprep.subr.mxu0 0.0
    %8507 = vmatpush1.msra.mxu0 %v8395
    %8508 = vmatprep.subr.mxu0 0.0
    %8509 = vmatpush1.msra.mxu0 %v8396
    %8510 = vmatprep.subr.mxu0 0.0
    %8511 = vmatpush1.msra.mxu0 %v8397
    %8512 = vmatprep.subr.mxu0 0.0
    %8513 = vmatpush1.msra.mxu0 %v8398
    %8514 = vmatprep.subr.mxu0 0.0
    %8515 = vmatpush1.msra.mxu0 %v8399
    %8516 = vmatprep.subr.mxu0 0.0
    %8517 = vmatpush1.msra.mxu0 %v8400
    %8518 = vmatprep.subr.mxu0 0.0
    %8519 = vmatpush1.msra.mxu0 %v8401
    %8520 = vmatprep.subr.mxu0 0.0
    %8521 = vmatpush1.msra.mxu0 %v8402
    %8522 = vmatprep.subr.mxu0 0.0
    %8523 = vmatpush1.msra.mxu0 %v8403
    %8524 = vmatprep.subr.mxu0 0.0
    %8525 = vmatpush1.msra.mxu0 %v8404
    %8526 = vmatprep.subr.mxu0 0.0
    %8527 = vmatpush1.msra.mxu0 %v8405
    %8528 = vmatprep.subr.mxu0 0.0
    %8529 = vmatpush1.msra.mxu0 %v8406
    %8530 = vmatprep.subr.mxu0 0.0
    %8531 = vmatpush1.msra.mxu0 %v8407
    %8532 = vmatprep.subr.mxu0 0.0
    %8533 = vmatpush1.msra.mxu0 %v8408
    %8534 = vmatprep.subr.mxu0 0.0
    %8535 = vmatpush1.msra.mxu0 %v8409
    %8536 = vmatprep.subr.mxu0 0.0
    %8537 = vmatpush1.msra.mxu0 %v8410
    %8538 = vmatprep.subr.mxu0 0.0
    %8539 = vmatpush1.msra.mxu0 %v8411
    %8540 = vmatprep.subr.mxu0 0.0
    %8541 = vmatpush1.msra.mxu0 %v8412
    %8542 = vmatprep.subr.mxu0 0.0
    %8543 = vmatpush1.msra.mxu0 %v8413
    %8544 = vmatprep.subr.mxu0 0.0
    %8545 = vmatpush1.msra.mxu0 %v8414
    %8546 = vmatprep.subr.mxu0 0.0
    %8547 = vmatpush1.msra.mxu0 %v8415
    %8548 = vmatprep.subr.mxu0 0.0
    %8549 = vmatpush1.msra.mxu0 %v8416
    %8550 = vmatprep.subr.mxu0 0.0
    %8551 = vmatpush1.msra.mxu0 %v8417
    %8552 = vmatprep.subr.mxu0 0.0
    %8553 = vmatpush1.msra.mxu0 %v8418
    %8554 = vmatprep.subr.mxu0 0.0
    %8555 = vmatpush1.msra.mxu0 %v8419
    %8556 = vmatprep.subr.mxu0 0.0
    %8557 = vmatpush1.msra.mxu0 %v8420
    %8558 = vmatprep.subr.mxu0 0.0
    %8559 = vmatpush1.msra.mxu0 %v8421
    %8560 = vmatprep.subr.mxu0 0.0
    %8561 = vmatpush1.msra.mxu0 %v8422
    %8562 = vmatprep.subr.mxu0 0.0
    %8563 = vmatpush1.msra.mxu0 %v8423
    %8564 = vmatprep.subr.mxu0 0.0
    %8565 = vmatpush1.msra.mxu0 %v8424
    %8566 = vmatprep.mubr.f32.mxu0 %v8360
    %8567 = vmatmul.mubr.f32.gmra.mrb[0].mxu0 %v8359
    %v8568 = vpop.f32.mrb[0].mxu0
    %v8569 = vadd.f32 %v8499, %v8568
    %v8570 = vpop.f32.mrb[0].mxu0
    %8571 = vdwg.mxu0
    %vm8572 = vcmask 74752
    %8573 = vst.msk [vmem:[#allocation13] sm:$0x3] %vm8572, %v8569
    // Predicated region
    $region54: #{cifar10_cnn_forward.1} parent=1 // pred_check
      _
    $region55: #{cifar10_cnn_forward.1} parent=1 // pred_check_branch
      %8575 = sbr.rel (0) target = $region57
    $region56: #{cifar10_cnn_forward.1} parent=1 // pred_region
      %s8577 = ssub.s32 32, 32
      %8578 = vsyncadd [#allocation6], %s8577
      %s8580 = sshll.u32 [#allocation13], 4
      %s8581 = int_to_ptr.vmem [resolvable:$true] %s8580
      %8583 = dma.vmem_to_hbm [thread:$0]  %s8581, 32, %s9, [#allocation6]
    $region57: #{cifar10_cnn_forward.1} parent=1 // pred_fallthru
      _
    // Predicated region
    $region58: #{cifar10_cnn_forward.1} parent=1 // pred_check
      _
    $region59: #{cifar10_cnn_forward.1} parent=1 // pred_check_branch
      %8585 = sbr.rel (0) target = $region61
    $region60: #{cifar10_cnn_forward.1} parent=1 // pred_region
      %8586 = dma.done [#allocation6], 32
    $region61: #{cifar10_cnn_forward.1} parent=1 // pred_fallthru
      _
    %8587 = vsyncpa [#allocation5], 1
    %8588 = vsyncpa [#allocation8], 1
    %8589 = vsyncpa [#allocation11], 1
    %8590 = vsyncpa [#allocation6], 1
  %8591 = vsyncmov [#allocation3]
  %s8592 = vpop.sfrf %8591
  %p8593 = scmp.eq.s32.totalorder %s8592, 0
  %p8594 = pneg %p8593
  %8596 = shalt.err (%p8594)

</llo_original>
